<compile_context>
chip_gen: v7x
topology: tpu7x:2x2x1
jax: 0.10.0
libtpu: 0.0.40
codegen_flags: <defaults>
</compile_context>

<pallas_src>
import numpy as np
import jax
import jax.numpy as jnp
from jax import lax
from jax.experimental import pallas as pl
from jax.experimental.pallas import tpu as pltpu

LRELU_SLOPE = 0.1


# ----------------------------------------------------------------------------- #
# Static layer description (mirrors the PyTorch module)
# ----------------------------------------------------------------------------- #
def _f0layer_specs(ch0, ch1, ch2, ch3, ch4, down_rates=(3, 4, 5, 5)):
    """(c_in, c_out, k, stride, padding, pre_lrelu) per conv, grouped by block."""
    r0, r1, r2, r3 = down_rates
    return [
        [(1,   ch4, 3,          1,  1,      False), (ch4, ch4, 3, 1, 1, True)],
        [(ch4, ch4, 2 * r0 - 1, r0, r0 - 1, True),
         (ch4, ch3, 3, 1, 1, False), (ch3, ch3, 3, 1, 1, True)],
        [(ch3, ch3, 2 * r1 - 1, r1, r1 - 1, True),
         (ch3, ch2, 3, 1, 1, False), (ch2, ch2, 3, 1, 1, True)],
        [(ch2, ch2, 2 * r2 - 1, r2, r2 - 1, True),
         (ch2, ch1, 3, 1, 1, False), (ch1, ch1, 3, 1, 1, True)],
        [(ch1, ch1, 2 * r3 + 1, r3, r3,     True),
         (ch1, ch0, 3, 1, 1, False), (ch0, ch0, 3, 1, 1, True)],
    ]


def init_f0layer_params(key, ch0, ch1, ch2, ch3, ch4, down_rates=(3, 4, 5, 5)):
    """Raw params: w (C_out, C_in, K), b (C_out,) per conv.

    weight_norm at init sets g = ||v|| per out-channel, so the effective weight equals the
    raw weight and is folded in directly.  NOTE: loading a *trained* checkpoint requires
    computing w = g * v / ||v|| before calling prepare_f0layer_params.
    """
    params = []
    for block in _f0layer_specs(ch0, ch1, ch2, ch3, ch4, down_rates):
        bp = []
        for (ci, co, k, s, p, pre) in block:
            key, kw, kb = jax.random.split(key, 3)
            w = jax.random.normal(kw, (co, ci, k), jnp.float32) / np.sqrt(ci * k)
            b = jax.random.normal(kb, (co,), jnp.float32) * 0.01
            bp.append(dict(w=w, b=b, stride=s, padding=p, pre_lrelu=pre))
        params.append(bp)
    return params


def prepare_f0layer_params(params):
    """One-time weight prep (review item): stack taps along the contraction axis.

    Stacked weight W_s[co, k*C_in + ci] = w[co, ci, k], zero-padded to a multiple-of-8
    contraction depth.  Bias is reshaped to (C_out, 1).  Done once, not per forward.
    """
    prepped = []
    for block in params:
        pb = []
        for cv in block:
            w = np.asarray(cv['w'], dtype=np.float32)
            co, ci, k = w.shape
            kc = k * ci
            kc_pad = -(-kc // 8) * 8
            ws = np.zeros((co, kc_pad), np.float32)
            ws[:, :kc] = np.transpose(w, (0, 2, 1)).reshape(co, kc)
            pb.append(dict(
                ws=jnp.asarray(ws),
                b2=jnp.asarray(np.asarray(cv['b'], np.float32).reshape(co, 1)),
                c_in=ci, c_out=co, k=k, kc=kc, kc_pad=kc_pad,
                stride=cv['stride'], padding=cv['padding'], pre_lrelu=cv['pre_lrelu']))
        prepped.append(pb)
    return prepped


# ----------------------------------------------------------------------------- #
# Fused kernel
# ----------------------------------------------------------------------------- #
def _build_f0_kernel(convs, block_last_set, n_blocks, use_bf16):
    n_conv = len(convs)

    def kernel(*args):
        x_ref = args[0]
        w_refs = args[1:1 + n_conv]
        b_refs = args[1 + n_conv:1 + 2 * n_conv]
        out_refs = args[1 + 2 * n_conv:1 + 2 * n_conv + n_blocks]
        xpad, stk = args[1 + 2 * n_conv + n_blocks:]

        act = x_ref[...].astype(jnp.float32)          # (1, L0) for the first conv
        blocks_done = 0

        for i, cs in enumerate(convs):                # fully static, unrolled at trace time
            ci, K, S, P = cs['c_in'], cs['k'], cs['s'], cs['p']
            kc, kcp = cs['kc'], cs['kc_pad']
            L_in, L_pad = cs['l_in'], cs['l_pad']
            L_full, L_out = cs['l_full'], cs['l_out']

            # Fused LeakyReLU (precedes the conv in the original Sequential).
            if cs['pre']:
                act = jnp.where(act >= 0.0, act, LRELU_SLOPE * act)

            # Zero-pad into VMEM scratch (lrelu(0) == 0 keeps the pads exact zeros).
            if P > 0:
                xpad[0:ci, 0:P] = jnp.zeros((ci, P), jnp.float32)
                xpad[0:ci, P + L_in:L_pad] = jnp.zeros((ci, L_pad - L_in - P), jnp.float32)
            xpad[0:ci, P:P + L_in] = act

            # In-VMEM tap stacking (im2col along the contraction axis): one big MXU matmul
            # instead of K shallow ones.  Each tap is a static unit-stride lane slice.
            for k in range(K):
                stk[k * ci:(k + 1) * ci, 0:L_full] = xpad[0:ci, k:k + L_full]
            if kcp > kc:
                stk[kc:kcp, 0:L_full] = jnp.zeros((kcp - kc, L_full), jnp.float32)

            lhs = w_refs[i][...]                      # (C_out, kc_pad)
            rhs = stk[0:kcp, 0:L_full]                # (kc_pad, L_full)
            if use_bf16:                              # v6e/v7x MXU-throughput lever
                lhs = lhs.astype(jnp.bfloat16)
                rhs = rhs.astype(jnp.bfloat16)
            y = jnp.dot(lhs, rhs, preferred_element_type=jnp.float32)   # (C_out, L_full)

            if S > 1:
                # Strided conv: full stride-1 conv above, then exact 0/1 selection matmul
                # on the MXU (no lane-strided loads).  Selection is exact in f32.
                rows = lax.broadcasted_iota(jnp.int32, (L_full, L_out), 0)
                cols = lax.broadcasted_iota(jnp.int32, (L_full, L_out), 1)
                sel = (rows == cols * S).astype(jnp.float32)
                y = jnp.dot(y, sel, preferred_element_type=jnp.float32)  # (C_out, L_out)

            act = y + b_refs[i][...]

            if i in block_last_set:
                # Block outputs are returned deepest-first (res[::-1] in the PyTorch module);
                # blocks finish shallow-first, so write back-to-front.
                o_ref = out_refs[n_blocks - 1 - blocks_done]
                o_ref[...] = act.astype(o_ref.dtype)
                blocks_done += 1

    return kernel


def f0_layer_forward(sines, prepped, *, use_bf16_mxu=False):
    """Pallas equivalent of F0Layer.forward: one fused kernel, 5 block outputs, deepest first."""
    x = sines.astype(jnp.float32)
    bsz, c_in0, L = x.shape
    assert c_in0 == 1, "F0Layer expects a single input channel"

    # Build the static per-conv schedule (lengths, pads) for this sequence length.
    convs, flat_w, flat_b, block_last = [], [], [], []
    L_cur, idx = L, 0
    for block in prepped:
        for cv in block:
            K, S, P = cv['k'], cv['stride'], cv['padding']
            L_pad = L_cur + 2 * P
            L_full = L_pad - K + 1
            L_out = (L_cur + 2 * P - K) // S + 1
            assert L_out >= 1, "sequence too short for this down-rate stack"
            convs.append(dict(c_in=cv['c_in'], c_out=cv['c_out'], k=K, s=S, p=P,
                              pre=cv['pre_lrelu'], kc=cv['kc'], kc_pad=cv['kc_pad'],
                              l_in=L_cur, l_pad=L_pad, l_full=L_full, l_out=L_out))
            flat_w.append(cv['ws'])
            flat_b.append(cv['b2'])
            L_cur = L_out
            idx += 1
        block_last.append(idx - 1)

    n_blocks = len(prepped)
    block_out = [(convs[j]['c_out'], convs[j]['l_out']) for j in block_last]   # shallow->deep
    out_cl = block_out[::-1]                                                    # deepest first

    pad_rows = max(c['c_in'] for c in convs)
    pad_cols = max(c['l_pad'] for c in convs)
    stk_rows = max(c['kc_pad'] for c in convs)
    stk_cols = max(c['l_full'] for c in convs)

    kernel = _build_f0_kernel(convs, set(block_last), n_blocks, use_bf16_mxu)

    # Note: block outputs keep their natural (C, L_out) shapes. With a single fused launch the
    # total store volume is ~30 KB, so lane-padding + wrapper-side crops would cost more HLOs
    # than the masked stores they remove.
    out_shape = tuple(jax.ShapeDtypeStruct((bsz, c, l), jnp.float32) for (c, l) in out_cl)
    in_specs = [pl.BlockSpec((None, 1, L), lambda i: (i, 0, 0))]
    in_specs += [pl.BlockSpec(w.shape, lambda i: (0, 0)) for w in flat_w]   # VMEM-resident
    in_specs += [pl.BlockSpec(b.shape, lambda i: (0, 0)) for b in flat_b]
    out_specs = tuple(pl.BlockSpec((None, c, l), lambda i: (i, 0, 0)) for (c, l) in out_cl)

    outs = pl.pallas_call(
        kernel,
        out_shape=out_shape,
        grid=(bsz,),
        in_specs=in_specs,
        out_specs=out_specs,
        scratch_shapes=[pltpu.VMEM((pad_rows, pad_cols), jnp.float32),   # padded activation
                        pltpu.VMEM((stk_rows, stk_cols), jnp.float32)],  # tap-stacked im2col
        compiler_params=pltpu.CompilerParams(dimension_semantics=("parallel",)),
    )(x, *flat_w, *flat_b)
    return list(outs)


# ----------------------------------------------------------------------------- #
# Pure-XLA reference (lax conv), same params / same fusion semantics
# ----------------------------------------------------------------------------- #
def _reference_forward(sines, params):
    def lrelu(v):
        return jnp.where(v >= 0, v, LRELU_SLOPE * v)
    res = []
    x = sines.astype(jnp.float32)
    for block in params:
        for cv in block:
            xin = lrelu(x) if cv['pre_lrelu'] else x
            x = lax.conv_general_dilated(
                xin, cv['w'], window_strides=(cv['stride'],),
                padding=[(cv['padding'], cv['padding'])],
                dimension_numbers=('NCH', 'OIH', 'NCH'))
            x = x + cv['b'][None, :, None]
        res.append(x)
    return res[::-1]


if __name__ == "__main__":
    key = jax.random.PRNGKey(0)
    kp, kx = jax.random.split(key)

    B, L = 2, 600                          # down_rates product = 300, so L=600 -> deepest L=2
    CH0, CH1, CH2, CH3, CH4 = 32, 16, 16, 8, 8
    DOWN_RATES = (3, 4, 5, 5)

    params = init_f0layer_params(kp, CH0, CH1, CH2, CH3, CH4, DOWN_RATES)
    prepped = prepare_f0layer_params(params)
    sines = jax.random.normal(kx, (B, 1, L), dtype=jnp.float32) * 0.1

    outs = f0_layer_forward(sines, prepped)
    outs = jax.block_until_ready(outs)

    expected_shapes = [(B, CH0, 2), (B, CH1, 10), (B, CH2, 50),
                       (B, CH3, 200), (B, CH4, 600)]
    for o, s in zip(outs, expected_shapes):
        assert o.shape == s, (o.shape, s)

    refs = _reference_forward(sines, params)
    for o, r in zip(outs, refs):
        err = float(jnp.max(jnp.abs(o - r)))
        assert err < 1e-3, f"mismatch vs reference: {err}"

    print("KERNEL_OK")
</pallas_src>

<mosaic_0001>
module attributes {stable_mosaic.version = 11 : i64} {
  func.func @kernel(%arg0: i32, %arg1: memref<1x1x600xf32, #tpu.memory_space<vmem>>, %arg2: memref<8x8xf32, #tpu.memory_space<vmem>>, %arg3: memref<8x24xf32, #tpu.memory_space<vmem>>, %arg4: memref<8x40xf32, #tpu.memory_space<vmem>>, %arg5: memref<8x24xf32, #tpu.memory_space<vmem>>, %arg6: memref<8x24xf32, #tpu.memory_space<vmem>>, %arg7: memref<8x56xf32, #tpu.memory_space<vmem>>, %arg8: memref<16x24xf32, #tpu.memory_space<vmem>>, %arg9: memref<16x48xf32, #tpu.memory_space<vmem>>, %arg10: memref<16x144xf32, #tpu.memory_space<vmem>>, %arg11: memref<16x48xf32, #tpu.memory_space<vmem>>, %arg12: memref<16x48xf32, #tpu.memory_space<vmem>>, %arg13: memref<16x176xf32, #tpu.memory_space<vmem>>, %arg14: memref<32x48xf32, #tpu.memory_space<vmem>>, %arg15: memref<32x96xf32, #tpu.memory_space<vmem>>, %arg16: memref<8x1xf32, #tpu.memory_space<vmem>>, %arg17: memref<8x1xf32, #tpu.memory_space<vmem>>, %arg18: memref<8x1xf32, #tpu.memory_space<vmem>>, %arg19: memref<8x1xf32, #tpu.memory_space<vmem>>, %arg20: memref<8x1xf32, #tpu.memory_space<vmem>>, %arg21: memref<8x1xf32, #tpu.memory_space<vmem>>, %arg22: memref<16x1xf32, #tpu.memory_space<vmem>>, %arg23: memref<16x1xf32, #tpu.memory_space<vmem>>, %arg24: memref<16x1xf32, #tpu.memory_space<vmem>>, %arg25: memref<16x1xf32, #tpu.memory_space<vmem>>, %arg26: memref<16x1xf32, #tpu.memory_space<vmem>>, %arg27: memref<16x1xf32, #tpu.memory_space<vmem>>, %arg28: memref<32x1xf32, #tpu.memory_space<vmem>>, %arg29: memref<32x1xf32, #tpu.memory_space<vmem>>, %arg30: memref<1x32x2xf32, #tpu.memory_space<vmem>>, %arg31: memref<1x16x10xf32, #tpu.memory_space<vmem>>, %arg32: memref<1x16x50xf32, #tpu.memory_space<vmem>>, %arg33: memref<1x8x200xf32, #tpu.memory_space<vmem>>, %arg34: memref<1x8x600xf32, #tpu.memory_space<vmem>>, %arg35: memref<32x604xf32, #tpu.memory_space<vmem>>, %arg36: memref<176x600xf32, #tpu.memory_space<vmem>>) attributes {dimension_semantics = [#tpu.dimension_semantics<parallel>], iteration_bounds = array<i64: 2>, scalar_prefetch = 0 : i64, scratch_operands = 2 : i64, tpu.core_type = #tpu.core_type<tc>, window_params = [{transform_indices = @transform_0, window_bounds = array<i64: 1, 1, 600>}, {pipeline_mode = #tpu.pipeline_mode<synchronous>, transform_indices = @transform_1, window_bounds = array<i64: 8, 8>}, {pipeline_mode = #tpu.pipeline_mode<synchronous>, transform_indices = @transform_2, window_bounds = array<i64: 8, 24>}, {pipeline_mode = #tpu.pipeline_mode<synchronous>, transform_indices = @transform_3, window_bounds = array<i64: 8, 40>}, {pipeline_mode = #tpu.pipeline_mode<synchronous>, transform_indices = @transform_4, window_bounds = array<i64: 8, 24>}, {pipeline_mode = #tpu.pipeline_mode<synchronous>, transform_indices = @transform_5, window_bounds = array<i64: 8, 24>}, {pipeline_mode = #tpu.pipeline_mode<synchronous>, transform_indices = @transform_6, window_bounds = array<i64: 8, 56>}, {pipeline_mode = #tpu.pipeline_mode<synchronous>, transform_indices = @transform_7, window_bounds = array<i64: 16, 24>}, {pipeline_mode = #tpu.pipeline_mode<synchronous>, transform_indices = @transform_8, window_bounds = array<i64: 16, 48>}, {pipeline_mode = #tpu.pipeline_mode<synchronous>, transform_indices = @transform_9, window_bounds = array<i64: 16, 144>}, {pipeline_mode = #tpu.pipeline_mode<synchronous>, transform_indices = @transform_10, window_bounds = array<i64: 16, 48>}, {pipeline_mode = #tpu.pipeline_mode<synchronous>, transform_indices = @transform_11, window_bounds = array<i64: 16, 48>}, {pipeline_mode = #tpu.pipeline_mode<synchronous>, transform_indices = @transform_12, window_bounds = array<i64: 16, 176>}, {pipeline_mode = #tpu.pipeline_mode<synchronous>, transform_indices = @transform_13, window_bounds = array<i64: 32, 48>}, {pipeline_mode = #tpu.pipeline_mode<synchronous>, transform_indices = @transform_14, window_bounds = array<i64: 32, 96>}, {pipeline_mode = #tpu.pipeline_mode<synchronous>, transform_indices = @transform_15, window_bounds = array<i64: 8, 1>}, {pipeline_mode = #tpu.pipeline_mode<synchronous>, transform_indices = @transform_16, window_bounds = array<i64: 8, 1>}, {pipeline_mode = #tpu.pipeline_mode<synchronous>, transform_indices = @transform_17, window_bounds = array<i64: 8, 1>}, {pipeline_mode = #tpu.pipeline_mode<synchronous>, transform_indices = @transform_18, window_bounds = array<i64: 8, 1>}, {pipeline_mode = #tpu.pipeline_mode<synchronous>, transform_indices = @transform_19, window_bounds = array<i64: 8, 1>}, {pipeline_mode = #tpu.pipeline_mode<synchronous>, transform_indices = @transform_20, window_bounds = array<i64: 8, 1>}, {pipeline_mode = #tpu.pipeline_mode<synchronous>, transform_indices = @transform_21, window_bounds = array<i64: 16, 1>}, {pipeline_mode = #tpu.pipeline_mode<synchronous>, transform_indices = @transform_22, window_bounds = array<i64: 16, 1>}, {pipeline_mode = #tpu.pipeline_mode<synchronous>, transform_indices = @transform_23, window_bounds = array<i64: 16, 1>}, {pipeline_mode = #tpu.pipeline_mode<synchronous>, transform_indices = @transform_24, window_bounds = array<i64: 16, 1>}, {pipeline_mode = #tpu.pipeline_mode<synchronous>, transform_indices = @transform_25, window_bounds = array<i64: 16, 1>}, {pipeline_mode = #tpu.pipeline_mode<synchronous>, transform_indices = @transform_26, window_bounds = array<i64: 16, 1>}, {pipeline_mode = #tpu.pipeline_mode<synchronous>, transform_indices = @transform_27, window_bounds = array<i64: 32, 1>}, {pipeline_mode = #tpu.pipeline_mode<synchronous>, transform_indices = @transform_28, window_bounds = array<i64: 32, 1>}, {transform_indices = @transform_29, window_bounds = array<i64: 1, 32, 2>}, {transform_indices = @transform_30, window_bounds = array<i64: 1, 16, 10>}, {transform_indices = @transform_31, window_bounds = array<i64: 1, 16, 50>}, {transform_indices = @transform_32, window_bounds = array<i64: 1, 8, 200>}, {transform_indices = @transform_33, window_bounds = array<i64: 1, 8, 600>}]} {
    %c0 = arith.constant 0 : index
    %c0_0 = arith.constant 0 : index
    %c0_1 = arith.constant 0 : index
    %0 = vector.load %arg1[%c0, %c0_0, %c0_1] : memref<1x1x600xf32, #tpu.memory_space<vmem>>, vector<1x1x600xf32>
    %1 = vector.shape_cast %0 : vector<1x1x600xf32> to vector<1x600xf32>
    %cst = arith.constant 0.000000e+00 : f32
    %2 = vector.broadcast %cst : f32 to vector<1x1xf32>
    %c0_2 = arith.constant 0 : index
    %c0_3 = arith.constant 0 : index
    %3 = vector.load %arg35[%c0_2, %c0_3] : memref<32x604xf32, #tpu.memory_space<vmem>>, vector<1x1xf32>
    tpu.vector_store %arg35[%c0_2, %c0_3], %2 {strides = array<i32>} : memref<32x604xf32, #tpu.memory_space<vmem>>, vector<1x1xf32>,
    %cst_4 = arith.constant 0.000000e+00 : f32
    %4 = vector.broadcast %cst_4 : f32 to vector<1x1xf32>
    %c0_5 = arith.constant 0 : index
    %c601 = arith.constant 601 : index
    %5 = vector.load %arg35[%c0_5, %c601] : memref<32x604xf32, #tpu.memory_space<vmem>>, vector<1x1xf32>
    tpu.vector_store %arg35[%c0_5, %c601], %4 {strides = array<i32>} : memref<32x604xf32, #tpu.memory_space<vmem>>, vector<1x1xf32>,
    %c0_6 = arith.constant 0 : index
    %c1 = arith.constant 1 : index
    %6 = vector.load %arg35[%c0_6, %c1] : memref<32x604xf32, #tpu.memory_space<vmem>>, vector<1x600xf32>
    tpu.vector_store %arg35[%c0_6, %c1], %1 {strides = array<i32>} : memref<32x604xf32, #tpu.memory_space<vmem>>, vector<1x600xf32>,
    %c0_7 = arith.constant 0 : index
    %c0_8 = arith.constant 0 : index
    %7 = vector.load %arg35[%c0_7, %c0_8] : memref<32x604xf32, #tpu.memory_space<vmem>>, vector<1x600xf32>
    %c0_9 = arith.constant 0 : index
    %c0_10 = arith.constant 0 : index
    %8 = vector.load %arg36[%c0_9, %c0_10] : memref<176x600xf32, #tpu.memory_space<vmem>>, vector<1x600xf32>
    tpu.vector_store %arg36[%c0_9, %c0_10], %7 {strides = array<i32>} : memref<176x600xf32, #tpu.memory_space<vmem>>, vector<1x600xf32>,
    %c0_11 = arith.constant 0 : index
    %c1_12 = arith.constant 1 : index
    %9 = vector.load %arg35[%c0_11, %c1_12] : memref<32x604xf32, #tpu.memory_space<vmem>>, vector<1x600xf32>
    %c1_13 = arith.constant 1 : index
    %c0_14 = arith.constant 0 : index
    %10 = vector.load %arg36[%c1_13, %c0_14] : memref<176x600xf32, #tpu.memory_space<vmem>>, vector<1x600xf32>
    tpu.vector_store %arg36[%c1_13, %c0_14], %9 {strides = array<i32>} : memref<176x600xf32, #tpu.memory_space<vmem>>, vector<1x600xf32>,
    %c0_15 = arith.constant 0 : index
    %c2 = arith.constant 2 : index
    %11 = vector.load %arg35[%c0_15, %c2] : memref<32x604xf32, #tpu.memory_space<vmem>>, vector<1x600xf32>
    %c2_16 = arith.constant 2 : index
    %c0_17 = arith.constant 0 : index
    %12 = vector.load %arg36[%c2_16, %c0_17] : memref<176x600xf32, #tpu.memory_space<vmem>>, vector<1x600xf32>
    tpu.vector_store %arg36[%c2_16, %c0_17], %11 {strides = array<i32>} : memref<176x600xf32, #tpu.memory_space<vmem>>, vector<1x600xf32>,
    %cst_18 = arith.constant 0.000000e+00 : f32
    %13 = vector.broadcast %cst_18 : f32 to vector<5x600xf32>
    %c3 = arith.constant 3 : index
    %c0_19 = arith.constant 0 : index
    %14 = vector.load %arg36[%c3, %c0_19] : memref<176x600xf32, #tpu.memory_space<vmem>>, vector<5x600xf32>
    tpu.vector_store %arg36[%c3, %c0_19], %13 {strides = array<i32>} : memref<176x600xf32, #tpu.memory_space<vmem>>, vector<5x600xf32>,
    %c0_20 = arith.constant 0 : index
    %c0_21 = arith.constant 0 : index
    %15 = vector.load %arg2[%c0_20, %c0_21] : memref<8x8xf32, #tpu.memory_space<vmem>>, vector<8x8xf32>
    %c0_22 = arith.constant 0 : index
    %c0_23 = arith.constant 0 : index
    %16 = vector.load %arg36[%c0_22, %c0_23] : memref<176x600xf32, #tpu.memory_space<vmem>>, vector<8x600xf32>
    %cst_24 = arith.constant dense<0.000000e+00> : vector<8x600xf32>
    %17 = tpu.matmul %15, %16, %cst_24 {dimension_numbers = #tpu.dot_dimension_numbers<[1], [0], [0], [1], [0, 0, 1, 1], [], []>} : vector<8x8xf32>, vector<8x600xf32>, vector<8x600xf32> -> vector<8x600xf32>
    %c0_25 = arith.constant 0 : index
    %c0_26 = arith.constant 0 : index
    %18 = vector.load %arg16[%c0_25, %c0_26] : memref<8x1xf32, #tpu.memory_space<vmem>>, vector<8x1xf32>
    %19 = vector.broadcast %18 : vector<8x1xf32> to vector<8x600xf32>
    %20 = arith.addf %17, %19 : vector<8x600xf32>
    %cst_27 = arith.constant 0.000000e+00 : f32
    %21 = vector.broadcast %cst_27 : f32 to vector<8x600xf32>
    %22 = arith.cmpf oge, %20, %21 : vector<8x600xf32>
    %cst_28 = arith.constant 1.000000e-01 : f32
    %23 = vector.broadcast %cst_28 : f32 to vector<8x600xf32>
    %24 = arith.mulf %23, %20 : vector<8x600xf32>
    %25 = arith.select %22, %20, %24 : vector<8x600xi1>, vector<8x600xf32>
    %cst_29 = arith.constant 0.000000e+00 : f32
    %26 = vector.broadcast %cst_29 : f32 to vector<8x1xf32>
    %c0_30 = arith.constant 0 : index
    %c0_31 = arith.constant 0 : index
    %27 = vector.load %arg35[%c0_30, %c0_31] : memref<32x604xf32, #tpu.memory_space<vmem>>, vector<8x1xf32>
    tpu.vector_store %arg35[%c0_30, %c0_31], %26 {strides = array<i32>} : memref<32x604xf32, #tpu.memory_space<vmem>>, vector<8x1xf32>,
    %cst_32 = arith.constant 0.000000e+00 : f32
    %28 = vector.broadcast %cst_32 : f32 to vector<8x1xf32>
    %c0_33 = arith.constant 0 : index
    %c601_34 = arith.constant 601 : index
    %29 = vector.load %arg35[%c0_33, %c601_34] : memref<32x604xf32, #tpu.memory_space<vmem>>, vector<8x1xf32>
    tpu.vector_store %arg35[%c0_33, %c601_34], %28 {strides = array<i32>} : memref<32x604xf32, #tpu.memory_space<vmem>>, vector<8x1xf32>,
    %c0_35 = arith.constant 0 : index
    %c1_36 = arith.constant 1 : index
    %30 = vector.load %arg35[%c0_35, %c1_36] : memref<32x604xf32, #tpu.memory_space<vmem>>, vector<8x600xf32>
    tpu.vector_store %arg35[%c0_35, %c1_36], %25 {strides = array<i32>} : memref<32x604xf32, #tpu.memory_space<vmem>>, vector<8x600xf32>,
    %c0_37 = arith.constant 0 : index
    %c0_38 = arith.constant 0 : index
    %31 = vector.load %arg35[%c0_37, %c0_38] : memref<32x604xf32, #tpu.memory_space<vmem>>, vector<8x600xf32>
    %c0_39 = arith.constant 0 : index
    %c0_40 = arith.constant 0 : index
    %32 = vector.load %arg36[%c0_39, %c0_40] : memref<176x600xf32, #tpu.memory_space<vmem>>, vector<8x600xf32>
    tpu.vector_store %arg36[%c0_39, %c0_40], %31 {strides = array<i32>} : memref<176x600xf32, #tpu.memory_space<vmem>>, vector<8x600xf32>,
    %c0_41 = arith.constant 0 : index
    %c1_42 = arith.constant 1 : index
    %33 = vector.load %arg35[%c0_41, %c1_42] : memref<32x604xf32, #tpu.memory_space<vmem>>, vector<8x600xf32>
    %c8 = arith.constant 8 : index
    %c0_43 = arith.constant 0 : index
    %34 = vector.load %arg36[%c8, %c0_43] : memref<176x600xf32, #tpu.memory_space<vmem>>, vector<8x600xf32>
    tpu.vector_store %arg36[%c8, %c0_43], %33 {strides = array<i32>} : memref<176x600xf32, #tpu.memory_space<vmem>>, vector<8x600xf32>,
    %c0_44 = arith.constant 0 : index
    %c2_45 = arith.constant 2 : index
    %35 = vector.load %arg35[%c0_44, %c2_45] : memref<32x604xf32, #tpu.memory_space<vmem>>, vector<8x600xf32>
    %c16 = arith.constant 16 : index
    %c0_46 = arith.constant 0 : index
    %36 = vector.load %arg36[%c16, %c0_46] : memref<176x600xf32, #tpu.memory_space<vmem>>, vector<8x600xf32>
    tpu.vector_store %arg36[%c16, %c0_46], %35 {strides = array<i32>} : memref<176x600xf32, #tpu.memory_space<vmem>>, vector<8x600xf32>,
    %c0_47 = arith.constant 0 : index
    %c0_48 = arith.constant 0 : index
    %37 = vector.load %arg3[%c0_47, %c0_48] : memref<8x24xf32, #tpu.memory_space<vmem>>, vector<8x24xf32>
    %c0_49 = arith.constant 0 : index
    %c0_50 = arith.constant 0 : index
    %38 = vector.load %arg36[%c0_49, %c0_50] : memref<176x600xf32, #tpu.memory_space<vmem>>, vector<24x600xf32>
    %cst_51 = arith.constant dense<0.000000e+00> : vector<8x600xf32>
    %39 = tpu.matmul %37, %38, %cst_51 {dimension_numbers = #tpu.dot_dimension_numbers<[1], [0], [0], [1], [0, 0, 1, 1], [], []>} : vector<8x24xf32>, vector<24x600xf32>, vector<8x600xf32> -> vector<8x600xf32>
    %c0_52 = arith.constant 0 : index
    %c0_53 = arith.constant 0 : index
    %40 = vector.load %arg17[%c0_52, %c0_53] : memref<8x1xf32, #tpu.memory_space<vmem>>, vector<8x1xf32>
    %41 = vector.broadcast %40 : vector<8x1xf32> to vector<8x600xf32>
    %42 = arith.addf %39, %41 : vector<8x600xf32>
    %c0_54 = arith.constant 0 : index
    %c0_55 = arith.constant 0 : index
    %c0_56 = arith.constant 0 : index
    %43 = vector.load %arg34[%c0_54, %c0_55, %c0_56] : memref<1x8x600xf32, #tpu.memory_space<vmem>>, vector<1x8x600xf32>
    %44 = vector.shape_cast %43 : vector<1x8x600xf32> to vector<8x600xf32>
    %45 = vector.shape_cast %42 : vector<8x600xf32> to vector<1x8x600xf32>
    tpu.vector_store %arg34[%c0_54, %c0_55, %c0_56], %45 {strides = array<i32>} : memref<1x8x600xf32, #tpu.memory_space<vmem>>, vector<1x8x600xf32>,
    %cst_57 = arith.constant 0.000000e+00 : f32
    %46 = vector.broadcast %cst_57 : f32 to vector<8x600xf32>
    %47 = arith.cmpf oge, %42, %46 : vector<8x600xf32>
    %cst_58 = arith.constant 1.000000e-01 : f32
    %48 = vector.broadcast %cst_58 : f32 to vector<8x600xf32>
    %49 = arith.mulf %48, %42 : vector<8x600xf32>
    %50 = arith.select %47, %42, %49 : vector<8x600xi1>, vector<8x600xf32>
    %cst_59 = arith.constant 0.000000e+00 : f32
    %51 = vector.broadcast %cst_59 : f32 to vector<8x2xf32>
    %c0_60 = arith.constant 0 : index
    %c0_61 = arith.constant 0 : index
    %52 = vector.load %arg35[%c0_60, %c0_61] : memref<32x604xf32, #tpu.memory_space<vmem>>, vector<8x2xf32>
    tpu.vector_store %arg35[%c0_60, %c0_61], %51 {strides = array<i32>} : memref<32x604xf32, #tpu.memory_space<vmem>>, vector<8x2xf32>,
    %cst_62 = arith.constant 0.000000e+00 : f32
    %53 = vector.broadcast %cst_62 : f32 to vector<8x2xf32>
    %c0_63 = arith.constant 0 : index
    %c602 = arith.constant 602 : index
    %54 = vector.load %arg35[%c0_63, %c602] : memref<32x604xf32, #tpu.memory_space<vmem>>, vector<8x2xf32>
    tpu.vector_store %arg35[%c0_63, %c602], %53 {strides = array<i32>} : memref<32x604xf32, #tpu.memory_space<vmem>>, vector<8x2xf32>,
    %c0_64 = arith.constant 0 : index
    %c2_65 = arith.constant 2 : index
    %55 = vector.load %arg35[%c0_64, %c2_65] : memref<32x604xf32, #tpu.memory_space<vmem>>, vector<8x600xf32>
    tpu.vector_store %arg35[%c0_64, %c2_65], %50 {strides = array<i32>} : memref<32x604xf32, #tpu.memory_space<vmem>>, vector<8x600xf32>,
    %c0_66 = arith.constant 0 : index
    %c0_67 = arith.constant 0 : index
    %56 = vector.load %arg35[%c0_66, %c0_67] : memref<32x604xf32, #tpu.memory_space<vmem>>, vector<8x600xf32>
    %c0_68 = arith.constant 0 : index
    %c0_69 = arith.constant 0 : index
    %57 = vector.load %arg36[%c0_68, %c0_69] : memref<176x600xf32, #tpu.memory_space<vmem>>, vector<8x600xf32>
    tpu.vector_store %arg36[%c0_68, %c0_69], %56 {strides = array<i32>} : memref<176x600xf32, #tpu.memory_space<vmem>>, vector<8x600xf32>,
    %c0_70 = arith.constant 0 : index
    %c1_71 = arith.constant 1 : index
    %58 = vector.load %arg35[%c0_70, %c1_71] : memref<32x604xf32, #tpu.memory_space<vmem>>, vector<8x600xf32>
    %c8_72 = arith.constant 8 : index
    %c0_73 = arith.constant 0 : index
    %59 = vector.load %arg36[%c8_72, %c0_73] : memref<176x600xf32, #tpu.memory_space<vmem>>, vector<8x600xf32>
    tpu.vector_store %arg36[%c8_72, %c0_73], %58 {strides = array<i32>} : memref<176x600xf32, #tpu.memory_space<vmem>>, vector<8x600xf32>,
    %c0_74 = arith.constant 0 : index
    %c2_75 = arith.constant 2 : index
    %60 = vector.load %arg35[%c0_74, %c2_75] : memref<32x604xf32, #tpu.memory_space<vmem>>, vector<8x600xf32>
    %c16_76 = arith.constant 16 : index
    %c0_77 = arith.constant 0 : index
    %61 = vector.load %arg36[%c16_76, %c0_77] : memref<176x600xf32, #tpu.memory_space<vmem>>, vector<8x600xf32>
    tpu.vector_store %arg36[%c16_76, %c0_77], %60 {strides = array<i32>} : memref<176x600xf32, #tpu.memory_space<vmem>>, vector<8x600xf32>,
    %c0_78 = arith.constant 0 : index
    %c3_79 = arith.constant 3 : index
    %62 = vector.load %arg35[%c0_78, %c3_79] : memref<32x604xf32, #tpu.memory_space<vmem>>, vector<8x600xf32>
    %c24 = arith.constant 24 : index
    %c0_80 = arith.constant 0 : index
    %63 = vector.load %arg36[%c24, %c0_80] : memref<176x600xf32, #tpu.memory_space<vmem>>, vector<8x600xf32>
    tpu.vector_store %arg36[%c24, %c0_80], %62 {strides = array<i32>} : memref<176x600xf32, #tpu.memory_space<vmem>>, vector<8x600xf32>,
    %c0_81 = arith.constant 0 : index
    %c4 = arith.constant 4 : index
    %64 = vector.load %arg35[%c0_81, %c4] : memref<32x604xf32, #tpu.memory_space<vmem>>, vector<8x600xf32>
    %c32 = arith.constant 32 : index
    %c0_82 = arith.constant 0 : index
    %65 = vector.load %arg36[%c32, %c0_82] : memref<176x600xf32, #tpu.memory_space<vmem>>, vector<8x600xf32>
    tpu.vector_store %arg36[%c32, %c0_82], %64 {strides = array<i32>} : memref<176x600xf32, #tpu.memory_space<vmem>>, vector<8x600xf32>,
    %c0_83 = arith.constant 0 : index
    %c0_84 = arith.constant 0 : index
    %66 = vector.load %arg4[%c0_83, %c0_84] : memref<8x40xf32, #tpu.memory_space<vmem>>, vector<8x40xf32>
    %c0_85 = arith.constant 0 : index
    %c0_86 = arith.constant 0 : index
    %67 = vector.load %arg36[%c0_85, %c0_86] : memref<176x600xf32, #tpu.memory_space<vmem>>, vector<40x600xf32>
    %cst_87 = arith.constant dense<0.000000e+00> : vector<8x600xf32>
    %68 = tpu.matmul %66, %67, %cst_87 {dimension_numbers = #tpu.dot_dimension_numbers<[1], [0], [0], [1], [0, 0, 1, 1], [], []>} : vector<8x40xf32>, vector<40x600xf32>, vector<8x600xf32> -> vector<8x600xf32>
    %69 = tpu.iota {dimensions = array<i32: 0>} : vector<600x200xi32>
    %70 = tpu.iota {dimensions = array<i32: 1>} : vector<600x200xi32>
    %c3_i32 = arith.constant 3 : i32
    %71 = vector.broadcast %c3_i32 : i32 to vector<600x200xi32>
    %72 = arith.muli %70, %71 : vector<600x200xi32>
    %73 = arith.cmpi eq, %69, %72 : vector<600x200xi32>
    %74 = arith.extui %73 : vector<600x200xi1> to vector<600x200xi32>
    %75 = arith.sitofp %74 : vector<600x200xi32> to vector<600x200xf32>
    %cst_88 = arith.constant dense<0.000000e+00> : vector<8x200xf32>
    %76 = tpu.matmul %68, %75, %cst_88 {dimension_numbers = #tpu.dot_dimension_numbers<[1], [0], [0], [1], [0, 0, 1, 1], [], []>} : vector<8x600xf32>, vector<600x200xf32>, vector<8x200xf32> -> vector<8x200xf32>
    %c0_89 = arith.constant 0 : index
    %c0_90 = arith.constant 0 : index
    %77 = vector.load %arg18[%c0_89, %c0_90] : memref<8x1xf32, #tpu.memory_space<vmem>>, vector<8x1xf32>
    %78 = vector.broadcast %77 : vector<8x1xf32> to vector<8x200xf32>
    %79 = arith.addf %76, %78 : vector<8x200xf32>
    %cst_91 = arith.constant 0.000000e+00 : f32
    %80 = vector.broadcast %cst_91 : f32 to vector<8x1xf32>
    %c0_92 = arith.constant 0 : index
    %c0_93 = arith.constant 0 : index
    %81 = vector.load %arg35[%c0_92, %c0_93] : memref<32x604xf32, #tpu.memory_space<vmem>>, vector<8x1xf32>
    tpu.vector_store %arg35[%c0_92, %c0_93], %80 {strides = array<i32>} : memref<32x604xf32, #tpu.memory_space<vmem>>, vector<8x1xf32>,
    %cst_94 = arith.constant 0.000000e+00 : f32
    %82 = vector.broadcast %cst_94 : f32 to vector<8x1xf32>
    %c0_95 = arith.constant 0 : index
    %c201 = arith.constant 201 : index
    %83 = vector.load %arg35[%c0_95, %c201] : memref<32x604xf32, #tpu.memory_space<vmem>>, vector<8x1xf32>
    tpu.vector_store %arg35[%c0_95, %c201], %82 {strides = array<i32>} : memref<32x604xf32, #tpu.memory_space<vmem>>, vector<8x1xf32>,
    %c0_96 = arith.constant 0 : index
    %c1_97 = arith.constant 1 : index
    %84 = vector.load %arg35[%c0_96, %c1_97] : memref<32x604xf32, #tpu.memory_space<vmem>>, vector<8x200xf32>
    tpu.vector_store %arg35[%c0_96, %c1_97], %79 {strides = array<i32>} : memref<32x604xf32, #tpu.memory_space<vmem>>, vector<8x200xf32>,
    %c0_98 = arith.constant 0 : index
    %c0_99 = arith.constant 0 : index
    %85 = vector.load %arg35[%c0_98, %c0_99] : memref<32x604xf32, #tpu.memory_space<vmem>>, vector<8x200xf32>
    %c0_100 = arith.constant 0 : index
    %c0_101 = arith.constant 0 : index
    %86 = vector.load %arg36[%c0_100, %c0_101] : memref<176x600xf32, #tpu.memory_space<vmem>>, vector<8x200xf32>
    tpu.vector_store %arg36[%c0_100, %c0_101], %85 {strides = array<i32>} : memref<176x600xf32, #tpu.memory_space<vmem>>, vector<8x200xf32>,
    %c0_102 = arith.constant 0 : index
    %c1_103 = arith.constant 1 : index
    %87 = vector.load %arg35[%c0_102, %c1_103] : memref<32x604xf32, #tpu.memory_space<vmem>>, vector<8x200xf32>
    %c8_104 = arith.constant 8 : index
    %c0_105 = arith.constant 0 : index
    %88 = vector.load %arg36[%c8_104, %c0_105] : memref<176x600xf32, #tpu.memory_space<vmem>>, vector<8x200xf32>
    tpu.vector_store %arg36[%c8_104, %c0_105], %87 {strides = array<i32>} : memref<176x600xf32, #tpu.memory_space<vmem>>, vector<8x200xf32>,
    %c0_106 = arith.constant 0 : index
    %c2_107 = arith.constant 2 : index
    %89 = vector.load %arg35[%c0_106, %c2_107] : memref<32x604xf32, #tpu.memory_space<vmem>>, vector<8x200xf32>
    %c16_108 = arith.constant 16 : index
    %c0_109 = arith.constant 0 : index
    %90 = vector.load %arg36[%c16_108, %c0_109] : memref<176x600xf32, #tpu.memory_space<vmem>>, vector<8x200xf32>
    tpu.vector_store %arg36[%c16_108, %c0_109], %89 {strides = array<i32>} : memref<176x600xf32, #tpu.memory_space<vmem>>, vector<8x200xf32>,
    %c0_110 = arith.constant 0 : index
    %c0_111 = arith.constant 0 : index
    %91 = vector.load %arg5[%c0_110, %c0_111] : memref<8x24xf32, #tpu.memory_space<vmem>>, vector<8x24xf32>
    %c0_112 = arith.constant 0 : index
    %c0_113 = arith.constant 0 : index
    %92 = vector.load %arg36[%c0_112, %c0_113] : memref<176x600xf32, #tpu.memory_space<vmem>>, vector<24x200xf32>
    %cst_114 = arith.constant dense<0.000000e+00> : vector<8x200xf32>
    %93 = tpu.matmul %91, %92, %cst_114 {dimension_numbers = #tpu.dot_dimension_numbers<[1], [0], [0], [1], [0, 0, 1, 1], [], []>} : vector<8x24xf32>, vector<24x200xf32>, vector<8x200xf32> -> vector<8x200xf32>
    %c0_115 = arith.constant 0 : index
    %c0_116 = arith.constant 0 : index
    %94 = vector.load %arg19[%c0_115, %c0_116] : memref<8x1xf32, #tpu.memory_space<vmem>>, vector<8x1xf32>
    %95 = vector.broadcast %94 : vector<8x1xf32> to vector<8x200xf32>
    %96 = arith.addf %93, %95 : vector<8x200xf32>
    %cst_117 = arith.constant 0.000000e+00 : f32
    %97 = vector.broadcast %cst_117 : f32 to vector<8x200xf32>
    %98 = arith.cmpf oge, %96, %97 : vector<8x200xf32>
    %cst_118 = arith.constant 1.000000e-01 : f32
    %99 = vector.broadcast %cst_118 : f32 to vector<8x200xf32>
    %100 = arith.mulf %99, %96 : vector<8x200xf32>
    %101 = arith.select %98, %96, %100 : vector<8x200xi1>, vector<8x200xf32>
    %cst_119 = arith.constant 0.000000e+00 : f32
    %102 = vector.broadcast %cst_119 : f32 to vector<8x1xf32>
    %c0_120 = arith.constant 0 : index
    %c0_121 = arith.constant 0 : index
    %103 = vector.load %arg35[%c0_120, %c0_121] : memref<32x604xf32, #tpu.memory_space<vmem>>, vector<8x1xf32>
    tpu.vector_store %arg35[%c0_120, %c0_121], %102 {strides = array<i32>} : memref<32x604xf32, #tpu.memory_space<vmem>>, vector<8x1xf32>,
    %cst_122 = arith.constant 0.000000e+00 : f32
    %104 = vector.broadcast %cst_122 : f32 to vector<8x1xf32>
    %c0_123 = arith.constant 0 : index
    %c201_124 = arith.constant 201 : index
    %105 = vector.load %arg35[%c0_123, %c201_124] : memref<32x604xf32, #tpu.memory_space<vmem>>, vector<8x1xf32>
    tpu.vector_store %arg35[%c0_123, %c201_124], %104 {strides = array<i32>} : memref<32x604xf32, #tpu.memory_space<vmem>>, vector<8x1xf32>,
    %c0_125 = arith.constant 0 : index
    %c1_126 = arith.constant 1 : index
    %106 = vector.load %arg35[%c0_125, %c1_126] : memref<32x604xf32, #tpu.memory_space<vmem>>, vector<8x200xf32>
    tpu.vector_store %arg35[%c0_125, %c1_126], %101 {strides = array<i32>} : memref<32x604xf32, #tpu.memory_space<vmem>>, vector<8x200xf32>,
    %c0_127 = arith.constant 0 : index
    %c0_128 = arith.constant 0 : index
    %107 = vector.load %arg35[%c0_127, %c0_128] : memref<32x604xf32, #tpu.memory_space<vmem>>, vector<8x200xf32>
    %c0_129 = arith.constant 0 : index
    %c0_130 = arith.constant 0 : index
    %108 = vector.load %arg36[%c0_129, %c0_130] : memref<176x600xf32, #tpu.memory_space<vmem>>, vector<8x200xf32>
    tpu.vector_store %arg36[%c0_129, %c0_130], %107 {strides = array<i32>} : memref<176x600xf32, #tpu.memory_space<vmem>>, vector<8x200xf32>,
    %c0_131 = arith.constant 0 : index
    %c1_132 = arith.constant 1 : index
    %109 = vector.load %arg35[%c0_131, %c1_132] : memref<32x604xf32, #tpu.memory_space<vmem>>, vector<8x200xf32>
    %c8_133 = arith.constant 8 : index
    %c0_134 = arith.constant 0 : index
    %110 = vector.load %arg36[%c8_133, %c0_134] : memref<176x600xf32, #tpu.memory_space<vmem>>, vector<8x200xf32>
    tpu.vector_store %arg36[%c8_133, %c0_134], %109 {strides = array<i32>} : memref<176x600xf32, #tpu.memory_space<vmem>>, vector<8x200xf32>,
    %c0_135 = arith.constant 0 : index
    %c2_136 = arith.constant 2 : index
    %111 = vector.load %arg35[%c0_135, %c2_136] : memref<32x604xf32, #tpu.memory_space<vmem>>, vector<8x200xf32>
    %c16_137 = arith.constant 16 : index
    %c0_138 = arith.constant 0 : index
    %112 = vector.load %arg36[%c16_137, %c0_138] : memref<176x600xf32, #tpu.memory_space<vmem>>, vector<8x200xf32>
    tpu.vector_store %arg36[%c16_137, %c0_138], %111 {strides = array<i32>} : memref<176x600xf32, #tpu.memory_space<vmem>>, vector<8x200xf32>,
    %c0_139 = arith.constant 0 : index
    %c0_140 = arith.constant 0 : index
    %113 = vector.load %arg6[%c0_139, %c0_140] : memref<8x24xf32, #tpu.memory_space<vmem>>, vector<8x24xf32>
    %c0_141 = arith.constant 0 : index
    %c0_142 = arith.constant 0 : index
    %114 = vector.load %arg36[%c0_141, %c0_142] : memref<176x600xf32, #tpu.memory_space<vmem>>, vector<24x200xf32>
    %cst_143 = arith.constant dense<0.000000e+00> : vector<8x200xf32>
    %115 = tpu.matmul %113, %114, %cst_143 {dimension_numbers = #tpu.dot_dimension_numbers<[1], [0], [0], [1], [0, 0, 1, 1], [], []>} : vector<8x24xf32>, vector<24x200xf32>, vector<8x200xf32> -> vector<8x200xf32>
    %c0_144 = arith.constant 0 : index
    %c0_145 = arith.constant 0 : index
    %116 = vector.load %arg20[%c0_144, %c0_145] : memref<8x1xf32, #tpu.memory_space<vmem>>, vector<8x1xf32>
    %117 = vector.broadcast %116 : vector<8x1xf32> to vector<8x200xf32>
    %118 = arith.addf %115, %117 : vector<8x200xf32>
    %c0_146 = arith.constant 0 : index
    %c0_147 = arith.constant 0 : index
    %c0_148 = arith.constant 0 : index
    %119 = vector.load %arg33[%c0_146, %c0_147, %c0_148] : memref<1x8x200xf32, #tpu.memory_space<vmem>>, vector<1x8x200xf32>
    %120 = vector.shape_cast %119 : vector<1x8x200xf32> to vector<8x200xf32>
    %121 = vector.shape_cast %118 : vector<8x200xf32> to vector<1x8x200xf32>
    tpu.vector_store %arg33[%c0_146, %c0_147, %c0_148], %121 {strides = array<i32>} : memref<1x8x200xf32, #tpu.memory_space<vmem>>, vector<1x8x200xf32>,
    %cst_149 = arith.constant 0.000000e+00 : f32
    %122 = vector.broadcast %cst_149 : f32 to vector<8x200xf32>
    %123 = arith.cmpf oge, %118, %122 : vector<8x200xf32>
    %cst_150 = arith.constant 1.000000e-01 : f32
    %124 = vector.broadcast %cst_150 : f32 to vector<8x200xf32>
    %125 = arith.mulf %124, %118 : vector<8x200xf32>
    %126 = arith.select %123, %118, %125 : vector<8x200xi1>, vector<8x200xf32>
    %cst_151 = arith.constant 0.000000e+00 : f32
    %127 = vector.broadcast %cst_151 : f32 to vector<8x3xf32>
    %c0_152 = arith.constant 0 : index
    %c0_153 = arith.constant 0 : index
    %128 = vector.load %arg35[%c0_152, %c0_153] : memref<32x604xf32, #tpu.memory_space<vmem>>, vector<8x3xf32>
    tpu.vector_store %arg35[%c0_152, %c0_153], %127 {strides = array<i32>} : memref<32x604xf32, #tpu.memory_space<vmem>>, vector<8x3xf32>,
    %cst_154 = arith.constant 0.000000e+00 : f32
    %129 = vector.broadcast %cst_154 : f32 to vector<8x3xf32>
    %c0_155 = arith.constant 0 : index
    %c203 = arith.constant 203 : index
    %130 = vector.load %arg35[%c0_155, %c203] : memref<32x604xf32, #tpu.memory_space<vmem>>, vector<8x3xf32>
    tpu.vector_store %arg35[%c0_155, %c203], %129 {strides = array<i32>} : memref<32x604xf32, #tpu.memory_space<vmem>>, vector<8x3xf32>,
    %c0_156 = arith.constant 0 : index
    %c3_157 = arith.constant 3 : index
    %131 = vector.load %arg35[%c0_156, %c3_157] : memref<32x604xf32, #tpu.memory_space<vmem>>, vector<8x200xf32>
    tpu.vector_store %arg35[%c0_156, %c3_157], %126 {strides = array<i32>} : memref<32x604xf32, #tpu.memory_space<vmem>>, vector<8x200xf32>,
    %c0_158 = arith.constant 0 : index
    %c0_159 = arith.constant 0 : index
    %132 = vector.load %arg35[%c0_158, %c0_159] : memref<32x604xf32, #tpu.memory_space<vmem>>, vector<8x200xf32>
    %c0_160 = arith.constant 0 : index
    %c0_161 = arith.constant 0 : index
    %133 = vector.load %arg36[%c0_160, %c0_161] : memref<176x600xf32, #tpu.memory_space<vmem>>, vector<8x200xf32>
    tpu.vector_store %arg36[%c0_160, %c0_161], %132 {strides = array<i32>} : memref<176x600xf32, #tpu.memory_space<vmem>>, vector<8x200xf32>,
    %c0_162 = arith.constant 0 : index
    %c1_163 = arith.constant 1 : index
    %134 = vector.load %arg35[%c0_162, %c1_163] : memref<32x604xf32, #tpu.memory_space<vmem>>, vector<8x200xf32>
    %c8_164 = arith.constant 8 : index
    %c0_165 = arith.constant 0 : index
    %135 = vector.load %arg36[%c8_164, %c0_165] : memref<176x600xf32, #tpu.memory_space<vmem>>, vector<8x200xf32>
    tpu.vector_store %arg36[%c8_164, %c0_165], %134 {strides = array<i32>} : memref<176x600xf32, #tpu.memory_space<vmem>>, vector<8x200xf32>,
    %c0_166 = arith.constant 0 : index
    %c2_167 = arith.constant 2 : index
    %136 = vector.load %arg35[%c0_166, %c2_167] : memref<32x604xf32, #tpu.memory_space<vmem>>, vector<8x200xf32>
    %c16_168 = arith.constant 16 : index
    %c0_169 = arith.constant 0 : index
    %137 = vector.load %arg36[%c16_168, %c0_169] : memref<176x600xf32, #tpu.memory_space<vmem>>, vector<8x200xf32>
    tpu.vector_store %arg36[%c16_168, %c0_169], %136 {strides = array<i32>} : memref<176x600xf32, #tpu.memory_space<vmem>>, vector<8x200xf32>,
    %c0_170 = arith.constant 0 : index
    %c3_171 = arith.constant 3 : index
    %138 = vector.load %arg35[%c0_170, %c3_171] : memref<32x604xf32, #tpu.memory_space<vmem>>, vector<8x200xf32>
    %c24_172 = arith.constant 24 : index
    %c0_173 = arith.constant 0 : index
    %139 = vector.load %arg36[%c24_172, %c0_173] : memref<176x600xf32, #tpu.memory_space<vmem>>, vector<8x200xf32>
    tpu.vector_store %arg36[%c24_172, %c0_173], %138 {strides = array<i32>} : memref<176x600xf32, #tpu.memory_space<vmem>>, vector<8x200xf32>,
    %c0_174 = arith.constant 0 : index
    %c4_175 = arith.constant 4 : index
    %140 = vector.load %arg35[%c0_174, %c4_175] : memref<32x604xf32, #tpu.memory_space<vmem>>, vector<8x200xf32>
    %c32_176 = arith.constant 32 : index
    %c0_177 = arith.constant 0 : index
    %141 = vector.load %arg36[%c32_176, %c0_177] : memref<176x600xf32, #tpu.memory_space<vmem>>, vector<8x200xf32>
    tpu.vector_store %arg36[%c32_176, %c0_177], %140 {strides = array<i32>} : memref<176x600xf32, #tpu.memory_space<vmem>>, vector<8x200xf32>,
    %c0_178 = arith.constant 0 : index
    %c5 = arith.constant 5 : index
    %142 = vector.load %arg35[%c0_178, %c5] : memref<32x604xf32, #tpu.memory_space<vmem>>, vector<8x200xf32>
    %c40 = arith.constant 40 : index
    %c0_179 = arith.constant 0 : index
    %143 = vector.load %arg36[%c40, %c0_179] : memref<176x600xf32, #tpu.memory_space<vmem>>, vector<8x200xf32>
    tpu.vector_store %arg36[%c40, %c0_179], %142 {strides = array<i32>} : memref<176x600xf32, #tpu.memory_space<vmem>>, vector<8x200xf32>,
    %c0_180 = arith.constant 0 : index
    %c6 = arith.constant 6 : index
    %144 = vector.load %arg35[%c0_180, %c6] : memref<32x604xf32, #tpu.memory_space<vmem>>, vector<8x200xf32>
    %c48 = arith.constant 48 : index
    %c0_181 = arith.constant 0 : index
    %145 = vector.load %arg36[%c48, %c0_181] : memref<176x600xf32, #tpu.memory_space<vmem>>, vector<8x200xf32>
    tpu.vector_store %arg36[%c48, %c0_181], %144 {strides = array<i32>} : memref<176x600xf32, #tpu.memory_space<vmem>>, vector<8x200xf32>,
    %c0_182 = arith.constant 0 : index
    %c0_183 = arith.constant 0 : index
    %146 = vector.load %arg7[%c0_182, %c0_183] : memref<8x56xf32, #tpu.memory_space<vmem>>, vector<8x56xf32>
    %c0_184 = arith.constant 0 : index
    %c0_185 = arith.constant 0 : index
    %147 = vector.load %arg36[%c0_184, %c0_185] : memref<176x600xf32, #tpu.memory_space<vmem>>, vector<56x200xf32>
    %cst_186 = arith.constant dense<0.000000e+00> : vector<8x200xf32>
    %148 = tpu.matmul %146, %147, %cst_186 {dimension_numbers = #tpu.dot_dimension_numbers<[1], [0], [0], [1], [0, 0, 1, 1], [], []>} : vector<8x56xf32>, vector<56x200xf32>, vector<8x200xf32> -> vector<8x200xf32>
    %149 = tpu.iota {dimensions = array<i32: 0>} : vector<200x50xi32>
    %150 = tpu.iota {dimensions = array<i32: 1>} : vector<200x50xi32>
    %c4_i32 = arith.constant 4 : i32
    %151 = vector.broadcast %c4_i32 : i32 to vector<200x50xi32>
    %152 = arith.muli %150, %151 : vector<200x50xi32>
    %153 = arith.cmpi eq, %149, %152 : vector<200x50xi32>
    %154 = arith.extui %153 : vector<200x50xi1> to vector<200x50xi32>
    %155 = arith.sitofp %154 : vector<200x50xi32> to vector<200x50xf32>
    %cst_187 = arith.constant dense<0.000000e+00> : vector<8x50xf32>
    %156 = tpu.matmul %148, %155, %cst_187 {dimension_numbers = #tpu.dot_dimension_numbers<[1], [0], [0], [1], [0, 0, 1, 1], [], []>} : vector<8x200xf32>, vector<200x50xf32>, vector<8x50xf32> -> vector<8x50xf32>
    %c0_188 = arith.constant 0 : index
    %c0_189 = arith.constant 0 : index
    %157 = vector.load %arg21[%c0_188, %c0_189] : memref<8x1xf32, #tpu.memory_space<vmem>>, vector<8x1xf32>
    %158 = vector.broadcast %157 : vector<8x1xf32> to vector<8x50xf32>
    %159 = arith.addf %156, %158 : vector<8x50xf32>
    %cst_190 = arith.constant 0.000000e+00 : f32
    %160 = vector.broadcast %cst_190 : f32 to vector<8x1xf32>
    %c0_191 = arith.constant 0 : index
    %c0_192 = arith.constant 0 : index
    %161 = vector.load %arg35[%c0_191, %c0_192] : memref<32x604xf32, #tpu.memory_space<vmem>>, vector<8x1xf32>
    tpu.vector_store %arg35[%c0_191, %c0_192], %160 {strides = array<i32>} : memref<32x604xf32, #tpu.memory_space<vmem>>, vector<8x1xf32>,
    %cst_193 = arith.constant 0.000000e+00 : f32
    %162 = vector.broadcast %cst_193 : f32 to vector<8x1xf32>
    %c0_194 = arith.constant 0 : index
    %c51 = arith.constant 51 : index
    %163 = vector.load %arg35[%c0_194, %c51] : memref<32x604xf32, #tpu.memory_space<vmem>>, vector<8x1xf32>
    tpu.vector_store %arg35[%c0_194, %c51], %162 {strides = array<i32>} : memref<32x604xf32, #tpu.memory_space<vmem>>, vector<8x1xf32>,
    %c0_195 = arith.constant 0 : index
    %c1_196 = arith.constant 1 : index
    %164 = vector.load %arg35[%c0_195, %c1_196] : memref<32x604xf32, #tpu.memory_space<vmem>>, vector<8x50xf32>
    tpu.vector_store %arg35[%c0_195, %c1_196], %159 {strides = array<i32>} : memref<32x604xf32, #tpu.memory_space<vmem>>, vector<8x50xf32>,
    %c0_197 = arith.constant 0 : index
    %c0_198 = arith.constant 0 : index
    %165 = vector.load %arg35[%c0_197, %c0_198] : memref<32x604xf32, #tpu.memory_space<vmem>>, vector<8x50xf32>
    %c0_199 = arith.constant 0 : index
    %c0_200 = arith.constant 0 : index
    %166 = vector.load %arg36[%c0_199, %c0_200] : memref<176x600xf32, #tpu.memory_space<vmem>>, vector<8x50xf32>
    tpu.vector_store %arg36[%c0_199, %c0_200], %165 {strides = array<i32>} : memref<176x600xf32, #tpu.memory_space<vmem>>, vector<8x50xf32>,
    %c0_201 = arith.constant 0 : index
    %c1_202 = arith.constant 1 : index
    %167 = vector.load %arg35[%c0_201, %c1_202] : memref<32x604xf32, #tpu.memory_space<vmem>>, vector<8x50xf32>
    %c8_203 = arith.constant 8 : index
    %c0_204 = arith.constant 0 : index
    %168 = vector.load %arg36[%c8_203, %c0_204] : memref<176x600xf32, #tpu.memory_space<vmem>>, vector<8x50xf32>
    tpu.vector_store %arg36[%c8_203, %c0_204], %167 {strides = array<i32>} : memref<176x600xf32, #tpu.memory_space<vmem>>, vector<8x50xf32>,
    %c0_205 = arith.constant 0 : index
    %c2_206 = arith.constant 2 : index
    %169 = vector.load %arg35[%c0_205, %c2_206] : memref<32x604xf32, #tpu.memory_space<vmem>>, vector<8x50xf32>
    %c16_207 = arith.constant 16 : index
    %c0_208 = arith.constant 0 : index
    %170 = vector.load %arg36[%c16_207, %c0_208] : memref<176x600xf32, #tpu.memory_space<vmem>>, vector<8x50xf32>
    tpu.vector_store %arg36[%c16_207, %c0_208], %169 {strides = array<i32>} : memref<176x600xf32, #tpu.memory_space<vmem>>, vector<8x50xf32>,
    %c0_209 = arith.constant 0 : index
    %c0_210 = arith.constant 0 : index
    %171 = vector.load %arg8[%c0_209, %c0_210] : memref<16x24xf32, #tpu.memory_space<vmem>>, vector<16x24xf32>
    %c0_211 = arith.constant 0 : index
    %c0_212 = arith.constant 0 : index
    %172 = vector.load %arg36[%c0_211, %c0_212] : memref<176x600xf32, #tpu.memory_space<vmem>>, vector<24x50xf32>
    %cst_213 = arith.constant dense<0.000000e+00> : vector<16x50xf32>
    %173 = tpu.matmul %171, %172, %cst_213 {dimension_numbers = #tpu.dot_dimension_numbers<[1], [0], [0], [1], [0, 0, 1, 1], [], []>} : vector<16x24xf32>, vector<24x50xf32>, vector<16x50xf32> -> vector<16x50xf32>
    %c0_214 = arith.constant 0 : index
    %c0_215 = arith.constant 0 : index
    %174 = vector.load %arg22[%c0_214, %c0_215] : memref<16x1xf32, #tpu.memory_space<vmem>>, vector<16x1xf32>
    %175 = vector.broadcast %174 : vector<16x1xf32> to vector<16x50xf32>
    %176 = arith.addf %173, %175 : vector<16x50xf32>
    %cst_216 = arith.constant 0.000000e+00 : f32
    %177 = vector.broadcast %cst_216 : f32 to vector<16x50xf32>
    %178 = arith.cmpf oge, %176, %177 : vector<16x50xf32>
    %cst_217 = arith.constant 1.000000e-01 : f32
    %179 = vector.broadcast %cst_217 : f32 to vector<16x50xf32>
    %180 = arith.mulf %179, %176 : vector<16x50xf32>
    %181 = arith.select %178, %176, %180 : vector<16x50xi1>, vector<16x50xf32>
    %cst_218 = arith.constant 0.000000e+00 : f32
    %182 = vector.broadcast %cst_218 : f32 to vector<16x1xf32>
    %c0_219 = arith.constant 0 : index
    %c0_220 = arith.constant 0 : index
    %183 = vector.load %arg35[%c0_219, %c0_220] : memref<32x604xf32, #tpu.memory_space<vmem>>, vector<16x1xf32>
    tpu.vector_store %arg35[%c0_219, %c0_220], %182 {strides = array<i32>} : memref<32x604xf32, #tpu.memory_space<vmem>>, vector<16x1xf32>,
    %cst_221 = arith.constant 0.000000e+00 : f32
    %184 = vector.broadcast %cst_221 : f32 to vector<16x1xf32>
    %c0_222 = arith.constant 0 : index
    %c51_223 = arith.constant 51 : index
    %185 = vector.load %arg35[%c0_222, %c51_223] : memref<32x604xf32, #tpu.memory_space<vmem>>, vector<16x1xf32>
    tpu.vector_store %arg35[%c0_222, %c51_223], %184 {strides = array<i32>} : memref<32x604xf32, #tpu.memory_space<vmem>>, vector<16x1xf32>,
    %c0_224 = arith.constant 0 : index
    %c1_225 = arith.constant 1 : index
    %186 = vector.load %arg35[%c0_224, %c1_225] : memref<32x604xf32, #tpu.memory_space<vmem>>, vector<16x50xf32>
    tpu.vector_store %arg35[%c0_224, %c1_225], %181 {strides = array<i32>} : memref<32x604xf32, #tpu.memory_space<vmem>>, vector<16x50xf32>,
    %c0_226 = arith.constant 0 : index
    %c0_227 = arith.constant 0 : index
    %187 = vector.load %arg35[%c0_226, %c0_227] : memref<32x604xf32, #tpu.memory_space<vmem>>, vector<16x50xf32>
    %c0_228 = arith.constant 0 : index
    %c0_229 = arith.constant 0 : index
    %188 = vector.load %arg36[%c0_228, %c0_229] : memref<176x600xf32, #tpu.memory_space<vmem>>, vector<16x50xf32>
    tpu.vector_store %arg36[%c0_228, %c0_229], %187 {strides = array<i32>} : memref<176x600xf32, #tpu.memory_space<vmem>>, vector<16x50xf32>,
    %c0_230 = arith.constant 0 : index
    %c1_231 = arith.constant 1 : index
    %189 = vector.load %arg35[%c0_230, %c1_231] : memref<32x604xf32, #tpu.memory_space<vmem>>, vector<16x50xf32>
    %c16_232 = arith.constant 16 : index
    %c0_233 = arith.constant 0 : index
    %190 = vector.load %arg36[%c16_232, %c0_233] : memref<176x600xf32, #tpu.memory_space<vmem>>, vector<16x50xf32>
    tpu.vector_store %arg36[%c16_232, %c0_233], %189 {strides = array<i32>} : memref<176x600xf32, #tpu.memory_space<vmem>>, vector<16x50xf32>,
    %c0_234 = arith.constant 0 : index
    %c2_235 = arith.constant 2 : index
    %191 = vector.load %arg35[%c0_234, %c2_235] : memref<32x604xf32, #tpu.memory_space<vmem>>, vector<16x50xf32>
    %c32_236 = arith.constant 32 : index
    %c0_237 = arith.constant 0 : index
    %192 = vector.load %arg36[%c32_236, %c0_237] : memref<176x600xf32, #tpu.memory_space<vmem>>, vector<16x50xf32>
    tpu.vector_store %arg36[%c32_236, %c0_237], %191 {strides = array<i32>} : memref<176x600xf32, #tpu.memory_space<vmem>>, vector<16x50xf32>,
    %c0_238 = arith.constant 0 : index
    %c0_239 = arith.constant 0 : index
    %193 = vector.load %arg9[%c0_238, %c0_239] : memref<16x48xf32, #tpu.memory_space<vmem>>, vector<16x48xf32>
    %c0_240 = arith.constant 0 : index
    %c0_241 = arith.constant 0 : index
    %194 = vector.load %arg36[%c0_240, %c0_241] : memref<176x600xf32, #tpu.memory_space<vmem>>, vector<48x50xf32>
    %cst_242 = arith.constant dense<0.000000e+00> : vector<16x50xf32>
    %195 = tpu.matmul %193, %194, %cst_242 {dimension_numbers = #tpu.dot_dimension_numbers<[1], [0], [0], [1], [0, 0, 1, 1], [], []>} : vector<16x48xf32>, vector<48x50xf32>, vector<16x50xf32> -> vector<16x50xf32>
    %c0_243 = arith.constant 0 : index
    %c0_244 = arith.constant 0 : index
    %196 = vector.load %arg23[%c0_243, %c0_244] : memref<16x1xf32, #tpu.memory_space<vmem>>, vector<16x1xf32>
    %197 = vector.broadcast %196 : vector<16x1xf32> to vector<16x50xf32>
    %198 = arith.addf %195, %197 : vector<16x50xf32>
    %c0_245 = arith.constant 0 : index
    %c0_246 = arith.constant 0 : index
    %c0_247 = arith.constant 0 : index
    %199 = vector.load %arg32[%c0_245, %c0_246, %c0_247] : memref<1x16x50xf32, #tpu.memory_space<vmem>>, vector<1x16x50xf32>
    %200 = vector.shape_cast %199 : vector<1x16x50xf32> to vector<16x50xf32>
    %201 = vector.shape_cast %198 : vector<16x50xf32> to vector<1x16x50xf32>
    tpu.vector_store %arg32[%c0_245, %c0_246, %c0_247], %201 {strides = array<i32>} : memref<1x16x50xf32, #tpu.memory_space<vmem>>, vector<1x16x50xf32>,
    %cst_248 = arith.constant 0.000000e+00 : f32
    %202 = vector.broadcast %cst_248 : f32 to vector<16x50xf32>
    %203 = arith.cmpf oge, %198, %202 : vector<16x50xf32>
    %cst_249 = arith.constant 1.000000e-01 : f32
    %204 = vector.broadcast %cst_249 : f32 to vector<16x50xf32>
    %205 = arith.mulf %204, %198 : vector<16x50xf32>
    %206 = arith.select %203, %198, %205 : vector<16x50xi1>, vector<16x50xf32>
    %cst_250 = arith.constant 0.000000e+00 : f32
    %207 = vector.broadcast %cst_250 : f32 to vector<16x4xf32>
    %c0_251 = arith.constant 0 : index
    %c0_252 = arith.constant 0 : index
    %208 = vector.load %arg35[%c0_251, %c0_252] : memref<32x604xf32, #tpu.memory_space<vmem>>, vector<16x4xf32>
    tpu.vector_store %arg35[%c0_251, %c0_252], %207 {strides = array<i32>} : memref<32x604xf32, #tpu.memory_space<vmem>>, vector<16x4xf32>,
    %cst_253 = arith.constant 0.000000e+00 : f32
    %209 = vector.broadcast %cst_253 : f32 to vector<16x4xf32>
    %c0_254 = arith.constant 0 : index
    %c54 = arith.constant 54 : index
    %210 = vector.load %arg35[%c0_254, %c54] : memref<32x604xf32, #tpu.memory_space<vmem>>, vector<16x4xf32>
    tpu.vector_store %arg35[%c0_254, %c54], %209 {strides = array<i32>} : memref<32x604xf32, #tpu.memory_space<vmem>>, vector<16x4xf32>,
    %c0_255 = arith.constant 0 : index
    %c4_256 = arith.constant 4 : index
    %211 = vector.load %arg35[%c0_255, %c4_256] : memref<32x604xf32, #tpu.memory_space<vmem>>, vector<16x50xf32>
    tpu.vector_store %arg35[%c0_255, %c4_256], %206 {strides = array<i32>} : memref<32x604xf32, #tpu.memory_space<vmem>>, vector<16x50xf32>,
    %c0_257 = arith.constant 0 : index
    %c0_258 = arith.constant 0 : index
    %212 = vector.load %arg35[%c0_257, %c0_258] : memref<32x604xf32, #tpu.memory_space<vmem>>, vector<16x50xf32>
    %c0_259 = arith.constant 0 : index
    %c0_260 = arith.constant 0 : index
    %213 = vector.load %arg36[%c0_259, %c0_260] : memref<176x600xf32, #tpu.memory_space<vmem>>, vector<16x50xf32>
    tpu.vector_store %arg36[%c0_259, %c0_260], %212 {strides = array<i32>} : memref<176x600xf32, #tpu.memory_space<vmem>>, vector<16x50xf32>,
    %c0_261 = arith.constant 0 : index
    %c1_262 = arith.constant 1 : index
    %214 = vector.load %arg35[%c0_261, %c1_262] : memref<32x604xf32, #tpu.memory_space<vmem>>, vector<16x50xf32>
    %c16_263 = arith.constant 16 : index
    %c0_264 = arith.constant 0 : index
    %215 = vector.load %arg36[%c16_263, %c0_264] : memref<176x600xf32, #tpu.memory_space<vmem>>, vector<16x50xf32>
    tpu.vector_store %arg36[%c16_263, %c0_264], %214 {strides = array<i32>} : memref<176x600xf32, #tpu.memory_space<vmem>>, vector<16x50xf32>,
    %c0_265 = arith.constant 0 : index
    %c2_266 = arith.constant 2 : index
    %216 = vector.load %arg35[%c0_265, %c2_266] : memref<32x604xf32, #tpu.memory_space<vmem>>, vector<16x50xf32>
    %c32_267 = arith.constant 32 : index
    %c0_268 = arith.constant 0 : index
    %217 = vector.load %arg36[%c32_267, %c0_268] : memref<176x600xf32, #tpu.memory_space<vmem>>, vector<16x50xf32>
    tpu.vector_store %arg36[%c32_267, %c0_268], %216 {strides = array<i32>} : memref<176x600xf32, #tpu.memory_space<vmem>>, vector<16x50xf32>,
    %c0_269 = arith.constant 0 : index
    %c3_270 = arith.constant 3 : index
    %218 = vector.load %arg35[%c0_269, %c3_270] : memref<32x604xf32, #tpu.memory_space<vmem>>, vector<16x50xf32>
    %c48_271 = arith.constant 48 : index
    %c0_272 = arith.constant 0 : index
    %219 = vector.load %arg36[%c48_271, %c0_272] : memref<176x600xf32, #tpu.memory_space<vmem>>, vector<16x50xf32>
    tpu.vector_store %arg36[%c48_271, %c0_272], %218 {strides = array<i32>} : memref<176x600xf32, #tpu.memory_space<vmem>>, vector<16x50xf32>,
    %c0_273 = arith.constant 0 : index
    %c4_274 = arith.constant 4 : index
    %220 = vector.load %arg35[%c0_273, %c4_274] : memref<32x604xf32, #tpu.memory_space<vmem>>, vector<16x50xf32>
    %c64 = arith.constant 64 : index
    %c0_275 = arith.constant 0 : index
    %221 = vector.load %arg36[%c64, %c0_275] : memref<176x600xf32, #tpu.memory_space<vmem>>, vector<16x50xf32>
    tpu.vector_store %arg36[%c64, %c0_275], %220 {strides = array<i32>} : memref<176x600xf32, #tpu.memory_space<vmem>>, vector<16x50xf32>,
    %c0_276 = arith.constant 0 : index
    %c5_277 = arith.constant 5 : index
    %222 = vector.load %arg35[%c0_276, %c5_277] : memref<32x604xf32, #tpu.memory_space<vmem>>, vector<16x50xf32>
    %c80 = arith.constant 80 : index
    %c0_278 = arith.constant 0 : index
    %223 = vector.load %arg36[%c80, %c0_278] : memref<176x600xf32, #tpu.memory_space<vmem>>, vector<16x50xf32>
    tpu.vector_store %arg36[%c80, %c0_278], %222 {strides = array<i32>} : memref<176x600xf32, #tpu.memory_space<vmem>>, vector<16x50xf32>,
    %c0_279 = arith.constant 0 : index
    %c6_280 = arith.constant 6 : index
    %224 = vector.load %arg35[%c0_279, %c6_280] : memref<32x604xf32, #tpu.memory_space<vmem>>, vector<16x50xf32>
    %c96 = arith.constant 96 : index
    %c0_281 = arith.constant 0 : index
    %225 = vector.load %arg36[%c96, %c0_281] : memref<176x600xf32, #tpu.memory_space<vmem>>, vector<16x50xf32>
    tpu.vector_store %arg36[%c96, %c0_281], %224 {strides = array<i32>} : memref<176x600xf32, #tpu.memory_space<vmem>>, vector<16x50xf32>,
    %c0_282 = arith.constant 0 : index
    %c7 = arith.constant 7 : index
    %226 = vector.load %arg35[%c0_282, %c7] : memref<32x604xf32, #tpu.memory_space<vmem>>, vector<16x50xf32>
    %c112 = arith.constant 112 : index
    %c0_283 = arith.constant 0 : index
    %227 = vector.load %arg36[%c112, %c0_283] : memref<176x600xf32, #tpu.memory_space<vmem>>, vector<16x50xf32>
    tpu.vector_store %arg36[%c112, %c0_283], %226 {strides = array<i32>} : memref<176x600xf32, #tpu.memory_space<vmem>>, vector<16x50xf32>,
    %c0_284 = arith.constant 0 : index
    %c8_285 = arith.constant 8 : index
    %228 = vector.load %arg35[%c0_284, %c8_285] : memref<32x604xf32, #tpu.memory_space<vmem>>, vector<16x50xf32>
    %c128 = arith.constant 128 : index
    %c0_286 = arith.constant 0 : index
    %229 = vector.load %arg36[%c128, %c0_286] : memref<176x600xf32, #tpu.memory_space<vmem>>, vector<16x50xf32>
    tpu.vector_store %arg36[%c128, %c0_286], %228 {strides = array<i32>} : memref<176x600xf32, #tpu.memory_space<vmem>>, vector<16x50xf32>,
    %c0_287 = arith.constant 0 : index
    %c0_288 = arith.constant 0 : index
    %230 = vector.load %arg10[%c0_287, %c0_288] : memref<16x144xf32, #tpu.memory_space<vmem>>, vector<16x144xf32>
    %c0_289 = arith.constant 0 : index
    %c0_290 = arith.constant 0 : index
    %231 = vector.load %arg36[%c0_289, %c0_290] : memref<176x600xf32, #tpu.memory_space<vmem>>, vector<144x50xf32>
    %cst_291 = arith.constant dense<0.000000e+00> : vector<16x50xf32>
    %232 = tpu.matmul %230, %231, %cst_291 {dimension_numbers = #tpu.dot_dimension_numbers<[1], [0], [0], [1], [0, 0, 1, 1], [], []>} : vector<16x144xf32>, vector<144x50xf32>, vector<16x50xf32> -> vector<16x50xf32>
    %233 = tpu.iota {dimensions = array<i32: 0>} : vector<50x10xi32>
    %234 = tpu.iota {dimensions = array<i32: 1>} : vector<50x10xi32>
    %c5_i32 = arith.constant 5 : i32
    %235 = vector.broadcast %c5_i32 : i32 to vector<50x10xi32>
    %236 = arith.muli %234, %235 : vector<50x10xi32>
    %237 = arith.cmpi eq, %233, %236 : vector<50x10xi32>
    %238 = arith.extui %237 : vector<50x10xi1> to vector<50x10xi32>
    %239 = arith.sitofp %238 : vector<50x10xi32> to vector<50x10xf32>
    %cst_292 = arith.constant dense<0.000000e+00> : vector<16x10xf32>
    %240 = tpu.matmul %232, %239, %cst_292 {dimension_numbers = #tpu.dot_dimension_numbers<[1], [0], [0], [1], [0, 0, 1, 1], [], []>} : vector<16x50xf32>, vector<50x10xf32>, vector<16x10xf32> -> vector<16x10xf32>
    %c0_293 = arith.constant 0 : index
    %c0_294 = arith.constant 0 : index
    %241 = vector.load %arg24[%c0_293, %c0_294] : memref<16x1xf32, #tpu.memory_space<vmem>>, vector<16x1xf32>
    %242 = vector.broadcast %241 : vector<16x1xf32> to vector<16x10xf32>
    %243 = arith.addf %240, %242 : vector<16x10xf32>
    %cst_295 = arith.constant 0.000000e+00 : f32
    %244 = vector.broadcast %cst_295 : f32 to vector<16x1xf32>
    %c0_296 = arith.constant 0 : index
    %c0_297 = arith.constant 0 : index
    %245 = vector.load %arg35[%c0_296, %c0_297] : memref<32x604xf32, #tpu.memory_space<vmem>>, vector<16x1xf32>
    tpu.vector_store %arg35[%c0_296, %c0_297], %244 {strides = array<i32>} : memref<32x604xf32, #tpu.memory_space<vmem>>, vector<16x1xf32>,
    %cst_298 = arith.constant 0.000000e+00 : f32
    %246 = vector.broadcast %cst_298 : f32 to vector<16x1xf32>
    %c0_299 = arith.constant 0 : index
    %c11 = arith.constant 11 : index
    %247 = vector.load %arg35[%c0_299, %c11] : memref<32x604xf32, #tpu.memory_space<vmem>>, vector<16x1xf32>
    tpu.vector_store %arg35[%c0_299, %c11], %246 {strides = array<i32>} : memref<32x604xf32, #tpu.memory_space<vmem>>, vector<16x1xf32>,
    %c0_300 = arith.constant 0 : index
    %c1_301 = arith.constant 1 : index
    %248 = vector.load %arg35[%c0_300, %c1_301] : memref<32x604xf32, #tpu.memory_space<vmem>>, vector<16x10xf32>
    tpu.vector_store %arg35[%c0_300, %c1_301], %243 {strides = array<i32>} : memref<32x604xf32, #tpu.memory_space<vmem>>, vector<16x10xf32>,
    %c0_302 = arith.constant 0 : index
    %c0_303 = arith.constant 0 : index
    %249 = vector.load %arg35[%c0_302, %c0_303] : memref<32x604xf32, #tpu.memory_space<vmem>>, vector<16x10xf32>
    %c0_304 = arith.constant 0 : index
    %c0_305 = arith.constant 0 : index
    %250 = vector.load %arg36[%c0_304, %c0_305] : memref<176x600xf32, #tpu.memory_space<vmem>>, vector<16x10xf32>
    tpu.vector_store %arg36[%c0_304, %c0_305], %249 {strides = array<i32>} : memref<176x600xf32, #tpu.memory_space<vmem>>, vector<16x10xf32>,
    %c0_306 = arith.constant 0 : index
    %c1_307 = arith.constant 1 : index
    %251 = vector.load %arg35[%c0_306, %c1_307] : memref<32x604xf32, #tpu.memory_space<vmem>>, vector<16x10xf32>
    %c16_308 = arith.constant 16 : index
    %c0_309 = arith.constant 0 : index
    %252 = vector.load %arg36[%c16_308, %c0_309] : memref<176x600xf32, #tpu.memory_space<vmem>>, vector<16x10xf32>
    tpu.vector_store %arg36[%c16_308, %c0_309], %251 {strides = array<i32>} : memref<176x600xf32, #tpu.memory_space<vmem>>, vector<16x10xf32>,
    %c0_310 = arith.constant 0 : index
    %c2_311 = arith.constant 2 : index
    %253 = vector.load %arg35[%c0_310, %c2_311] : memref<32x604xf32, #tpu.memory_space<vmem>>, vector<16x10xf32>
    %c32_312 = arith.constant 32 : index
    %c0_313 = arith.constant 0 : index
    %254 = vector.load %arg36[%c32_312, %c0_313] : memref<176x600xf32, #tpu.memory_space<vmem>>, vector<16x10xf32>
    tpu.vector_store %arg36[%c32_312, %c0_313], %253 {strides = array<i32>} : memref<176x600xf32, #tpu.memory_space<vmem>>, vector<16x10xf32>,
    %c0_314 = arith.constant 0 : index
    %c0_315 = arith.constant 0 : index
    %255 = vector.load %arg11[%c0_314, %c0_315] : memref<16x48xf32, #tpu.memory_space<vmem>>, vector<16x48xf32>
    %c0_316 = arith.constant 0 : index
    %c0_317 = arith.constant 0 : index
    %256 = vector.load %arg36[%c0_316, %c0_317] : memref<176x600xf32, #tpu.memory_space<vmem>>, vector<48x10xf32>
    %cst_318 = arith.constant dense<0.000000e+00> : vector<16x10xf32>
    %257 = tpu.matmul %255, %256, %cst_318 {dimension_numbers = #tpu.dot_dimension_numbers<[1], [0], [0], [1], [0, 0, 1, 1], [], []>} : vector<16x48xf32>, vector<48x10xf32>, vector<16x10xf32> -> vector<16x10xf32>
    %c0_319 = arith.constant 0 : index
    %c0_320 = arith.constant 0 : index
    %258 = vector.load %arg25[%c0_319, %c0_320] : memref<16x1xf32, #tpu.memory_space<vmem>>, vector<16x1xf32>
    %259 = vector.broadcast %258 : vector<16x1xf32> to vector<16x10xf32>
    %260 = arith.addf %257, %259 : vector<16x10xf32>
    %cst_321 = arith.constant 0.000000e+00 : f32
    %261 = vector.broadcast %cst_321 : f32 to vector<16x10xf32>
    %262 = arith.cmpf oge, %260, %261 : vector<16x10xf32>
    %cst_322 = arith.constant 1.000000e-01 : f32
    %263 = vector.broadcast %cst_322 : f32 to vector<16x10xf32>
    %264 = arith.mulf %263, %260 : vector<16x10xf32>
    %265 = arith.select %262, %260, %264 : vector<16x10xi1>, vector<16x10xf32>
    %cst_323 = arith.constant 0.000000e+00 : f32
    %266 = vector.broadcast %cst_323 : f32 to vector<16x1xf32>
    %c0_324 = arith.constant 0 : index
    %c0_325 = arith.constant 0 : index
    %267 = vector.load %arg35[%c0_324, %c0_325] : memref<32x604xf32, #tpu.memory_space<vmem>>, vector<16x1xf32>
    tpu.vector_store %arg35[%c0_324, %c0_325], %266 {strides = array<i32>} : memref<32x604xf32, #tpu.memory_space<vmem>>, vector<16x1xf32>,
    %cst_326 = arith.constant 0.000000e+00 : f32
    %268 = vector.broadcast %cst_326 : f32 to vector<16x1xf32>
    %c0_327 = arith.constant 0 : index
    %c11_328 = arith.constant 11 : index
    %269 = vector.load %arg35[%c0_327, %c11_328] : memref<32x604xf32, #tpu.memory_space<vmem>>, vector<16x1xf32>
    tpu.vector_store %arg35[%c0_327, %c11_328], %268 {strides = array<i32>} : memref<32x604xf32, #tpu.memory_space<vmem>>, vector<16x1xf32>,
    %c0_329 = arith.constant 0 : index
    %c1_330 = arith.constant 1 : index
    %270 = vector.load %arg35[%c0_329, %c1_330] : memref<32x604xf32, #tpu.memory_space<vmem>>, vector<16x10xf32>
    tpu.vector_store %arg35[%c0_329, %c1_330], %265 {strides = array<i32>} : memref<32x604xf32, #tpu.memory_space<vmem>>, vector<16x10xf32>,
    %c0_331 = arith.constant 0 : index
    %c0_332 = arith.constant 0 : index
    %271 = vector.load %arg35[%c0_331, %c0_332] : memref<32x604xf32, #tpu.memory_space<vmem>>, vector<16x10xf32>
    %c0_333 = arith.constant 0 : index
    %c0_334 = arith.constant 0 : index
    %272 = vector.load %arg36[%c0_333, %c0_334] : memref<176x600xf32, #tpu.memory_space<vmem>>, vector<16x10xf32>
    tpu.vector_store %arg36[%c0_333, %c0_334], %271 {strides = array<i32>} : memref<176x600xf32, #tpu.memory_space<vmem>>, vector<16x10xf32>,
    %c0_335 = arith.constant 0 : index
    %c1_336 = arith.constant 1 : index
    %273 = vector.load %arg35[%c0_335, %c1_336] : memref<32x604xf32, #tpu.memory_space<vmem>>, vector<16x10xf32>
    %c16_337 = arith.constant 16 : index
    %c0_338 = arith.constant 0 : index
    %274 = vector.load %arg36[%c16_337, %c0_338] : memref<176x600xf32, #tpu.memory_space<vmem>>, vector<16x10xf32>
    tpu.vector_store %arg36[%c16_337, %c0_338], %273 {strides = array<i32>} : memref<176x600xf32, #tpu.memory_space<vmem>>, vector<16x10xf32>,
    %c0_339 = arith.constant 0 : index
    %c2_340 = arith.constant 2 : index
    %275 = vector.load %arg35[%c0_339, %c2_340] : memref<32x604xf32, #tpu.memory_space<vmem>>, vector<16x10xf32>
    %c32_341 = arith.constant 32 : index
    %c0_342 = arith.constant 0 : index
    %276 = vector.load %arg36[%c32_341, %c0_342] : memref<176x600xf32, #tpu.memory_space<vmem>>, vector<16x10xf32>
    tpu.vector_store %arg36[%c32_341, %c0_342], %275 {strides = array<i32>} : memref<176x600xf32, #tpu.memory_space<vmem>>, vector<16x10xf32>,
    %c0_343 = arith.constant 0 : index
    %c0_344 = arith.constant 0 : index
    %277 = vector.load %arg12[%c0_343, %c0_344] : memref<16x48xf32, #tpu.memory_space<vmem>>, vector<16x48xf32>
    %c0_345 = arith.constant 0 : index
    %c0_346 = arith.constant 0 : index
    %278 = vector.load %arg36[%c0_345, %c0_346] : memref<176x600xf32, #tpu.memory_space<vmem>>, vector<48x10xf32>
    %cst_347 = arith.constant dense<0.000000e+00> : vector<16x10xf32>
    %279 = tpu.matmul %277, %278, %cst_347 {dimension_numbers = #tpu.dot_dimension_numbers<[1], [0], [0], [1], [0, 0, 1, 1], [], []>} : vector<16x48xf32>, vector<48x10xf32>, vector<16x10xf32> -> vector<16x10xf32>
    %c0_348 = arith.constant 0 : index
    %c0_349 = arith.constant 0 : index
    %280 = vector.load %arg26[%c0_348, %c0_349] : memref<16x1xf32, #tpu.memory_space<vmem>>, vector<16x1xf32>
    %281 = vector.broadcast %280 : vector<16x1xf32> to vector<16x10xf32>
    %282 = arith.addf %279, %281 : vector<16x10xf32>
    %c0_350 = arith.constant 0 : index
    %c0_351 = arith.constant 0 : index
    %c0_352 = arith.constant 0 : index
    %283 = vector.load %arg31[%c0_350, %c0_351, %c0_352] : memref<1x16x10xf32, #tpu.memory_space<vmem>>, vector<1x16x10xf32>
    %284 = vector.shape_cast %283 : vector<1x16x10xf32> to vector<16x10xf32>
    %285 = vector.shape_cast %282 : vector<16x10xf32> to vector<1x16x10xf32>
    tpu.vector_store %arg31[%c0_350, %c0_351, %c0_352], %285 {strides = array<i32>} : memref<1x16x10xf32, #tpu.memory_space<vmem>>, vector<1x16x10xf32>,
    %cst_353 = arith.constant 0.000000e+00 : f32
    %286 = vector.broadcast %cst_353 : f32 to vector<16x10xf32>
    %287 = arith.cmpf oge, %282, %286 : vector<16x10xf32>
    %cst_354 = arith.constant 1.000000e-01 : f32
    %288 = vector.broadcast %cst_354 : f32 to vector<16x10xf32>
    %289 = arith.mulf %288, %282 : vector<16x10xf32>
    %290 = arith.select %287, %282, %289 : vector<16x10xi1>, vector<16x10xf32>
    %cst_355 = arith.constant 0.000000e+00 : f32
    %291 = vector.broadcast %cst_355 : f32 to vector<16x5xf32>
    %c0_356 = arith.constant 0 : index
    %c0_357 = arith.constant 0 : index
    %292 = vector.load %arg35[%c0_356, %c0_357] : memref<32x604xf32, #tpu.memory_space<vmem>>, vector<16x5xf32>
    tpu.vector_store %arg35[%c0_356, %c0_357], %291 {strides = array<i32>} : memref<32x604xf32, #tpu.memory_space<vmem>>, vector<16x5xf32>,
    %cst_358 = arith.constant 0.000000e+00 : f32
    %293 = vector.broadcast %cst_358 : f32 to vector<16x5xf32>
    %c0_359 = arith.constant 0 : index
    %c15 = arith.constant 15 : index
    %294 = vector.load %arg35[%c0_359, %c15] : memref<32x604xf32, #tpu.memory_space<vmem>>, vector<16x5xf32>
    tpu.vector_store %arg35[%c0_359, %c15], %293 {strides = array<i32>} : memref<32x604xf32, #tpu.memory_space<vmem>>, vector<16x5xf32>,
    %c0_360 = arith.constant 0 : index
    %c5_361 = arith.constant 5 : index
    %295 = vector.load %arg35[%c0_360, %c5_361] : memref<32x604xf32, #tpu.memory_space<vmem>>, vector<16x10xf32>
    tpu.vector_store %arg35[%c0_360, %c5_361], %290 {strides = array<i32>} : memref<32x604xf32, #tpu.memory_space<vmem>>, vector<16x10xf32>,
    %c0_362 = arith.constant 0 : index
    %c0_363 = arith.constant 0 : index
    %296 = vector.load %arg35[%c0_362, %c0_363] : memref<32x604xf32, #tpu.memory_space<vmem>>, vector<16x10xf32>
    %c0_364 = arith.constant 0 : index
    %c0_365 = arith.constant 0 : index
    %297 = vector.load %arg36[%c0_364, %c0_365] : memref<176x600xf32, #tpu.memory_space<vmem>>, vector<16x10xf32>
    tpu.vector_store %arg36[%c0_364, %c0_365], %296 {strides = array<i32>} : memref<176x600xf32, #tpu.memory_space<vmem>>, vector<16x10xf32>,
    %c0_366 = arith.constant 0 : index
    %c1_367 = arith.constant 1 : index
    %298 = vector.load %arg35[%c0_366, %c1_367] : memref<32x604xf32, #tpu.memory_space<vmem>>, vector<16x10xf32>
    %c16_368 = arith.constant 16 : index
    %c0_369 = arith.constant 0 : index
    %299 = vector.load %arg36[%c16_368, %c0_369] : memref<176x600xf32, #tpu.memory_space<vmem>>, vector<16x10xf32>
    tpu.vector_store %arg36[%c16_368, %c0_369], %298 {strides = array<i32>} : memref<176x600xf32, #tpu.memory_space<vmem>>, vector<16x10xf32>,
    %c0_370 = arith.constant 0 : index
    %c2_371 = arith.constant 2 : index
    %300 = vector.load %arg35[%c0_370, %c2_371] : memref<32x604xf32, #tpu.memory_space<vmem>>, vector<16x10xf32>
    %c32_372 = arith.constant 32 : index
    %c0_373 = arith.constant 0 : index
    %301 = vector.load %arg36[%c32_372, %c0_373] : memref<176x600xf32, #tpu.memory_space<vmem>>, vector<16x10xf32>
    tpu.vector_store %arg36[%c32_372, %c0_373], %300 {strides = array<i32>} : memref<176x600xf32, #tpu.memory_space<vmem>>, vector<16x10xf32>,
    %c0_374 = arith.constant 0 : index
    %c3_375 = arith.constant 3 : index
    %302 = vector.load %arg35[%c0_374, %c3_375] : memref<32x604xf32, #tpu.memory_space<vmem>>, vector<16x10xf32>
    %c48_376 = arith.constant 48 : index
    %c0_377 = arith.constant 0 : index
    %303 = vector.load %arg36[%c48_376, %c0_377] : memref<176x600xf32, #tpu.memory_space<vmem>>, vector<16x10xf32>
    tpu.vector_store %arg36[%c48_376, %c0_377], %302 {strides = array<i32>} : memref<176x600xf32, #tpu.memory_space<vmem>>, vector<16x10xf32>,
    %c0_378 = arith.constant 0 : index
    %c4_379 = arith.constant 4 : index
    %304 = vector.load %arg35[%c0_378, %c4_379] : memref<32x604xf32, #tpu.memory_space<vmem>>, vector<16x10xf32>
    %c64_380 = arith.constant 64 : index
    %c0_381 = arith.constant 0 : index
    %305 = vector.load %arg36[%c64_380, %c0_381] : memref<176x600xf32, #tpu.memory_space<vmem>>, vector<16x10xf32>
    tpu.vector_store %arg36[%c64_380, %c0_381], %304 {strides = array<i32>} : memref<176x600xf32, #tpu.memory_space<vmem>>, vector<16x10xf32>,
    %c0_382 = arith.constant 0 : index
    %c5_383 = arith.constant 5 : index
    %306 = vector.load %arg35[%c0_382, %c5_383] : memref<32x604xf32, #tpu.memory_space<vmem>>, vector<16x10xf32>
    %c80_384 = arith.constant 80 : index
    %c0_385 = arith.constant 0 : index
    %307 = vector.load %arg36[%c80_384, %c0_385] : memref<176x600xf32, #tpu.memory_space<vmem>>, vector<16x10xf32>
    tpu.vector_store %arg36[%c80_384, %c0_385], %306 {strides = array<i32>} : memref<176x600xf32, #tpu.memory_space<vmem>>, vector<16x10xf32>,
    %c0_386 = arith.constant 0 : index
    %c6_387 = arith.constant 6 : index
    %308 = vector.load %arg35[%c0_386, %c6_387] : memref<32x604xf32, #tpu.memory_space<vmem>>, vector<16x10xf32>
    %c96_388 = arith.constant 96 : index
    %c0_389 = arith.constant 0 : index
    %309 = vector.load %arg36[%c96_388, %c0_389] : memref<176x600xf32, #tpu.memory_space<vmem>>, vector<16x10xf32>
    tpu.vector_store %arg36[%c96_388, %c0_389], %308 {strides = array<i32>} : memref<176x600xf32, #tpu.memory_space<vmem>>, vector<16x10xf32>,
    %c0_390 = arith.constant 0 : index
    %c7_391 = arith.constant 7 : index
    %310 = vector.load %arg35[%c0_390, %c7_391] : memref<32x604xf32, #tpu.memory_space<vmem>>, vector<16x10xf32>
    %c112_392 = arith.constant 112 : index
    %c0_393 = arith.constant 0 : index
    %311 = vector.load %arg36[%c112_392, %c0_393] : memref<176x600xf32, #tpu.memory_space<vmem>>, vector<16x10xf32>
    tpu.vector_store %arg36[%c112_392, %c0_393], %310 {strides = array<i32>} : memref<176x600xf32, #tpu.memory_space<vmem>>, vector<16x10xf32>,
    %c0_394 = arith.constant 0 : index
    %c8_395 = arith.constant 8 : index
    %312 = vector.load %arg35[%c0_394, %c8_395] : memref<32x604xf32, #tpu.memory_space<vmem>>, vector<16x10xf32>
    %c128_396 = arith.constant 128 : index
    %c0_397 = arith.constant 0 : index
    %313 = vector.load %arg36[%c128_396, %c0_397] : memref<176x600xf32, #tpu.memory_space<vmem>>, vector<16x10xf32>
    tpu.vector_store %arg36[%c128_396, %c0_397], %312 {strides = array<i32>} : memref<176x600xf32, #tpu.memory_space<vmem>>, vector<16x10xf32>,
    %c0_398 = arith.constant 0 : index
    %c9 = arith.constant 9 : index
    %314 = vector.load %arg35[%c0_398, %c9] : memref<32x604xf32, #tpu.memory_space<vmem>>, vector<16x10xf32>
    %c144 = arith.constant 144 : index
    %c0_399 = arith.constant 0 : index
    %315 = vector.load %arg36[%c144, %c0_399] : memref<176x600xf32, #tpu.memory_space<vmem>>, vector<16x10xf32>
    tpu.vector_store %arg36[%c144, %c0_399], %314 {strides = array<i32>} : memref<176x600xf32, #tpu.memory_space<vmem>>, vector<16x10xf32>,
    %c0_400 = arith.constant 0 : index
    %c10 = arith.constant 10 : index
    %316 = vector.load %arg35[%c0_400, %c10] : memref<32x604xf32, #tpu.memory_space<vmem>>, vector<16x10xf32>
    %c160 = arith.constant 160 : index
    %c0_401 = arith.constant 0 : index
    %317 = vector.load %arg36[%c160, %c0_401] : memref<176x600xf32, #tpu.memory_space<vmem>>, vector<16x10xf32>
    tpu.vector_store %arg36[%c160, %c0_401], %316 {strides = array<i32>} : memref<176x600xf32, #tpu.memory_space<vmem>>, vector<16x10xf32>,
    %c0_402 = arith.constant 0 : index
    %c0_403 = arith.constant 0 : index
    %318 = vector.load %arg13[%c0_402, %c0_403] : memref<16x176xf32, #tpu.memory_space<vmem>>, vector<16x176xf32>
    %c0_404 = arith.constant 0 : index
    %c0_405 = arith.constant 0 : index
    %319 = vector.load %arg36[%c0_404, %c0_405] : memref<176x600xf32, #tpu.memory_space<vmem>>, vector<176x10xf32>
    %cst_406 = arith.constant dense<0.000000e+00> : vector<16x10xf32>
    %320 = tpu.matmul %318, %319, %cst_406 {dimension_numbers = #tpu.dot_dimension_numbers<[1], [0], [0], [1], [0, 0, 1, 1], [], []>} : vector<16x176xf32>, vector<176x10xf32>, vector<16x10xf32> -> vector<16x10xf32>
    %321 = tpu.iota {dimensions = array<i32: 0>} : vector<10x2xi32>
    %322 = tpu.iota {dimensions = array<i32: 1>} : vector<10x2xi32>
    %c5_i32_407 = arith.constant 5 : i32
    %323 = vector.broadcast %c5_i32_407 : i32 to vector<10x2xi32>
    %324 = arith.muli %322, %323 : vector<10x2xi32>
    %325 = arith.cmpi eq, %321, %324 : vector<10x2xi32>
    %326 = arith.extui %325 : vector<10x2xi1> to vector<10x2xi32>
    %327 = arith.sitofp %326 : vector<10x2xi32> to vector<10x2xf32>
    %cst_408 = arith.constant dense<0.000000e+00> : vector<16x2xf32>
    %328 = tpu.matmul %320, %327, %cst_408 {dimension_numbers = #tpu.dot_dimension_numbers<[1], [0], [0], [1], [0, 0, 1, 1], [], []>} : vector<16x10xf32>, vector<10x2xf32>, vector<16x2xf32> -> vector<16x2xf32>
    %c0_409 = arith.constant 0 : index
    %c0_410 = arith.constant 0 : index
    %329 = vector.load %arg27[%c0_409, %c0_410] : memref<16x1xf32, #tpu.memory_space<vmem>>, vector<16x1xf32>
    %330 = vector.broadcast %329 : vector<16x1xf32> to vector<16x2xf32>
    %331 = arith.addf %328, %330 : vector<16x2xf32>
    %cst_411 = arith.constant 0.000000e+00 : f32
    %332 = vector.broadcast %cst_411 : f32 to vector<16x1xf32>
    %c0_412 = arith.constant 0 : index
    %c0_413 = arith.constant 0 : index
    %333 = vector.load %arg35[%c0_412, %c0_413] : memref<32x604xf32, #tpu.memory_space<vmem>>, vector<16x1xf32>
    tpu.vector_store %arg35[%c0_412, %c0_413], %332 {strides = array<i32>} : memref<32x604xf32, #tpu.memory_space<vmem>>, vector<16x1xf32>,
    %cst_414 = arith.constant 0.000000e+00 : f32
    %334 = vector.broadcast %cst_414 : f32 to vector<16x1xf32>
    %c0_415 = arith.constant 0 : index
    %c3_416 = arith.constant 3 : index
    %335 = vector.load %arg35[%c0_415, %c3_416] : memref<32x604xf32, #tpu.memory_space<vmem>>, vector<16x1xf32>
    tpu.vector_store %arg35[%c0_415, %c3_416], %334 {strides = array<i32>} : memref<32x604xf32, #tpu.memory_space<vmem>>, vector<16x1xf32>,
    %c0_417 = arith.constant 0 : index
    %c1_418 = arith.constant 1 : index
    %336 = vector.load %arg35[%c0_417, %c1_418] : memref<32x604xf32, #tpu.memory_space<vmem>>, vector<16x2xf32>
    tpu.vector_store %arg35[%c0_417, %c1_418], %331 {strides = array<i32>} : memref<32x604xf32, #tpu.memory_space<vmem>>, vector<16x2xf32>,
    %c0_419 = arith.constant 0 : index
    %c0_420 = arith.constant 0 : index
    %337 = vector.load %arg35[%c0_419, %c0_420] : memref<32x604xf32, #tpu.memory_space<vmem>>, vector<16x2xf32>
    %c0_421 = arith.constant 0 : index
    %c0_422 = arith.constant 0 : index
    %338 = vector.load %arg36[%c0_421, %c0_422] : memref<176x600xf32, #tpu.memory_space<vmem>>, vector<16x2xf32>
    tpu.vector_store %arg36[%c0_421, %c0_422], %337 {strides = array<i32>} : memref<176x600xf32, #tpu.memory_space<vmem>>, vector<16x2xf32>,
    %c0_423 = arith.constant 0 : index
    %c1_424 = arith.constant 1 : index
    %339 = vector.load %arg35[%c0_423, %c1_424] : memref<32x604xf32, #tpu.memory_space<vmem>>, vector<16x2xf32>
    %c16_425 = arith.constant 16 : index
    %c0_426 = arith.constant 0 : index
    %340 = vector.load %arg36[%c16_425, %c0_426] : memref<176x600xf32, #tpu.memory_space<vmem>>, vector<16x2xf32>
    tpu.vector_store %arg36[%c16_425, %c0_426], %339 {strides = array<i32>} : memref<176x600xf32, #tpu.memory_space<vmem>>, vector<16x2xf32>,
    %c0_427 = arith.constant 0 : index
    %c2_428 = arith.constant 2 : index
    %341 = vector.load %arg35[%c0_427, %c2_428] : memref<32x604xf32, #tpu.memory_space<vmem>>, vector<16x2xf32>
    %c32_429 = arith.constant 32 : index
    %c0_430 = arith.constant 0 : index
    %342 = vector.load %arg36[%c32_429, %c0_430] : memref<176x600xf32, #tpu.memory_space<vmem>>, vector<16x2xf32>
    tpu.vector_store %arg36[%c32_429, %c0_430], %341 {strides = array<i32>} : memref<176x600xf32, #tpu.memory_space<vmem>>, vector<16x2xf32>,
    %c0_431 = arith.constant 0 : index
    %c0_432 = arith.constant 0 : index
    %343 = vector.load %arg14[%c0_431, %c0_432] : memref<32x48xf32, #tpu.memory_space<vmem>>, vector<32x48xf32>
    %c0_433 = arith.constant 0 : index
    %c0_434 = arith.constant 0 : index
    %344 = vector.load %arg36[%c0_433, %c0_434] : memref<176x600xf32, #tpu.memory_space<vmem>>, vector<48x2xf32>
    %cst_435 = arith.constant dense<0.000000e+00> : vector<32x2xf32>
    %345 = tpu.matmul %343, %344, %cst_435 {dimension_numbers = #tpu.dot_dimension_numbers<[1], [0], [0], [1], [0, 0, 1, 1], [], []>} : vector<32x48xf32>, vector<48x2xf32>, vector<32x2xf32> -> vector<32x2xf32>
    %c0_436 = arith.constant 0 : index
    %c0_437 = arith.constant 0 : index
    %346 = vector.load %arg28[%c0_436, %c0_437] : memref<32x1xf32, #tpu.memory_space<vmem>>, vector<32x1xf32>
    %347 = vector.broadcast %346 : vector<32x1xf32> to vector<32x2xf32>
    %348 = arith.addf %345, %347 : vector<32x2xf32>
    %cst_438 = arith.constant 0.000000e+00 : f32
    %349 = vector.broadcast %cst_438 : f32 to vector<32x2xf32>
    %350 = arith.cmpf oge, %348, %349 : vector<32x2xf32>
    %cst_439 = arith.constant 1.000000e-01 : f32
    %351 = vector.broadcast %cst_439 : f32 to vector<32x2xf32>
    %352 = arith.mulf %351, %348 : vector<32x2xf32>
    %353 = arith.select %350, %348, %352 : vector<32x2xi1>, vector<32x2xf32>
    %cst_440 = arith.constant 0.000000e+00 : f32
    %354 = vector.broadcast %cst_440 : f32 to vector<32x1xf32>
    %c0_441 = arith.constant 0 : index
    %c0_442 = arith.constant 0 : index
    %355 = vector.load %arg35[%c0_441, %c0_442] : memref<32x604xf32, #tpu.memory_space<vmem>>, vector<32x1xf32>
    tpu.vector_store %arg35[%c0_441, %c0_442], %354 {strides = array<i32>} : memref<32x604xf32, #tpu.memory_space<vmem>>, vector<32x1xf32>,
    %cst_443 = arith.constant 0.000000e+00 : f32
    %356 = vector.broadcast %cst_443 : f32 to vector<32x1xf32>
    %c0_444 = arith.constant 0 : index
    %c3_445 = arith.constant 3 : index
    %357 = vector.load %arg35[%c0_444, %c3_445] : memref<32x604xf32, #tpu.memory_space<vmem>>, vector<32x1xf32>
    tpu.vector_store %arg35[%c0_444, %c3_445], %356 {strides = array<i32>} : memref<32x604xf32, #tpu.memory_space<vmem>>, vector<32x1xf32>,
    %c0_446 = arith.constant 0 : index
    %c1_447 = arith.constant 1 : index
    %358 = vector.load %arg35[%c0_446, %c1_447] : memref<32x604xf32, #tpu.memory_space<vmem>>, vector<32x2xf32>
    tpu.vector_store %arg35[%c0_446, %c1_447], %353 {strides = array<i32>} : memref<32x604xf32, #tpu.memory_space<vmem>>, vector<32x2xf32>,
    %c0_448 = arith.constant 0 : index
    %c0_449 = arith.constant 0 : index
    %359 = vector.load %arg35[%c0_448, %c0_449] : memref<32x604xf32, #tpu.memory_space<vmem>>, vector<32x2xf32>
    %c0_450 = arith.constant 0 : index
    %c0_451 = arith.constant 0 : index
    %360 = vector.load %arg36[%c0_450, %c0_451] : memref<176x600xf32, #tpu.memory_space<vmem>>, vector<32x2xf32>
    tpu.vector_store %arg36[%c0_450, %c0_451], %359 {strides = array<i32>} : memref<176x600xf32, #tpu.memory_space<vmem>>, vector<32x2xf32>,
    %c0_452 = arith.constant 0 : index
    %c1_453 = arith.constant 1 : index
    %361 = vector.load %arg35[%c0_452, %c1_453] : memref<32x604xf32, #tpu.memory_space<vmem>>, vector<32x2xf32>
    %c32_454 = arith.constant 32 : index
    %c0_455 = arith.constant 0 : index
    %362 = vector.load %arg36[%c32_454, %c0_455] : memref<176x600xf32, #tpu.memory_space<vmem>>, vector<32x2xf32>
    tpu.vector_store %arg36[%c32_454, %c0_455], %361 {strides = array<i32>} : memref<176x600xf32, #tpu.memory_space<vmem>>, vector<32x2xf32>,
    %c0_456 = arith.constant 0 : index
    %c2_457 = arith.constant 2 : index
    %363 = vector.load %arg35[%c0_456, %c2_457] : memref<32x604xf32, #tpu.memory_space<vmem>>, vector<32x2xf32>
    %c64_458 = arith.constant 64 : index
    %c0_459 = arith.constant 0 : index
    %364 = vector.load %arg36[%c64_458, %c0_459] : memref<176x600xf32, #tpu.memory_space<vmem>>, vector<32x2xf32>
    tpu.vector_store %arg36[%c64_458, %c0_459], %363 {strides = array<i32>} : memref<176x600xf32, #tpu.memory_space<vmem>>, vector<32x2xf32>,
    %c0_460 = arith.constant 0 : index
    %c0_461 = arith.constant 0 : index
    %365 = vector.load %arg15[%c0_460, %c0_461] : memref<32x96xf32, #tpu.memory_space<vmem>>, vector<32x96xf32>
    %c0_462 = arith.constant 0 : index
    %c0_463 = arith.constant 0 : index
    %366 = vector.load %arg36[%c0_462, %c0_463] : memref<176x600xf32, #tpu.memory_space<vmem>>, vector<96x2xf32>
    %cst_464 = arith.constant dense<0.000000e+00> : vector<32x2xf32>
    %367 = tpu.matmul %365, %366, %cst_464 {dimension_numbers = #tpu.dot_dimension_numbers<[1], [0], [0], [1], [0, 0, 1, 1], [], []>} : vector<32x96xf32>, vector<96x2xf32>, vector<32x2xf32> -> vector<32x2xf32>
    %c0_465 = arith.constant 0 : index
    %c0_466 = arith.constant 0 : index
    %368 = vector.load %arg29[%c0_465, %c0_466] : memref<32x1xf32, #tpu.memory_space<vmem>>, vector<32x1xf32>
    %369 = vector.broadcast %368 : vector<32x1xf32> to vector<32x2xf32>
    %370 = arith.addf %367, %369 : vector<32x2xf32>
    %c0_467 = arith.constant 0 : index
    %c0_468 = arith.constant 0 : index
    %c0_469 = arith.constant 0 : index
    %371 = vector.load %arg30[%c0_467, %c0_468, %c0_469] : memref<1x32x2xf32, #tpu.memory_space<vmem>>, vector<1x32x2xf32>
    %372 = vector.shape_cast %371 : vector<1x32x2xf32> to vector<32x2xf32>
    %373 = vector.shape_cast %370 : vector<32x2xf32> to vector<1x32x2xf32>
    tpu.vector_store %arg30[%c0_467, %c0_468, %c0_469], %373 {strides = array<i32>} : memref<1x32x2xf32, #tpu.memory_space<vmem>>, vector<1x32x2xf32>,
    return
  }
  func.func @transform_0(%arg0: i32) -> (i32, i32, i32) {
    %c0_i32 = arith.constant 0 : i32
    %c0_i32_0 = arith.constant 0 : i32
    %c0_i32_1 = arith.constant 0 : i32
    return %arg0, %c0_i32, %c0_i32_0 : i32, i32, i32
  }
  func.func @transform_1(%arg0: i32) -> (i32, i32) {
    %c0_i32 = arith.constant 0 : i32
    %c0_i32_0 = arith.constant 0 : i32
    %c0_i32_1 = arith.constant 0 : i32
    return %c0_i32, %c0_i32_0 : i32, i32
  }
  func.func @transform_2(%arg0: i32) -> (i32, i32) {
    %c0_i32 = arith.constant 0 : i32
    %c0_i32_0 = arith.constant 0 : i32
    %c0_i32_1 = arith.constant 0 : i32
    return %c0_i32, %c0_i32_0 : i32, i32
  }
  func.func @transform_3(%arg0: i32) -> (i32, i32) {
    %c0_i32 = arith.constant 0 : i32
    %c0_i32_0 = arith.constant 0 : i32
    %c0_i32_1 = arith.constant 0 : i32
    return %c0_i32, %c0_i32_0 : i32, i32
  }
  func.func @transform_4(%arg0: i32) -> (i32, i32) {
    %c0_i32 = arith.constant 0 : i32
    %c0_i32_0 = arith.constant 0 : i32
    %c0_i32_1 = arith.constant 0 : i32
    return %c0_i32, %c0_i32_0 : i32, i32
  }
  func.func @transform_5(%arg0: i32) -> (i32, i32) {
    %c0_i32 = arith.constant 0 : i32
    %c0_i32_0 = arith.constant 0 : i32
    %c0_i32_1 = arith.constant 0 : i32
    return %c0_i32, %c0_i32_0 : i32, i32
  }
  func.func @transform_6(%arg0: i32) -> (i32, i32) {
    %c0_i32 = arith.constant 0 : i32
    %c0_i32_0 = arith.constant 0 : i32
    %c0_i32_1 = arith.constant 0 : i32
    return %c0_i32, %c0_i32_0 : i32, i32
  }
  func.func @transform_7(%arg0: i32) -> (i32, i32) {
    %c0_i32 = arith.constant 0 : i32
    %c0_i32_0 = arith.constant 0 : i32
    %c0_i32_1 = arith.constant 0 : i32
    return %c0_i32, %c0_i32_0 : i32, i32
  }
  func.func @transform_8(%arg0: i32) -> (i32, i32) {
    %c0_i32 = arith.constant 0 : i32
    %c0_i32_0 = arith.constant 0 : i32
    %c0_i32_1 = arith.constant 0 : i32
    return %c0_i32, %c0_i32_0 : i32, i32
  }
  func.func @transform_9(%arg0: i32) -> (i32, i32) {
    %c0_i32 = arith.constant 0 : i32
    %c0_i32_0 = arith.constant 0 : i32
    %c0_i32_1 = arith.constant 0 : i32
    return %c0_i32, %c0_i32_0 : i32, i32
  }
  func.func @transform_10(%arg0: i32) -> (i32, i32) {
    %c0_i32 = arith.constant 0 : i32
    %c0_i32_0 = arith.constant 0 : i32
    %c0_i32_1 = arith.constant 0 : i32
    return %c0_i32, %c0_i32_0 : i32, i32
  }
  func.func @transform_11(%arg0: i32) -> (i32, i32) {
    %c0_i32 = arith.constant 0 : i32
    %c0_i32_0 = arith.constant 0 : i32
    %c0_i32_1 = arith.constant 0 : i32
    return %c0_i32, %c0_i32_0 : i32, i32
  }
  func.func @transform_12(%arg0: i32) -> (i32, i32) {
    %c0_i32 = arith.constant 0 : i32
    %c0_i32_0 = arith.constant 0 : i32
    %c0_i32_1 = arith.constant 0 : i32
    return %c0_i32, %c0_i32_0 : i32, i32
  }
  func.func @transform_13(%arg0: i32) -> (i32, i32) {
    %c0_i32 = arith.constant 0 : i32
    %c0_i32_0 = arith.constant 0 : i32
    %c0_i32_1 = arith.constant 0 : i32
    return %c0_i32, %c0_i32_0 : i32, i32
  }
  func.func @transform_14(%arg0: i32) -> (i32, i32) {
    %c0_i32 = arith.constant 0 : i32
    %c0_i32_0 = arith.constant 0 : i32
    %c0_i32_1 = arith.constant 0 : i32
    return %c0_i32, %c0_i32_0 : i32, i32
  }
  func.func @transform_15(%arg0: i32) -> (i32, i32) {
    %c0_i32 = arith.constant 0 : i32
    %c0_i32_0 = arith.constant 0 : i32
    %c0_i32_1 = arith.constant 0 : i32
    return %c0_i32, %c0_i32_0 : i32, i32
  }
  func.func @transform_16(%arg0: i32) -> (i32, i32) {
    %c0_i32 = arith.constant 0 : i32
    %c0_i32_0 = arith.constant 0 : i32
    %c0_i32_1 = arith.constant 0 : i32
    return %c0_i32, %c0_i32_0 : i32, i32
  }
  func.func @transform_17(%arg0: i32) -> (i32, i32) {
    %c0_i32 = arith.constant 0 : i32
    %c0_i32_0 = arith.constant 0 : i32
    %c0_i32_1 = arith.constant 0 : i32
    return %c0_i32, %c0_i32_0 : i32, i32
  }
  func.func @transform_18(%arg0: i32) -> (i32, i32) {
    %c0_i32 = arith.constant 0 : i32
    %c0_i32_0 = arith.constant 0 : i32
    %c0_i32_1 = arith.constant 0 : i32
    return %c0_i32, %c0_i32_0 : i32, i32
  }
  func.func @transform_19(%arg0: i32) -> (i32, i32) {
    %c0_i32 = arith.constant 0 : i32
    %c0_i32_0 = arith.constant 0 : i32
    %c0_i32_1 = arith.constant 0 : i32
    return %c0_i32, %c0_i32_0 : i32, i32
  }
  func.func @transform_20(%arg0: i32) -> (i32, i32) {
    %c0_i32 = arith.constant 0 : i32
    %c0_i32_0 = arith.constant 0 : i32
    %c0_i32_1 = arith.constant 0 : i32
    return %c0_i32, %c0_i32_0 : i32, i32
  }
  func.func @transform_21(%arg0: i32) -> (i32, i32) {
    %c0_i32 = arith.constant 0 : i32
    %c0_i32_0 = arith.constant 0 : i32
    %c0_i32_1 = arith.constant 0 : i32
    return %c0_i32, %c0_i32_0 : i32, i32
  }
  func.func @transform_22(%arg0: i32) -> (i32, i32) {
    %c0_i32 = arith.constant 0 : i32
    %c0_i32_0 = arith.constant 0 : i32
    %c0_i32_1 = arith.constant 0 : i32
    return %c0_i32, %c0_i32_0 : i32, i32
  }
  func.func @transform_23(%arg0: i32) -> (i32, i32) {
    %c0_i32 = arith.constant 0 : i32
    %c0_i32_0 = arith.constant 0 : i32
    %c0_i32_1 = arith.constant 0 : i32
    return %c0_i32, %c0_i32_0 : i32, i32
  }
  func.func @transform_24(%arg0: i32) -> (i32, i32) {
    %c0_i32 = arith.constant 0 : i32
    %c0_i32_0 = arith.constant 0 : i32
    %c0_i32_1 = arith.constant 0 : i32
    return %c0_i32, %c0_i32_0 : i32, i32
  }
  func.func @transform_25(%arg0: i32) -> (i32, i32) {
    %c0_i32 = arith.constant 0 : i32
    %c0_i32_0 = arith.constant 0 : i32
    %c0_i32_1 = arith.constant 0 : i32
    return %c0_i32, %c0_i32_0 : i32, i32
  }
  func.func @transform_26(%arg0: i32) -> (i32, i32) {
    %c0_i32 = arith.constant 0 : i32
    %c0_i32_0 = arith.constant 0 : i32
    %c0_i32_1 = arith.constant 0 : i32
    return %c0_i32, %c0_i32_0 : i32, i32
  }
  func.func @transform_27(%arg0: i32) -> (i32, i32) {
    %c0_i32 = arith.constant 0 : i32
    %c0_i32_0 = arith.constant 0 : i32
    %c0_i32_1 = arith.constant 0 : i32
    return %c0_i32, %c0_i32_0 : i32, i32
  }
  func.func @transform_28(%arg0: i32) -> (i32, i32) {
    %c0_i32 = arith.constant 0 : i32
    %c0_i32_0 = arith.constant 0 : i32
    %c0_i32_1 = arith.constant 0 : i32
    return %c0_i32, %c0_i32_0 : i32, i32
  }
  func.func @transform_29(%arg0: i32) -> (i32, i32, i32) {
    %c0_i32 = arith.constant 0 : i32
    %c0_i32_0 = arith.constant 0 : i32
    %c0_i32_1 = arith.constant 0 : i32
    return %arg0, %c0_i32, %c0_i32_0 : i32, i32, i32
  }
  func.func @transform_30(%arg0: i32) -> (i32, i32, i32) {
    %c0_i32 = arith.constant 0 : i32
    %c0_i32_0 = arith.constant 0 : i32
    %c0_i32_1 = arith.constant 0 : i32
    return %arg0, %c0_i32, %c0_i32_0 : i32, i32, i32
  }
  func.func @transform_31(%arg0: i32) -> (i32, i32, i32) {
    %c0_i32 = arith.constant 0 : i32
    %c0_i32_0 = arith.constant 0 : i32
    %c0_i32_1 = arith.constant 0 : i32
    return %arg0, %c0_i32, %c0_i32_0 : i32, i32, i32
  }
  func.func @transform_32(%arg0: i32) -> (i32, i32, i32) {
    %c0_i32 = arith.constant 0 : i32
    %c0_i32_0 = arith.constant 0 : i32
    %c0_i32_1 = arith.constant 0 : i32
    return %arg0, %c0_i32, %c0_i32_0 : i32, i32, i32
  }
  func.func @transform_33(%arg0: i32) -> (i32, i32, i32) {
    %c0_i32 = arith.constant 0 : i32
    %c0_i32_0 = arith.constant 0 : i32
    %c0_i32_1 = arith.constant 0 : i32
    return %arg0, %c0_i32, %c0_i32_0 : i32, i32, i32
  }
}

</mosaic_0001>

<llo_original>
// kernel: tpu_custom_call.1
$region0: #{tpu_custom_call.1}
  #allocation0 [shape = 'u32[]', space=smem, size = 0x4, offset = 0x4, fixed_abs, tag = 'smem constant byte address 0x4 - core index']
  #allocation1 [shape = 'u32[144,128]{1,0:T(1,128)}', space=vmem, size = 0x12000, scoped, tag = 'internal scratch']
  #allocation2 [shape = 'f32[32,604]{1,0:T(8,128)}', space=vmem, size = 0x14000, scoped, tag = 'scratch operand']
  #allocation3 [shape = 'f32[176,600]{1,0:T(8,128)}', space=vmem, size = 0x6e000, scoped, tag = 'scratch operand']
  %s0 = inlined_call_operand.smem [shape: u32[34], index: -1, kind: input, shape index: {}]
  %s1 = sld [smem:[%s0]]
  %s2 = scalar_lea.smem %s0, 1
  %s3 = sld [smem:[%s2]]
  %s4 = scalar_lea.smem %s0, 2
  %s5 = sld [smem:[%s4]]
  %s6 = scalar_lea.smem %s0, 3
  %s7 = sld [smem:[%s6]]
  %s8 = scalar_lea.smem %s0, 4
  %s9 = sld [smem:[%s8]]
  %s10 = scalar_lea.smem %s0, 5
  %s11 = sld [smem:[%s10]]
  %s12 = scalar_lea.smem %s0, 6
  %s13 = sld [smem:[%s12]]
  %s14 = scalar_lea.smem %s0, 7
  %s15 = sld [smem:[%s14]]
  %s16 = scalar_lea.smem %s0, 8
  %s17 = sld [smem:[%s16]]
  %s18 = scalar_lea.smem %s0, 9
  %s19 = sld [smem:[%s18]]
  %s20 = scalar_lea.smem %s0, 10
  %s21 = sld [smem:[%s20]]
  %s22 = scalar_lea.smem %s0, 11
  %s23 = sld [smem:[%s22]]
  %s24 = scalar_lea.smem %s0, 12
  %s25 = sld [smem:[%s24]]
  %s26 = scalar_lea.smem %s0, 13
  %s27 = sld [smem:[%s26]]
  %s28 = scalar_lea.smem %s0, 14
  %s29 = sld [smem:[%s28]]
  %s30 = scalar_lea.smem %s0, 15
  %s31 = sld [smem:[%s30]]
  %s32 = scalar_lea.smem %s0, 16
  %s33 = sld [smem:[%s32]]
  %s34 = scalar_lea.smem %s0, 17
  %s35 = sld [smem:[%s34]]
  %s36 = scalar_lea.smem %s0, 18
  %s37 = sld [smem:[%s36]]
  %s38 = scalar_lea.smem %s0, 19
  %s39 = sld [smem:[%s38]]
  %s40 = scalar_lea.smem %s0, 20
  %s41 = sld [smem:[%s40]]
  %s42 = scalar_lea.smem %s0, 21
  %s43 = sld [smem:[%s42]]
  %s44 = scalar_lea.smem %s0, 22
  %s45 = sld [smem:[%s44]]
  %s46 = scalar_lea.smem %s0, 23
  %s47 = sld [smem:[%s46]]
  %s48 = scalar_lea.smem %s0, 24
  %s49 = sld [smem:[%s48]]
  %s50 = scalar_lea.smem %s0, 25
  %s51 = sld [smem:[%s50]]
  %s52 = scalar_lea.smem %s0, 26
  %s53 = sld [smem:[%s52]]
  %s54 = scalar_lea.smem %s0, 27
  %s55 = sld [smem:[%s54]]
  %s56 = scalar_lea.smem %s0, 28
  %s57 = sld [smem:[%s56]]
  %s58 = scalar_lea.smem %s0, 29
  %s59 = sld [smem:[%s58]]
  %s60 = scalar_lea.smem %s0, 30
  %s61 = sld [smem:[%s60]]
  %s62 = scalar_lea.smem %s0, 31
  %s63 = sld [smem:[%s62]]
  %s64 = scalar_lea.smem %s0, 32
  %s65 = sld [smem:[%s64]]
  %s66 = scalar_lea.smem %s0, 33
  %s67 = sld [smem:[%s66]]
  %68 = xla_tuple %s59, %s61, %s63, %s65, %s67
  %s69 = sld [smem:[#allocation0]]
  $region185: #{tpu_custom_call.1} parent=0
    _
  %s71 = ssub.s32 1, %s69
  %s72 = scalar_select 0, %s71, %s69
  $region1: #{tpu_custom_call.1} parent=0
    #allocation4 [shape = 'u8[4096]{0}', space=vmem, size = 0x1000, scoped, tag = 'input window, operand 5, single buffered']
    #allocation5 [shape = 's32[2]{0}', space=sflag, size = 0x8, scoped, tag = 'scoped memory for tpu_custom_call.1']
    #allocation6 [shape = 's32[2]{0}', space=sflag, size = 0x8, scoped, tag = 'scoped memory for tpu_custom_call.1']
    #allocation7 [shape = 'u8[16384]{0}', space=vmem, size = 0x4000, scoped, tag = 'output window, operand 2']
    #allocation8 [shape = 'u8[16384]{0}', space=vmem, size = 0x4000, scoped, tag = 'output window, operand 3']
    #allocation9 [shape = 's32[2]{0}', space=sflag, size = 0x8, scoped, tag = 'scoped memory for tpu_custom_call.1']
    #allocation10 [shape = 'u8[40960]{0}', space=vmem, size = 0xa000, scoped, tag = 'output window, operand 4']
    %73 = vsyncpa [#allocation5], 0
    %74 = vsyncpa [#allocation6], 0
    %s75 = scalar_lea.sflag [#allocation6], 1
    %76 = vsyncpa %s75, 0
    %77 = vsyncpa [#allocation9], 0
    %s78 = scalar_lea.sflag [#allocation9], 1
    %79 = vsyncpa %s78, 0
    loop: start=0, step=1, limit=4
    $region2: #{tpu_custom_call.1} parent=1 // loop_pre_header
      _
    $region3: #{tpu_custom_call.1} parent=1 // loop_header
      %s81 = sphi 0, %s85
      %p82 = scmp.ge.s32.totalorder %s81, 4
      %s91 = sphi 0, %s93
      %s94 = sphi 0, %s91
      %s95 = sphi 0, %s94
      %s111 = sphi 0, %s95
      %s115 = sphi 0, %s115
      %s117 = sphi 0, %s115
      %s118 = sphi 0, %s117
      %s132 = sphi 0, %s118
      %s136 = sphi 0, %s136
      %s138 = sphi 0, %s136
      %s139 = sphi 0, %s138
      %s153 = sphi 0, %s139
      %s157 = sphi 0, %s157
      %s159 = sphi 0, %s157
      %s160 = sphi 0, %s159
      %s174 = sphi 0, %s160
      %s178 = sphi 0, %s178
      %s180 = sphi 0, %s178
      %s181 = sphi 0, %s180
      %s195 = sphi 0, %s181
      %s199 = sphi 0, %s199
      %s201 = sphi 0, %s199
      %s202 = sphi 0, %s201
      %s216 = sphi 0, %s202
      %s220 = sphi 0, %s220
      %s222 = sphi 0, %s220
      %s223 = sphi 0, %s222
      %s237 = sphi 0, %s223
      %s241 = sphi 0, %s241
      %s243 = sphi 0, %s241
      %s244 = sphi 0, %s243
      %s258 = sphi 0, %s244
      %s262 = sphi 0, %s262
      %s264 = sphi 0, %s262
      %s265 = sphi 0, %s264
      %s279 = sphi 0, %s265
      %s283 = sphi 0, %s283
      %s285 = sphi 0, %s283
      %s286 = sphi 0, %s285
      %s300 = sphi 0, %s286
      %s304 = sphi 0, %s304
      %s306 = sphi 0, %s304
      %s307 = sphi 0, %s306
      %s321 = sphi 0, %s307
      %s325 = sphi 0, %s325
      %s327 = sphi 0, %s325
      %s328 = sphi 0, %s327
      %s342 = sphi 0, %s328
      %s346 = sphi 0, %s346
      %s348 = sphi 0, %s346
      %s349 = sphi 0, %s348
      %s363 = sphi 0, %s349
      %s367 = sphi 0, %s367
      %s369 = sphi 0, %s367
      %s370 = sphi 0, %s369
      %s384 = sphi 0, %s370
      %s388 = sphi 0, %s388
      %s390 = sphi 0, %s388
      %s391 = sphi 0, %s390
      %s405 = sphi 0, %s391
      %s409 = sphi 0, %s409
      %s411 = sphi 0, %s409
      %s412 = sphi 0, %s411
      %s426 = sphi 0, %s412
      %s430 = sphi 0, %s430
      %s432 = sphi 0, %s430
      %s433 = sphi 0, %s432
      %s447 = sphi 0, %s433
      %s451 = sphi 0, %s451
      %s453 = sphi 0, %s451
      %s454 = sphi 0, %s453
      %s468 = sphi 0, %s454
      %s472 = sphi 0, %s472
      %s474 = sphi 0, %s472
      %s475 = sphi 0, %s474
      %s489 = sphi 0, %s475
      %s493 = sphi 0, %s493
      %s495 = sphi 0, %s493
      %s496 = sphi 0, %s495
      %s510 = sphi 0, %s496
      %s514 = sphi 0, %s514
      %s516 = sphi 0, %s514
      %s517 = sphi 0, %s516
      %s531 = sphi 0, %s517
      %s535 = sphi 0, %s535
      %s537 = sphi 0, %s535
      %s538 = sphi 0, %s537
      %s552 = sphi 0, %s538
      %s556 = sphi 0, %s556
      %s558 = sphi 0, %s556
      %s559 = sphi 0, %s558
      %s573 = sphi 0, %s559
      %s577 = sphi 0, %s577
      %s579 = sphi 0, %s577
      %s580 = sphi 0, %s579
      %s594 = sphi 0, %s580
      %s598 = sphi 0, %s598
      %s600 = sphi 0, %s598
      %s601 = sphi 0, %s600
      %s615 = sphi 0, %s601
      %s619 = sphi 0, %s619
      %s621 = sphi 0, %s619
      %s622 = sphi 0, %s621
      %s636 = sphi 0, %s622
      %s640 = sphi 0, %s640
      %s642 = sphi 0, %s640
      %s643 = sphi 0, %s642
      %s657 = sphi 0, %s643
      %s661 = sphi 0, %s661
      %s663 = sphi 0, %s661
      %s664 = sphi 0, %s663
      %s678 = sphi 0, %s664
      %s682 = sphi 0, %s682
      %s684 = sphi 0, %s682
      %s685 = sphi 0, %s684
      %s699 = sphi 0, %s685
      %s705 = sphi 0, %s707
      %s708 = sphi 0, %s705
      %s709 = sphi 0, %s708
      %s725 = sphi 0, %s709
      %s731 = sphi 0, %s733
      %s734 = sphi 0, %s731
      %s735 = sphi 0, %s734
      %s751 = sphi 0, %s735
      %s757 = sphi 0, %s759
      %s760 = sphi 0, %s757
      %s761 = sphi 0, %s760
      %s777 = sphi 0, %s761
      %s783 = sphi 0, %s785
      %s786 = sphi 0, %s783
      %s787 = sphi 0, %s786
      %s803 = sphi 0, %s787
      %s809 = sphi 0, %s811
      %s812 = sphi 0, %s809
      %s813 = sphi 0, %s812
      %s829 = sphi 0, %s813
    $region4: #{tpu_custom_call.1} parent=1 // loop_header_branch
      %84 = sbr.rel (%p82) target = $region8
    $region5: #{tpu_custom_call.1} parent=1 // loop_body
      %s86 = ssub.s32 %s81, 1
      %s87 = ssub.s32 %s81, 2
      %s88 = sadd.s32 %s81, 1
      %s89 = ssub.s32 %s81, %s88
      %p90 = scmp.eq.s32.totalorder %s89, 0
      %s92 = sadd.s32 %s91, 1
      %s93 = scalar_select %p90, %s91, %s92
      %p96 = pneg %p90
      %p97 = scmp.eq.s32.totalorder %s81, 1
      %p98 = por %p96, %p97
      %p99 = scmp.ne.s32.totalorder %s91, %s94
      %p100 = scmp.eq.s32.totalorder %s81, 0
      %p101 = por %p99, %p100
      %p102 = scmp.ne.s32.totalorder %s91, %s94
      %p103 = scmp.eq.s32.totalorder %s86, 1
      %p104 = por %p102, %p103
      %p105 = scmp.ne.s32.totalorder %s94, %s95
      %p106 = scmp.eq.s32.totalorder %s86, 0
      %p107 = por %p105, %p106
      %p108 = scmp.ne.s32.totalorder %s94, %s95
      %p109 = scmp.eq.s32.totalorder %s87, 1
      %p110 = por %p108, %p109
      %p112 = scmp.ne.s32.totalorder %s95, %s111
      %p113 = scmp.eq.s32.totalorder %s87, 0
      %p114 = por %p112, %p113
      %s116 = sadd.s32 %s115, 1
      %p119 = scmp.eq.s32.totalorder %s81, 1
      %p120 = scmp.ne.s32.totalorder %s115, %s117
      %p121 = scmp.eq.s32.totalorder %s81, 0
      %p122 = por %p120, %p121
      %p123 = scmp.ne.s32.totalorder %s115, %s117
      %p124 = scmp.eq.s32.totalorder %s86, 1
      %p125 = por %p123, %p124
      %p126 = scmp.ne.s32.totalorder %s117, %s118
      %p127 = scmp.eq.s32.totalorder %s86, 0
      %p128 = por %p126, %p127
      %p129 = scmp.ne.s32.totalorder %s117, %s118
      %p130 = scmp.eq.s32.totalorder %s87, 1
      %p131 = por %p129, %p130
      %p133 = scmp.ne.s32.totalorder %s118, %s132
      %p134 = scmp.eq.s32.totalorder %s87, 0
      %p135 = por %p133, %p134
      %s137 = sadd.s32 %s136, 1
      %p140 = scmp.eq.s32.totalorder %s81, 1
      %p141 = scmp.ne.s32.totalorder %s136, %s138
      %p142 = scmp.eq.s32.totalorder %s81, 0
      %p143 = por %p141, %p142
      %p144 = scmp.ne.s32.totalorder %s136, %s138
      %p145 = scmp.eq.s32.totalorder %s86, 1
      %p146 = por %p144, %p145
      %p147 = scmp.ne.s32.totalorder %s138, %s139
      %p148 = scmp.eq.s32.totalorder %s86, 0
      %p149 = por %p147, %p148
      %p150 = scmp.ne.s32.totalorder %s138, %s139
      %p151 = scmp.eq.s32.totalorder %s87, 1
      %p152 = por %p150, %p151
      %p154 = scmp.ne.s32.totalorder %s139, %s153
      %p155 = scmp.eq.s32.totalorder %s87, 0
      %p156 = por %p154, %p155
      %s158 = sadd.s32 %s157, 1
      %p161 = scmp.eq.s32.totalorder %s81, 1
      %p162 = scmp.ne.s32.totalorder %s157, %s159
      %p163 = scmp.eq.s32.totalorder %s81, 0
      %p164 = por %p162, %p163
      %p165 = scmp.ne.s32.totalorder %s157, %s159
      %p166 = scmp.eq.s32.totalorder %s86, 1
      %p167 = por %p165, %p166
      %p168 = scmp.ne.s32.totalorder %s159, %s160
      %p169 = scmp.eq.s32.totalorder %s86, 0
      %p170 = por %p168, %p169
      %p171 = scmp.ne.s32.totalorder %s159, %s160
      %p172 = scmp.eq.s32.totalorder %s87, 1
      %p173 = por %p171, %p172
      %p175 = scmp.ne.s32.totalorder %s160, %s174
      %p176 = scmp.eq.s32.totalorder %s87, 0
      %p177 = por %p175, %p176
      %s179 = sadd.s32 %s178, 1
      %p182 = scmp.eq.s32.totalorder %s81, 1
      %p183 = scmp.ne.s32.totalorder %s178, %s180
      %p184 = scmp.eq.s32.totalorder %s81, 0
      %p185 = por %p183, %p184
      %p186 = scmp.ne.s32.totalorder %s178, %s180
      %p187 = scmp.eq.s32.totalorder %s86, 1
      %p188 = por %p186, %p187
      %p189 = scmp.ne.s32.totalorder %s180, %s181
      %p190 = scmp.eq.s32.totalorder %s86, 0
      %p191 = por %p189, %p190
      %p192 = scmp.ne.s32.totalorder %s180, %s181
      %p193 = scmp.eq.s32.totalorder %s87, 1
      %p194 = por %p192, %p193
      %p196 = scmp.ne.s32.totalorder %s181, %s195
      %p197 = scmp.eq.s32.totalorder %s87, 0
      %p198 = por %p196, %p197
      %s200 = sadd.s32 %s199, 1
      %p203 = scmp.eq.s32.totalorder %s81, 1
      %p204 = scmp.ne.s32.totalorder %s199, %s201
      %p205 = scmp.eq.s32.totalorder %s81, 0
      %p206 = por %p204, %p205
      %p207 = scmp.ne.s32.totalorder %s199, %s201
      %p208 = scmp.eq.s32.totalorder %s86, 1
      %p209 = por %p207, %p208
      %p210 = scmp.ne.s32.totalorder %s201, %s202
      %p211 = scmp.eq.s32.totalorder %s86, 0
      %p212 = por %p210, %p211
      %p213 = scmp.ne.s32.totalorder %s201, %s202
      %p214 = scmp.eq.s32.totalorder %s87, 1
      %p215 = por %p213, %p214
      %p217 = scmp.ne.s32.totalorder %s202, %s216
      %p218 = scmp.eq.s32.totalorder %s87, 0
      %p219 = por %p217, %p218
      %s221 = sadd.s32 %s220, 1
      %p224 = scmp.eq.s32.totalorder %s81, 1
      %p225 = scmp.ne.s32.totalorder %s220, %s222
      %p226 = scmp.eq.s32.totalorder %s81, 0
      %p227 = por %p225, %p226
      %p228 = scmp.ne.s32.totalorder %s220, %s222
      %p229 = scmp.eq.s32.totalorder %s86, 1
      %p230 = por %p228, %p229
      %p231 = scmp.ne.s32.totalorder %s222, %s223
      %p232 = scmp.eq.s32.totalorder %s86, 0
      %p233 = por %p231, %p232
      %p234 = scmp.ne.s32.totalorder %s222, %s223
      %p235 = scmp.eq.s32.totalorder %s87, 1
      %p236 = por %p234, %p235
      %p238 = scmp.ne.s32.totalorder %s223, %s237
      %p239 = scmp.eq.s32.totalorder %s87, 0
      %p240 = por %p238, %p239
      %s242 = sadd.s32 %s241, 1
      %p245 = scmp.eq.s32.totalorder %s81, 1
      %p246 = scmp.ne.s32.totalorder %s241, %s243
      %p247 = scmp.eq.s32.totalorder %s81, 0
      %p248 = por %p246, %p247
      %p249 = scmp.ne.s32.totalorder %s241, %s243
      %p250 = scmp.eq.s32.totalorder %s86, 1
      %p251 = por %p249, %p250
      %p252 = scmp.ne.s32.totalorder %s243, %s244
      %p253 = scmp.eq.s32.totalorder %s86, 0
      %p254 = por %p252, %p253
      %p255 = scmp.ne.s32.totalorder %s243, %s244
      %p256 = scmp.eq.s32.totalorder %s87, 1
      %p257 = por %p255, %p256
      %p259 = scmp.ne.s32.totalorder %s244, %s258
      %p260 = scmp.eq.s32.totalorder %s87, 0
      %p261 = por %p259, %p260
      %s263 = sadd.s32 %s262, 1
      %p266 = scmp.eq.s32.totalorder %s81, 1
      %p267 = scmp.ne.s32.totalorder %s262, %s264
      %p268 = scmp.eq.s32.totalorder %s81, 0
      %p269 = por %p267, %p268
      %p270 = scmp.ne.s32.totalorder %s262, %s264
      %p271 = scmp.eq.s32.totalorder %s86, 1
      %p272 = por %p270, %p271
      %p273 = scmp.ne.s32.totalorder %s264, %s265
      %p274 = scmp.eq.s32.totalorder %s86, 0
      %p275 = por %p273, %p274
      %p276 = scmp.ne.s32.totalorder %s264, %s265
      %p277 = scmp.eq.s32.totalorder %s87, 1
      %p278 = por %p276, %p277
      %p280 = scmp.ne.s32.totalorder %s265, %s279
      %p281 = scmp.eq.s32.totalorder %s87, 0
      %p282 = por %p280, %p281
      %s284 = sadd.s32 %s283, 1
      %p287 = scmp.eq.s32.totalorder %s81, 1
      %p288 = scmp.ne.s32.totalorder %s283, %s285
      %p289 = scmp.eq.s32.totalorder %s81, 0
      %p290 = por %p288, %p289
      %p291 = scmp.ne.s32.totalorder %s283, %s285
      %p292 = scmp.eq.s32.totalorder %s86, 1
      %p293 = por %p291, %p292
      %p294 = scmp.ne.s32.totalorder %s285, %s286
      %p295 = scmp.eq.s32.totalorder %s86, 0
      %p296 = por %p294, %p295
      %p297 = scmp.ne.s32.totalorder %s285, %s286
      %p298 = scmp.eq.s32.totalorder %s87, 1
      %p299 = por %p297, %p298
      %p301 = scmp.ne.s32.totalorder %s286, %s300
      %p302 = scmp.eq.s32.totalorder %s87, 0
      %p303 = por %p301, %p302
      %s305 = sadd.s32 %s304, 1
      %p308 = scmp.eq.s32.totalorder %s81, 1
      %p309 = scmp.ne.s32.totalorder %s304, %s306
      %p310 = scmp.eq.s32.totalorder %s81, 0
      %p311 = por %p309, %p310
      %p312 = scmp.ne.s32.totalorder %s304, %s306
      %p313 = scmp.eq.s32.totalorder %s86, 1
      %p314 = por %p312, %p313
      %p315 = scmp.ne.s32.totalorder %s306, %s307
      %p316 = scmp.eq.s32.totalorder %s86, 0
      %p317 = por %p315, %p316
      %p318 = scmp.ne.s32.totalorder %s306, %s307
      %p319 = scmp.eq.s32.totalorder %s87, 1
      %p320 = por %p318, %p319
      %p322 = scmp.ne.s32.totalorder %s307, %s321
      %p323 = scmp.eq.s32.totalorder %s87, 0
      %p324 = por %p322, %p323
      %s326 = sadd.s32 %s325, 1
      %p329 = scmp.eq.s32.totalorder %s81, 1
      %p330 = scmp.ne.s32.totalorder %s325, %s327
      %p331 = scmp.eq.s32.totalorder %s81, 0
      %p332 = por %p330, %p331
      %p333 = scmp.ne.s32.totalorder %s325, %s327
      %p334 = scmp.eq.s32.totalorder %s86, 1
      %p335 = por %p333, %p334
      %p336 = scmp.ne.s32.totalorder %s327, %s328
      %p337 = scmp.eq.s32.totalorder %s86, 0
      %p338 = por %p336, %p337
      %p339 = scmp.ne.s32.totalorder %s327, %s328
      %p340 = scmp.eq.s32.totalorder %s87, 1
      %p341 = por %p339, %p340
      %p343 = scmp.ne.s32.totalorder %s328, %s342
      %p344 = scmp.eq.s32.totalorder %s87, 0
      %p345 = por %p343, %p344
      %s347 = sadd.s32 %s346, 1
      %p350 = scmp.eq.s32.totalorder %s81, 1
      %p351 = scmp.ne.s32.totalorder %s346, %s348
      %p352 = scmp.eq.s32.totalorder %s81, 0
      %p353 = por %p351, %p352
      %p354 = scmp.ne.s32.totalorder %s346, %s348
      %p355 = scmp.eq.s32.totalorder %s86, 1
      %p356 = por %p354, %p355
      %p357 = scmp.ne.s32.totalorder %s348, %s349
      %p358 = scmp.eq.s32.totalorder %s86, 0
      %p359 = por %p357, %p358
      %p360 = scmp.ne.s32.totalorder %s348, %s349
      %p361 = scmp.eq.s32.totalorder %s87, 1
      %p362 = por %p360, %p361
      %p364 = scmp.ne.s32.totalorder %s349, %s363
      %p365 = scmp.eq.s32.totalorder %s87, 0
      %p366 = por %p364, %p365
      %s368 = sadd.s32 %s367, 1
      %p371 = scmp.eq.s32.totalorder %s81, 1
      %p372 = scmp.ne.s32.totalorder %s367, %s369
      %p373 = scmp.eq.s32.totalorder %s81, 0
      %p374 = por %p372, %p373
      %p375 = scmp.ne.s32.totalorder %s367, %s369
      %p376 = scmp.eq.s32.totalorder %s86, 1
      %p377 = por %p375, %p376
      %p378 = scmp.ne.s32.totalorder %s369, %s370
      %p379 = scmp.eq.s32.totalorder %s86, 0
      %p380 = por %p378, %p379
      %p381 = scmp.ne.s32.totalorder %s369, %s370
      %p382 = scmp.eq.s32.totalorder %s87, 1
      %p383 = por %p381, %p382
      %p385 = scmp.ne.s32.totalorder %s370, %s384
      %p386 = scmp.eq.s32.totalorder %s87, 0
      %p387 = por %p385, %p386
      %s389 = sadd.s32 %s388, 1
      %p392 = scmp.eq.s32.totalorder %s81, 1
      %p393 = scmp.ne.s32.totalorder %s388, %s390
      %p394 = scmp.eq.s32.totalorder %s81, 0
      %p395 = por %p393, %p394
      %p396 = scmp.ne.s32.totalorder %s388, %s390
      %p397 = scmp.eq.s32.totalorder %s86, 1
      %p398 = por %p396, %p397
      %p399 = scmp.ne.s32.totalorder %s390, %s391
      %p400 = scmp.eq.s32.totalorder %s86, 0
      %p401 = por %p399, %p400
      %p402 = scmp.ne.s32.totalorder %s390, %s391
      %p403 = scmp.eq.s32.totalorder %s87, 1
      %p404 = por %p402, %p403
      %p406 = scmp.ne.s32.totalorder %s391, %s405
      %p407 = scmp.eq.s32.totalorder %s87, 0
      %p408 = por %p406, %p407
      %s410 = sadd.s32 %s409, 1
      %p413 = scmp.eq.s32.totalorder %s81, 1
      %p414 = scmp.ne.s32.totalorder %s409, %s411
      %p415 = scmp.eq.s32.totalorder %s81, 0
      %p416 = por %p414, %p415
      %p417 = scmp.ne.s32.totalorder %s409, %s411
      %p418 = scmp.eq.s32.totalorder %s86, 1
      %p419 = por %p417, %p418
      %p420 = scmp.ne.s32.totalorder %s411, %s412
      %p421 = scmp.eq.s32.totalorder %s86, 0
      %p422 = por %p420, %p421
      %p423 = scmp.ne.s32.totalorder %s411, %s412
      %p424 = scmp.eq.s32.totalorder %s87, 1
      %p425 = por %p423, %p424
      %p427 = scmp.ne.s32.totalorder %s412, %s426
      %p428 = scmp.eq.s32.totalorder %s87, 0
      %p429 = por %p427, %p428
      %s431 = sadd.s32 %s430, 1
      %p434 = scmp.eq.s32.totalorder %s81, 1
      %p435 = scmp.ne.s32.totalorder %s430, %s432
      %p436 = scmp.eq.s32.totalorder %s81, 0
      %p437 = por %p435, %p436
      %p438 = scmp.ne.s32.totalorder %s430, %s432
      %p439 = scmp.eq.s32.totalorder %s86, 1
      %p440 = por %p438, %p439
      %p441 = scmp.ne.s32.totalorder %s432, %s433
      %p442 = scmp.eq.s32.totalorder %s86, 0
      %p443 = por %p441, %p442
      %p444 = scmp.ne.s32.totalorder %s432, %s433
      %p445 = scmp.eq.s32.totalorder %s87, 1
      %p446 = por %p444, %p445
      %p448 = scmp.ne.s32.totalorder %s433, %s447
      %p449 = scmp.eq.s32.totalorder %s87, 0
      %p450 = por %p448, %p449
      %s452 = sadd.s32 %s451, 1
      %p455 = scmp.eq.s32.totalorder %s81, 1
      %p456 = scmp.ne.s32.totalorder %s451, %s453
      %p457 = scmp.eq.s32.totalorder %s81, 0
      %p458 = por %p456, %p457
      %p459 = scmp.ne.s32.totalorder %s451, %s453
      %p460 = scmp.eq.s32.totalorder %s86, 1
      %p461 = por %p459, %p460
      %p462 = scmp.ne.s32.totalorder %s453, %s454
      %p463 = scmp.eq.s32.totalorder %s86, 0
      %p464 = por %p462, %p463
      %p465 = scmp.ne.s32.totalorder %s453, %s454
      %p466 = scmp.eq.s32.totalorder %s87, 1
      %p467 = por %p465, %p466
      %p469 = scmp.ne.s32.totalorder %s454, %s468
      %p470 = scmp.eq.s32.totalorder %s87, 0
      %p471 = por %p469, %p470
      %s473 = sadd.s32 %s472, 1
      %p476 = scmp.eq.s32.totalorder %s81, 1
      %p477 = scmp.ne.s32.totalorder %s472, %s474
      %p478 = scmp.eq.s32.totalorder %s81, 0
      %p479 = por %p477, %p478
      %p480 = scmp.ne.s32.totalorder %s472, %s474
      %p481 = scmp.eq.s32.totalorder %s86, 1
      %p482 = por %p480, %p481
      %p483 = scmp.ne.s32.totalorder %s474, %s475
      %p484 = scmp.eq.s32.totalorder %s86, 0
      %p485 = por %p483, %p484
      %p486 = scmp.ne.s32.totalorder %s474, %s475
      %p487 = scmp.eq.s32.totalorder %s87, 1
      %p488 = por %p486, %p487
      %p490 = scmp.ne.s32.totalorder %s475, %s489
      %p491 = scmp.eq.s32.totalorder %s87, 0
      %p492 = por %p490, %p491
      %s494 = sadd.s32 %s493, 1
      %p497 = scmp.eq.s32.totalorder %s81, 1
      %p498 = scmp.ne.s32.totalorder %s493, %s495
      %p499 = scmp.eq.s32.totalorder %s81, 0
      %p500 = por %p498, %p499
      %p501 = scmp.ne.s32.totalorder %s493, %s495
      %p502 = scmp.eq.s32.totalorder %s86, 1
      %p503 = por %p501, %p502
      %p504 = scmp.ne.s32.totalorder %s495, %s496
      %p505 = scmp.eq.s32.totalorder %s86, 0
      %p506 = por %p504, %p505
      %p507 = scmp.ne.s32.totalorder %s495, %s496
      %p508 = scmp.eq.s32.totalorder %s87, 1
      %p509 = por %p507, %p508
      %p511 = scmp.ne.s32.totalorder %s496, %s510
      %p512 = scmp.eq.s32.totalorder %s87, 0
      %p513 = por %p511, %p512
      %s515 = sadd.s32 %s514, 1
      %p518 = scmp.eq.s32.totalorder %s81, 1
      %p519 = scmp.ne.s32.totalorder %s514, %s516
      %p520 = scmp.eq.s32.totalorder %s81, 0
      %p521 = por %p519, %p520
      %p522 = scmp.ne.s32.totalorder %s514, %s516
      %p523 = scmp.eq.s32.totalorder %s86, 1
      %p524 = por %p522, %p523
      %p525 = scmp.ne.s32.totalorder %s516, %s517
      %p526 = scmp.eq.s32.totalorder %s86, 0
      %p527 = por %p525, %p526
      %p528 = scmp.ne.s32.totalorder %s516, %s517
      %p529 = scmp.eq.s32.totalorder %s87, 1
      %p530 = por %p528, %p529
      %p532 = scmp.ne.s32.totalorder %s517, %s531
      %p533 = scmp.eq.s32.totalorder %s87, 0
      %p534 = por %p532, %p533
      %s536 = sadd.s32 %s535, 1
      %p539 = scmp.eq.s32.totalorder %s81, 1
      %p540 = scmp.ne.s32.totalorder %s535, %s537
      %p541 = scmp.eq.s32.totalorder %s81, 0
      %p542 = por %p540, %p541
      %p543 = scmp.ne.s32.totalorder %s535, %s537
      %p544 = scmp.eq.s32.totalorder %s86, 1
      %p545 = por %p543, %p544
      %p546 = scmp.ne.s32.totalorder %s537, %s538
      %p547 = scmp.eq.s32.totalorder %s86, 0
      %p548 = por %p546, %p547
      %p549 = scmp.ne.s32.totalorder %s537, %s538
      %p550 = scmp.eq.s32.totalorder %s87, 1
      %p551 = por %p549, %p550
      %p553 = scmp.ne.s32.totalorder %s538, %s552
      %p554 = scmp.eq.s32.totalorder %s87, 0
      %p555 = por %p553, %p554
      %s557 = sadd.s32 %s556, 1
      %p560 = scmp.eq.s32.totalorder %s81, 1
      %p561 = scmp.ne.s32.totalorder %s556, %s558
      %p562 = scmp.eq.s32.totalorder %s81, 0
      %p563 = por %p561, %p562
      %p564 = scmp.ne.s32.totalorder %s556, %s558
      %p565 = scmp.eq.s32.totalorder %s86, 1
      %p566 = por %p564, %p565
      %p567 = scmp.ne.s32.totalorder %s558, %s559
      %p568 = scmp.eq.s32.totalorder %s86, 0
      %p569 = por %p567, %p568
      %p570 = scmp.ne.s32.totalorder %s558, %s559
      %p571 = scmp.eq.s32.totalorder %s87, 1
      %p572 = por %p570, %p571
      %p574 = scmp.ne.s32.totalorder %s559, %s573
      %p575 = scmp.eq.s32.totalorder %s87, 0
      %p576 = por %p574, %p575
      %s578 = sadd.s32 %s577, 1
      %p581 = scmp.eq.s32.totalorder %s81, 1
      %p582 = scmp.ne.s32.totalorder %s577, %s579
      %p583 = scmp.eq.s32.totalorder %s81, 0
      %p584 = por %p582, %p583
      %p585 = scmp.ne.s32.totalorder %s577, %s579
      %p586 = scmp.eq.s32.totalorder %s86, 1
      %p587 = por %p585, %p586
      %p588 = scmp.ne.s32.totalorder %s579, %s580
      %p589 = scmp.eq.s32.totalorder %s86, 0
      %p590 = por %p588, %p589
      %p591 = scmp.ne.s32.totalorder %s579, %s580
      %p592 = scmp.eq.s32.totalorder %s87, 1
      %p593 = por %p591, %p592
      %p595 = scmp.ne.s32.totalorder %s580, %s594
      %p596 = scmp.eq.s32.totalorder %s87, 0
      %p597 = por %p595, %p596
      %s599 = sadd.s32 %s598, 1
      %p602 = scmp.eq.s32.totalorder %s81, 1
      %p603 = scmp.ne.s32.totalorder %s598, %s600
      %p604 = scmp.eq.s32.totalorder %s81, 0
      %p605 = por %p603, %p604
      %p606 = scmp.ne.s32.totalorder %s598, %s600
      %p607 = scmp.eq.s32.totalorder %s86, 1
      %p608 = por %p606, %p607
      %p609 = scmp.ne.s32.totalorder %s600, %s601
      %p610 = scmp.eq.s32.totalorder %s86, 0
      %p611 = por %p609, %p610
      %p612 = scmp.ne.s32.totalorder %s600, %s601
      %p613 = scmp.eq.s32.totalorder %s87, 1
      %p614 = por %p612, %p613
      %p616 = scmp.ne.s32.totalorder %s601, %s615
      %p617 = scmp.eq.s32.totalorder %s87, 0
      %p618 = por %p616, %p617
      %s620 = sadd.s32 %s619, 1
      %p623 = scmp.eq.s32.totalorder %s81, 1
      %p624 = scmp.ne.s32.totalorder %s619, %s621
      %p625 = scmp.eq.s32.totalorder %s81, 0
      %p626 = por %p624, %p625
      %p627 = scmp.ne.s32.totalorder %s619, %s621
      %p628 = scmp.eq.s32.totalorder %s86, 1
      %p629 = por %p627, %p628
      %p630 = scmp.ne.s32.totalorder %s621, %s622
      %p631 = scmp.eq.s32.totalorder %s86, 0
      %p632 = por %p630, %p631
      %p633 = scmp.ne.s32.totalorder %s621, %s622
      %p634 = scmp.eq.s32.totalorder %s87, 1
      %p635 = por %p633, %p634
      %p637 = scmp.ne.s32.totalorder %s622, %s636
      %p638 = scmp.eq.s32.totalorder %s87, 0
      %p639 = por %p637, %p638
      %s641 = sadd.s32 %s640, 1
      %p644 = scmp.eq.s32.totalorder %s81, 1
      %p645 = scmp.ne.s32.totalorder %s640, %s642
      %p646 = scmp.eq.s32.totalorder %s81, 0
      %p647 = por %p645, %p646
      %p648 = scmp.ne.s32.totalorder %s640, %s642
      %p649 = scmp.eq.s32.totalorder %s86, 1
      %p650 = por %p648, %p649
      %p651 = scmp.ne.s32.totalorder %s642, %s643
      %p652 = scmp.eq.s32.totalorder %s86, 0
      %p653 = por %p651, %p652
      %p654 = scmp.ne.s32.totalorder %s642, %s643
      %p655 = scmp.eq.s32.totalorder %s87, 1
      %p656 = por %p654, %p655
      %p658 = scmp.ne.s32.totalorder %s643, %s657
      %p659 = scmp.eq.s32.totalorder %s87, 0
      %p660 = por %p658, %p659
      %s662 = sadd.s32 %s661, 1
      %p665 = scmp.eq.s32.totalorder %s81, 1
      %p666 = scmp.ne.s32.totalorder %s661, %s663
      %p667 = scmp.eq.s32.totalorder %s81, 0
      %p668 = por %p666, %p667
      %p669 = scmp.ne.s32.totalorder %s661, %s663
      %p670 = scmp.eq.s32.totalorder %s86, 1
      %p671 = por %p669, %p670
      %p672 = scmp.ne.s32.totalorder %s663, %s664
      %p673 = scmp.eq.s32.totalorder %s86, 0
      %p674 = por %p672, %p673
      %p675 = scmp.ne.s32.totalorder %s663, %s664
      %p676 = scmp.eq.s32.totalorder %s87, 1
      %p677 = por %p675, %p676
      %p679 = scmp.ne.s32.totalorder %s664, %s678
      %p680 = scmp.eq.s32.totalorder %s87, 0
      %p681 = por %p679, %p680
      %s683 = sadd.s32 %s682, 1
      %p686 = scmp.eq.s32.totalorder %s81, 1
      %p687 = scmp.ne.s32.totalorder %s682, %s684
      %p688 = scmp.eq.s32.totalorder %s81, 0
      %p689 = por %p687, %p688
      %p690 = scmp.ne.s32.totalorder %s682, %s684
      %p691 = scmp.eq.s32.totalorder %s86, 1
      %p692 = por %p690, %p691
      %p693 = scmp.ne.s32.totalorder %s684, %s685
      %p694 = scmp.eq.s32.totalorder %s86, 0
      %p695 = por %p693, %p694
      %p696 = scmp.ne.s32.totalorder %s684, %s685
      %p697 = scmp.eq.s32.totalorder %s87, 1
      %p698 = por %p696, %p697
      %p700 = scmp.ne.s32.totalorder %s685, %s699
      %p701 = scmp.eq.s32.totalorder %s87, 0
      %p702 = por %p700, %p701
      %s703 = ssub.s32 %s81, %s88
      %p704 = scmp.eq.s32.totalorder %s703, 0
      %s706 = sadd.s32 %s705, 1
      %s707 = scalar_select %p704, %s705, %s706
      %p710 = pneg %p704
      %p711 = scmp.eq.s32.totalorder %s81, 1
      %p712 = por %p710, %p711
      %p713 = scmp.ne.s32.totalorder %s705, %s708
      %p714 = scmp.eq.s32.totalorder %s81, 0
      %p715 = por %p713, %p714
      %p716 = scmp.ne.s32.totalorder %s705, %s708
      %p717 = scmp.eq.s32.totalorder %s86, 1
      %p718 = por %p716, %p717
      %p719 = scmp.ne.s32.totalorder %s708, %s709
      %p720 = scmp.eq.s32.totalorder %s86, 0
      %p721 = por %p719, %p720
      %p722 = scmp.ne.s32.totalorder %s708, %s709
      %p723 = scmp.eq.s32.totalorder %s87, 1
      %p724 = por %p722, %p723
      %p726 = scmp.ne.s32.totalorder %s709, %s725
      %p727 = scmp.eq.s32.totalorder %s87, 0
      %p728 = por %p726, %p727
      %s729 = ssub.s32 %s81, %s88
      %p730 = scmp.eq.s32.totalorder %s729, 0
      %s732 = sadd.s32 %s731, 1
      %s733 = scalar_select %p730, %s731, %s732
      %p736 = pneg %p730
      %p737 = scmp.eq.s32.totalorder %s81, 1
      %p738 = por %p736, %p737
      %p739 = scmp.ne.s32.totalorder %s731, %s734
      %p740 = scmp.eq.s32.totalorder %s81, 0
      %p741 = por %p739, %p740
      %p742 = scmp.ne.s32.totalorder %s731, %s734
      %p743 = scmp.eq.s32.totalorder %s86, 1
      %p744 = por %p742, %p743
      %p745 = scmp.ne.s32.totalorder %s734, %s735
      %p746 = scmp.eq.s32.totalorder %s86, 0
      %p747 = por %p745, %p746
      %p748 = scmp.ne.s32.totalorder %s734, %s735
      %p749 = scmp.eq.s32.totalorder %s87, 1
      %p750 = por %p748, %p749
      %p752 = scmp.ne.s32.totalorder %s735, %s751
      %p753 = scmp.eq.s32.totalorder %s87, 0
      %p754 = por %p752, %p753
      %s755 = ssub.s32 %s81, %s88
      %p756 = scmp.eq.s32.totalorder %s755, 0
      %s758 = sadd.s32 %s757, 1
      %s759 = scalar_select %p756, %s757, %s758
      %p762 = pneg %p756
      %p763 = scmp.eq.s32.totalorder %s81, 1
      %p764 = por %p762, %p763
      %p765 = scmp.ne.s32.totalorder %s757, %s760
      %p766 = scmp.eq.s32.totalorder %s81, 0
      %p767 = por %p765, %p766
      %p768 = scmp.ne.s32.totalorder %s757, %s760
      %p769 = scmp.eq.s32.totalorder %s86, 1
      %p770 = por %p768, %p769
      %p771 = scmp.ne.s32.totalorder %s760, %s761
      %p772 = scmp.eq.s32.totalorder %s86, 0
      %p773 = por %p771, %p772
      %p774 = scmp.ne.s32.totalorder %s760, %s761
      %p775 = scmp.eq.s32.totalorder %s87, 1
      %p776 = por %p774, %p775
      %p778 = scmp.ne.s32.totalorder %s761, %s777
      %p779 = scmp.eq.s32.totalorder %s87, 0
      %p780 = por %p778, %p779
      %s781 = ssub.s32 %s81, %s88
      %p782 = scmp.eq.s32.totalorder %s781, 0
      %s784 = sadd.s32 %s783, 1
      %s785 = scalar_select %p782, %s783, %s784
      %p788 = pneg %p782
      %p789 = scmp.eq.s32.totalorder %s81, 1
      %p790 = por %p788, %p789
      %p791 = scmp.ne.s32.totalorder %s783, %s786
      %p792 = scmp.eq.s32.totalorder %s81, 0
      %p793 = por %p791, %p792
      %p794 = scmp.ne.s32.totalorder %s783, %s786
      %p795 = scmp.eq.s32.totalorder %s86, 1
      %p796 = por %p794, %p795
      %p797 = scmp.ne.s32.totalorder %s786, %s787
      %p798 = scmp.eq.s32.totalorder %s86, 0
      %p799 = por %p797, %p798
      %p800 = scmp.ne.s32.totalorder %s786, %s787
      %p801 = scmp.eq.s32.totalorder %s87, 1
      %p802 = por %p800, %p801
      %p804 = scmp.ne.s32.totalorder %s787, %s803
      %p805 = scmp.eq.s32.totalorder %s87, 0
      %p806 = por %p804, %p805
      %s807 = ssub.s32 %s81, %s88
      %p808 = scmp.eq.s32.totalorder %s807, 0
      %s810 = sadd.s32 %s809, 1
      %s811 = scalar_select %p808, %s809, %s810
      %p814 = pneg %p808
      %p815 = scmp.eq.s32.totalorder %s81, 1
      %p816 = por %p814, %p815
      %p817 = scmp.ne.s32.totalorder %s809, %s812
      %p818 = scmp.eq.s32.totalorder %s81, 0
      %p819 = por %p817, %p818
      %p820 = scmp.ne.s32.totalorder %s809, %s812
      %p821 = scmp.eq.s32.totalorder %s86, 1
      %p822 = por %p820, %p821
      %p823 = scmp.ne.s32.totalorder %s812, %s813
      %p824 = scmp.eq.s32.totalorder %s86, 0
      %p825 = por %p823, %p824
      %p826 = scmp.ne.s32.totalorder %s812, %s813
      %p827 = scmp.eq.s32.totalorder %s87, 1
      %p828 = por %p826, %p827
      %p830 = scmp.ne.s32.totalorder %s813, %s829
      %p831 = scmp.eq.s32.totalorder %s87, 0
      %p832 = por %p830, %p831
      %p833 = scmp.le.s32.totalorder 1, %s81
      %p834 = scmp.lt.s32.totalorder %s81, 3
      %p835 = pnand %p833, %p834
      %p836 = pneg %p835
      // Predicated region
      $region9: #{tpu_custom_call.1} parent=5 // pred_check
        _
      $region10: #{tpu_custom_call.1} parent=5 // pred_check_branch
        %838 = sbr.rel (%p835) target = $region12
      $region11: #{tpu_custom_call.1} parent=5 // pred_region
        %s839 = ssub.s32 %s81, 1
        // Predicated region
        $region13: #{tpu_custom_call.1} parent=11 // pred_check
          %p840 = pneg %p128
        $region14: #{tpu_custom_call.1} parent=11 // pred_check_branch
          %842 = sbr.rel (%p840) target = $region16
        $region15: #{tpu_custom_call.1} parent=11 // pred_region
          _
        $region16: #{tpu_custom_call.1} parent=11 // pred_fallthru
          _
        // Predicated region
        $region17: #{tpu_custom_call.1} parent=11 // pred_check
          %p843 = pneg %p149
        $region18: #{tpu_custom_call.1} parent=11 // pred_check_branch
          %845 = sbr.rel (%p843) target = $region20
        $region19: #{tpu_custom_call.1} parent=11 // pred_region
          _
        $region20: #{tpu_custom_call.1} parent=11 // pred_fallthru
          _
        // Predicated region
        $region21: #{tpu_custom_call.1} parent=11 // pred_check
          %p846 = pneg %p170
        $region22: #{tpu_custom_call.1} parent=11 // pred_check_branch
          %848 = sbr.rel (%p846) target = $region24
        $region23: #{tpu_custom_call.1} parent=11 // pred_region
          _
        $region24: #{tpu_custom_call.1} parent=11 // pred_fallthru
          _
        // Predicated region
        $region25: #{tpu_custom_call.1} parent=11 // pred_check
          %p849 = pneg %p191
        $region26: #{tpu_custom_call.1} parent=11 // pred_check_branch
          %851 = sbr.rel (%p849) target = $region28
        $region27: #{tpu_custom_call.1} parent=11 // pred_region
          _
        $region28: #{tpu_custom_call.1} parent=11 // pred_fallthru
          _
        // Predicated region
        $region29: #{tpu_custom_call.1} parent=11 // pred_check
          %p852 = pneg %p212
        $region30: #{tpu_custom_call.1} parent=11 // pred_check_branch
          %854 = sbr.rel (%p852) target = $region32
        $region31: #{tpu_custom_call.1} parent=11 // pred_region
          %s856 = ssub.s32 128, 128
          %857 = vsyncadd [#allocation5], %s856
          %s859 = sshll.u32 [#allocation4], 4
          %s860 = int_to_ptr.vmem [resolvable:$true] %s859
          %862 = dma.hbm_to_vmem [thread:$0]  %s11, 128, %s860, [#allocation5]
        $region32: #{tpu_custom_call.1} parent=11 // pred_fallthru
          _
        // Predicated region
        $region33: #{tpu_custom_call.1} parent=11 // pred_check
          %p863 = pneg %p233
        $region34: #{tpu_custom_call.1} parent=11 // pred_check_branch
          %865 = sbr.rel (%p863) target = $region36
        $region35: #{tpu_custom_call.1} parent=11 // pred_region
          _
        $region36: #{tpu_custom_call.1} parent=11 // pred_fallthru
          _
        // Predicated region
        $region37: #{tpu_custom_call.1} parent=11 // pred_check
          %p866 = pneg %p254
        $region38: #{tpu_custom_call.1} parent=11 // pred_check_branch
          %868 = sbr.rel (%p866) target = $region40
        $region39: #{tpu_custom_call.1} parent=11 // pred_region
          _
        $region40: #{tpu_custom_call.1} parent=11 // pred_fallthru
          _
        // Predicated region
        $region41: #{tpu_custom_call.1} parent=11 // pred_check
          %p869 = pneg %p275
        $region42: #{tpu_custom_call.1} parent=11 // pred_check_branch
          %871 = sbr.rel (%p869) target = $region44
        $region43: #{tpu_custom_call.1} parent=11 // pred_region
          _
        $region44: #{tpu_custom_call.1} parent=11 // pred_fallthru
          _
        // Predicated region
        $region45: #{tpu_custom_call.1} parent=11 // pred_check
          %p872 = pneg %p296
        $region46: #{tpu_custom_call.1} parent=11 // pred_check_branch
          %874 = sbr.rel (%p872) target = $region48
        $region47: #{tpu_custom_call.1} parent=11 // pred_region
          _
        $region48: #{tpu_custom_call.1} parent=11 // pred_fallthru
          _
        // Predicated region
        $region49: #{tpu_custom_call.1} parent=11 // pred_check
          %p875 = pneg %p317
        $region50: #{tpu_custom_call.1} parent=11 // pred_check_branch
          %877 = sbr.rel (%p875) target = $region52
        $region51: #{tpu_custom_call.1} parent=11 // pred_region
          _
        $region52: #{tpu_custom_call.1} parent=11 // pred_fallthru
          _
        // Predicated region
        $region53: #{tpu_custom_call.1} parent=11 // pred_check
          %p878 = pneg %p338
        $region54: #{tpu_custom_call.1} parent=11 // pred_check_branch
          %880 = sbr.rel (%p878) target = $region56
        $region55: #{tpu_custom_call.1} parent=11 // pred_region
          _
        $region56: #{tpu_custom_call.1} parent=11 // pred_fallthru
          _
        // Predicated region
        $region57: #{tpu_custom_call.1} parent=11 // pred_check
          %p881 = pneg %p359
        $region58: #{tpu_custom_call.1} parent=11 // pred_check_branch
          %883 = sbr.rel (%p881) target = $region60
        $region59: #{tpu_custom_call.1} parent=11 // pred_region
          _
        $region60: #{tpu_custom_call.1} parent=11 // pred_fallthru
          _
        // Predicated region
        $region61: #{tpu_custom_call.1} parent=11 // pred_check
          %p884 = pneg %p380
        $region62: #{tpu_custom_call.1} parent=11 // pred_check_branch
          %886 = sbr.rel (%p884) target = $region64
        $region63: #{tpu_custom_call.1} parent=11 // pred_region
          _
        $region64: #{tpu_custom_call.1} parent=11 // pred_fallthru
          _
        // Predicated region
        $region65: #{tpu_custom_call.1} parent=11 // pred_check
          %p887 = pneg %p401
        $region66: #{tpu_custom_call.1} parent=11 // pred_check_branch
          %889 = sbr.rel (%p887) target = $region68
        $region67: #{tpu_custom_call.1} parent=11 // pred_region
          _
        $region68: #{tpu_custom_call.1} parent=11 // pred_fallthru
          _
        // Predicated region
        $region69: #{tpu_custom_call.1} parent=11 // pred_check
          %p890 = pneg %p422
        $region70: #{tpu_custom_call.1} parent=11 // pred_check_branch
          %892 = sbr.rel (%p890) target = $region72
        $region71: #{tpu_custom_call.1} parent=11 // pred_region
          _
        $region72: #{tpu_custom_call.1} parent=11 // pred_fallthru
          _
        // Predicated region
        $region73: #{tpu_custom_call.1} parent=11 // pred_check
          %p893 = pneg %p443
        $region74: #{tpu_custom_call.1} parent=11 // pred_check_branch
          %895 = sbr.rel (%p893) target = $region76
        $region75: #{tpu_custom_call.1} parent=11 // pred_region
          _
        $region76: #{tpu_custom_call.1} parent=11 // pred_fallthru
          _
        // Predicated region
        $region77: #{tpu_custom_call.1} parent=11 // pred_check
          %p896 = pneg %p464
        $region78: #{tpu_custom_call.1} parent=11 // pred_check_branch
          %898 = sbr.rel (%p896) target = $region80
        $region79: #{tpu_custom_call.1} parent=11 // pred_region
          _
        $region80: #{tpu_custom_call.1} parent=11 // pred_fallthru
          _
        // Predicated region
        $region81: #{tpu_custom_call.1} parent=11 // pred_check
          %p899 = pneg %p485
        $region82: #{tpu_custom_call.1} parent=11 // pred_check_branch
          %901 = sbr.rel (%p899) target = $region84
        $region83: #{tpu_custom_call.1} parent=11 // pred_region
          _
        $region84: #{tpu_custom_call.1} parent=11 // pred_fallthru
          _
        // Predicated region
        $region85: #{tpu_custom_call.1} parent=11 // pred_check
          %p902 = pneg %p506
        $region86: #{tpu_custom_call.1} parent=11 // pred_check_branch
          %904 = sbr.rel (%p902) target = $region88
        $region87: #{tpu_custom_call.1} parent=11 // pred_region
          _
        $region88: #{tpu_custom_call.1} parent=11 // pred_fallthru
          _
        // Predicated region
        $region89: #{tpu_custom_call.1} parent=11 // pred_check
          %p905 = pneg %p527
        $region90: #{tpu_custom_call.1} parent=11 // pred_check_branch
          %907 = sbr.rel (%p905) target = $region92
        $region91: #{tpu_custom_call.1} parent=11 // pred_region
          _
        $region92: #{tpu_custom_call.1} parent=11 // pred_fallthru
          _
        // Predicated region
        $region93: #{tpu_custom_call.1} parent=11 // pred_check
          %p908 = pneg %p548
        $region94: #{tpu_custom_call.1} parent=11 // pred_check_branch
          %910 = sbr.rel (%p908) target = $region96
        $region95: #{tpu_custom_call.1} parent=11 // pred_region
          _
        $region96: #{tpu_custom_call.1} parent=11 // pred_fallthru
          _
        // Predicated region
        $region97: #{tpu_custom_call.1} parent=11 // pred_check
          %p911 = pneg %p569
        $region98: #{tpu_custom_call.1} parent=11 // pred_check_branch
          %913 = sbr.rel (%p911) target = $region100
        $region99: #{tpu_custom_call.1} parent=11 // pred_region
          _
        $region100: #{tpu_custom_call.1} parent=11 // pred_fallthru
          _
        // Predicated region
        $region101: #{tpu_custom_call.1} parent=11 // pred_check
          %p914 = pneg %p590
        $region102: #{tpu_custom_call.1} parent=11 // pred_check_branch
          %916 = sbr.rel (%p914) target = $region104
        $region103: #{tpu_custom_call.1} parent=11 // pred_region
          _
        $region104: #{tpu_custom_call.1} parent=11 // pred_fallthru
          _
        // Predicated region
        $region105: #{tpu_custom_call.1} parent=11 // pred_check
          %p917 = pneg %p611
        $region106: #{tpu_custom_call.1} parent=11 // pred_check_branch
          %919 = sbr.rel (%p917) target = $region108
        $region107: #{tpu_custom_call.1} parent=11 // pred_region
          _
        $region108: #{tpu_custom_call.1} parent=11 // pred_fallthru
          _
        // Predicated region
        $region109: #{tpu_custom_call.1} parent=11 // pred_check
          %p920 = pneg %p632
        $region110: #{tpu_custom_call.1} parent=11 // pred_check_branch
          %922 = sbr.rel (%p920) target = $region112
        $region111: #{tpu_custom_call.1} parent=11 // pred_region
          _
        $region112: #{tpu_custom_call.1} parent=11 // pred_fallthru
          _
        // Predicated region
        $region113: #{tpu_custom_call.1} parent=11 // pred_check
          %p923 = pneg %p653
        $region114: #{tpu_custom_call.1} parent=11 // pred_check_branch
          %925 = sbr.rel (%p923) target = $region116
        $region115: #{tpu_custom_call.1} parent=11 // pred_region
          _
        $region116: #{tpu_custom_call.1} parent=11 // pred_fallthru
          _
        // Predicated region
        $region117: #{tpu_custom_call.1} parent=11 // pred_check
          %p926 = pneg %p674
        $region118: #{tpu_custom_call.1} parent=11 // pred_check_branch
          %928 = sbr.rel (%p926) target = $region120
        $region119: #{tpu_custom_call.1} parent=11 // pred_region
          _
        $region120: #{tpu_custom_call.1} parent=11 // pred_fallthru
          _
        // Predicated region
        $region121: #{tpu_custom_call.1} parent=11 // pred_check
          %p929 = pneg %p695
        $region122: #{tpu_custom_call.1} parent=11 // pred_check_branch
          %931 = sbr.rel (%p929) target = $region124
        $region123: #{tpu_custom_call.1} parent=11 // pred_region
          _
        $region124: #{tpu_custom_call.1} parent=11 // pred_fallthru
          _
      $region12: #{tpu_custom_call.1} parent=5 // pred_fallthru
        _
      %p932 = scmp.lt.s32.totalorder %s81, 2
      // Predicated region
      $region125: #{tpu_custom_call.1} parent=5 // pred_check
        %p933 = pneg %p932
      $region126: #{tpu_custom_call.1} parent=5 // pred_check_branch
        %935 = sbr.rel (%p933) target = $region128
      $region127: #{tpu_custom_call.1} parent=5 // pred_region
        // Predicated region
        $region129: #{tpu_custom_call.1} parent=127 // pred_check
          %p936 = pneg %p101
        $region130: #{tpu_custom_call.1} parent=127 // pred_check_branch
          %938 = sbr.rel (%p936) target = $region132
        $region131: #{tpu_custom_call.1} parent=127 // pred_region
          %p939 = scmp.lt.s32.totalorder %s81, 1
          %s940 = scalar_select %p939, %s81, 1
          %s941 = smul.addr %s940, 5
          %s942 = scalar_lea.vmem %s1, %s941
        $region132: #{tpu_custom_call.1} parent=127 // pred_fallthru
          _
      $region128: #{tpu_custom_call.1} parent=5 // pred_fallthru
        _
      %p943 = scmp.le.s32.totalorder 1, %s81
      %p944 = scmp.lt.s32.totalorder %s81, 3
      %p945 = pnand %p943, %p944
      %p946 = pneg %p945
      // Predicated region
      $region133: #{tpu_custom_call.1} parent=5 // pred_check
        _
      $region134: #{tpu_custom_call.1} parent=5 // pred_check_branch
        %948 = sbr.rel (%p945) target = $region136
      $region135: #{tpu_custom_call.1} parent=5 // pred_region
        %s949 = ssub.s32 %s81, 1
        // Predicated region
        $region137: #{tpu_custom_call.1} parent=135 // pred_check
          %p950 = pneg %p212
        $region138: #{tpu_custom_call.1} parent=135 // pred_check_branch
          %952 = sbr.rel (%p950) target = $region140
        $region139: #{tpu_custom_call.1} parent=135 // pred_region
          %953 = dma.done [#allocation5], 128
        $region140: #{tpu_custom_call.1} parent=135 // pred_fallthru
          _
        %p954 = scmp.lt.s32.totalorder %s86, 1
        %s955 = scalar_select %p954, %s86, 1
        %s956 = smul.addr %s955, 5
        %s957 = scalar_lea.vmem %s1, %s956
        %p958 = pneg %p107
        %p959 = pneg %p104
        %p960 = pneg %p128
        %p961 = pneg %p125
        %p962 = pneg %p149
        %p963 = pneg %p146
        %p964 = pneg %p170
        %p965 = pneg %p167
        %p966 = pneg %p191
        %p967 = pneg %p188
        %p968 = pneg %p212
        %p969 = pneg %p209
        %p970 = pneg %p233
        %p971 = pneg %p230
        %p972 = pneg %p254
        %p973 = pneg %p251
        %p974 = pneg %p275
        %p975 = pneg %p272
        %p976 = pneg %p296
        %p977 = pneg %p293
        %p978 = pneg %p317
        %p979 = pneg %p314
        %p980 = pneg %p338
        %p981 = pneg %p335
        %p982 = pneg %p359
        %p983 = pneg %p356
        %p984 = pneg %p380
        %p985 = pneg %p377
        %p986 = pneg %p401
        %p987 = pneg %p398
        %p988 = pneg %p422
        %p989 = pneg %p419
        %p990 = pneg %p443
        %p991 = pneg %p440
        %p992 = pneg %p464
        %p993 = pneg %p461
        %p994 = pneg %p485
        %p995 = pneg %p482
        %p996 = pneg %p506
        %p997 = pneg %p503
        %p998 = pneg %p527
        %p999 = pneg %p524
        %p1000 = pneg %p548
        %p1001 = pneg %p545
        %p1002 = pneg %p569
        %p1003 = pneg %p566
        %p1004 = pneg %p590
        %p1005 = pneg %p587
        %p1006 = pneg %p611
        %p1007 = pneg %p608
        %p1008 = pneg %p632
        %p1009 = pneg %p629
        %p1010 = pneg %p653
        %p1011 = pneg %p650
        %p1012 = pneg %p674
        %p1013 = pneg %p671
        %p1014 = pneg %p695
        %p1015 = pneg %p692
        %p1016 = pneg %p721
        %p1017 = pneg %p718
        %p1018 = scmp.lt.s32.totalorder %s86, 1
        %s1019 = scalar_select %p1018, %s86, 1
        %s1020 = smul.addr %s1019, 4
        %s1021 = smul.addr %s1020, 8
        %s1022 = scalar_lea.vmem %s59, %s1021
        %p1023 = pneg %p747
        %p1024 = pneg %p744
        %p1025 = scmp.lt.s32.totalorder %s86, 1
        %s1026 = scalar_select %p1025, %s86, 1
        %s1027 = smul.addr %s1026, 2
        %s1028 = smul.addr %s1027, 8
        %s1029 = scalar_lea.vmem %s61, %s1028
        %p1030 = pneg %p773
        %p1031 = pneg %p770
        %s1032 = sand.u32 %s760, 1
        %s1033 = scalar_lea.sflag [#allocation6], %s1032
        %s1034 = sand.u32 %s760, 1
        %s1035 = smul.addr %s1034, 16
        %s1036 = scalar_lea.vmem [#allocation7], %s1035
        %p1037 = pneg %p799
        %p1038 = pneg %p796
        %s1039 = sand.u32 %s86, 1
        %s1040 = scalar_lea.sflag [#allocation9], %s1039
        %s1041 = sand.u32 %s786, 1
        %s1042 = smul.addr %s1041, 16
        %s1043 = scalar_lea.vmem [#allocation8], %s1042
        %p1044 = pneg %p825
        %p1045 = pneg %p822
        %s1046 = sand.u32 %s86, 1
        %s1047 = scalar_lea.sflag [#allocation9], %s1046
        %s1048 = sand.u32 %s812, 1
        %s1049 = smul.addr %s1048, 40
        %s1050 = scalar_lea.vmem [#allocation10], %s1049
        %p1051 = scmp.lt.s32.totalorder %s86, 1
        %s1052 = scalar_select %p1051, %s86, 1
        %s1053 = smul.addr %s1052, 5
        %s1054 = scalar_lea.vmem %s1, %s1053
        %p1055 = scmp.lt.s32.totalorder %s86, 1
        %s1056 = scalar_select %p1055, %s86, 1
        %s1057 = smul.addr %s1056, 4
        %s1058 = smul.addr %s1057, 8
        %s1059 = scalar_lea.vmem %s59, %s1058
        %p1060 = scmp.lt.s32.totalorder %s86, 1
        %s1061 = scalar_select %p1060, %s86, 1
        %s1062 = smul.addr %s1061, 2
        %s1063 = smul.addr %s1062, 8
        %s1064 = scalar_lea.vmem %s61, %s1063
        %v1065 = vld [vmem:[%s1054] sm:$0x1f]
        %vm1066 = vcmask 0
        %1067 = vst.msk [vmem:[#allocation2] sm:$0x1] %vm1066, 0.0
        %vm1068 = vcmask 729800
        %1069 = vst.msk [vmem:[#allocation2 + $0x20] sm:$0x1] %vm1068, 0.0
        %1071 = vrot.lane.b32.xlu0 %v1065, 1
        %v1072 = vpop.permute.xlu0 %1071
        %v1073 = vrot.slane %v1072, 7
        %vm1074 = vcmask 7168
        %v1075 = vsel %vm1074, %v1073, %v1072
        %v1077 = vlaneseq
        %vm1078 = vcmp.ge.s32.totalorder %v1077, 1
        %vm1079 = vcmp.lt.s32.totalorder %v1077, 601
        %vm1080 = vmand %vm1078, %vm1079
        %1081 = vst.msk [vmem:[#allocation2] ss:$8 sm:$0xf] %vm1080, %v1075
        %1082 = vst.msk [vmem:[#allocation2] ss:$8 sm:$0x10] %vm1080, %v1075
        %v1083 = vld [vmem:[#allocation2] ss:$8 sm:$0xf]
        %v1084 = vld [vmem:[#allocation2] ss:$8 sm:$0x10]
        %v1085 = vor.u32 %v1083, %v1084
        %vm1086 = vcmp.ge.s32.totalorder %v1077, 0
        %vm1087 = vcmp.lt.s32.totalorder %v1077, 600
        %vm1088 = vmand %vm1086, %vm1087
        %1089 = vst.msk [vmem:[#allocation3] ss:$8 sm:$0xf] %vm1088, %v1085
        %1090 = vst.msk [vmem:[#allocation3] ss:$8 sm:$0x10] %vm1088, %v1085
        %v1091 = vld [vmem:[#allocation2] ss:$8 sm:$0xf]
        %v1092 = vld [vmem:[#allocation2] ss:$8 sm:$0x10]
        %v1093 = vor.u32 %v1091, %v1092
        %1095 = vrot.lane.b32.xlu0 %v1093, 127
        %v1096 = vpop.permute.xlu0 %1095
        %v1097 = vrot.slane %v1096, 1
        %vm1098 = vcmask 1039360
        %v1099 = vsel %vm1098, %v1096, %v1097
        %s1101 = scalar_lea.vmem [#allocation3], 1
        %1102 = vst.msk [vmem:[%s1101] ss:$8 sm:$0xf] %vm1088, %v1099
        %1103 = vst.msk [vmem:[%s1101] ss:$8 sm:$0x10] %vm1088, %v1099
        %v1104 = vld [vmem:[#allocation2] ss:$8 sm:$0xf]
        %v1105 = vld [vmem:[#allocation2] ss:$8 sm:$0x10]
        %v1106 = vor.u32 %v1104, %v1105
        %1108 = vrot.lane.b32.xlu0 %v1106, 126
        %v1109 = vpop.permute.xlu0 %1108
        %v1110 = vrot.slane %v1109, 1
        %vm1111 = vcmask 1031168
        %v1112 = vsel %vm1111, %v1109, %v1110
        %s1114 = scalar_lea.vmem [#allocation3], 2
        %1115 = vst.msk [vmem:[%s1114] ss:$8 sm:$0xf] %vm1088, %v1112
        %1116 = vst.msk [vmem:[%s1114] ss:$8 sm:$0x10] %vm1088, %v1112
        %1117 = vst [vmem:[#allocation3] sm:$0xf8] 0.0
        %1118 = vst [vmem:[#allocation3 + $0x8] sm:$0xf8] 0.0
        %1119 = vst [vmem:[#allocation3 + $0x10] sm:$0xf8] 0.0
        %1120 = vst [vmem:[#allocation3 + $0x18] sm:$0xf8] 0.0
        %vm1121 = vcmask 719875
        %1122 = vst.msk [vmem:[#allocation3 + $0x20] sm:$0xf8] %vm1121, 0.0
        %v1123 = vld [vmem:[%s3] sm:$0xff]
        %v1124 = vld [vmem:[#allocation3] sm:$0xff]
        %v1125 = vld [vmem:[#allocation3 + $0x8] sm:$0xff]
        %v1126 = vld [vmem:[#allocation3 + $0x10] sm:$0xff]
        %v1127 = vld [vmem:[#allocation3 + $0x18] sm:$0xff]
        %v1128 = vld [vmem:[#allocation3 + $0x20] sm:$0xff]
        %v1129 = vld [vmem:[%s31] sm:$0xff]
        %1131 = vset.pattern.permute.xlu0 0
        %1132 = vperm.xlu0 %1131, %v1129
        %v1133 = vpop.permute.xlu0 %1132
        %vm1135 = vcmask 64512
        %v1137 = vsel %vm1135, %v1123, 0
        %1139 = vmatprep.subr.mxu0 %v1125
        %1140 = vmatpush1.msra.mxu0 %v1124
        %1141 = vmatprep.subr.mxu0 0.0
        %1142 = vmatpush1.msra.mxu0 0.0
        %1143 = vmatprep.subr.mxu0 0.0
        %1144 = vmatpush1.msra.mxu0 0.0
        %1145 = vmatprep.subr.mxu0 0.0
        %1146 = vmatpush1.msra.mxu0 0.0
        %1147 = vmatprep.subr.mxu0 0.0
        %1148 = vmatpush1.msra.mxu0 0.0
        %1149 = vmatprep.subr.mxu0 0.0
        %1150 = vmatpush1.msra.mxu0 0.0
        %1151 = vmatprep.subr.mxu0 0.0
        %1152 = vmatpush1.msra.mxu0 0.0
        %1153 = vmatprep.subr.mxu0 0.0
        %1154 = vmatpush1.msra.mxu0 0.0
        %1155 = vmatprep.subr.mxu0 0.0
        %1156 = vmatpush1.msra.mxu0 0.0
        %1157 = vmatprep.subr.mxu0 0.0
        %1158 = vmatpush1.msra.mxu0 0.0
        %1159 = vmatprep.subr.mxu0 0.0
        %1160 = vmatpush1.msra.mxu0 0.0
        %1161 = vmatprep.subr.mxu0 0.0
        %1162 = vmatpush1.msra.mxu0 0.0
        %1163 = vmatprep.subr.mxu0 0.0
        %1164 = vmatpush1.msra.mxu0 0.0
        %1165 = vmatprep.subr.mxu0 0.0
        %1166 = vmatpush1.msra.mxu0 0.0
        %1167 = vmatprep.subr.mxu0 0.0
        %1168 = vmatpush1.msra.mxu0 0.0
        %1169 = vmatprep.subr.mxu0 0.0
        %1170 = vmatpush1.msra.mxu0 0.0
        %1171 = vmatprep.subr.mxu0 0.0
        %1172 = vmatpush1.msra.mxu0 0.0
        %1173 = vmatprep.subr.mxu0 0.0
        %1174 = vmatpush1.msra.mxu0 0.0
        %1175 = vmatprep.subr.mxu0 0.0
        %1176 = vmatpush1.msra.mxu0 0.0
        %1177 = vmatprep.subr.mxu0 0.0
        %1178 = vmatpush1.msra.mxu0 0.0
        %1179 = vmatprep.subr.mxu0 0.0
        %1180 = vmatpush1.msra.mxu0 0.0
        %1181 = vmatprep.subr.mxu0 0.0
        %1182 = vmatpush1.msra.mxu0 0.0
        %1183 = vmatprep.subr.mxu0 0.0
        %1184 = vmatpush1.msra.mxu0 0.0
        %1185 = vmatprep.subr.mxu0 0.0
        %1186 = vmatpush1.msra.mxu0 0.0
        %1187 = vmatprep.subr.mxu0 0.0
        %1188 = vmatpush1.msra.mxu0 0.0
        %1189 = vmatprep.subr.mxu0 0.0
        %1190 = vmatpush1.msra.mxu0 0.0
        %1191 = vmatprep.subr.mxu0 0.0
        %1192 = vmatpush1.msra.mxu0 0.0
        %1193 = vmatprep.subr.mxu0 0.0
        %1194 = vmatpush1.msra.mxu0 0.0
        %1195 = vmatprep.subr.mxu0 0.0
        %1196 = vmatpush1.msra.mxu0 0.0
        %1197 = vmatprep.subr.mxu0 0.0
        %1198 = vmatpush1.msra.mxu0 0.0
        %1199 = vmatprep.subr.mxu0 0.0
        %1200 = vmatpush1.msra.mxu0 0.0
        %1201 = vmatprep.subr.mxu0 0.0
        %1202 = vmatpush1.msra.mxu0 0.0
        %1203 = vmatprep.mubr.f32.mxu0 0.0
        %1204 = vmatmul.mubr.f32.gmra.mrb[0].mxu0 %v1137
        %v1205 = vpop.f32.mrb[0].mxu0
        %v1206 = vadd.f32 %v1133, %v1205
        %v1207 = vpop.f32.mrb[0].mxu0
        %v1208 = vadd.f32 %v1133, %v1207
        %1209 = vdwg.mxu0
        %1210 = vmatprep.subr.mxu0 %v1127
        %1211 = vmatpush1.msra.mxu0 %v1126
        %1212 = vmatprep.subr.mxu0 0.0
        %1213 = vmatpush1.msra.mxu0 0.0
        %1214 = vmatprep.subr.mxu0 0.0
        %1215 = vmatpush1.msra.mxu0 0.0
        %1216 = vmatprep.subr.mxu0 0.0
        %1217 = vmatpush1.msra.mxu0 0.0
        %1218 = vmatprep.subr.mxu0 0.0
        %1219 = vmatpush1.msra.mxu0 0.0
        %1220 = vmatprep.subr.mxu0 0.0
        %1221 = vmatpush1.msra.mxu0 0.0
        %1222 = vmatprep.subr.mxu0 0.0
        %1223 = vmatpush1.msra.mxu0 0.0
        %1224 = vmatprep.subr.mxu0 0.0
        %1225 = vmatpush1.msra.mxu0 0.0
        %1226 = vmatprep.subr.mxu0 0.0
        %1227 = vmatpush1.msra.mxu0 0.0
        %1228 = vmatprep.subr.mxu0 0.0
        %1229 = vmatpush1.msra.mxu0 0.0
        %1230 = vmatprep.subr.mxu0 0.0
        %1231 = vmatpush1.msra.mxu0 0.0
        %1232 = vmatprep.subr.mxu0 0.0
        %1233 = vmatpush1.msra.mxu0 0.0
        %1234 = vmatprep.subr.mxu0 0.0
        %1235 = vmatpush1.msra.mxu0 0.0
        %1236 = vmatprep.subr.mxu0 0.0
        %1237 = vmatpush1.msra.mxu0 0.0
        %1238 = vmatprep.subr.mxu0 0.0
        %1239 = vmatpush1.msra.mxu0 0.0
        %1240 = vmatprep.subr.mxu0 0.0
        %1241 = vmatpush1.msra.mxu0 0.0
        %1242 = vmatprep.subr.mxu0 0.0
        %1243 = vmatpush1.msra.mxu0 0.0
        %1244 = vmatprep.subr.mxu0 0.0
        %1245 = vmatpush1.msra.mxu0 0.0
        %1246 = vmatprep.subr.mxu0 0.0
        %1247 = vmatpush1.msra.mxu0 0.0
        %1248 = vmatprep.subr.mxu0 0.0
        %1249 = vmatpush1.msra.mxu0 0.0
        %1250 = vmatprep.subr.mxu0 0.0
        %1251 = vmatpush1.msra.mxu0 0.0
        %1252 = vmatprep.subr.mxu0 0.0
        %1253 = vmatpush1.msra.mxu0 0.0
        %1254 = vmatprep.subr.mxu0 0.0
        %1255 = vmatpush1.msra.mxu0 0.0
        %1256 = vmatprep.subr.mxu0 0.0
        %1257 = vmatpush1.msra.mxu0 0.0
        %1258 = vmatprep.subr.mxu0 0.0
        %1259 = vmatpush1.msra.mxu0 0.0
        %1260 = vmatprep.subr.mxu0 0.0
        %1261 = vmatpush1.msra.mxu0 0.0
        %1262 = vmatprep.subr.mxu0 0.0
        %1263 = vmatpush1.msra.mxu0 0.0
        %1264 = vmatprep.subr.mxu0 0.0
        %1265 = vmatpush1.msra.mxu0 0.0
        %1266 = vmatprep.subr.mxu0 0.0
        %1267 = vmatpush1.msra.mxu0 0.0
        %1268 = vmatprep.subr.mxu0 0.0
        %1269 = vmatpush1.msra.mxu0 0.0
        %1270 = vmatprep.subr.mxu0 0.0
        %1271 = vmatpush1.msra.mxu0 0.0
        %1272 = vmatprep.subr.mxu0 0.0
        %1273 = vmatpush1.msra.mxu0 0.0
        %1274 = vmatprep.mubr.f32.mxu0 0.0
        %1275 = vmatmul.mubr.f32.gmra.mrb[0].mxu0 %v1137
        %v1276 = vpop.f32.mrb[0].mxu0
        %v1277 = vadd.f32 %v1133, %v1276
        %v1278 = vpop.f32.mrb[0].mxu0
        %v1279 = vadd.f32 %v1133, %v1278
        %1280 = vdwg.mxu0
        %1281 = vmatprep.subr.mxu0 0.0
        %1282 = vmatpush1.msra.mxu0 %v1128
        %1283 = vmatprep.subr.mxu0 0.0
        %1284 = vmatpush1.msra.mxu0 0.0
        %1285 = vmatprep.subr.mxu0 0.0
        %1286 = vmatpush1.msra.mxu0 0.0
        %1287 = vmatprep.subr.mxu0 0.0
        %1288 = vmatpush1.msra.mxu0 0.0
        %1289 = vmatprep.subr.mxu0 0.0
        %1290 = vmatpush1.msra.mxu0 0.0
        %1291 = vmatprep.subr.mxu0 0.0
        %1292 = vmatpush1.msra.mxu0 0.0
        %1293 = vmatprep.subr.mxu0 0.0
        %1294 = vmatpush1.msra.mxu0 0.0
        %1295 = vmatprep.subr.mxu0 0.0
        %1296 = vmatpush1.msra.mxu0 0.0
        %1297 = vmatprep.subr.mxu0 0.0
        %1298 = vmatpush1.msra.mxu0 0.0
        %1299 = vmatprep.subr.mxu0 0.0
        %1300 = vmatpush1.msra.mxu0 0.0
        %1301 = vmatprep.subr.mxu0 0.0
        %1302 = vmatpush1.msra.mxu0 0.0
        %1303 = vmatprep.subr.mxu0 0.0
        %1304 = vmatpush1.msra.mxu0 0.0
        %1305 = vmatprep.subr.mxu0 0.0
        %1306 = vmatpush1.msra.mxu0 0.0
        %1307 = vmatprep.subr.mxu0 0.0
        %1308 = vmatpush1.msra.mxu0 0.0
        %1309 = vmatprep.subr.mxu0 0.0
        %1310 = vmatpush1.msra.mxu0 0.0
        %1311 = vmatprep.subr.mxu0 0.0
        %1312 = vmatpush1.msra.mxu0 0.0
        %1313 = vmatprep.subr.mxu0 0.0
        %1314 = vmatpush1.msra.mxu0 0.0
        %1315 = vmatprep.subr.mxu0 0.0
        %1316 = vmatpush1.msra.mxu0 0.0
        %1317 = vmatprep.subr.mxu0 0.0
        %1318 = vmatpush1.msra.mxu0 0.0
        %1319 = vmatprep.subr.mxu0 0.0
        %1320 = vmatpush1.msra.mxu0 0.0
        %1321 = vmatprep.subr.mxu0 0.0
        %1322 = vmatpush1.msra.mxu0 0.0
        %1323 = vmatprep.subr.mxu0 0.0
        %1324 = vmatpush1.msra.mxu0 0.0
        %1325 = vmatprep.subr.mxu0 0.0
        %1326 = vmatpush1.msra.mxu0 0.0
        %1327 = vmatprep.subr.mxu0 0.0
        %1328 = vmatpush1.msra.mxu0 0.0
        %1329 = vmatprep.subr.mxu0 0.0
        %1330 = vmatpush1.msra.mxu0 0.0
        %1331 = vmatprep.subr.mxu0 0.0
        %1332 = vmatpush1.msra.mxu0 0.0
        %1333 = vmatprep.subr.mxu0 0.0
        %1334 = vmatpush1.msra.mxu0 0.0
        %1335 = vmatprep.subr.mxu0 0.0
        %1336 = vmatpush1.msra.mxu0 0.0
        %1337 = vmatprep.subr.mxu0 0.0
        %1338 = vmatpush1.msra.mxu0 0.0
        %1339 = vmatprep.subr.mxu0 0.0
        %1340 = vmatpush1.msra.mxu0 0.0
        %1341 = vmatprep.subr.mxu0 0.0
        %1342 = vmatpush1.msra.mxu0 0.0
        %1343 = vmatprep.subr.mxu0 0.0
        %1344 = vmatpush1.msra.mxu0 0.0
        %1345 = vmatprep.mubr.f32.mxu0 0.0
        %1346 = vmatmul.mubr.f32.gmra.mrb[0].mxu0 %v1137
        %v1347 = vpop.f32.mrb[0].mxu0
        %v1348 = vadd.f32 %v1133, %v1347
        %v1349 = vpop.f32.mrb[0].mxu0
        %1350 = vdwg.mxu0
        %vm1351 = vcmp.ge.f32.partialorder %v1206, 0.0
        %vm1352 = vcmp.ge.f32.partialorder %v1208, 0.0
        %vm1353 = vcmp.ge.f32.partialorder %v1277, 0.0
        %vm1354 = vcmp.ge.f32.partialorder %v1279, 0.0
        %vm1355 = vcmp.ge.f32.partialorder %v1348, 0.0
        %v1356 = vmul.f32 %v1206, 0.1
        %v1357 = vmul.f32 %v1208, 0.1
        %v1358 = vmul.f32 %v1277, 0.1
        %v1359 = vmul.f32 %v1279, 0.1
        %v1360 = vmul.f32 %v1348, 0.1
        %v1361 = vsel %vm1351, %v1206, %v1356
        %v1362 = vsel %vm1352, %v1208, %v1357
        %v1363 = vsel %vm1353, %v1277, %v1358
        %v1364 = vsel %vm1354, %v1279, %v1359
        %v1365 = vsel %vm1355, %v1348, %v1360
        %1366 = vst.msk [vmem:[#allocation2] sm:$0xff] %vm1074, 0.0
        %vm1367 = vcmask 736968
        %1368 = vst.msk [vmem:[#allocation2 + $0x20] sm:$0xff] %vm1367, 0.0
        %1374 = vrot.lane.b32.xlu0 %v1361, 1
        %v1375 = vpop.permute.xlu0 %1374
        %1376 = vrot.lane.b32.xlu0 %v1362, 1
        %v1377 = vpop.permute.xlu0 %1376
        %1378 = vrot.lane.b32.xlu0 %v1363, 1
        %v1379 = vpop.permute.xlu0 %1378
        %1380 = vrot.lane.b32.xlu0 %v1364, 1
        %v1381 = vpop.permute.xlu0 %1380
        %1382 = vrot.lane.b32.xlu0 %v1365, 1
        %v1383 = vpop.permute.xlu0 %1382
        %v1384 = vsel %vm1074, %v1375, %v1377
        %v1385 = vsel %vm1074, %v1377, %v1379
        %v1386 = vsel %vm1074, %v1379, %v1381
        %v1387 = vsel %vm1074, %v1381, %v1383
        %vm1393 = vcmask 1047560
        %1394 = vst.msk [vmem:[#allocation2] sm:$0xff] %vm1393, %v1375
        %1395 = vst [vmem:[#allocation2 + $0x8] sm:$0xff] %v1384
        %1396 = vst [vmem:[#allocation2 + $0x10] sm:$0xff] %v1385
        %1397 = vst [vmem:[#allocation2 + $0x18] sm:$0xff] %v1386
        %vm1398 = vcmask 728064
        %1399 = vst.msk [vmem:[#allocation2 + $0x20] sm:$0xff] %vm1398, %v1387
        %v1400 = vld [vmem:[#allocation2] sm:$0xff]
        %v1401 = vld [vmem:[#allocation2 + $0x8] sm:$0xff]
        %v1402 = vld [vmem:[#allocation2 + $0x10] sm:$0xff]
        %v1403 = vld [vmem:[#allocation2 + $0x18] sm:$0xff]
        %v1404 = vld [vmem:[#allocation2 + $0x20] sm:$0xff]
        %1405 = vst [vmem:[#allocation3] sm:$0xff] %v1400
        %1406 = vst [vmem:[#allocation3 + $0x8] sm:$0xff] %v1401
        %1407 = vst [vmem:[#allocation3 + $0x10] sm:$0xff] %v1402
        %1408 = vst [vmem:[#allocation3 + $0x18] sm:$0xff] %v1403
        %vm1409 = vcmask 719872
        %1410 = vst.msk [vmem:[#allocation3 + $0x20] sm:$0xff] %vm1409, %v1404
        %v1411 = vld [vmem:[#allocation2] sm:$0xff]
        %v1412 = vld [vmem:[#allocation2 + $0x8] sm:$0xff]
        %v1413 = vld [vmem:[#allocation2 + $0x10] sm:$0xff]
        %v1414 = vld [vmem:[#allocation2 + $0x18] sm:$0xff]
        %v1415 = vld [vmem:[#allocation2 + $0x20] sm:$0xff]
        %1421 = vrot.lane.b32.xlu0 %v1411, 127
        %v1422 = vpop.permute.xlu0 %1421
        %1423 = vrot.lane.b32.xlu0 %v1412, 127
        %v1424 = vpop.permute.xlu0 %1423
        %1425 = vrot.lane.b32.xlu0 %v1413, 127
        %v1426 = vpop.permute.xlu0 %1425
        %1427 = vrot.lane.b32.xlu0 %v1414, 127
        %v1428 = vpop.permute.xlu0 %1427
        %1429 = vrot.lane.b32.xlu0 %v1415, 127
        %v1430 = vpop.permute.xlu0 %1429
        %v1431 = vsel %vm1098, %v1422, %v1424
        %v1432 = vsel %vm1098, %v1424, %v1426
        %v1433 = vsel %vm1098, %v1426, %v1428
        %v1434 = vsel %vm1098, %v1428, %v1430
        %1440 = vst [vmem:[#allocation3 + $0x28] sm:$0xff] %v1431
        %1441 = vst [vmem:[#allocation3 + $0x30] sm:$0xff] %v1432
        %1442 = vst [vmem:[#allocation3 + $0x38] sm:$0xff] %v1433
        %1443 = vst [vmem:[#allocation3 + $0x40] sm:$0xff] %v1434
        %1444 = vst.msk [vmem:[#allocation3 + $0x48] sm:$0xff] %vm1409, %v1430
        %v1445 = vld [vmem:[#allocation2] sm:$0xff]
        %v1446 = vld [vmem:[#allocation2 + $0x8] sm:$0xff]
        %v1447 = vld [vmem:[#allocation2 + $0x10] sm:$0xff]
        %v1448 = vld [vmem:[#allocation2 + $0x18] sm:$0xff]
        %v1449 = vld [vmem:[#allocation2 + $0x20] sm:$0xff]
        %1455 = vrot.lane.b32.xlu0 %v1445, 126
        %v1456 = vpop.permute.xlu0 %1455
        %1457 = vrot.lane.b32.xlu0 %v1446, 126
        %v1458 = vpop.permute.xlu0 %1457
        %1459 = vrot.lane.b32.xlu0 %v1447, 126
        %v1460 = vpop.permute.xlu0 %1459
        %1461 = vrot.lane.b32.xlu0 %v1448, 126
        %v1462 = vpop.permute.xlu0 %1461
        %1463 = vrot.lane.b32.xlu0 %v1449, 126
        %v1464 = vpop.permute.xlu0 %1463
        %v1465 = vsel %vm1111, %v1456, %v1458
        %v1466 = vsel %vm1111, %v1458, %v1460
        %v1467 = vsel %vm1111, %v1460, %v1462
        %v1468 = vsel %vm1111, %v1462, %v1464
        %1474 = vst [vmem:[#allocation3 + $0x50] sm:$0xff] %v1465
        %1475 = vst [vmem:[#allocation3 + $0x58] sm:$0xff] %v1466
        %1476 = vst [vmem:[#allocation3 + $0x60] sm:$0xff] %v1467
        %1477 = vst [vmem:[#allocation3 + $0x68] sm:$0xff] %v1468
        %1478 = vst.msk [vmem:[#allocation3 + $0x70] sm:$0xff] %vm1409, %v1464
        %v1479 = vld [vmem:[%s5] sm:$0xff]
        %v1480 = vld [vmem:[#allocation3] sm:$0xff]
        %v1481 = vld [vmem:[#allocation3 + $0x8] sm:$0xff]
        %v1482 = vld [vmem:[#allocation3 + $0x10] sm:$0xff]
        %v1483 = vld [vmem:[#allocation3 + $0x18] sm:$0xff]
        %v1484 = vld [vmem:[#allocation3 + $0x20] sm:$0xff]
        %v1485 = vld [vmem:[#allocation3 + $0x28] sm:$0xff]
        %v1486 = vld [vmem:[#allocation3 + $0x30] sm:$0xff]
        %v1487 = vld [vmem:[#allocation3 + $0x38] sm:$0xff]
        %v1488 = vld [vmem:[#allocation3 + $0x40] sm:$0xff]
        %v1489 = vld [vmem:[#allocation3 + $0x48] sm:$0xff]
        %v1490 = vld [vmem:[#allocation3 + $0x50] sm:$0xff]
        %v1491 = vld [vmem:[#allocation3 + $0x58] sm:$0xff]
        %v1492 = vld [vmem:[#allocation3 + $0x60] sm:$0xff]
        %v1493 = vld [vmem:[#allocation3 + $0x68] sm:$0xff]
        %v1494 = vld [vmem:[#allocation3 + $0x70] sm:$0xff]
        %v1495 = vld [vmem:[%s33] sm:$0xff]
        %1497 = vset.pattern.permute.xlu0 0
        %1498 = vperm.xlu0 %1497, %v1495
        %v1499 = vpop.permute.xlu0 %1498
        %vm1501 = vcmask 195584
        %v1503 = vsel %vm1501, %v1479, 0
        %1505 = vmatprep.subr.mxu0 %v1481
        %1506 = vmatpush1.msra.mxu0 %v1480
        %1507 = vmatprep.subr.mxu0 %v1486
        %1508 = vmatpush1.msra.mxu0 %v1485
        %1509 = vmatprep.subr.mxu0 %v1491
        %1510 = vmatpush1.msra.mxu0 %v1490
        %1511 = vmatprep.subr.mxu0 0.0
        %1512 = vmatpush1.msra.mxu0 0.0
        %1513 = vmatprep.subr.mxu0 0.0
        %1514 = vmatpush1.msra.mxu0 0.0
        %1515 = vmatprep.subr.mxu0 0.0
        %1516 = vmatpush1.msra.mxu0 0.0
        %1517 = vmatprep.subr.mxu0 0.0
        %1518 = vmatpush1.msra.mxu0 0.0
        %1519 = vmatprep.subr.mxu0 0.0
        %1520 = vmatpush1.msra.mxu0 0.0
        %1521 = vmatprep.subr.mxu0 0.0
        %1522 = vmatpush1.msra.mxu0 0.0
        %1523 = vmatprep.subr.mxu0 0.0
        %1524 = vmatpush1.msra.mxu0 0.0
        %1525 = vmatprep.subr.mxu0 0.0
        %1526 = vmatpush1.msra.mxu0 0.0
        %1527 = vmatprep.subr.mxu0 0.0
        %1528 = vmatpush1.msra.mxu0 0.0
        %1529 = vmatprep.subr.mxu0 0.0
        %1530 = vmatpush1.msra.mxu0 0.0
        %1531 = vmatprep.subr.mxu0 0.0
        %1532 = vmatpush1.msra.mxu0 0.0
        %1533 = vmatprep.subr.mxu0 0.0
        %1534 = vmatpush1.msra.mxu0 0.0
        %1535 = vmatprep.subr.mxu0 0.0
        %1536 = vmatpush1.msra.mxu0 0.0
        %1537 = vmatprep.subr.mxu0 0.0
        %1538 = vmatpush1.msra.mxu0 0.0
        %1539 = vmatprep.subr.mxu0 0.0
        %1540 = vmatpush1.msra.mxu0 0.0
        %1541 = vmatprep.subr.mxu0 0.0
        %1542 = vmatpush1.msra.mxu0 0.0
        %1543 = vmatprep.subr.mxu0 0.0
        %1544 = vmatpush1.msra.mxu0 0.0
        %1545 = vmatprep.subr.mxu0 0.0
        %1546 = vmatpush1.msra.mxu0 0.0
        %1547 = vmatprep.subr.mxu0 0.0
        %1548 = vmatpush1.msra.mxu0 0.0
        %1549 = vmatprep.subr.mxu0 0.0
        %1550 = vmatpush1.msra.mxu0 0.0
        %1551 = vmatprep.subr.mxu0 0.0
        %1552 = vmatpush1.msra.mxu0 0.0
        %1553 = vmatprep.subr.mxu0 0.0
        %1554 = vmatpush1.msra.mxu0 0.0
        %1555 = vmatprep.subr.mxu0 0.0
        %1556 = vmatpush1.msra.mxu0 0.0
        %1557 = vmatprep.subr.mxu0 0.0
        %1558 = vmatpush1.msra.mxu0 0.0
        %1559 = vmatprep.subr.mxu0 0.0
        %1560 = vmatpush1.msra.mxu0 0.0
        %1561 = vmatprep.subr.mxu0 0.0
        %1562 = vmatpush1.msra.mxu0 0.0
        %1563 = vmatprep.subr.mxu0 0.0
        %1564 = vmatpush1.msra.mxu0 0.0
        %1565 = vmatprep.subr.mxu0 0.0
        %1566 = vmatpush1.msra.mxu0 0.0
        %1567 = vmatprep.subr.mxu0 0.0
        %1568 = vmatpush1.msra.mxu0 0.0
        %1569 = vmatprep.mubr.f32.mxu0 0.0
        %1570 = vmatmul.mubr.f32.gmra.mrb[0].mxu0 %v1503
        %v1571 = vpop.f32.mrb[0].mxu0
        %v1572 = vadd.f32 %v1499, %v1571
        %v1573 = vpop.f32.mrb[0].mxu0
        %v1574 = vadd.f32 %v1499, %v1573
        %1575 = vdwg.mxu0
        %1576 = vmatprep.subr.mxu0 %v1483
        %1577 = vmatpush1.msra.mxu0 %v1482
        %1578 = vmatprep.subr.mxu0 %v1488
        %1579 = vmatpush1.msra.mxu0 %v1487
        %1580 = vmatprep.subr.mxu0 %v1493
        %1581 = vmatpush1.msra.mxu0 %v1492
        %1582 = vmatprep.subr.mxu0 0.0
        %1583 = vmatpush1.msra.mxu0 0.0
        %1584 = vmatprep.subr.mxu0 0.0
        %1585 = vmatpush1.msra.mxu0 0.0
        %1586 = vmatprep.subr.mxu0 0.0
        %1587 = vmatpush1.msra.mxu0 0.0
        %1588 = vmatprep.subr.mxu0 0.0
        %1589 = vmatpush1.msra.mxu0 0.0
        %1590 = vmatprep.subr.mxu0 0.0
        %1591 = vmatpush1.msra.mxu0 0.0
        %1592 = vmatprep.subr.mxu0 0.0
        %1593 = vmatpush1.msra.mxu0 0.0
        %1594 = vmatprep.subr.mxu0 0.0
        %1595 = vmatpush1.msra.mxu0 0.0
        %1596 = vmatprep.subr.mxu0 0.0
        %1597 = vmatpush1.msra.mxu0 0.0
        %1598 = vmatprep.subr.mxu0 0.0
        %1599 = vmatpush1.msra.mxu0 0.0
        %1600 = vmatprep.subr.mxu0 0.0
        %1601 = vmatpush1.msra.mxu0 0.0
        %1602 = vmatprep.subr.mxu0 0.0
        %1603 = vmatpush1.msra.mxu0 0.0
        %1604 = vmatprep.subr.mxu0 0.0
        %1605 = vmatpush1.msra.mxu0 0.0
        %1606 = vmatprep.subr.mxu0 0.0
        %1607 = vmatpush1.msra.mxu0 0.0
        %1608 = vmatprep.subr.mxu0 0.0
        %1609 = vmatpush1.msra.mxu0 0.0
        %1610 = vmatprep.subr.mxu0 0.0
        %1611 = vmatpush1.msra.mxu0 0.0
        %1612 = vmatprep.subr.mxu0 0.0
        %1613 = vmatpush1.msra.mxu0 0.0
        %1614 = vmatprep.subr.mxu0 0.0
        %1615 = vmatpush1.msra.mxu0 0.0
        %1616 = vmatprep.subr.mxu0 0.0
        %1617 = vmatpush1.msra.mxu0 0.0
        %1618 = vmatprep.subr.mxu0 0.0
        %1619 = vmatpush1.msra.mxu0 0.0
        %1620 = vmatprep.subr.mxu0 0.0
        %1621 = vmatpush1.msra.mxu0 0.0
        %1622 = vmatprep.subr.mxu0 0.0
        %1623 = vmatpush1.msra.mxu0 0.0
        %1624 = vmatprep.subr.mxu0 0.0
        %1625 = vmatpush1.msra.mxu0 0.0
        %1626 = vmatprep.subr.mxu0 0.0
        %1627 = vmatpush1.msra.mxu0 0.0
        %1628 = vmatprep.subr.mxu0 0.0
        %1629 = vmatpush1.msra.mxu0 0.0
        %1630 = vmatprep.subr.mxu0 0.0
        %1631 = vmatpush1.msra.mxu0 0.0
        %1632 = vmatprep.subr.mxu0 0.0
        %1633 = vmatpush1.msra.mxu0 0.0
        %1634 = vmatprep.subr.mxu0 0.0
        %1635 = vmatpush1.msra.mxu0 0.0
        %1636 = vmatprep.subr.mxu0 0.0
        %1637 = vmatpush1.msra.mxu0 0.0
        %1638 = vmatprep.subr.mxu0 0.0
        %1639 = vmatpush1.msra.mxu0 0.0
        %1640 = vmatprep.mubr.f32.mxu0 0.0
        %1641 = vmatmul.mubr.f32.gmra.mrb[0].mxu0 %v1503
        %v1642 = vpop.f32.mrb[0].mxu0
        %v1643 = vadd.f32 %v1499, %v1642
        %v1644 = vpop.f32.mrb[0].mxu0
        %v1645 = vadd.f32 %v1499, %v1644
        %1646 = vdwg.mxu0
        %1647 = vmatprep.subr.mxu0 0.0
        %1648 = vmatpush1.msra.mxu0 %v1484
        %1649 = vmatprep.subr.mxu0 0.0
        %1650 = vmatpush1.msra.mxu0 %v1489
        %1651 = vmatprep.subr.mxu0 0.0
        %1652 = vmatpush1.msra.mxu0 %v1494
        %1653 = vmatprep.subr.mxu0 0.0
        %1654 = vmatpush1.msra.mxu0 0.0
        %1655 = vmatprep.subr.mxu0 0.0
        %1656 = vmatpush1.msra.mxu0 0.0
        %1657 = vmatprep.subr.mxu0 0.0
        %1658 = vmatpush1.msra.mxu0 0.0
        %1659 = vmatprep.subr.mxu0 0.0
        %1660 = vmatpush1.msra.mxu0 0.0
        %1661 = vmatprep.subr.mxu0 0.0
        %1662 = vmatpush1.msra.mxu0 0.0
        %1663 = vmatprep.subr.mxu0 0.0
        %1664 = vmatpush1.msra.mxu0 0.0
        %1665 = vmatprep.subr.mxu0 0.0
        %1666 = vmatpush1.msra.mxu0 0.0
        %1667 = vmatprep.subr.mxu0 0.0
        %1668 = vmatpush1.msra.mxu0 0.0
        %1669 = vmatprep.subr.mxu0 0.0
        %1670 = vmatpush1.msra.mxu0 0.0
        %1671 = vmatprep.subr.mxu0 0.0
        %1672 = vmatpush1.msra.mxu0 0.0
        %1673 = vmatprep.subr.mxu0 0.0
        %1674 = vmatpush1.msra.mxu0 0.0
        %1675 = vmatprep.subr.mxu0 0.0
        %1676 = vmatpush1.msra.mxu0 0.0
        %1677 = vmatprep.subr.mxu0 0.0
        %1678 = vmatpush1.msra.mxu0 0.0
        %1679 = vmatprep.subr.mxu0 0.0
        %1680 = vmatpush1.msra.mxu0 0.0
        %1681 = vmatprep.subr.mxu0 0.0
        %1682 = vmatpush1.msra.mxu0 0.0
        %1683 = vmatprep.subr.mxu0 0.0
        %1684 = vmatpush1.msra.mxu0 0.0
        %1685 = vmatprep.subr.mxu0 0.0
        %1686 = vmatpush1.msra.mxu0 0.0
        %1687 = vmatprep.subr.mxu0 0.0
        %1688 = vmatpush1.msra.mxu0 0.0
        %1689 = vmatprep.subr.mxu0 0.0
        %1690 = vmatpush1.msra.mxu0 0.0
        %1691 = vmatprep.subr.mxu0 0.0
        %1692 = vmatpush1.msra.mxu0 0.0
        %1693 = vmatprep.subr.mxu0 0.0
        %1694 = vmatpush1.msra.mxu0 0.0
        %1695 = vmatprep.subr.mxu0 0.0
        %1696 = vmatpush1.msra.mxu0 0.0
        %1697 = vmatprep.subr.mxu0 0.0
        %1698 = vmatpush1.msra.mxu0 0.0
        %1699 = vmatprep.subr.mxu0 0.0
        %1700 = vmatpush1.msra.mxu0 0.0
        %1701 = vmatprep.subr.mxu0 0.0
        %1702 = vmatpush1.msra.mxu0 0.0
        %1703 = vmatprep.subr.mxu0 0.0
        %1704 = vmatpush1.msra.mxu0 0.0
        %1705 = vmatprep.subr.mxu0 0.0
        %1706 = vmatpush1.msra.mxu0 0.0
        %1707 = vmatprep.subr.mxu0 0.0
        %1708 = vmatpush1.msra.mxu0 0.0
        %1709 = vmatprep.subr.mxu0 0.0
        %1710 = vmatpush1.msra.mxu0 0.0
        %1711 = vmatprep.mubr.f32.mxu0 0.0
        %1712 = vmatmul.mubr.f32.gmra.mrb[0].mxu0 %v1503
        %v1713 = vpop.f32.mrb[0].mxu0
        %v1714 = vadd.f32 %v1499, %v1713
        %v1715 = vpop.f32.mrb[0].mxu0
        %1716 = vdwg.mxu0
        %1717 = vst [vmem:[%s1050] sm:$0xff] %v1572
        %1718 = vst [vmem:[%s1050 + $0x8] sm:$0xff] %v1574
        %1719 = vst [vmem:[%s1050 + $0x10] sm:$0xff] %v1643
        %1720 = vst [vmem:[%s1050 + $0x18] sm:$0xff] %v1645
        %1721 = vst.msk [vmem:[%s1050 + $0x20] sm:$0xff] %vm1409, %v1714
        %vm1722 = vcmp.ge.f32.partialorder %v1572, 0.0
        %vm1723 = vcmp.ge.f32.partialorder %v1574, 0.0
        %vm1724 = vcmp.ge.f32.partialorder %v1643, 0.0
        %vm1725 = vcmp.ge.f32.partialorder %v1645, 0.0
        %vm1726 = vcmp.ge.f32.partialorder %v1714, 0.0
        %v1727 = vmul.f32 %v1572, 0.1
        %v1728 = vmul.f32 %v1574, 0.1
        %v1729 = vmul.f32 %v1643, 0.1
        %v1730 = vmul.f32 %v1645, 0.1
        %v1731 = vmul.f32 %v1714, 0.1
        %v1732 = vsel %vm1722, %v1572, %v1727
        %v1733 = vsel %vm1723, %v1574, %v1728
        %v1734 = vsel %vm1724, %v1643, %v1729
        %v1735 = vsel %vm1725, %v1645, %v1730
        %v1736 = vsel %vm1726, %v1714, %v1731
        %vm1737 = vcmask 15360
        %1738 = vst.msk [vmem:[#allocation2] sm:$0xff] %vm1737, 0.0
        %vm1739 = vcmask 753360
        %1740 = vst.msk [vmem:[#allocation2 + $0x20] sm:$0xff] %vm1739, 0.0
        %1746 = vrot.lane.b32.xlu0 %v1732, 2
        %v1747 = vpop.permute.xlu0 %1746
        %1748 = vrot.lane.b32.xlu0 %v1733, 2
        %v1749 = vpop.permute.xlu0 %1748
        %1750 = vrot.lane.b32.xlu0 %v1734, 2
        %v1751 = vpop.permute.xlu0 %1750
        %1752 = vrot.lane.b32.xlu0 %v1735, 2
        %v1753 = vpop.permute.xlu0 %1752
        %1754 = vrot.lane.b32.xlu0 %v1736, 2
        %v1755 = vpop.permute.xlu0 %1754
        %v1756 = vsel %vm1737, %v1747, %v1749
        %v1757 = vsel %vm1737, %v1749, %v1751
        %v1758 = vsel %vm1737, %v1751, %v1753
        %v1759 = vsel %vm1737, %v1753, %v1755
        %vm1765 = vcmask 1047568
        %1766 = vst.msk [vmem:[#allocation2] sm:$0xff] %vm1765, %v1747
        %1767 = vst [vmem:[#allocation2 + $0x8] sm:$0xff] %v1756
        %1768 = vst [vmem:[#allocation2 + $0x10] sm:$0xff] %v1757
        %1769 = vst [vmem:[#allocation2 + $0x18] sm:$0xff] %v1758
        %vm1770 = vcmask 736256
        %1771 = vst.msk [vmem:[#allocation2 + $0x20] sm:$0xff] %vm1770, %v1759
        %v1772 = vld [vmem:[#allocation2] sm:$0xff]
        %v1773 = vld [vmem:[#allocation2 + $0x8] sm:$0xff]
        %v1774 = vld [vmem:[#allocation2 + $0x10] sm:$0xff]
        %v1775 = vld [vmem:[#allocation2 + $0x18] sm:$0xff]
        %v1776 = vld [vmem:[#allocation2 + $0x20] sm:$0xff]
        %1777 = vst [vmem:[#allocation3] sm:$0xff] %v1772
        %1778 = vst [vmem:[#allocation3 + $0x8] sm:$0xff] %v1773
        %1779 = vst [vmem:[#allocation3 + $0x10] sm:$0xff] %v1774
        %1780 = vst [vmem:[#allocation3 + $0x18] sm:$0xff] %v1775
        %1781 = vst.msk [vmem:[#allocation3 + $0x20] sm:$0xff] %vm1409, %v1776
        %v1782 = vld [vmem:[#allocation2] sm:$0xff]
        %v1783 = vld [vmem:[#allocation2 + $0x8] sm:$0xff]
        %v1784 = vld [vmem:[#allocation2 + $0x10] sm:$0xff]
        %v1785 = vld [vmem:[#allocation2 + $0x18] sm:$0xff]
        %v1786 = vld [vmem:[#allocation2 + $0x20] sm:$0xff]
        %1792 = vrot.lane.b32.xlu0 %v1782, 127
        %v1793 = vpop.permute.xlu0 %1792
        %1794 = vrot.lane.b32.xlu0 %v1783, 127
        %v1795 = vpop.permute.xlu0 %1794
        %1796 = vrot.lane.b32.xlu0 %v1784, 127
        %v1797 = vpop.permute.xlu0 %1796
        %1798 = vrot.lane.b32.xlu0 %v1785, 127
        %v1799 = vpop.permute.xlu0 %1798
        %1800 = vrot.lane.b32.xlu0 %v1786, 127
        %v1801 = vpop.permute.xlu0 %1800
        %v1802 = vsel %vm1098, %v1793, %v1795
        %v1803 = vsel %vm1098, %v1795, %v1797
        %v1804 = vsel %vm1098, %v1797, %v1799
        %v1805 = vsel %vm1098, %v1799, %v1801
        %1811 = vst [vmem:[#allocation3 + $0x28] sm:$0xff] %v1802
        %1812 = vst [vmem:[#allocation3 + $0x30] sm:$0xff] %v1803
        %1813 = vst [vmem:[#allocation3 + $0x38] sm:$0xff] %v1804
        %1814 = vst [vmem:[#allocation3 + $0x40] sm:$0xff] %v1805
        %1815 = vst.msk [vmem:[#allocation3 + $0x48] sm:$0xff] %vm1409, %v1801
        %v1816 = vld [vmem:[#allocation2] sm:$0xff]
        %v1817 = vld [vmem:[#allocation2 + $0x8] sm:$0xff]
        %v1818 = vld [vmem:[#allocation2 + $0x10] sm:$0xff]
        %v1819 = vld [vmem:[#allocation2 + $0x18] sm:$0xff]
        %v1820 = vld [vmem:[#allocation2 + $0x20] sm:$0xff]
        %1826 = vrot.lane.b32.xlu0 %v1816, 126
        %v1827 = vpop.permute.xlu0 %1826
        %1828 = vrot.lane.b32.xlu0 %v1817, 126
        %v1829 = vpop.permute.xlu0 %1828
        %1830 = vrot.lane.b32.xlu0 %v1818, 126
        %v1831 = vpop.permute.xlu0 %1830
        %1832 = vrot.lane.b32.xlu0 %v1819, 126
        %v1833 = vpop.permute.xlu0 %1832
        %1834 = vrot.lane.b32.xlu0 %v1820, 126
        %v1835 = vpop.permute.xlu0 %1834
        %v1836 = vsel %vm1111, %v1827, %v1829
        %v1837 = vsel %vm1111, %v1829, %v1831
        %v1838 = vsel %vm1111, %v1831, %v1833
        %v1839 = vsel %vm1111, %v1833, %v1835
        %1845 = vst [vmem:[#allocation3 + $0x50] sm:$0xff] %v1836
        %1846 = vst [vmem:[#allocation3 + $0x58] sm:$0xff] %v1837
        %1847 = vst [vmem:[#allocation3 + $0x60] sm:$0xff] %v1838
        %1848 = vst [vmem:[#allocation3 + $0x68] sm:$0xff] %v1839
        %1849 = vst.msk [vmem:[#allocation3 + $0x70] sm:$0xff] %vm1409, %v1835
        %v1850 = vld [vmem:[#allocation2] sm:$0xff]
        %v1851 = vld [vmem:[#allocation2 + $0x8] sm:$0xff]
        %v1852 = vld [vmem:[#allocation2 + $0x10] sm:$0xff]
        %v1853 = vld [vmem:[#allocation2 + $0x18] sm:$0xff]
        %v1854 = vld [vmem:[#allocation2 + $0x20] sm:$0xff]
        %1860 = vrot.lane.b32.xlu0 %v1850, 125
        %v1861 = vpop.permute.xlu0 %1860
        %1862 = vrot.lane.b32.xlu0 %v1851, 125
        %v1863 = vpop.permute.xlu0 %1862
        %1864 = vrot.lane.b32.xlu0 %v1852, 125
        %v1865 = vpop.permute.xlu0 %1864
        %1866 = vrot.lane.b32.xlu0 %v1853, 125
        %v1867 = vpop.permute.xlu0 %1866
        %1868 = vrot.lane.b32.xlu0 %v1854, 125
        %v1869 = vpop.permute.xlu0 %1868
        %vm1870 = vcmask 1022976
        %v1871 = vsel %vm1870, %v1861, %v1863
        %v1872 = vsel %vm1870, %v1863, %v1865
        %v1873 = vsel %vm1870, %v1865, %v1867
        %v1874 = vsel %vm1870, %v1867, %v1869
        %1880 = vst [vmem:[#allocation3 + $0x78] sm:$0xff] %v1871
        %1881 = vst [vmem:[#allocation3 + $0x80] sm:$0xff] %v1872
        %1882 = vst [vmem:[#allocation3 + $0x88] sm:$0xff] %v1873
        %1883 = vst [vmem:[#allocation3 + $0x90] sm:$0xff] %v1874
        %1884 = vst.msk [vmem:[#allocation3 + $0x98] sm:$0xff] %vm1409, %v1869
        %v1885 = vld [vmem:[#allocation2] sm:$0xff]
        %v1886 = vld [vmem:[#allocation2 + $0x8] sm:$0xff]
        %v1887 = vld [vmem:[#allocation2 + $0x10] sm:$0xff]
        %v1888 = vld [vmem:[#allocation2 + $0x18] sm:$0xff]
        %v1889 = vld [vmem:[#allocation2 + $0x20] sm:$0xff]
        %1895 = vrot.lane.b32.xlu0 %v1885, 124
        %v1896 = vpop.permute.xlu0 %1895
        %1897 = vrot.lane.b32.xlu0 %v1886, 124
        %v1898 = vpop.permute.xlu0 %1897
        %1899 = vrot.lane.b32.xlu0 %v1887, 124
        %v1900 = vpop.permute.xlu0 %1899
        %1901 = vrot.lane.b32.xlu0 %v1888, 124
        %v1902 = vpop.permute.xlu0 %1901
        %1903 = vrot.lane.b32.xlu0 %v1889, 124
        %v1904 = vpop.permute.xlu0 %1903
        %vm1905 = vcmask 1014784
        %v1906 = vsel %vm1905, %v1896, %v1898
        %v1907 = vsel %vm1905, %v1898, %v1900
        %v1908 = vsel %vm1905, %v1900, %v1902
        %v1909 = vsel %vm1905, %v1902, %v1904
        %1915 = vst [vmem:[#allocation3 + $0xa0] sm:$0xff] %v1906
        %1916 = vst [vmem:[#allocation3 + $0xa8] sm:$0xff] %v1907
        %1917 = vst [vmem:[#allocation3 + $0xb0] sm:$0xff] %v1908
        %1918 = vst [vmem:[#allocation3 + $0xb8] sm:$0xff] %v1909
        %1919 = vst.msk [vmem:[#allocation3 + $0xc0] sm:$0xff] %vm1409, %v1904
        %v1920 = vld [vmem:[%s7] sm:$0xff]
        %v1921 = vld [vmem:[#allocation3] sm:$0xff]
        %v1922 = vld [vmem:[#allocation3 + $0x8] sm:$0xff]
        %v1923 = vld [vmem:[#allocation3 + $0x10] sm:$0xff]
        %v1924 = vld [vmem:[#allocation3 + $0x18] sm:$0xff]
        %v1925 = vld [vmem:[#allocation3 + $0x20] sm:$0xff]
        %v1926 = vld [vmem:[#allocation3 + $0x28] sm:$0xff]
        %v1927 = vld [vmem:[#allocation3 + $0x30] sm:$0xff]
        %v1928 = vld [vmem:[#allocation3 + $0x38] sm:$0xff]
        %v1929 = vld [vmem:[#allocation3 + $0x40] sm:$0xff]
        %v1930 = vld [vmem:[#allocation3 + $0x48] sm:$0xff]
        %v1931 = vld [vmem:[#allocation3 + $0x50] sm:$0xff]
        %v1932 = vld [vmem:[#allocation3 + $0x58] sm:$0xff]
        %v1933 = vld [vmem:[#allocation3 + $0x60] sm:$0xff]
        %v1934 = vld [vmem:[#allocation3 + $0x68] sm:$0xff]
        %v1935 = vld [vmem:[#allocation3 + $0x70] sm:$0xff]
        %v1936 = vld [vmem:[#allocation3 + $0x78] sm:$0xff]
        %v1937 = vld [vmem:[#allocation3 + $0x80] sm:$0xff]
        %v1938 = vld [vmem:[#allocation3 + $0x88] sm:$0xff]
        %v1939 = vld [vmem:[#allocation3 + $0x90] sm:$0xff]
        %v1940 = vld [vmem:[#allocation3 + $0x98] sm:$0xff]
        %v1941 = vld [vmem:[#allocation3 + $0xa0] sm:$0xff]
        %v1942 = vld [vmem:[#allocation3 + $0xa8] sm:$0xff]
        %v1943 = vld [vmem:[#allocation3 + $0xb0] sm:$0xff]
        %v1944 = vld [vmem:[#allocation3 + $0xb8] sm:$0xff]
        %v1945 = vld [vmem:[#allocation3 + $0xc0] sm:$0xff]
        %vm1946 = vcmask 326656
        %v1948 = vsel %vm1946, %v1920, 0
        %1950 = vmatprep.subr.mxu0 %v1922
        %1951 = vmatpush1.msra.mxu0 %v1921
        %1952 = vmatprep.subr.mxu0 %v1927
        %1953 = vmatpush1.msra.mxu0 %v1926
        %1954 = vmatprep.subr.mxu0 %v1932
        %1955 = vmatpush1.msra.mxu0 %v1931
        %1956 = vmatprep.subr.mxu0 %v1937
        %1957 = vmatpush1.msra.mxu0 %v1936
        %1958 = vmatprep.subr.mxu0 %v1942
        %1959 = vmatpush1.msra.mxu0 %v1941
        %1960 = vmatprep.subr.mxu0 0.0
        %1961 = vmatpush1.msra.mxu0 0.0
        %1962 = vmatprep.subr.mxu0 0.0
        %1963 = vmatpush1.msra.mxu0 0.0
        %1964 = vmatprep.subr.mxu0 0.0
        %1965 = vmatpush1.msra.mxu0 0.0
        %1966 = vmatprep.subr.mxu0 0.0
        %1967 = vmatpush1.msra.mxu0 0.0
        %1968 = vmatprep.subr.mxu0 0.0
        %1969 = vmatpush1.msra.mxu0 0.0
        %1970 = vmatprep.subr.mxu0 0.0
        %1971 = vmatpush1.msra.mxu0 0.0
        %1972 = vmatprep.subr.mxu0 0.0
        %1973 = vmatpush1.msra.mxu0 0.0
        %1974 = vmatprep.subr.mxu0 0.0
        %1975 = vmatpush1.msra.mxu0 0.0
        %1976 = vmatprep.subr.mxu0 0.0
        %1977 = vmatpush1.msra.mxu0 0.0
        %1978 = vmatprep.subr.mxu0 0.0
        %1979 = vmatpush1.msra.mxu0 0.0
        %1980 = vmatprep.subr.mxu0 0.0
        %1981 = vmatpush1.msra.mxu0 0.0
        %1982 = vmatprep.subr.mxu0 0.0
        %1983 = vmatpush1.msra.mxu0 0.0
        %1984 = vmatprep.subr.mxu0 0.0
        %1985 = vmatpush1.msra.mxu0 0.0
        %1986 = vmatprep.subr.mxu0 0.0
        %1987 = vmatpush1.msra.mxu0 0.0
        %1988 = vmatprep.subr.mxu0 0.0
        %1989 = vmatpush1.msra.mxu0 0.0
        %1990 = vmatprep.subr.mxu0 0.0
        %1991 = vmatpush1.msra.mxu0 0.0
        %1992 = vmatprep.subr.mxu0 0.0
        %1993 = vmatpush1.msra.mxu0 0.0
        %1994 = vmatprep.subr.mxu0 0.0
        %1995 = vmatpush1.msra.mxu0 0.0
        %1996 = vmatprep.subr.mxu0 0.0
        %1997 = vmatpush1.msra.mxu0 0.0
        %1998 = vmatprep.subr.mxu0 0.0
        %1999 = vmatpush1.msra.mxu0 0.0
        %2000 = vmatprep.subr.mxu0 0.0
        %2001 = vmatpush1.msra.mxu0 0.0
        %2002 = vmatprep.subr.mxu0 0.0
        %2003 = vmatpush1.msra.mxu0 0.0
        %2004 = vmatprep.subr.mxu0 0.0
        %2005 = vmatpush1.msra.mxu0 0.0
        %2006 = vmatprep.subr.mxu0 0.0
        %2007 = vmatpush1.msra.mxu0 0.0
        %2008 = vmatprep.subr.mxu0 0.0
        %2009 = vmatpush1.msra.mxu0 0.0
        %2010 = vmatprep.subr.mxu0 0.0
        %2011 = vmatpush1.msra.mxu0 0.0
        %2012 = vmatprep.subr.mxu0 0.0
        %2013 = vmatpush1.msra.mxu0 0.0
        %2014 = vmatprep.mubr.f32.mxu0 0.0
        %2015 = vmatmul.mubr.f32.gmra.mrb[0].mxu0 %v1948
        %v2016 = vpop.f32.mrb[0].mxu0
        %v2017 = vadd.f32 0.0, %v2016
        %v2018 = vpop.f32.mrb[0].mxu0
        %v2019 = vadd.f32 0.0, %v2018
        %2020 = vdwg.mxu0
        %2021 = vmatprep.subr.mxu0 %v1924
        %2022 = vmatpush1.msra.mxu0 %v1923
        %2023 = vmatprep.subr.mxu0 %v1929
        %2024 = vmatpush1.msra.mxu0 %v1928
        %2025 = vmatprep.subr.mxu0 %v1934
        %2026 = vmatpush1.msra.mxu0 %v1933
        %2027 = vmatprep.subr.mxu0 %v1939
        %2028 = vmatpush1.msra.mxu0 %v1938
        %2029 = vmatprep.subr.mxu0 %v1944
        %2030 = vmatpush1.msra.mxu0 %v1943
        %2031 = vmatprep.subr.mxu0 0.0
        %2032 = vmatpush1.msra.mxu0 0.0
        %2033 = vmatprep.subr.mxu0 0.0
        %2034 = vmatpush1.msra.mxu0 0.0
        %2035 = vmatprep.subr.mxu0 0.0
        %2036 = vmatpush1.msra.mxu0 0.0
        %2037 = vmatprep.subr.mxu0 0.0
        %2038 = vmatpush1.msra.mxu0 0.0
        %2039 = vmatprep.subr.mxu0 0.0
        %2040 = vmatpush1.msra.mxu0 0.0
        %2041 = vmatprep.subr.mxu0 0.0
        %2042 = vmatpush1.msra.mxu0 0.0
        %2043 = vmatprep.subr.mxu0 0.0
        %2044 = vmatpush1.msra.mxu0 0.0
        %2045 = vmatprep.subr.mxu0 0.0
        %2046 = vmatpush1.msra.mxu0 0.0
        %2047 = vmatprep.subr.mxu0 0.0
        %2048 = vmatpush1.msra.mxu0 0.0
        %2049 = vmatprep.subr.mxu0 0.0
        %2050 = vmatpush1.msra.mxu0 0.0
        %2051 = vmatprep.subr.mxu0 0.0
        %2052 = vmatpush1.msra.mxu0 0.0
        %2053 = vmatprep.subr.mxu0 0.0
        %2054 = vmatpush1.msra.mxu0 0.0
        %2055 = vmatprep.subr.mxu0 0.0
        %2056 = vmatpush1.msra.mxu0 0.0
        %2057 = vmatprep.subr.mxu0 0.0
        %2058 = vmatpush1.msra.mxu0 0.0
        %2059 = vmatprep.subr.mxu0 0.0
        %2060 = vmatpush1.msra.mxu0 0.0
        %2061 = vmatprep.subr.mxu0 0.0
        %2062 = vmatpush1.msra.mxu0 0.0
        %2063 = vmatprep.subr.mxu0 0.0
        %2064 = vmatpush1.msra.mxu0 0.0
        %2065 = vmatprep.subr.mxu0 0.0
        %2066 = vmatpush1.msra.mxu0 0.0
        %2067 = vmatprep.subr.mxu0 0.0
        %2068 = vmatpush1.msra.mxu0 0.0
        %2069 = vmatprep.subr.mxu0 0.0
        %2070 = vmatpush1.msra.mxu0 0.0
        %2071 = vmatprep.subr.mxu0 0.0
        %2072 = vmatpush1.msra.mxu0 0.0
        %2073 = vmatprep.subr.mxu0 0.0
        %2074 = vmatpush1.msra.mxu0 0.0
        %2075 = vmatprep.subr.mxu0 0.0
        %2076 = vmatpush1.msra.mxu0 0.0
        %2077 = vmatprep.subr.mxu0 0.0
        %2078 = vmatpush1.msra.mxu0 0.0
        %2079 = vmatprep.subr.mxu0 0.0
        %2080 = vmatpush1.msra.mxu0 0.0
        %2081 = vmatprep.subr.mxu0 0.0
        %2082 = vmatpush1.msra.mxu0 0.0
        %2083 = vmatprep.subr.mxu0 0.0
        %2084 = vmatpush1.msra.mxu0 0.0
        %2085 = vmatprep.mubr.f32.mxu0 0.0
        %2086 = vmatmul.mubr.f32.gmra.mrb[0].mxu0 %v1948
        %v2087 = vpop.f32.mrb[0].mxu0
        %v2088 = vadd.f32 0.0, %v2087
        %v2089 = vpop.f32.mrb[0].mxu0
        %v2090 = vadd.f32 0.0, %v2089
        %2091 = vdwg.mxu0
        %2092 = vmatprep.subr.mxu0 0.0
        %2093 = vmatpush1.msra.mxu0 %v1925
        %2094 = vmatprep.subr.mxu0 0.0
        %2095 = vmatpush1.msra.mxu0 %v1930
        %2096 = vmatprep.subr.mxu0 0.0
        %2097 = vmatpush1.msra.mxu0 %v1935
        %2098 = vmatprep.subr.mxu0 0.0
        %2099 = vmatpush1.msra.mxu0 %v1940
        %2100 = vmatprep.subr.mxu0 0.0
        %2101 = vmatpush1.msra.mxu0 %v1945
        %2102 = vmatprep.subr.mxu0 0.0
        %2103 = vmatpush1.msra.mxu0 0.0
        %2104 = vmatprep.subr.mxu0 0.0
        %2105 = vmatpush1.msra.mxu0 0.0
        %2106 = vmatprep.subr.mxu0 0.0
        %2107 = vmatpush1.msra.mxu0 0.0
        %2108 = vmatprep.subr.mxu0 0.0
        %2109 = vmatpush1.msra.mxu0 0.0
        %2110 = vmatprep.subr.mxu0 0.0
        %2111 = vmatpush1.msra.mxu0 0.0
        %2112 = vmatprep.subr.mxu0 0.0
        %2113 = vmatpush1.msra.mxu0 0.0
        %2114 = vmatprep.subr.mxu0 0.0
        %2115 = vmatpush1.msra.mxu0 0.0
        %2116 = vmatprep.subr.mxu0 0.0
        %2117 = vmatpush1.msra.mxu0 0.0
        %2118 = vmatprep.subr.mxu0 0.0
        %2119 = vmatpush1.msra.mxu0 0.0
        %2120 = vmatprep.subr.mxu0 0.0
        %2121 = vmatpush1.msra.mxu0 0.0
        %2122 = vmatprep.subr.mxu0 0.0
        %2123 = vmatpush1.msra.mxu0 0.0
        %2124 = vmatprep.subr.mxu0 0.0
        %2125 = vmatpush1.msra.mxu0 0.0
        %2126 = vmatprep.subr.mxu0 0.0
        %2127 = vmatpush1.msra.mxu0 0.0
        %2128 = vmatprep.subr.mxu0 0.0
        %2129 = vmatpush1.msra.mxu0 0.0
        %2130 = vmatprep.subr.mxu0 0.0
        %2131 = vmatpush1.msra.mxu0 0.0
        %2132 = vmatprep.subr.mxu0 0.0
        %2133 = vmatpush1.msra.mxu0 0.0
        %2134 = vmatprep.subr.mxu0 0.0
        %2135 = vmatpush1.msra.mxu0 0.0
        %2136 = vmatprep.subr.mxu0 0.0
        %2137 = vmatpush1.msra.mxu0 0.0
        %2138 = vmatprep.subr.mxu0 0.0
        %2139 = vmatpush1.msra.mxu0 0.0
        %2140 = vmatprep.subr.mxu0 0.0
        %2141 = vmatpush1.msra.mxu0 0.0
        %2142 = vmatprep.subr.mxu0 0.0
        %2143 = vmatpush1.msra.mxu0 0.0
        %2144 = vmatprep.subr.mxu0 0.0
        %2145 = vmatpush1.msra.mxu0 0.0
        %2146 = vmatprep.subr.mxu0 0.0
        %2147 = vmatpush1.msra.mxu0 0.0
        %2148 = vmatprep.subr.mxu0 0.0
        %2149 = vmatpush1.msra.mxu0 0.0
        %2150 = vmatprep.subr.mxu0 0.0
        %2151 = vmatpush1.msra.mxu0 0.0
        %2152 = vmatprep.subr.mxu0 0.0
        %2153 = vmatpush1.msra.mxu0 0.0
        %2154 = vmatprep.subr.mxu0 0.0
        %2155 = vmatpush1.msra.mxu0 0.0
        %2156 = vmatprep.mubr.f32.mxu0 0.0
        %2157 = vmatmul.mubr.f32.gmra.mrb[0].mxu0 %v1948
        %v2158 = vpop.f32.mrb[0].mxu0
        %v2159 = vadd.f32 0.0, %v2158
        %v2160 = vpop.f32.mrb[0].mxu0
        %2161 = vdwg.mxu0
        %v2162 = vlaneseq
        %v2163 = vshrl.u32 %v2162, 7
        %v2164 = vadd.s32 %v2163, 8
        %v2165 = vadd.s32 %v2163, 16
        %v2166 = vadd.s32 %v2163, 24
        %v2167 = vadd.s32 %v2163, 32
        %v2168 = vadd.s32 %v2163, 40
        %v2169 = vadd.s32 %v2163, 48
        %v2170 = vadd.s32 %v2163, 56
        %v2171 = vadd.s32 %v2163, 64
        %v2172 = vadd.s32 %v2163, 72
        %v2173 = vadd.s32 %v2163, 80
        %v2174 = vadd.s32 %v2163, 88
        %v2175 = vadd.s32 %v2163, 96
        %v2176 = vadd.s32 %v2163, 104
        %v2177 = vadd.s32 %v2163, 112
        %v2178 = vadd.s32 %v2163, 120
        %v2179 = vadd.s32 %v2163, 128
        %v2180 = vadd.s32 %v2163, 136
        %v2181 = vadd.s32 %v2163, 144
        %v2182 = vadd.s32 %v2163, 152
        %v2183 = vadd.s32 %v2163, 160
        %v2184 = vadd.s32 %v2163, 168
        %v2185 = vadd.s32 %v2163, 176
        %v2186 = vadd.s32 %v2163, 184
        %v2187 = vadd.s32 %v2163, 192
        %v2188 = vadd.s32 %v2163, 200
        %v2189 = vadd.s32 %v2163, 208
        %v2190 = vadd.s32 %v2163, 216
        %v2191 = vadd.s32 %v2163, 224
        %v2192 = vadd.s32 %v2163, 232
        %v2193 = vadd.s32 %v2163, 240
        %v2194 = vadd.s32 %v2163, 248
        %v2195 = vadd.s32 %v2163, 256
        %v2196 = vadd.s32 %v2163, 264
        %v2197 = vadd.s32 %v2163, 272
        %v2198 = vadd.s32 %v2163, 280
        %v2199 = vadd.s32 %v2163, 288
        %v2200 = vadd.s32 %v2163, 296
        %v2201 = vadd.s32 %v2163, 304
        %v2202 = vadd.s32 %v2163, 312
        %v2203 = vadd.s32 %v2163, 320
        %v2204 = vadd.s32 %v2163, 328
        %v2205 = vadd.s32 %v2163, 336
        %v2206 = vadd.s32 %v2163, 344
        %v2207 = vadd.s32 %v2163, 352
        %v2208 = vadd.s32 %v2163, 360
        %v2209 = vadd.s32 %v2163, 368
        %v2210 = vadd.s32 %v2163, 376
        %v2211 = vadd.s32 %v2163, 384
        %v2212 = vadd.s32 %v2163, 392
        %v2213 = vadd.s32 %v2163, 400
        %v2214 = vadd.s32 %v2163, 408
        %v2215 = vadd.s32 %v2163, 416
        %v2216 = vadd.s32 %v2163, 424
        %v2217 = vadd.s32 %v2163, 432
        %v2218 = vadd.s32 %v2163, 440
        %v2219 = vadd.s32 %v2163, 448
        %v2220 = vadd.s32 %v2163, 456
        %v2221 = vadd.s32 %v2163, 464
        %v2222 = vadd.s32 %v2163, 472
        %v2223 = vadd.s32 %v2163, 480
        %v2224 = vadd.s32 %v2163, 488
        %v2225 = vadd.s32 %v2163, 496
        %v2226 = vadd.s32 %v2163, 504
        %v2227 = vadd.s32 %v2163, 512
        %v2228 = vadd.s32 %v2163, 520
        %v2229 = vadd.s32 %v2163, 528
        %v2230 = vadd.s32 %v2163, 536
        %v2231 = vadd.s32 %v2163, 544
        %v2232 = vadd.s32 %v2163, 552
        %v2233 = vadd.s32 %v2163, 560
        %v2234 = vadd.s32 %v2163, 568
        %v2235 = vadd.s32 %v2163, 576
        %v2236 = vadd.s32 %v2163, 584
        %v2237 = vadd.s32 %v2163, 592
        %v2238 = vlaneseq
        %v2239 = vand.u32 %v2238, 127
        %v2240 = vadd.s32 %v2239, 128
        %v2241 = vmul.u32 %v2239, 3
        %v2242 = vmul.u32 %v2240, 3
        %vm2243 = vcmp.eq.s32.totalorder %v2163, %v2241
        %vm2244 = vcmp.eq.s32.totalorder %v2163, %v2242
        %vm2245 = vcmp.eq.s32.totalorder %v2164, %v2241
        %vm2246 = vcmp.eq.s32.totalorder %v2164, %v2242
        %vm2247 = vcmp.eq.s32.totalorder %v2165, %v2241
        %vm2248 = vcmp.eq.s32.totalorder %v2165, %v2242
        %vm2249 = vcmp.eq.s32.totalorder %v2166, %v2241
        %vm2250 = vcmp.eq.s32.totalorder %v2166, %v2242
        %vm2251 = vcmp.eq.s32.totalorder %v2167, %v2241
        %vm2252 = vcmp.eq.s32.totalorder %v2167, %v2242
        %vm2253 = vcmp.eq.s32.totalorder %v2168, %v2241
        %vm2254 = vcmp.eq.s32.totalorder %v2168, %v2242
        %vm2255 = vcmp.eq.s32.totalorder %v2169, %v2241
        %vm2256 = vcmp.eq.s32.totalorder %v2169, %v2242
        %vm2257 = vcmp.eq.s32.totalorder %v2170, %v2241
        %vm2258 = vcmp.eq.s32.totalorder %v2170, %v2242
        %vm2259 = vcmp.eq.s32.totalorder %v2171, %v2241
        %vm2260 = vcmp.eq.s32.totalorder %v2171, %v2242
        %vm2261 = vcmp.eq.s32.totalorder %v2172, %v2241
        %vm2262 = vcmp.eq.s32.totalorder %v2172, %v2242
        %vm2263 = vcmp.eq.s32.totalorder %v2173, %v2241
        %vm2264 = vcmp.eq.s32.totalorder %v2173, %v2242
        %vm2265 = vcmp.eq.s32.totalorder %v2174, %v2241
        %vm2266 = vcmp.eq.s32.totalorder %v2174, %v2242
        %vm2267 = vcmp.eq.s32.totalorder %v2175, %v2241
        %vm2268 = vcmp.eq.s32.totalorder %v2175, %v2242
        %vm2269 = vcmp.eq.s32.totalorder %v2176, %v2241
        %vm2270 = vcmp.eq.s32.totalorder %v2176, %v2242
        %vm2271 = vcmp.eq.s32.totalorder %v2177, %v2241
        %vm2272 = vcmp.eq.s32.totalorder %v2177, %v2242
        %vm2273 = vcmp.eq.s32.totalorder %v2178, %v2241
        %vm2274 = vcmp.eq.s32.totalorder %v2178, %v2242
        %vm2275 = vcmp.eq.s32.totalorder %v2179, %v2241
        %vm2276 = vcmp.eq.s32.totalorder %v2179, %v2242
        %vm2277 = vcmp.eq.s32.totalorder %v2180, %v2241
        %vm2278 = vcmp.eq.s32.totalorder %v2180, %v2242
        %vm2279 = vcmp.eq.s32.totalorder %v2181, %v2241
        %vm2280 = vcmp.eq.s32.totalorder %v2181, %v2242
        %vm2281 = vcmp.eq.s32.totalorder %v2182, %v2241
        %vm2282 = vcmp.eq.s32.totalorder %v2182, %v2242
        %vm2283 = vcmp.eq.s32.totalorder %v2183, %v2241
        %vm2284 = vcmp.eq.s32.totalorder %v2183, %v2242
        %vm2285 = vcmp.eq.s32.totalorder %v2184, %v2241
        %vm2286 = vcmp.eq.s32.totalorder %v2184, %v2242
        %vm2287 = vcmp.eq.s32.totalorder %v2185, %v2241
        %vm2288 = vcmp.eq.s32.totalorder %v2185, %v2242
        %vm2289 = vcmp.eq.s32.totalorder %v2186, %v2241
        %vm2290 = vcmp.eq.s32.totalorder %v2186, %v2242
        %vm2291 = vcmp.eq.s32.totalorder %v2187, %v2241
        %vm2292 = vcmp.eq.s32.totalorder %v2187, %v2242
        %vm2293 = vcmp.eq.s32.totalorder %v2188, %v2241
        %vm2294 = vcmp.eq.s32.totalorder %v2188, %v2242
        %vm2295 = vcmp.eq.s32.totalorder %v2189, %v2241
        %vm2296 = vcmp.eq.s32.totalorder %v2189, %v2242
        %vm2297 = vcmp.eq.s32.totalorder %v2190, %v2241
        %vm2298 = vcmp.eq.s32.totalorder %v2190, %v2242
        %vm2299 = vcmp.eq.s32.totalorder %v2191, %v2241
        %vm2300 = vcmp.eq.s32.totalorder %v2191, %v2242
        %vm2301 = vcmp.eq.s32.totalorder %v2192, %v2241
        %vm2302 = vcmp.eq.s32.totalorder %v2192, %v2242
        %vm2303 = vcmp.eq.s32.totalorder %v2193, %v2241
        %vm2304 = vcmp.eq.s32.totalorder %v2193, %v2242
        %vm2305 = vcmp.eq.s32.totalorder %v2194, %v2241
        %vm2306 = vcmp.eq.s32.totalorder %v2194, %v2242
        %vm2307 = vcmp.eq.s32.totalorder %v2195, %v2241
        %vm2308 = vcmp.eq.s32.totalorder %v2195, %v2242
        %vm2309 = vcmp.eq.s32.totalorder %v2196, %v2241
        %vm2310 = vcmp.eq.s32.totalorder %v2196, %v2242
        %vm2311 = vcmp.eq.s32.totalorder %v2197, %v2241
        %vm2312 = vcmp.eq.s32.totalorder %v2197, %v2242
        %vm2313 = vcmp.eq.s32.totalorder %v2198, %v2241
        %vm2314 = vcmp.eq.s32.totalorder %v2198, %v2242
        %vm2315 = vcmp.eq.s32.totalorder %v2199, %v2241
        %vm2316 = vcmp.eq.s32.totalorder %v2199, %v2242
        %vm2317 = vcmp.eq.s32.totalorder %v2200, %v2241
        %vm2318 = vcmp.eq.s32.totalorder %v2200, %v2242
        %vm2319 = vcmp.eq.s32.totalorder %v2201, %v2241
        %vm2320 = vcmp.eq.s32.totalorder %v2201, %v2242
        %vm2321 = vcmp.eq.s32.totalorder %v2202, %v2241
        %vm2322 = vcmp.eq.s32.totalorder %v2202, %v2242
        %vm2323 = vcmp.eq.s32.totalorder %v2203, %v2241
        %vm2324 = vcmp.eq.s32.totalorder %v2203, %v2242
        %vm2325 = vcmp.eq.s32.totalorder %v2204, %v2241
        %vm2326 = vcmp.eq.s32.totalorder %v2204, %v2242
        %vm2327 = vcmp.eq.s32.totalorder %v2205, %v2241
        %vm2328 = vcmp.eq.s32.totalorder %v2205, %v2242
        %vm2329 = vcmp.eq.s32.totalorder %v2206, %v2241
        %vm2330 = vcmp.eq.s32.totalorder %v2206, %v2242
        %vm2331 = vcmp.eq.s32.totalorder %v2207, %v2241
        %vm2332 = vcmp.eq.s32.totalorder %v2207, %v2242
        %vm2333 = vcmp.eq.s32.totalorder %v2208, %v2241
        %vm2334 = vcmp.eq.s32.totalorder %v2208, %v2242
        %vm2335 = vcmp.eq.s32.totalorder %v2209, %v2241
        %vm2336 = vcmp.eq.s32.totalorder %v2209, %v2242
        %vm2337 = vcmp.eq.s32.totalorder %v2210, %v2241
        %vm2338 = vcmp.eq.s32.totalorder %v2210, %v2242
        %vm2339 = vcmp.eq.s32.totalorder %v2211, %v2241
        %vm2340 = vcmp.eq.s32.totalorder %v2211, %v2242
        %vm2341 = vcmp.eq.s32.totalorder %v2212, %v2241
        %vm2342 = vcmp.eq.s32.totalorder %v2212, %v2242
        %vm2343 = vcmp.eq.s32.totalorder %v2213, %v2241
        %vm2344 = vcmp.eq.s32.totalorder %v2213, %v2242
        %vm2345 = vcmp.eq.s32.totalorder %v2214, %v2241
        %vm2346 = vcmp.eq.s32.totalorder %v2214, %v2242
        %vm2347 = vcmp.eq.s32.totalorder %v2215, %v2241
        %vm2348 = vcmp.eq.s32.totalorder %v2215, %v2242
        %vm2349 = vcmp.eq.s32.totalorder %v2216, %v2241
        %vm2350 = vcmp.eq.s32.totalorder %v2216, %v2242
        %vm2351 = vcmp.eq.s32.totalorder %v2217, %v2241
        %vm2352 = vcmp.eq.s32.totalorder %v2217, %v2242
        %vm2353 = vcmp.eq.s32.totalorder %v2218, %v2241
        %vm2354 = vcmp.eq.s32.totalorder %v2218, %v2242
        %vm2355 = vcmp.eq.s32.totalorder %v2219, %v2241
        %vm2356 = vcmp.eq.s32.totalorder %v2219, %v2242
        %vm2357 = vcmp.eq.s32.totalorder %v2220, %v2241
        %vm2358 = vcmp.eq.s32.totalorder %v2220, %v2242
        %vm2359 = vcmp.eq.s32.totalorder %v2221, %v2241
        %vm2360 = vcmp.eq.s32.totalorder %v2221, %v2242
        %vm2361 = vcmp.eq.s32.totalorder %v2222, %v2241
        %vm2362 = vcmp.eq.s32.totalorder %v2222, %v2242
        %vm2363 = vcmp.eq.s32.totalorder %v2223, %v2241
        %vm2364 = vcmp.eq.s32.totalorder %v2223, %v2242
        %vm2365 = vcmp.eq.s32.totalorder %v2224, %v2241
        %vm2366 = vcmp.eq.s32.totalorder %v2224, %v2242
        %vm2367 = vcmp.eq.s32.totalorder %v2225, %v2241
        %vm2368 = vcmp.eq.s32.totalorder %v2225, %v2242
        %vm2369 = vcmp.eq.s32.totalorder %v2226, %v2241
        %vm2370 = vcmp.eq.s32.totalorder %v2226, %v2242
        %vm2371 = vcmp.eq.s32.totalorder %v2227, %v2241
        %vm2372 = vcmp.eq.s32.totalorder %v2227, %v2242
        %vm2373 = vcmp.eq.s32.totalorder %v2228, %v2241
        %vm2374 = vcmp.eq.s32.totalorder %v2228, %v2242
        %vm2375 = vcmp.eq.s32.totalorder %v2229, %v2241
        %vm2376 = vcmp.eq.s32.totalorder %v2229, %v2242
        %vm2377 = vcmp.eq.s32.totalorder %v2230, %v2241
        %vm2378 = vcmp.eq.s32.totalorder %v2230, %v2242
        %vm2379 = vcmp.eq.s32.totalorder %v2231, %v2241
        %vm2380 = vcmp.eq.s32.totalorder %v2231, %v2242
        %vm2381 = vcmp.eq.s32.totalorder %v2232, %v2241
        %vm2382 = vcmp.eq.s32.totalorder %v2232, %v2242
        %vm2383 = vcmp.eq.s32.totalorder %v2233, %v2241
        %vm2384 = vcmp.eq.s32.totalorder %v2233, %v2242
        %vm2385 = vcmp.eq.s32.totalorder %v2234, %v2241
        %vm2386 = vcmp.eq.s32.totalorder %v2234, %v2242
        %vm2387 = vcmp.eq.s32.totalorder %v2235, %v2241
        %vm2388 = vcmp.eq.s32.totalorder %v2235, %v2242
        %vm2389 = vcmp.eq.s32.totalorder %v2236, %v2241
        %vm2390 = vcmp.eq.s32.totalorder %v2236, %v2242
        %vm2391 = vcmp.eq.s32.totalorder %v2237, %v2241
        %vm2392 = vcmp.eq.s32.totalorder %v2237, %v2242
        %v2393 = vsel %vm2243, 1, 0
        %v2394 = vsel %vm2244, 1, 0
        %v2395 = vsel %vm2245, 1, 0
        %v2396 = vsel %vm2246, 1, 0
        %v2397 = vsel %vm2247, 1, 0
        %v2398 = vsel %vm2248, 1, 0
        %v2399 = vsel %vm2249, 1, 0
        %v2400 = vsel %vm2250, 1, 0
        %v2401 = vsel %vm2251, 1, 0
        %v2402 = vsel %vm2252, 1, 0
        %v2403 = vsel %vm2253, 1, 0
        %v2404 = vsel %vm2254, 1, 0
        %v2405 = vsel %vm2255, 1, 0
        %v2406 = vsel %vm2256, 1, 0
        %v2407 = vsel %vm2257, 1, 0
        %v2408 = vsel %vm2258, 1, 0
        %v2409 = vsel %vm2259, 1, 0
        %v2410 = vsel %vm2260, 1, 0
        %v2411 = vsel %vm2261, 1, 0
        %v2412 = vsel %vm2262, 1, 0
        %v2413 = vsel %vm2263, 1, 0
        %v2414 = vsel %vm2264, 1, 0
        %v2415 = vsel %vm2265, 1, 0
        %v2416 = vsel %vm2266, 1, 0
        %v2417 = vsel %vm2267, 1, 0
        %v2418 = vsel %vm2268, 1, 0
        %v2419 = vsel %vm2269, 1, 0
        %v2420 = vsel %vm2270, 1, 0
        %v2421 = vsel %vm2271, 1, 0
        %v2422 = vsel %vm2272, 1, 0
        %v2423 = vsel %vm2273, 1, 0
        %v2424 = vsel %vm2274, 1, 0
        %v2425 = vsel %vm2275, 1, 0
        %v2426 = vsel %vm2276, 1, 0
        %v2427 = vsel %vm2277, 1, 0
        %v2428 = vsel %vm2278, 1, 0
        %v2429 = vsel %vm2279, 1, 0
        %v2430 = vsel %vm2280, 1, 0
        %v2431 = vsel %vm2281, 1, 0
        %v2432 = vsel %vm2282, 1, 0
        %v2433 = vsel %vm2283, 1, 0
        %v2434 = vsel %vm2284, 1, 0
        %v2435 = vsel %vm2285, 1, 0
        %v2436 = vsel %vm2286, 1, 0
        %v2437 = vsel %vm2287, 1, 0
        %v2438 = vsel %vm2288, 1, 0
        %v2439 = vsel %vm2289, 1, 0
        %v2440 = vsel %vm2290, 1, 0
        %v2441 = vsel %vm2291, 1, 0
        %v2442 = vsel %vm2292, 1, 0
        %v2443 = vsel %vm2293, 1, 0
        %v2444 = vsel %vm2294, 1, 0
        %v2445 = vsel %vm2295, 1, 0
        %v2446 = vsel %vm2296, 1, 0
        %v2447 = vsel %vm2297, 1, 0
        %v2448 = vsel %vm2298, 1, 0
        %v2449 = vsel %vm2299, 1, 0
        %v2450 = vsel %vm2300, 1, 0
        %v2451 = vsel %vm2301, 1, 0
        %v2452 = vsel %vm2302, 1, 0
        %v2453 = vsel %vm2303, 1, 0
        %v2454 = vsel %vm2304, 1, 0
        %v2455 = vsel %vm2305, 1, 0
        %v2456 = vsel %vm2306, 1, 0
        %v2457 = vsel %vm2307, 1, 0
        %v2458 = vsel %vm2308, 1, 0
        %v2459 = vsel %vm2309, 1, 0
        %v2460 = vsel %vm2310, 1, 0
        %v2461 = vsel %vm2311, 1, 0
        %v2462 = vsel %vm2312, 1, 0
        %v2463 = vsel %vm2313, 1, 0
        %v2464 = vsel %vm2314, 1, 0
        %v2465 = vsel %vm2315, 1, 0
        %v2466 = vsel %vm2316, 1, 0
        %v2467 = vsel %vm2317, 1, 0
        %v2468 = vsel %vm2318, 1, 0
        %v2469 = vsel %vm2319, 1, 0
        %v2470 = vsel %vm2320, 1, 0
        %v2471 = vsel %vm2321, 1, 0
        %v2472 = vsel %vm2322, 1, 0
        %v2473 = vsel %vm2323, 1, 0
        %v2474 = vsel %vm2324, 1, 0
        %v2475 = vsel %vm2325, 1, 0
        %v2476 = vsel %vm2326, 1, 0
        %v2477 = vsel %vm2327, 1, 0
        %v2478 = vsel %vm2328, 1, 0
        %v2479 = vsel %vm2329, 1, 0
        %v2480 = vsel %vm2330, 1, 0
        %v2481 = vsel %vm2331, 1, 0
        %v2482 = vsel %vm2332, 1, 0
        %v2483 = vsel %vm2333, 1, 0
        %v2484 = vsel %vm2334, 1, 0
        %v2485 = vsel %vm2335, 1, 0
        %v2486 = vsel %vm2336, 1, 0
        %v2487 = vsel %vm2337, 1, 0
        %v2488 = vsel %vm2338, 1, 0
        %v2489 = vsel %vm2339, 1, 0
        %v2490 = vsel %vm2340, 1, 0
        %v2491 = vsel %vm2341, 1, 0
        %v2492 = vsel %vm2342, 1, 0
        %v2493 = vsel %vm2343, 1, 0
        %v2494 = vsel %vm2344, 1, 0
        %v2495 = vsel %vm2345, 1, 0
        %v2496 = vsel %vm2346, 1, 0
        %v2497 = vsel %vm2347, 1, 0
        %v2498 = vsel %vm2348, 1, 0
        %v2499 = vsel %vm2349, 1, 0
        %v2500 = vsel %vm2350, 1, 0
        %v2501 = vsel %vm2351, 1, 0
        %v2502 = vsel %vm2352, 1, 0
        %v2503 = vsel %vm2353, 1, 0
        %v2504 = vsel %vm2354, 1, 0
        %v2505 = vsel %vm2355, 1, 0
        %v2506 = vsel %vm2356, 1, 0
        %v2507 = vsel %vm2357, 1, 0
        %v2508 = vsel %vm2358, 1, 0
        %v2509 = vsel %vm2359, 1, 0
        %v2510 = vsel %vm2360, 1, 0
        %v2511 = vsel %vm2361, 1, 0
        %v2512 = vsel %vm2362, 1, 0
        %v2513 = vsel %vm2363, 1, 0
        %v2514 = vsel %vm2364, 1, 0
        %v2515 = vsel %vm2365, 1, 0
        %v2516 = vsel %vm2366, 1, 0
        %v2517 = vsel %vm2367, 1, 0
        %v2518 = vsel %vm2368, 1, 0
        %v2519 = vsel %vm2369, 1, 0
        %v2520 = vsel %vm2370, 1, 0
        %v2521 = vsel %vm2371, 1, 0
        %v2522 = vsel %vm2372, 1, 0
        %v2523 = vsel %vm2373, 1, 0
        %v2524 = vsel %vm2374, 1, 0
        %v2525 = vsel %vm2375, 1, 0
        %v2526 = vsel %vm2376, 1, 0
        %v2527 = vsel %vm2377, 1, 0
        %v2528 = vsel %vm2378, 1, 0
        %v2529 = vsel %vm2379, 1, 0
        %v2530 = vsel %vm2380, 1, 0
        %v2531 = vsel %vm2381, 1, 0
        %v2532 = vsel %vm2382, 1, 0
        %v2533 = vsel %vm2383, 1, 0
        %v2534 = vsel %vm2384, 1, 0
        %v2535 = vsel %vm2385, 1, 0
        %v2536 = vsel %vm2386, 1, 0
        %v2537 = vsel %vm2387, 1, 0
        %v2538 = vsel %vm2388, 1, 0
        %v2539 = vsel %vm2389, 1, 0
        %v2540 = vsel %vm2390, 1, 0
        %v2541 = vsel %vm2391, 1, 0
        %v2542 = vsel %vm2392, 1, 0
        %v2543 = vcvt.s32.f32 %v2393
        %v2544 = vcvt.s32.f32 %v2394
        %v2545 = vcvt.s32.f32 %v2395
        %v2546 = vcvt.s32.f32 %v2396
        %v2547 = vcvt.s32.f32 %v2397
        %v2548 = vcvt.s32.f32 %v2398
        %v2549 = vcvt.s32.f32 %v2399
        %v2550 = vcvt.s32.f32 %v2400
        %v2551 = vcvt.s32.f32 %v2401
        %v2552 = vcvt.s32.f32 %v2402
        %v2553 = vcvt.s32.f32 %v2403
        %v2554 = vcvt.s32.f32 %v2404
        %v2555 = vcvt.s32.f32 %v2405
        %v2556 = vcvt.s32.f32 %v2406
        %v2557 = vcvt.s32.f32 %v2407
        %v2558 = vcvt.s32.f32 %v2408
        %v2559 = vcvt.s32.f32 %v2409
        %v2560 = vcvt.s32.f32 %v2410
        %v2561 = vcvt.s32.f32 %v2411
        %v2562 = vcvt.s32.f32 %v2412
        %v2563 = vcvt.s32.f32 %v2413
        %v2564 = vcvt.s32.f32 %v2414
        %v2565 = vcvt.s32.f32 %v2415
        %v2566 = vcvt.s32.f32 %v2416
        %v2567 = vcvt.s32.f32 %v2417
        %v2568 = vcvt.s32.f32 %v2418
        %v2569 = vcvt.s32.f32 %v2419
        %v2570 = vcvt.s32.f32 %v2420
        %v2571 = vcvt.s32.f32 %v2421
        %v2572 = vcvt.s32.f32 %v2422
        %v2573 = vcvt.s32.f32 %v2423
        %v2574 = vcvt.s32.f32 %v2424
        %v2575 = vcvt.s32.f32 %v2425
        %v2576 = vcvt.s32.f32 %v2426
        %v2577 = vcvt.s32.f32 %v2427
        %v2578 = vcvt.s32.f32 %v2428
        %v2579 = vcvt.s32.f32 %v2429
        %v2580 = vcvt.s32.f32 %v2430
        %v2581 = vcvt.s32.f32 %v2431
        %v2582 = vcvt.s32.f32 %v2432
        %v2583 = vcvt.s32.f32 %v2433
        %v2584 = vcvt.s32.f32 %v2434
        %v2585 = vcvt.s32.f32 %v2435
        %v2586 = vcvt.s32.f32 %v2436
        %v2587 = vcvt.s32.f32 %v2437
        %v2588 = vcvt.s32.f32 %v2438
        %v2589 = vcvt.s32.f32 %v2439
        %v2590 = vcvt.s32.f32 %v2440
        %v2591 = vcvt.s32.f32 %v2441
        %v2592 = vcvt.s32.f32 %v2442
        %v2593 = vcvt.s32.f32 %v2443
        %v2594 = vcvt.s32.f32 %v2444
        %v2595 = vcvt.s32.f32 %v2445
        %v2596 = vcvt.s32.f32 %v2446
        %v2597 = vcvt.s32.f32 %v2447
        %v2598 = vcvt.s32.f32 %v2448
        %v2599 = vcvt.s32.f32 %v2449
        %v2600 = vcvt.s32.f32 %v2450
        %v2601 = vcvt.s32.f32 %v2451
        %v2602 = vcvt.s32.f32 %v2452
        %v2603 = vcvt.s32.f32 %v2453
        %v2604 = vcvt.s32.f32 %v2454
        %v2605 = vcvt.s32.f32 %v2455
        %v2606 = vcvt.s32.f32 %v2456
        %v2607 = vcvt.s32.f32 %v2457
        %v2608 = vcvt.s32.f32 %v2458
        %v2609 = vcvt.s32.f32 %v2459
        %v2610 = vcvt.s32.f32 %v2460
        %v2611 = vcvt.s32.f32 %v2461
        %v2612 = vcvt.s32.f32 %v2462
        %v2613 = vcvt.s32.f32 %v2463
        %v2614 = vcvt.s32.f32 %v2464
        %v2615 = vcvt.s32.f32 %v2465
        %v2616 = vcvt.s32.f32 %v2466
        %v2617 = vcvt.s32.f32 %v2467
        %v2618 = vcvt.s32.f32 %v2468
        %v2619 = vcvt.s32.f32 %v2469
        %v2620 = vcvt.s32.f32 %v2470
        %v2621 = vcvt.s32.f32 %v2471
        %v2622 = vcvt.s32.f32 %v2472
        %v2623 = vcvt.s32.f32 %v2473
        %v2624 = vcvt.s32.f32 %v2474
        %v2625 = vcvt.s32.f32 %v2475
        %v2626 = vcvt.s32.f32 %v2476
        %v2627 = vcvt.s32.f32 %v2477
        %v2628 = vcvt.s32.f32 %v2478
        %v2629 = vcvt.s32.f32 %v2479
        %v2630 = vcvt.s32.f32 %v2480
        %v2631 = vcvt.s32.f32 %v2481
        %v2632 = vcvt.s32.f32 %v2482
        %v2633 = vcvt.s32.f32 %v2483
        %v2634 = vcvt.s32.f32 %v2484
        %v2635 = vcvt.s32.f32 %v2485
        %v2636 = vcvt.s32.f32 %v2486
        %v2637 = vcvt.s32.f32 %v2487
        %v2638 = vcvt.s32.f32 %v2488
        %v2639 = vcvt.s32.f32 %v2489
        %v2640 = vcvt.s32.f32 %v2490
        %v2641 = vcvt.s32.f32 %v2491
        %v2642 = vcvt.s32.f32 %v2492
        %v2643 = vcvt.s32.f32 %v2493
        %v2644 = vcvt.s32.f32 %v2494
        %v2645 = vcvt.s32.f32 %v2495
        %v2646 = vcvt.s32.f32 %v2496
        %v2647 = vcvt.s32.f32 %v2497
        %v2648 = vcvt.s32.f32 %v2498
        %v2649 = vcvt.s32.f32 %v2499
        %v2650 = vcvt.s32.f32 %v2500
        %v2651 = vcvt.s32.f32 %v2501
        %v2652 = vcvt.s32.f32 %v2502
        %v2653 = vcvt.s32.f32 %v2503
        %v2654 = vcvt.s32.f32 %v2504
        %v2655 = vcvt.s32.f32 %v2505
        %v2656 = vcvt.s32.f32 %v2506
        %v2657 = vcvt.s32.f32 %v2507
        %v2658 = vcvt.s32.f32 %v2508
        %v2659 = vcvt.s32.f32 %v2509
        %v2660 = vcvt.s32.f32 %v2510
        %v2661 = vcvt.s32.f32 %v2511
        %v2662 = vcvt.s32.f32 %v2512
        %v2663 = vcvt.s32.f32 %v2513
        %v2664 = vcvt.s32.f32 %v2514
        %v2665 = vcvt.s32.f32 %v2515
        %v2666 = vcvt.s32.f32 %v2516
        %v2667 = vcvt.s32.f32 %v2517
        %v2668 = vcvt.s32.f32 %v2518
        %v2669 = vcvt.s32.f32 %v2519
        %v2670 = vcvt.s32.f32 %v2520
        %v2671 = vcvt.s32.f32 %v2521
        %v2672 = vcvt.s32.f32 %v2522
        %v2673 = vcvt.s32.f32 %v2523
        %v2674 = vcvt.s32.f32 %v2524
        %v2675 = vcvt.s32.f32 %v2525
        %v2676 = vcvt.s32.f32 %v2526
        %v2677 = vcvt.s32.f32 %v2527
        %v2678 = vcvt.s32.f32 %v2528
        %v2679 = vcvt.s32.f32 %v2529
        %v2680 = vcvt.s32.f32 %v2530
        %v2681 = vcvt.s32.f32 %v2531
        %v2682 = vcvt.s32.f32 %v2532
        %v2683 = vcvt.s32.f32 %v2533
        %v2684 = vcvt.s32.f32 %v2534
        %v2685 = vcvt.s32.f32 %v2535
        %v2686 = vcvt.s32.f32 %v2536
        %v2687 = vcvt.s32.f32 %v2537
        %v2688 = vcvt.s32.f32 %v2538
        %v2689 = vcvt.s32.f32 %v2539
        %v2690 = vcvt.s32.f32 %v2540
        %v2691 = vcvt.s32.f32 %v2541
        %v2692 = vcvt.s32.f32 %v2542
        %v2693 = vld [vmem:[%s35] sm:$0xff]
        %2695 = vset.pattern.permute.xlu0 0
        %2696 = vperm.xlu0 %2695, %v2693
        %v2697 = vpop.permute.xlu0 %2696
        %v2700 = vsel %vm1409, %v2159, 0
        %2702 = vmatprep.subr.mxu0 %v2544
        %2703 = vmatpush1.msra.mxu0 %v2543
        %2704 = vmatprep.subr.mxu0 %v2546
        %2705 = vmatpush1.msra.mxu0 %v2545
        %2706 = vmatprep.subr.mxu0 %v2548
        %2707 = vmatpush1.msra.mxu0 %v2547
        %2708 = vmatprep.subr.mxu0 %v2550
        %2709 = vmatpush1.msra.mxu0 %v2549
        %2710 = vmatprep.subr.mxu0 %v2552
        %2711 = vmatpush1.msra.mxu0 %v2551
        %2712 = vmatprep.subr.mxu0 %v2554
        %2713 = vmatpush1.msra.mxu0 %v2553
        %2714 = vmatprep.subr.mxu0 %v2556
        %2715 = vmatpush1.msra.mxu0 %v2555
        %2716 = vmatprep.subr.mxu0 %v2558
        %2717 = vmatpush1.msra.mxu0 %v2557
        %2718 = vmatprep.subr.mxu0 %v2560
        %2719 = vmatpush1.msra.mxu0 %v2559
        %2720 = vmatprep.subr.mxu0 %v2562
        %2721 = vmatpush1.msra.mxu0 %v2561
        %2722 = vmatprep.subr.mxu0 %v2564
        %2723 = vmatpush1.msra.mxu0 %v2563
        %2724 = vmatprep.subr.mxu0 %v2566
        %2725 = vmatpush1.msra.mxu0 %v2565
        %2726 = vmatprep.subr.mxu0 %v2568
        %2727 = vmatpush1.msra.mxu0 %v2567
        %2728 = vmatprep.subr.mxu0 %v2570
        %2729 = vmatpush1.msra.mxu0 %v2569
        %2730 = vmatprep.subr.mxu0 %v2572
        %2731 = vmatpush1.msra.mxu0 %v2571
        %2732 = vmatprep.subr.mxu0 %v2574
        %2733 = vmatpush1.msra.mxu0 %v2573
        %2734 = vmatprep.subr.mxu0 %v2576
        %2735 = vmatpush1.msra.mxu0 %v2575
        %2736 = vmatprep.subr.mxu0 %v2578
        %2737 = vmatpush1.msra.mxu0 %v2577
        %2738 = vmatprep.subr.mxu0 %v2580
        %2739 = vmatpush1.msra.mxu0 %v2579
        %2740 = vmatprep.subr.mxu0 %v2582
        %2741 = vmatpush1.msra.mxu0 %v2581
        %2742 = vmatprep.subr.mxu0 %v2584
        %2743 = vmatpush1.msra.mxu0 %v2583
        %2744 = vmatprep.subr.mxu0 %v2586
        %2745 = vmatpush1.msra.mxu0 %v2585
        %2746 = vmatprep.subr.mxu0 %v2588
        %2747 = vmatpush1.msra.mxu0 %v2587
        %2748 = vmatprep.subr.mxu0 %v2590
        %2749 = vmatpush1.msra.mxu0 %v2589
        %2750 = vmatprep.subr.mxu0 %v2592
        %2751 = vmatpush1.msra.mxu0 %v2591
        %2752 = vmatprep.subr.mxu0 %v2594
        %2753 = vmatpush1.msra.mxu0 %v2593
        %2754 = vmatprep.subr.mxu0 %v2596
        %2755 = vmatpush1.msra.mxu0 %v2595
        %2756 = vmatprep.subr.mxu0 %v2598
        %2757 = vmatpush1.msra.mxu0 %v2597
        %2758 = vmatprep.subr.mxu0 %v2600
        %2759 = vmatpush1.msra.mxu0 %v2599
        %2760 = vmatprep.subr.mxu0 %v2602
        %2761 = vmatpush1.msra.mxu0 %v2601
        %2762 = vmatprep.subr.mxu0 %v2604
        %2763 = vmatpush1.msra.mxu0 %v2603
        %2764 = vmatprep.subr.mxu0 %v2606
        %2765 = vmatpush1.msra.mxu0 %v2605
        %2766 = vmatprep.mubr.f32.mxu0 %v2019
        %2767 = vmatmul.mubr.f32.gmra.mrb[0].mxu0 %v2017
        %v2768 = vpop.f32.mrb[0].mxu0
        %v2769 = vadd.f32 %v2697, %v2768
        %v2770 = vpop.f32.mrb[0].mxu0
        %v2771 = vadd.f32 %v2697, %v2770
        %2772 = vdwg.mxu0
        %2773 = vmatprep.subr.mxu0 %v2608
        %2774 = vmatpush1.msra.mxu0 %v2607
        %2775 = vmatprep.subr.mxu0 %v2610
        %2776 = vmatpush1.msra.mxu0 %v2609
        %2777 = vmatprep.subr.mxu0 %v2612
        %2778 = vmatpush1.msra.mxu0 %v2611
        %2779 = vmatprep.subr.mxu0 %v2614
        %2780 = vmatpush1.msra.mxu0 %v2613
        %2781 = vmatprep.subr.mxu0 %v2616
        %2782 = vmatpush1.msra.mxu0 %v2615
        %2783 = vmatprep.subr.mxu0 %v2618
        %2784 = vmatpush1.msra.mxu0 %v2617
        %2785 = vmatprep.subr.mxu0 %v2620
        %2786 = vmatpush1.msra.mxu0 %v2619
        %2787 = vmatprep.subr.mxu0 %v2622
        %2788 = vmatpush1.msra.mxu0 %v2621
        %2789 = vmatprep.subr.mxu0 %v2624
        %2790 = vmatpush1.msra.mxu0 %v2623
        %2791 = vmatprep.subr.mxu0 %v2626
        %2792 = vmatpush1.msra.mxu0 %v2625
        %2793 = vmatprep.subr.mxu0 %v2628
        %2794 = vmatpush1.msra.mxu0 %v2627
        %2795 = vmatprep.subr.mxu0 %v2630
        %2796 = vmatpush1.msra.mxu0 %v2629
        %2797 = vmatprep.subr.mxu0 %v2632
        %2798 = vmatpush1.msra.mxu0 %v2631
        %2799 = vmatprep.subr.mxu0 %v2634
        %2800 = vmatpush1.msra.mxu0 %v2633
        %2801 = vmatprep.subr.mxu0 %v2636
        %2802 = vmatpush1.msra.mxu0 %v2635
        %2803 = vmatprep.subr.mxu0 %v2638
        %2804 = vmatpush1.msra.mxu0 %v2637
        %2805 = vmatprep.subr.mxu0 %v2640
        %2806 = vmatpush1.msra.mxu0 %v2639
        %2807 = vmatprep.subr.mxu0 %v2642
        %2808 = vmatpush1.msra.mxu0 %v2641
        %2809 = vmatprep.subr.mxu0 %v2644
        %2810 = vmatpush1.msra.mxu0 %v2643
        %2811 = vmatprep.subr.mxu0 %v2646
        %2812 = vmatpush1.msra.mxu0 %v2645
        %2813 = vmatprep.subr.mxu0 %v2648
        %2814 = vmatpush1.msra.mxu0 %v2647
        %2815 = vmatprep.subr.mxu0 %v2650
        %2816 = vmatpush1.msra.mxu0 %v2649
        %2817 = vmatprep.subr.mxu0 %v2652
        %2818 = vmatpush1.msra.mxu0 %v2651
        %2819 = vmatprep.subr.mxu0 %v2654
        %2820 = vmatpush1.msra.mxu0 %v2653
        %2821 = vmatprep.subr.mxu0 %v2656
        %2822 = vmatpush1.msra.mxu0 %v2655
        %2823 = vmatprep.subr.mxu0 %v2658
        %2824 = vmatpush1.msra.mxu0 %v2657
        %2825 = vmatprep.subr.mxu0 %v2660
        %2826 = vmatpush1.msra.mxu0 %v2659
        %2827 = vmatprep.subr.mxu0 %v2662
        %2828 = vmatpush1.msra.mxu0 %v2661
        %2829 = vmatprep.subr.mxu0 %v2664
        %2830 = vmatpush1.msra.mxu0 %v2663
        %2831 = vmatprep.subr.mxu0 %v2666
        %2832 = vmatpush1.msra.mxu0 %v2665
        %2833 = vmatprep.subr.mxu0 %v2668
        %2834 = vmatpush1.msra.mxu0 %v2667
        %2835 = vmatprep.subr.mxu0 %v2670
        %2836 = vmatpush1.msra.mxu0 %v2669
        %2837 = vmatprep.mubr.f32.mxu0 %v2090
        %2838 = vmatmul.mubr.f32.gmra.mrb[0].mxu0 %v2088
        %v2839 = vpop.f32.mrb[0].mxu0
        %v2840 = vadd.f32 %v2769, %v2839
        %v2841 = vpop.f32.mrb[0].mxu0
        %v2842 = vadd.f32 %v2771, %v2841
        %2843 = vdwg.mxu0
        %2844 = vmatprep.subr.mxu0 %v2672
        %2845 = vmatpush1.msra.mxu0 %v2671
        %2846 = vmatprep.subr.mxu0 %v2674
        %2847 = vmatpush1.msra.mxu0 %v2673
        %2848 = vmatprep.subr.mxu0 %v2676
        %2849 = vmatpush1.msra.mxu0 %v2675
        %2850 = vmatprep.subr.mxu0 %v2678
        %2851 = vmatpush1.msra.mxu0 %v2677
        %2852 = vmatprep.subr.mxu0 %v2680
        %2853 = vmatpush1.msra.mxu0 %v2679
        %2854 = vmatprep.subr.mxu0 %v2682
        %2855 = vmatpush1.msra.mxu0 %v2681
        %2856 = vmatprep.subr.mxu0 %v2684
        %2857 = vmatpush1.msra.mxu0 %v2683
        %2858 = vmatprep.subr.mxu0 %v2686
        %2859 = vmatpush1.msra.mxu0 %v2685
        %2860 = vmatprep.subr.mxu0 %v2688
        %2861 = vmatpush1.msra.mxu0 %v2687
        %2862 = vmatprep.subr.mxu0 %v2690
        %2863 = vmatpush1.msra.mxu0 %v2689
        %2864 = vmatprep.subr.mxu0 %v2692
        %2865 = vmatpush1.msra.mxu0 %v2691
        %2866 = vmatprep.subr.mxu0 0.0
        %2867 = vmatpush1.msra.mxu0 0.0
        %2868 = vmatprep.subr.mxu0 0.0
        %2869 = vmatpush1.msra.mxu0 0.0
        %2870 = vmatprep.subr.mxu0 0.0
        %2871 = vmatpush1.msra.mxu0 0.0
        %2872 = vmatprep.subr.mxu0 0.0
        %2873 = vmatpush1.msra.mxu0 0.0
        %2874 = vmatprep.subr.mxu0 0.0
        %2875 = vmatpush1.msra.mxu0 0.0
        %2876 = vmatprep.subr.mxu0 0.0
        %2877 = vmatpush1.msra.mxu0 0.0
        %2878 = vmatprep.subr.mxu0 0.0
        %2879 = vmatpush1.msra.mxu0 0.0
        %2880 = vmatprep.subr.mxu0 0.0
        %2881 = vmatpush1.msra.mxu0 0.0
        %2882 = vmatprep.subr.mxu0 0.0
        %2883 = vmatpush1.msra.mxu0 0.0
        %2884 = vmatprep.subr.mxu0 0.0
        %2885 = vmatpush1.msra.mxu0 0.0
        %2886 = vmatprep.subr.mxu0 0.0
        %2887 = vmatpush1.msra.mxu0 0.0
        %2888 = vmatprep.subr.mxu0 0.0
        %2889 = vmatpush1.msra.mxu0 0.0
        %2890 = vmatprep.subr.mxu0 0.0
        %2891 = vmatpush1.msra.mxu0 0.0
        %2892 = vmatprep.subr.mxu0 0.0
        %2893 = vmatpush1.msra.mxu0 0.0
        %2894 = vmatprep.subr.mxu0 0.0
        %2895 = vmatpush1.msra.mxu0 0.0
        %2896 = vmatprep.subr.mxu0 0.0
        %2897 = vmatpush1.msra.mxu0 0.0
        %2898 = vmatprep.subr.mxu0 0.0
        %2899 = vmatpush1.msra.mxu0 0.0
        %2900 = vmatprep.subr.mxu0 0.0
        %2901 = vmatpush1.msra.mxu0 0.0
        %2902 = vmatprep.subr.mxu0 0.0
        %2903 = vmatpush1.msra.mxu0 0.0
        %2904 = vmatprep.subr.mxu0 0.0
        %2905 = vmatpush1.msra.mxu0 0.0
        %2906 = vmatprep.subr.mxu0 0.0
        %2907 = vmatpush1.msra.mxu0 0.0
        %2908 = vmatprep.mubr.f32.mxu0 0.0
        %2909 = vmatmul.mubr.f32.gmra.mrb[0].mxu0 %v2700
        %v2910 = vpop.f32.mrb[0].mxu0
        %v2911 = vadd.f32 %v2840, %v2910
        %v2912 = vpop.f32.mrb[0].mxu0
        %v2913 = vadd.f32 %v2842, %v2912
        %2914 = vdwg.mxu0
        %2915 = vst.msk [vmem:[#allocation2] sm:$0xff] %vm1074, 0.0
        %vm2916 = vcmask 605768
        %2917 = vst.msk [vmem:[#allocation2 + $0x8] sm:$0xff] %vm2916, 0.0
        %2920 = vrot.lane.b32.xlu0 %v2911, 1
        %v2921 = vpop.permute.xlu0 %2920
        %2922 = vrot.lane.b32.xlu0 %v2913, 1
        %v2923 = vpop.permute.xlu0 %2922
        %v2924 = vsel %vm1074, %v2921, %v2923
        %2927 = vst.msk [vmem:[#allocation2] sm:$0xff] %vm1393, %v2921
        %vm2928 = vcmask 596992
        %2929 = vst.msk [vmem:[#allocation2 + $0x8] sm:$0xff] %vm2928, %v2924
        %v2930 = vld [vmem:[#allocation2] sm:$0xff]
        %v2931 = vld [vmem:[#allocation2 + $0x8] sm:$0xff]
        %2932 = vst [vmem:[#allocation3] sm:$0xff] %v2930
        %vm2933 = vcmask 588800
        %2934 = vst.msk [vmem:[#allocation3 + $0x8] sm:$0xff] %vm2933, %v2931
        %v2935 = vld [vmem:[#allocation2] sm:$0xff]
        %v2936 = vld [vmem:[#allocation2 + $0x8] sm:$0xff]
        %2939 = vrot.lane.b32.xlu0 %v2935, 127
        %v2940 = vpop.permute.xlu0 %2939
        %2941 = vrot.lane.b32.xlu0 %v2936, 127
        %v2942 = vpop.permute.xlu0 %2941
        %v2943 = vsel %vm1098, %v2940, %v2942
        %2946 = vst [vmem:[#allocation3 + $0x28] sm:$0xff] %v2943
        %2947 = vst.msk [vmem:[#allocation3 + $0x30] sm:$0xff] %vm2933, %v2942
        %v2948 = vld [vmem:[#allocation2] sm:$0xff]
        %v2949 = vld [vmem:[#allocation2 + $0x8] sm:$0xff]
        %2952 = vrot.lane.b32.xlu0 %v2948, 126
        %v2953 = vpop.permute.xlu0 %2952
        %2954 = vrot.lane.b32.xlu0 %v2949, 126
        %v2955 = vpop.permute.xlu0 %2954
        %v2956 = vsel %vm1111, %v2953, %v2955
        %2959 = vst [vmem:[#allocation3 + $0x50] sm:$0xff] %v2956
        %2960 = vst.msk [vmem:[#allocation3 + $0x58] sm:$0xff] %vm2933, %v2955
        %v2961 = vld [vmem:[%s9] sm:$0xff]
        %v2962 = vld [vmem:[#allocation3] sm:$0xff]
        %v2963 = vld [vmem:[#allocation3 + $0x8] sm:$0xff]
        %v2964 = vld [vmem:[#allocation3 + $0x28] sm:$0xff]
        %v2965 = vld [vmem:[#allocation3 + $0x30] sm:$0xff]
        %v2966 = vld [vmem:[#allocation3 + $0x50] sm:$0xff]
        %v2967 = vld [vmem:[#allocation3 + $0x58] sm:$0xff]
        %v2968 = vld [vmem:[%s37] sm:$0xff]
        %2970 = vset.pattern.permute.xlu0 0
        %2971 = vperm.xlu0 %2970, %v2968
        %v2972 = vpop.permute.xlu0 %2971
        %v2975 = vsel %vm1501, %v2961, 0
        %2977 = vmatprep.subr.mxu0 %v2963
        %2978 = vmatpush1.msra.mxu0 %v2962
        %2979 = vmatprep.subr.mxu0 %v2965
        %2980 = vmatpush1.msra.mxu0 %v2964
        %2981 = vmatprep.subr.mxu0 %v2967
        %2982 = vmatpush1.msra.mxu0 %v2966
        %2983 = vmatprep.subr.mxu0 0.0
        %2984 = vmatpush1.msra.mxu0 0.0
        %2985 = vmatprep.subr.mxu0 0.0
        %2986 = vmatpush1.msra.mxu0 0.0
        %2987 = vmatprep.subr.mxu0 0.0
        %2988 = vmatpush1.msra.mxu0 0.0
        %2989 = vmatprep.subr.mxu0 0.0
        %2990 = vmatpush1.msra.mxu0 0.0
        %2991 = vmatprep.subr.mxu0 0.0
        %2992 = vmatpush1.msra.mxu0 0.0
        %2993 = vmatprep.subr.mxu0 0.0
        %2994 = vmatpush1.msra.mxu0 0.0
        %2995 = vmatprep.subr.mxu0 0.0
        %2996 = vmatpush1.msra.mxu0 0.0
        %2997 = vmatprep.subr.mxu0 0.0
        %2998 = vmatpush1.msra.mxu0 0.0
        %2999 = vmatprep.subr.mxu0 0.0
        %3000 = vmatpush1.msra.mxu0 0.0
        %3001 = vmatprep.subr.mxu0 0.0
        %3002 = vmatpush1.msra.mxu0 0.0
        %3003 = vmatprep.subr.mxu0 0.0
        %3004 = vmatpush1.msra.mxu0 0.0
        %3005 = vmatprep.subr.mxu0 0.0
        %3006 = vmatpush1.msra.mxu0 0.0
        %3007 = vmatprep.subr.mxu0 0.0
        %3008 = vmatpush1.msra.mxu0 0.0
        %3009 = vmatprep.subr.mxu0 0.0
        %3010 = vmatpush1.msra.mxu0 0.0
        %3011 = vmatprep.subr.mxu0 0.0
        %3012 = vmatpush1.msra.mxu0 0.0
        %3013 = vmatprep.subr.mxu0 0.0
        %3014 = vmatpush1.msra.mxu0 0.0
        %3015 = vmatprep.subr.mxu0 0.0
        %3016 = vmatpush1.msra.mxu0 0.0
        %3017 = vmatprep.subr.mxu0 0.0
        %3018 = vmatpush1.msra.mxu0 0.0
        %3019 = vmatprep.subr.mxu0 0.0
        %3020 = vmatpush1.msra.mxu0 0.0
        %3021 = vmatprep.subr.mxu0 0.0
        %3022 = vmatpush1.msra.mxu0 0.0
        %3023 = vmatprep.subr.mxu0 0.0
        %3024 = vmatpush1.msra.mxu0 0.0
        %3025 = vmatprep.subr.mxu0 0.0
        %3026 = vmatpush1.msra.mxu0 0.0
        %3027 = vmatprep.subr.mxu0 0.0
        %3028 = vmatpush1.msra.mxu0 0.0
        %3029 = vmatprep.subr.mxu0 0.0
        %3030 = vmatpush1.msra.mxu0 0.0
        %3031 = vmatprep.subr.mxu0 0.0
        %3032 = vmatpush1.msra.mxu0 0.0
        %3033 = vmatprep.subr.mxu0 0.0
        %3034 = vmatpush1.msra.mxu0 0.0
        %3035 = vmatprep.subr.mxu0 0.0
        %3036 = vmatpush1.msra.mxu0 0.0
        %3037 = vmatprep.subr.mxu0 0.0
        %3038 = vmatpush1.msra.mxu0 0.0
        %3039 = vmatprep.subr.mxu0 0.0
        %3040 = vmatpush1.msra.mxu0 0.0
        %3041 = vmatprep.mubr.f32.mxu0 0.0
        %3042 = vmatmul.mubr.f32.gmra.mrb[0].mxu0 %v2975
        %v3043 = vpop.f32.mrb[0].mxu0
        %v3044 = vadd.f32 %v2972, %v3043
        %v3045 = vpop.f32.mrb[0].mxu0
        %v3046 = vadd.f32 %v2972, %v3045
        %3047 = vdwg.mxu0
        %vm3048 = vcmp.ge.f32.partialorder %v3044, 0.0
        %vm3049 = vcmp.ge.f32.partialorder %v3046, 0.0
        %v3050 = vmul.f32 %v3044, 0.1
        %v3051 = vmul.f32 %v3046, 0.1
        %v3052 = vsel %vm3048, %v3044, %v3050
        %v3053 = vsel %vm3049, %v3046, %v3051
        %3054 = vst.msk [vmem:[#allocation2] sm:$0xff] %vm1074, 0.0
        %3055 = vst.msk [vmem:[#allocation2 + $0x8] sm:$0xff] %vm2916, 0.0
        %3058 = vrot.lane.b32.xlu0 %v3052, 1
        %v3059 = vpop.permute.xlu0 %3058
        %3060 = vrot.lane.b32.xlu0 %v3053, 1
        %v3061 = vpop.permute.xlu0 %3060
        %v3062 = vsel %vm1074, %v3059, %v3061
        %3065 = vst.msk [vmem:[#allocation2] sm:$0xff] %vm1393, %v3059
        %3066 = vst.msk [vmem:[#allocation2 + $0x8] sm:$0xff] %vm2928, %v3062
        %v3067 = vld [vmem:[#allocation2] sm:$0xff]
        %v3068 = vld [vmem:[#allocation2 + $0x8] sm:$0xff]
        %3069 = vst [vmem:[#allocation3] sm:$0xff] %v3067
        %3070 = vst.msk [vmem:[#allocation3 + $0x8] sm:$0xff] %vm2933, %v3068
        %v3071 = vld [vmem:[#allocation2] sm:$0xff]
        %v3072 = vld [vmem:[#allocation2 + $0x8] sm:$0xff]
        %3075 = vrot.lane.b32.xlu0 %v3071, 127
        %v3076 = vpop.permute.xlu0 %3075
        %3077 = vrot.lane.b32.xlu0 %v3072, 127
        %v3078 = vpop.permute.xlu0 %3077
        %v3079 = vsel %vm1098, %v3076, %v3078
        %3082 = vst [vmem:[#allocation3 + $0x28] sm:$0xff] %v3079
        %3083 = vst.msk [vmem:[#allocation3 + $0x30] sm:$0xff] %vm2933, %v3078
        %v3084 = vld [vmem:[#allocation2] sm:$0xff]
        %v3085 = vld [vmem:[#allocation2 + $0x8] sm:$0xff]
        %3088 = vrot.lane.b32.xlu0 %v3084, 126
        %v3089 = vpop.permute.xlu0 %3088
        %3090 = vrot.lane.b32.xlu0 %v3085, 126
        %v3091 = vpop.permute.xlu0 %3090
        %v3092 = vsel %vm1111, %v3089, %v3091
        %3095 = vst [vmem:[#allocation3 + $0x50] sm:$0xff] %v3092
        %3096 = vst.msk [vmem:[#allocation3 + $0x58] sm:$0xff] %vm2933, %v3091
        %v3097 = vld [vmem:[#allocation4] sm:$0xff]
        %v3098 = vld [vmem:[#allocation3] sm:$0xff]
        %v3099 = vld [vmem:[#allocation3 + $0x8] sm:$0xff]
        %v3100 = vld [vmem:[#allocation3 + $0x28] sm:$0xff]
        %v3101 = vld [vmem:[#allocation3 + $0x30] sm:$0xff]
        %v3102 = vld [vmem:[#allocation3 + $0x50] sm:$0xff]
        %v3103 = vld [vmem:[#allocation3 + $0x58] sm:$0xff]
        %v3104 = vld [vmem:[%s39] sm:$0xff]
        %3106 = vset.pattern.permute.xlu0 0
        %3107 = vperm.xlu0 %3106, %v3104
        %v3108 = vpop.permute.xlu0 %3107
        %v3111 = vsel %vm1501, %v3097, 0
        %3113 = vmatprep.subr.mxu0 %v3099
        %3114 = vmatpush1.msra.mxu0 %v3098
        %3115 = vmatprep.subr.mxu0 %v3101
        %3116 = vmatpush1.msra.mxu0 %v3100
        %3117 = vmatprep.subr.mxu0 %v3103
        %3118 = vmatpush1.msra.mxu0 %v3102
        %3119 = vmatprep.subr.mxu0 0.0
        %3120 = vmatpush1.msra.mxu0 0.0
        %3121 = vmatprep.subr.mxu0 0.0
        %3122 = vmatpush1.msra.mxu0 0.0
        %3123 = vmatprep.subr.mxu0 0.0
        %3124 = vmatpush1.msra.mxu0 0.0
        %3125 = vmatprep.subr.mxu0 0.0
        %3126 = vmatpush1.msra.mxu0 0.0
        %3127 = vmatprep.subr.mxu0 0.0
        %3128 = vmatpush1.msra.mxu0 0.0
        %3129 = vmatprep.subr.mxu0 0.0
        %3130 = vmatpush1.msra.mxu0 0.0
        %3131 = vmatprep.subr.mxu0 0.0
        %3132 = vmatpush1.msra.mxu0 0.0
        %3133 = vmatprep.subr.mxu0 0.0
        %3134 = vmatpush1.msra.mxu0 0.0
        %3135 = vmatprep.subr.mxu0 0.0
        %3136 = vmatpush1.msra.mxu0 0.0
        %3137 = vmatprep.subr.mxu0 0.0
        %3138 = vmatpush1.msra.mxu0 0.0
        %3139 = vmatprep.subr.mxu0 0.0
        %3140 = vmatpush1.msra.mxu0 0.0
        %3141 = vmatprep.subr.mxu0 0.0
        %3142 = vmatpush1.msra.mxu0 0.0
        %3143 = vmatprep.subr.mxu0 0.0
        %3144 = vmatpush1.msra.mxu0 0.0
        %3145 = vmatprep.subr.mxu0 0.0
        %3146 = vmatpush1.msra.mxu0 0.0
        %3147 = vmatprep.subr.mxu0 0.0
        %3148 = vmatpush1.msra.mxu0 0.0
        %3149 = vmatprep.subr.mxu0 0.0
        %3150 = vmatpush1.msra.mxu0 0.0
        %3151 = vmatprep.subr.mxu0 0.0
        %3152 = vmatpush1.msra.mxu0 0.0
        %3153 = vmatprep.subr.mxu0 0.0
        %3154 = vmatpush1.msra.mxu0 0.0
        %3155 = vmatprep.subr.mxu0 0.0
        %3156 = vmatpush1.msra.mxu0 0.0
        %3157 = vmatprep.subr.mxu0 0.0
        %3158 = vmatpush1.msra.mxu0 0.0
        %3159 = vmatprep.subr.mxu0 0.0
        %3160 = vmatpush1.msra.mxu0 0.0
        %3161 = vmatprep.subr.mxu0 0.0
        %3162 = vmatpush1.msra.mxu0 0.0
        %3163 = vmatprep.subr.mxu0 0.0
        %3164 = vmatpush1.msra.mxu0 0.0
        %3165 = vmatprep.subr.mxu0 0.0
        %3166 = vmatpush1.msra.mxu0 0.0
        %3167 = vmatprep.subr.mxu0 0.0
        %3168 = vmatpush1.msra.mxu0 0.0
        %3169 = vmatprep.subr.mxu0 0.0
        %3170 = vmatpush1.msra.mxu0 0.0
        %3171 = vmatprep.subr.mxu0 0.0
        %3172 = vmatpush1.msra.mxu0 0.0
        %3173 = vmatprep.subr.mxu0 0.0
        %3174 = vmatpush1.msra.mxu0 0.0
        %3175 = vmatprep.subr.mxu0 0.0
        %3176 = vmatpush1.msra.mxu0 0.0
        %3177 = vmatprep.mubr.f32.mxu0 0.0
        %3178 = vmatmul.mubr.f32.gmra.mrb[0].mxu0 %v3111
        %v3179 = vpop.f32.mrb[0].mxu0
        %v3180 = vadd.f32 %v3108, %v3179
        %v3181 = vpop.f32.mrb[0].mxu0
        %v3182 = vadd.f32 %v3108, %v3181
        %3183 = vdwg.mxu0
        %3184 = vst [vmem:[%s1043] sm:$0xff] %v3180
        %3185 = vst.msk [vmem:[%s1043 + $0x8] sm:$0xff] %vm2933, %v3182
        %vm3186 = vcmp.ge.f32.partialorder %v3180, 0.0
        %vm3187 = vcmp.ge.f32.partialorder %v3182, 0.0
        %v3188 = vmul.f32 %v3180, 0.1
        %v3189 = vmul.f32 %v3182, 0.1
        %v3190 = vsel %vm3186, %v3180, %v3188
        %v3191 = vsel %vm3187, %v3182, %v3189
        %vm3192 = vcmask 23552
        %3193 = vst.msk [vmem:[#allocation2] sm:$0xff] %vm3192, 0.0
        %vm3194 = vcmask 638552
        %3195 = vst.msk [vmem:[#allocation2 + $0x8] sm:$0xff] %vm3194, 0.0
        %3198 = vrot.lane.b32.xlu0 %v3190, 3
        %v3199 = vpop.permute.xlu0 %3198
        %3200 = vrot.lane.b32.xlu0 %v3191, 3
        %v3201 = vpop.permute.xlu0 %3200
        %v3202 = vsel %vm3192, %v3199, %v3201
        %vm3205 = vcmask 1047576
        %3206 = vst.msk [vmem:[#allocation2] sm:$0xff] %vm3205, %v3199
        %vm3207 = vcmask 613376
        %3208 = vst.msk [vmem:[#allocation2 + $0x8] sm:$0xff] %vm3207, %v3202
        %v3209 = vld [vmem:[#allocation2] sm:$0xff]
        %v3210 = vld [vmem:[#allocation2 + $0x8] sm:$0xff]
        %3211 = vst [vmem:[#allocation3] sm:$0xff] %v3209
        %3212 = vst.msk [vmem:[#allocation3 + $0x8] sm:$0xff] %vm2933, %v3210
        %v3213 = vld [vmem:[#allocation2] sm:$0xff]
        %v3214 = vld [vmem:[#allocation2 + $0x8] sm:$0xff]
        %3217 = vrot.lane.b32.xlu0 %v3213, 127
        %v3218 = vpop.permute.xlu0 %3217
        %3219 = vrot.lane.b32.xlu0 %v3214, 127
        %v3220 = vpop.permute.xlu0 %3219
        %v3221 = vsel %vm1098, %v3218, %v3220
        %3224 = vst [vmem:[#allocation3 + $0x28] sm:$0xff] %v3221
        %3225 = vst.msk [vmem:[#allocation3 + $0x30] sm:$0xff] %vm2933, %v3220
        %v3226 = vld [vmem:[#allocation2] sm:$0xff]
        %v3227 = vld [vmem:[#allocation2 + $0x8] sm:$0xff]
        %3230 = vrot.lane.b32.xlu0 %v3226, 126
        %v3231 = vpop.permute.xlu0 %3230
        %3232 = vrot.lane.b32.xlu0 %v3227, 126
        %v3233 = vpop.permute.xlu0 %3232
        %v3234 = vsel %vm1111, %v3231, %v3233
        %3237 = vst [vmem:[#allocation3 + $0x50] sm:$0xff] %v3234
        %3238 = vst.msk [vmem:[#allocation3 + $0x58] sm:$0xff] %vm2933, %v3233
        %v3239 = vld [vmem:[#allocation2] sm:$0xff]
        %v3240 = vld [vmem:[#allocation2 + $0x8] sm:$0xff]
        %3243 = vrot.lane.b32.xlu0 %v3239, 125
        %v3244 = vpop.permute.xlu0 %3243
        %3245 = vrot.lane.b32.xlu0 %v3240, 125
        %v3246 = vpop.permute.xlu0 %3245
        %v3247 = vsel %vm1870, %v3244, %v3246
        %3250 = vst [vmem:[#allocation3 + $0x78] sm:$0xff] %v3247
        %3251 = vst.msk [vmem:[#allocation3 + $0x80] sm:$0xff] %vm2933, %v3246
        %v3252 = vld [vmem:[#allocation2] sm:$0xff]
        %v3253 = vld [vmem:[#allocation2 + $0x8] sm:$0xff]
        %3256 = vrot.lane.b32.xlu0 %v3252, 124
        %v3257 = vpop.permute.xlu0 %3256
        %3258 = vrot.lane.b32.xlu0 %v3253, 124
        %v3259 = vpop.permute.xlu0 %3258
        %v3260 = vsel %vm1905, %v3257, %v3259
        %3263 = vst [vmem:[#allocation3 + $0xa0] sm:$0xff] %v3260
        %3264 = vst.msk [vmem:[#allocation3 + $0xa8] sm:$0xff] %vm2933, %v3259
        %v3265 = vld [vmem:[#allocation2] sm:$0xff]
        %v3266 = vld [vmem:[#allocation2 + $0x8] sm:$0xff]
        %3269 = vrot.lane.b32.xlu0 %v3265, 123
        %v3270 = vpop.permute.xlu0 %3269
        %3271 = vrot.lane.b32.xlu0 %v3266, 123
        %v3272 = vpop.permute.xlu0 %3271
        %vm3273 = vcmask 1006592
        %v3274 = vsel %vm3273, %v3270, %v3272
        %3277 = vst [vmem:[#allocation3 + $0xc8] sm:$0xff] %v3274
        %3278 = vst.msk [vmem:[#allocation3 + $0xd0] sm:$0xff] %vm2933, %v3272
        %v3279 = vld [vmem:[#allocation2] sm:$0xff]
        %v3280 = vld [vmem:[#allocation2 + $0x8] sm:$0xff]
        %3283 = vrot.lane.b32.xlu0 %v3279, 122
        %v3284 = vpop.permute.xlu0 %3283
        %3285 = vrot.lane.b32.xlu0 %v3280, 122
        %v3286 = vpop.permute.xlu0 %3285
        %vm3287 = vcmask 998400
        %v3288 = vsel %vm3287, %v3284, %v3286
        %3291 = vst [vmem:[#allocation3 + $0xf0] sm:$0xff] %v3288
        %3292 = vst.msk [vmem:[#allocation3 + $0xf8] sm:$0xff] %vm2933, %v3286
        %v3293 = vld [vmem:[%s13] sm:$0xff]
        %v3294 = vld [vmem:[#allocation3] sm:$0xff]
        %v3295 = vld [vmem:[#allocation3 + $0x8] sm:$0xff]
        %v3296 = vld [vmem:[#allocation3 + $0x28] sm:$0xff]
        %v3297 = vld [vmem:[#allocation3 + $0x30] sm:$0xff]
        %v3298 = vld [vmem:[#allocation3 + $0x50] sm:$0xff]
        %v3299 = vld [vmem:[#allocation3 + $0x58] sm:$0xff]
        %v3300 = vld [vmem:[#allocation3 + $0x78] sm:$0xff]
        %v3301 = vld [vmem:[#allocation3 + $0x80] sm:$0xff]
        %v3302 = vld [vmem:[#allocation3 + $0xa0] sm:$0xff]
        %v3303 = vld [vmem:[#allocation3 + $0xa8] sm:$0xff]
        %v3304 = vld [vmem:[#allocation3 + $0xc8] sm:$0xff]
        %v3305 = vld [vmem:[#allocation3 + $0xd0] sm:$0xff]
        %v3306 = vld [vmem:[#allocation3 + $0xf0] sm:$0xff]
        %v3307 = vld [vmem:[#allocation3 + $0xf8] sm:$0xff]
        %vm3308 = vcmask 457728
        %v3310 = vsel %vm3308, %v3293, 0
        %3312 = vmatprep.subr.mxu0 %v3295
        %3313 = vmatpush1.msra.mxu0 %v3294
        %3314 = vmatprep.subr.mxu0 %v3297
        %3315 = vmatpush1.msra.mxu0 %v3296
        %3316 = vmatprep.subr.mxu0 %v3299
        %3317 = vmatpush1.msra.mxu0 %v3298
        %3318 = vmatprep.subr.mxu0 %v3301
        %3319 = vmatpush1.msra.mxu0 %v3300
        %3320 = vmatprep.subr.mxu0 %v3303
        %3321 = vmatpush1.msra.mxu0 %v3302
        %3322 = vmatprep.subr.mxu0 %v3305
        %3323 = vmatpush1.msra.mxu0 %v3304
        %3324 = vmatprep.subr.mxu0 %v3307
        %3325 = vmatpush1.msra.mxu0 %v3306
        %3326 = vmatprep.subr.mxu0 0.0
        %3327 = vmatpush1.msra.mxu0 0.0
        %3328 = vmatprep.subr.mxu0 0.0
        %3329 = vmatpush1.msra.mxu0 0.0
        %3330 = vmatprep.subr.mxu0 0.0
        %3331 = vmatpush1.msra.mxu0 0.0
        %3332 = vmatprep.subr.mxu0 0.0
        %3333 = vmatpush1.msra.mxu0 0.0
        %3334 = vmatprep.subr.mxu0 0.0
        %3335 = vmatpush1.msra.mxu0 0.0
        %3336 = vmatprep.subr.mxu0 0.0
        %3337 = vmatpush1.msra.mxu0 0.0
        %3338 = vmatprep.subr.mxu0 0.0
        %3339 = vmatpush1.msra.mxu0 0.0
        %3340 = vmatprep.subr.mxu0 0.0
        %3341 = vmatpush1.msra.mxu0 0.0
        %3342 = vmatprep.subr.mxu0 0.0
        %3343 = vmatpush1.msra.mxu0 0.0
        %3344 = vmatprep.subr.mxu0 0.0
        %3345 = vmatpush1.msra.mxu0 0.0
        %3346 = vmatprep.subr.mxu0 0.0
        %3347 = vmatpush1.msra.mxu0 0.0
        %3348 = vmatprep.subr.mxu0 0.0
        %3349 = vmatpush1.msra.mxu0 0.0
        %3350 = vmatprep.subr.mxu0 0.0
        %3351 = vmatpush1.msra.mxu0 0.0
        %3352 = vmatprep.subr.mxu0 0.0
        %3353 = vmatpush1.msra.mxu0 0.0
        %3354 = vmatprep.subr.mxu0 0.0
        %3355 = vmatpush1.msra.mxu0 0.0
        %3356 = vmatprep.subr.mxu0 0.0
        %3357 = vmatpush1.msra.mxu0 0.0
        %3358 = vmatprep.subr.mxu0 0.0
        %3359 = vmatpush1.msra.mxu0 0.0
        %3360 = vmatprep.subr.mxu0 0.0
        %3361 = vmatpush1.msra.mxu0 0.0
        %3362 = vmatprep.subr.mxu0 0.0
        %3363 = vmatpush1.msra.mxu0 0.0
        %3364 = vmatprep.subr.mxu0 0.0
        %3365 = vmatpush1.msra.mxu0 0.0
        %3366 = vmatprep.subr.mxu0 0.0
        %3367 = vmatpush1.msra.mxu0 0.0
        %3368 = vmatprep.subr.mxu0 0.0
        %3369 = vmatpush1.msra.mxu0 0.0
        %3370 = vmatprep.subr.mxu0 0.0
        %3371 = vmatpush1.msra.mxu0 0.0
        %3372 = vmatprep.subr.mxu0 0.0
        %3373 = vmatpush1.msra.mxu0 0.0
        %3374 = vmatprep.subr.mxu0 0.0
        %3375 = vmatpush1.msra.mxu0 0.0
        %3376 = vmatprep.mubr.f32.mxu0 0.0
        %3377 = vmatmul.mubr.f32.gmra.mrb[0].mxu0 %v3310
        %v3378 = vpop.f32.mrb[0].mxu0
        %v3379 = vadd.f32 0.0, %v3378
        %v3380 = vpop.f32.mrb[0].mxu0
        %v3381 = vadd.f32 0.0, %v3380
        %3382 = vdwg.mxu0
        %v3383 = vmul.u32 %v2239, 4
        %vm3384 = vcmp.eq.s32.totalorder %v2163, %v3383
        %vm3385 = vcmp.eq.s32.totalorder %v2164, %v3383
        %vm3386 = vcmp.eq.s32.totalorder %v2165, %v3383
        %vm3387 = vcmp.eq.s32.totalorder %v2166, %v3383
        %vm3388 = vcmp.eq.s32.totalorder %v2167, %v3383
        %vm3389 = vcmp.eq.s32.totalorder %v2168, %v3383
        %vm3390 = vcmp.eq.s32.totalorder %v2169, %v3383
        %vm3391 = vcmp.eq.s32.totalorder %v2170, %v3383
        %vm3392 = vcmp.eq.s32.totalorder %v2171, %v3383
        %vm3393 = vcmp.eq.s32.totalorder %v2172, %v3383
        %vm3394 = vcmp.eq.s32.totalorder %v2173, %v3383
        %vm3395 = vcmp.eq.s32.totalorder %v2174, %v3383
        %vm3396 = vcmp.eq.s32.totalorder %v2175, %v3383
        %vm3397 = vcmp.eq.s32.totalorder %v2176, %v3383
        %vm3398 = vcmp.eq.s32.totalorder %v2177, %v3383
        %vm3399 = vcmp.eq.s32.totalorder %v2178, %v3383
        %vm3400 = vcmp.eq.s32.totalorder %v2179, %v3383
        %vm3401 = vcmp.eq.s32.totalorder %v2180, %v3383
        %vm3402 = vcmp.eq.s32.totalorder %v2181, %v3383
        %vm3403 = vcmp.eq.s32.totalorder %v2182, %v3383
        %vm3404 = vcmp.eq.s32.totalorder %v2183, %v3383
        %vm3405 = vcmp.eq.s32.totalorder %v2184, %v3383
        %vm3406 = vcmp.eq.s32.totalorder %v2185, %v3383
        %vm3407 = vcmp.eq.s32.totalorder %v2186, %v3383
        %vm3408 = vcmp.eq.s32.totalorder %v2187, %v3383
        %v3409 = vsel %vm3384, 1, 0
        %v3410 = vsel %vm3385, 1, 0
        %v3411 = vsel %vm3386, 1, 0
        %v3412 = vsel %vm3387, 1, 0
        %v3413 = vsel %vm3388, 1, 0
        %v3414 = vsel %vm3389, 1, 0
        %v3415 = vsel %vm3390, 1, 0
        %v3416 = vsel %vm3391, 1, 0
        %v3417 = vsel %vm3392, 1, 0
        %v3418 = vsel %vm3393, 1, 0
        %v3419 = vsel %vm3394, 1, 0
        %v3420 = vsel %vm3395, 1, 0
        %v3421 = vsel %vm3396, 1, 0
        %v3422 = vsel %vm3397, 1, 0
        %v3423 = vsel %vm3398, 1, 0
        %v3424 = vsel %vm3399, 1, 0
        %v3425 = vsel %vm3400, 1, 0
        %v3426 = vsel %vm3401, 1, 0
        %v3427 = vsel %vm3402, 1, 0
        %v3428 = vsel %vm3403, 1, 0
        %v3429 = vsel %vm3404, 1, 0
        %v3430 = vsel %vm3405, 1, 0
        %v3431 = vsel %vm3406, 1, 0
        %v3432 = vsel %vm3407, 1, 0
        %v3433 = vsel %vm3408, 1, 0
        %v3434 = vcvt.s32.f32 %v3409
        %v3435 = vcvt.s32.f32 %v3410
        %v3436 = vcvt.s32.f32 %v3411
        %v3437 = vcvt.s32.f32 %v3412
        %v3438 = vcvt.s32.f32 %v3413
        %v3439 = vcvt.s32.f32 %v3414
        %v3440 = vcvt.s32.f32 %v3415
        %v3441 = vcvt.s32.f32 %v3416
        %v3442 = vcvt.s32.f32 %v3417
        %v3443 = vcvt.s32.f32 %v3418
        %v3444 = vcvt.s32.f32 %v3419
        %v3445 = vcvt.s32.f32 %v3420
        %v3446 = vcvt.s32.f32 %v3421
        %v3447 = vcvt.s32.f32 %v3422
        %v3448 = vcvt.s32.f32 %v3423
        %v3449 = vcvt.s32.f32 %v3424
        %v3450 = vcvt.s32.f32 %v3425
        %v3451 = vcvt.s32.f32 %v3426
        %v3452 = vcvt.s32.f32 %v3427
        %v3453 = vcvt.s32.f32 %v3428
        %v3454 = vcvt.s32.f32 %v3429
        %v3455 = vcvt.s32.f32 %v3430
        %v3456 = vcvt.s32.f32 %v3431
        %v3457 = vcvt.s32.f32 %v3432
        %v3458 = vcvt.s32.f32 %v3433
        %v3459 = vld [vmem:[%s41] sm:$0xff]
        %3461 = vset.pattern.permute.xlu0 0
        %3462 = vperm.xlu0 %3461, %v3459
        %v3463 = vpop.permute.xlu0 %3462
        %v3466 = vsel %vm2933, %v3381, 0
        %3468 = vmatprep.subr.mxu0 0.0
        %3469 = vmatpush1.msra.mxu0 %v3434
        %3470 = vmatprep.subr.mxu0 0.0
        %3471 = vmatpush1.msra.mxu0 %v3435
        %3472 = vmatprep.subr.mxu0 0.0
        %3473 = vmatpush1.msra.mxu0 %v3436
        %3474 = vmatprep.subr.mxu0 0.0
        %3475 = vmatpush1.msra.mxu0 %v3437
        %3476 = vmatprep.subr.mxu0 0.0
        %3477 = vmatpush1.msra.mxu0 %v3438
        %3478 = vmatprep.subr.mxu0 0.0
        %3479 = vmatpush1.msra.mxu0 %v3439
        %3480 = vmatprep.subr.mxu0 0.0
        %3481 = vmatpush1.msra.mxu0 %v3440
        %3482 = vmatprep.subr.mxu0 0.0
        %3483 = vmatpush1.msra.mxu0 %v3441
        %3484 = vmatprep.subr.mxu0 0.0
        %3485 = vmatpush1.msra.mxu0 %v3442
        %3486 = vmatprep.subr.mxu0 0.0
        %3487 = vmatpush1.msra.mxu0 %v3443
        %3488 = vmatprep.subr.mxu0 0.0
        %3489 = vmatpush1.msra.mxu0 %v3444
        %3490 = vmatprep.subr.mxu0 0.0
        %3491 = vmatpush1.msra.mxu0 %v3445
        %3492 = vmatprep.subr.mxu0 0.0
        %3493 = vmatpush1.msra.mxu0 %v3446
        %3494 = vmatprep.subr.mxu0 0.0
        %3495 = vmatpush1.msra.mxu0 %v3447
        %3496 = vmatprep.subr.mxu0 0.0
        %3497 = vmatpush1.msra.mxu0 %v3448
        %3498 = vmatprep.subr.mxu0 0.0
        %3499 = vmatpush1.msra.mxu0 %v3449
        %3500 = vmatprep.subr.mxu0 0.0
        %3501 = vmatpush1.msra.mxu0 %v3450
        %3502 = vmatprep.subr.mxu0 0.0
        %3503 = vmatpush1.msra.mxu0 %v3451
        %3504 = vmatprep.subr.mxu0 0.0
        %3505 = vmatpush1.msra.mxu0 %v3452
        %3506 = vmatprep.subr.mxu0 0.0
        %3507 = vmatpush1.msra.mxu0 %v3453
        %3508 = vmatprep.subr.mxu0 0.0
        %3509 = vmatpush1.msra.mxu0 %v3454
        %3510 = vmatprep.subr.mxu0 0.0
        %3511 = vmatpush1.msra.mxu0 %v3455
        %3512 = vmatprep.subr.mxu0 0.0
        %3513 = vmatpush1.msra.mxu0 %v3456
        %3514 = vmatprep.subr.mxu0 0.0
        %3515 = vmatpush1.msra.mxu0 %v3457
        %3516 = vmatprep.subr.mxu0 0.0
        %3517 = vmatpush1.msra.mxu0 %v3458
        %3518 = vmatprep.subr.mxu0 0.0
        %3519 = vmatpush1.msra.mxu0 0.0
        %3520 = vmatprep.subr.mxu0 0.0
        %3521 = vmatpush1.msra.mxu0 0.0
        %3522 = vmatprep.subr.mxu0 0.0
        %3523 = vmatpush1.msra.mxu0 0.0
        %3524 = vmatprep.subr.mxu0 0.0
        %3525 = vmatpush1.msra.mxu0 0.0
        %3526 = vmatprep.subr.mxu0 0.0
        %3527 = vmatpush1.msra.mxu0 0.0
        %3528 = vmatprep.subr.mxu0 0.0
        %3529 = vmatpush1.msra.mxu0 0.0
        %3530 = vmatprep.subr.mxu0 0.0
        %3531 = vmatpush1.msra.mxu0 0.0
        %3532 = vmatprep.mubr.f32.mxu0 %v3466
        %3533 = vmatmul.mubr.f32.gmra.mrb[0].mxu0 %v3379
        %v3534 = vpop.f32.mrb[0].mxu0
        %v3535 = vadd.f32 %v3463, %v3534
        %v3536 = vpop.f32.mrb[0].mxu0
        %3537 = vdwg.mxu0
        %3538 = vst.msk [vmem:[#allocation2] sm:$0xff] %vm1074, 0.0
        %vm3539 = vcmask 425368
        %3540 = vst.msk [vmem:[#allocation2] sm:$0xff] %vm3539, 0.0
        %3542 = vrot.lane.b32.xlu0 %v3535, 1
        %v3543 = vpop.permute.xlu0 %3542
        %vm3545 = vcmask 416776
        %3546 = vst.msk [vmem:[#allocation2] sm:$0xff] %vm3545, %v3543
        %v3547 = vld [vmem:[#allocation2] sm:$0xff]
        %vm3548 = vcmask 408576
        %3549 = vst.msk [vmem:[#allocation3] sm:$0xff] %vm3548, %v3547
        %v3550 = vld [vmem:[#allocation2] sm:$0xff]
        %3552 = vrot.lane.b32.xlu0 %v3550, 127
        %v3553 = vpop.permute.xlu0 %3552
        %3555 = vst.msk [vmem:[#allocation3 + $0x28] sm:$0xff] %vm3548, %v3553
        %v3556 = vld [vmem:[#allocation2] sm:$0xff]
        %3558 = vrot.lane.b32.xlu0 %v3556, 126
        %v3559 = vpop.permute.xlu0 %3558
        %3561 = vst.msk [vmem:[#allocation3 + $0x50] sm:$0xff] %vm3548, %v3559
        %v3562 = vld [vmem:[%s15] sm:$0xff]
        %v3563 = vld [vmem:[%s15 + $0x8] sm:$0xff]
        %v3564 = vld [vmem:[#allocation3] sm:$0xff]
        %v3565 = vld [vmem:[#allocation3 + $0x28] sm:$0xff]
        %v3566 = vld [vmem:[#allocation3 + $0x50] sm:$0xff]
        %v3567 = vld [vmem:[%s43] sm:$0xff]
        %v3568 = vld [vmem:[%s43 + $0x8] sm:$0xff]
        %3570 = vset.pattern.permute.xlu0 0
        %3571 = vperm.xlu0 %3570, %v3567
        %v3572 = vpop.permute.xlu0 %3571
        %3575 = vset.pattern.permute.xlu0 0
        %3576 = vperm.xlu0 %3575, %v3568
        %v3577 = vpop.permute.xlu0 %3576
        %v3580 = vsel %vm1501, %v3562, 0
        %v3583 = vsel %vm1501, %v3563, 0
        %3585 = vmatprep.subr.mxu0 0.0
        %3586 = vmatpush1.msra.mxu0 %v3564
        %3587 = vmatprep.subr.mxu0 0.0
        %3588 = vmatpush1.msra.mxu0 %v3565
        %3589 = vmatprep.subr.mxu0 0.0
        %3590 = vmatpush1.msra.mxu0 %v3566
        %3591 = vmatprep.subr.mxu0 0.0
        %3592 = vmatpush1.msra.mxu0 0.0
        %3593 = vmatprep.subr.mxu0 0.0
        %3594 = vmatpush1.msra.mxu0 0.0
        %3595 = vmatprep.subr.mxu0 0.0
        %3596 = vmatpush1.msra.mxu0 0.0
        %3597 = vmatprep.subr.mxu0 0.0
        %3598 = vmatpush1.msra.mxu0 0.0
        %3599 = vmatprep.subr.mxu0 0.0
        %3600 = vmatpush1.msra.mxu0 0.0
        %3601 = vmatprep.subr.mxu0 0.0
        %3602 = vmatpush1.msra.mxu0 0.0
        %3603 = vmatprep.subr.mxu0 0.0
        %3604 = vmatpush1.msra.mxu0 0.0
        %3605 = vmatprep.subr.mxu0 0.0
        %3606 = vmatpush1.msra.mxu0 0.0
        %3607 = vmatprep.subr.mxu0 0.0
        %3608 = vmatpush1.msra.mxu0 0.0
        %3609 = vmatprep.subr.mxu0 0.0
        %3610 = vmatpush1.msra.mxu0 0.0
        %3611 = vmatprep.subr.mxu0 0.0
        %3612 = vmatpush1.msra.mxu0 0.0
        %3613 = vmatprep.subr.mxu0 0.0
        %3614 = vmatpush1.msra.mxu0 0.0
        %3615 = vmatprep.subr.mxu0 0.0
        %3616 = vmatpush1.msra.mxu0 0.0
        %3617 = vmatprep.subr.mxu0 0.0
        %3618 = vmatpush1.msra.mxu0 0.0
        %3619 = vmatprep.subr.mxu0 0.0
        %3620 = vmatpush1.msra.mxu0 0.0
        %3621 = vmatprep.subr.mxu0 0.0
        %3622 = vmatpush1.msra.mxu0 0.0
        %3623 = vmatprep.subr.mxu0 0.0
        %3624 = vmatpush1.msra.mxu0 0.0
        %3625 = vmatprep.subr.mxu0 0.0
        %3626 = vmatpush1.msra.mxu0 0.0
        %3627 = vmatprep.subr.mxu0 0.0
        %3628 = vmatpush1.msra.mxu0 0.0
        %3629 = vmatprep.subr.mxu0 0.0
        %3630 = vmatpush1.msra.mxu0 0.0
        %3631 = vmatprep.subr.mxu0 0.0
        %3632 = vmatpush1.msra.mxu0 0.0
        %3633 = vmatprep.subr.mxu0 0.0
        %3634 = vmatpush1.msra.mxu0 0.0
        %3635 = vmatprep.subr.mxu0 0.0
        %3636 = vmatpush1.msra.mxu0 0.0
        %3637 = vmatprep.subr.mxu0 0.0
        %3638 = vmatpush1.msra.mxu0 0.0
        %3639 = vmatprep.subr.mxu0 0.0
        %3640 = vmatpush1.msra.mxu0 0.0
        %3641 = vmatprep.subr.mxu0 0.0
        %3642 = vmatpush1.msra.mxu0 0.0
        %3643 = vmatprep.subr.mxu0 0.0
        %3644 = vmatpush1.msra.mxu0 0.0
        %3645 = vmatprep.subr.mxu0 0.0
        %3646 = vmatpush1.msra.mxu0 0.0
        %3647 = vmatprep.subr.mxu0 0.0
        %3648 = vmatpush1.msra.mxu0 0.0
        %3649 = vmatprep.mubr.f32.mxu0 0.0
        %3650 = vmatmul.mubr.f32.gmra.mrb[0].mxu0 %v3580
        %v3651 = vpop.f32.mrb[0].mxu0
        %v3652 = vadd.f32 %v3572, %v3651
        %v3653 = vpop.f32.mrb[0].mxu0
        %3654 = vmatprep.mubr.f32.mxu0 0.0
        %3655 = vmatmul.mubr.f32.gmra.mrb[0].mxu0 %v3583
        %v3656 = vpop.f32.mrb[0].mxu0
        %v3657 = vadd.f32 %v3577, %v3656
        %v3658 = vpop.f32.mrb[0].mxu0
        %3659 = vdwg.mxu0
        %vm3660 = vcmp.ge.f32.partialorder %v3652, 0.0
        %vm3661 = vcmp.ge.f32.partialorder %v3657, 0.0
        %v3662 = vmul.f32 %v3652, 0.1
        %v3663 = vmul.f32 %v3657, 0.1
        %v3664 = vsel %vm3660, %v3652, %v3662
        %v3665 = vsel %vm3661, %v3657, %v3663
        %3666 = vst.msk [vmem:[#allocation2] sm:$0xff] %vm1074, 0.0
        %3667 = vst.msk [vmem:[#allocation2 + $0x28] sm:$0xff] %vm1074, 0.0
        %3668 = vst.msk [vmem:[#allocation2] sm:$0xff] %vm3539, 0.0
        %3669 = vst.msk [vmem:[#allocation2 + $0x28] sm:$0xff] %vm3539, 0.0
        %3672 = vrot.lane.b32.xlu0 %v3664, 1
        %v3673 = vpop.permute.xlu0 %3672
        %3674 = vrot.lane.b32.xlu0 %v3665, 1
        %v3675 = vpop.permute.xlu0 %3674
        %3678 = vst.msk [vmem:[#allocation2] sm:$0xff] %vm3545, %v3673
        %3679 = vst.msk [vmem:[#allocation2 + $0x28] sm:$0xff] %vm3545, %v3675
        %v3680 = vld [vmem:[#allocation2] sm:$0xff]
        %v3681 = vld [vmem:[#allocation2 + $0x28] sm:$0xff]
        %3682 = vst.msk [vmem:[#allocation3] sm:$0xff] %vm3548, %v3680
        %3683 = vst.msk [vmem:[#allocation3 + $0x28] sm:$0xff] %vm3548, %v3681
        %v3684 = vld [vmem:[#allocation2] sm:$0xff]
        %v3685 = vld [vmem:[#allocation2 + $0x28] sm:$0xff]
        %3688 = vrot.lane.b32.xlu0 %v3684, 127
        %v3689 = vpop.permute.xlu0 %3688
        %3690 = vrot.lane.b32.xlu0 %v3685, 127
        %v3691 = vpop.permute.xlu0 %3690
        %3694 = vst.msk [vmem:[#allocation3 + $0x50] sm:$0xff] %vm3548, %v3689
        %3695 = vst.msk [vmem:[#allocation3 + $0x78] sm:$0xff] %vm3548, %v3691
        %v3696 = vld [vmem:[#allocation2] sm:$0xff]
        %v3697 = vld [vmem:[#allocation2 + $0x28] sm:$0xff]
        %3700 = vrot.lane.b32.xlu0 %v3696, 126
        %v3701 = vpop.permute.xlu0 %3700
        %3702 = vrot.lane.b32.xlu0 %v3697, 126
        %v3703 = vpop.permute.xlu0 %3702
        %3706 = vst.msk [vmem:[#allocation3 + $0xa0] sm:$0xff] %vm3548, %v3701
        %3707 = vst.msk [vmem:[#allocation3 + $0xc8] sm:$0xff] %vm3548, %v3703
        %v3708 = vld [vmem:[%s17] sm:$0xff]
        %v3709 = vld [vmem:[%s17 + $0x8] sm:$0xff]
        %v3710 = vld [vmem:[#allocation3] sm:$0xff]
        %v3711 = vld [vmem:[#allocation3 + $0x28] sm:$0xff]
        %v3712 = vld [vmem:[#allocation3 + $0x50] sm:$0xff]
        %v3713 = vld [vmem:[#allocation3 + $0x78] sm:$0xff]
        %v3714 = vld [vmem:[#allocation3 + $0xa0] sm:$0xff]
        %v3715 = vld [vmem:[#allocation3 + $0xc8] sm:$0xff]
        %v3716 = vld [vmem:[%s45] sm:$0xff]
        %v3717 = vld [vmem:[%s45 + $0x8] sm:$0xff]
        %3719 = vset.pattern.permute.xlu0 0
        %3720 = vperm.xlu0 %3719, %v3716
        %v3721 = vpop.permute.xlu0 %3720
        %3724 = vset.pattern.permute.xlu0 0
        %3725 = vperm.xlu0 %3724, %v3717
        %v3726 = vpop.permute.xlu0 %3725
        %vm3728 = vcmask 392192
        %v3730 = vsel %vm3728, %v3708, 0
        %v3733 = vsel %vm3728, %v3709, 0
        %3735 = vmatprep.subr.mxu0 0.0
        %3736 = vmatpush1.msra.mxu0 %v3710
        %3737 = vmatprep.subr.mxu0 0.0
        %3738 = vmatpush1.msra.mxu0 %v3711
        %3739 = vmatprep.subr.mxu0 0.0
        %3740 = vmatpush1.msra.mxu0 %v3712
        %3741 = vmatprep.subr.mxu0 0.0
        %3742 = vmatpush1.msra.mxu0 %v3713
        %3743 = vmatprep.subr.mxu0 0.0
        %3744 = vmatpush1.msra.mxu0 %v3714
        %3745 = vmatprep.subr.mxu0 0.0
        %3746 = vmatpush1.msra.mxu0 %v3715
        %3747 = vmatprep.subr.mxu0 0.0
        %3748 = vmatpush1.msra.mxu0 0.0
        %3749 = vmatprep.subr.mxu0 0.0
        %3750 = vmatpush1.msra.mxu0 0.0
        %3751 = vmatprep.subr.mxu0 0.0
        %3752 = vmatpush1.msra.mxu0 0.0
        %3753 = vmatprep.subr.mxu0 0.0
        %3754 = vmatpush1.msra.mxu0 0.0
        %3755 = vmatprep.subr.mxu0 0.0
        %3756 = vmatpush1.msra.mxu0 0.0
        %3757 = vmatprep.subr.mxu0 0.0
        %3758 = vmatpush1.msra.mxu0 0.0
        %3759 = vmatprep.subr.mxu0 0.0
        %3760 = vmatpush1.msra.mxu0 0.0
        %3761 = vmatprep.subr.mxu0 0.0
        %3762 = vmatpush1.msra.mxu0 0.0
        %3763 = vmatprep.subr.mxu0 0.0
        %3764 = vmatpush1.msra.mxu0 0.0
        %3765 = vmatprep.subr.mxu0 0.0
        %3766 = vmatpush1.msra.mxu0 0.0
        %3767 = vmatprep.subr.mxu0 0.0
        %3768 = vmatpush1.msra.mxu0 0.0
        %3769 = vmatprep.subr.mxu0 0.0
        %3770 = vmatpush1.msra.mxu0 0.0
        %3771 = vmatprep.subr.mxu0 0.0
        %3772 = vmatpush1.msra.mxu0 0.0
        %3773 = vmatprep.subr.mxu0 0.0
        %3774 = vmatpush1.msra.mxu0 0.0
        %3775 = vmatprep.subr.mxu0 0.0
        %3776 = vmatpush1.msra.mxu0 0.0
        %3777 = vmatprep.subr.mxu0 0.0
        %3778 = vmatpush1.msra.mxu0 0.0
        %3779 = vmatprep.subr.mxu0 0.0
        %3780 = vmatpush1.msra.mxu0 0.0
        %3781 = vmatprep.subr.mxu0 0.0
        %3782 = vmatpush1.msra.mxu0 0.0
        %3783 = vmatprep.subr.mxu0 0.0
        %3784 = vmatpush1.msra.mxu0 0.0
        %3785 = vmatprep.subr.mxu0 0.0
        %3786 = vmatpush1.msra.mxu0 0.0
        %3787 = vmatprep.subr.mxu0 0.0
        %3788 = vmatpush1.msra.mxu0 0.0
        %3789 = vmatprep.subr.mxu0 0.0
        %3790 = vmatpush1.msra.mxu0 0.0
        %3791 = vmatprep.subr.mxu0 0.0
        %3792 = vmatpush1.msra.mxu0 0.0
        %3793 = vmatprep.subr.mxu0 0.0
        %3794 = vmatpush1.msra.mxu0 0.0
        %3795 = vmatprep.subr.mxu0 0.0
        %3796 = vmatpush1.msra.mxu0 0.0
        %3797 = vmatprep.subr.mxu0 0.0
        %3798 = vmatpush1.msra.mxu0 0.0
        %3799 = vmatprep.mubr.f32.mxu0 0.0
        %3800 = vmatmul.mubr.f32.gmra.mrb[0].mxu0 %v3730
        %v3801 = vpop.f32.mrb[0].mxu0
        %v3802 = vadd.f32 %v3721, %v3801
        %v3803 = vpop.f32.mrb[0].mxu0
        %3804 = vmatprep.mubr.f32.mxu0 0.0
        %3805 = vmatmul.mubr.f32.gmra.mrb[0].mxu0 %v3733
        %v3806 = vpop.f32.mrb[0].mxu0
        %v3807 = vadd.f32 %v3726, %v3806
        %v3808 = vpop.f32.mrb[0].mxu0
        %3809 = vdwg.mxu0
        %3810 = vst.msk [vmem:[%s1036] sm:$0xff] %vm3548, %v3802
        %3811 = vst.msk [vmem:[%s1036 + $0x8] sm:$0xff] %vm3548, %v3807
        %vm3812 = vcmp.ge.f32.partialorder %v3802, 0.0
        %vm3813 = vcmp.ge.f32.partialorder %v3807, 0.0
        %v3814 = vmul.f32 %v3802, 0.1
        %v3815 = vmul.f32 %v3807, 0.1
        %v3816 = vsel %vm3812, %v3802, %v3814
        %v3817 = vsel %vm3813, %v3807, %v3815
        %vm3818 = vcmask 31744
        %3819 = vst.msk [vmem:[#allocation2] sm:$0xff] %vm3818, 0.0
        %3820 = vst.msk [vmem:[#allocation2 + $0x28] sm:$0xff] %vm3818, 0.0
        %vm3821 = vcmask 474544
        %3822 = vst.msk [vmem:[#allocation2] sm:$0xff] %vm3821, 0.0
        %3823 = vst.msk [vmem:[#allocation2 + $0x28] sm:$0xff] %vm3821, 0.0
        %3826 = vrot.lane.b32.xlu0 %v3816, 4
        %v3827 = vpop.permute.xlu0 %3826
        %3828 = vrot.lane.b32.xlu0 %v3817, 4
        %v3829 = vpop.permute.xlu0 %3828
        %vm3832 = vcmask 441376
        %3833 = vst.msk [vmem:[#allocation2] sm:$0xff] %vm3832, %v3827
        %3834 = vst.msk [vmem:[#allocation2 + $0x28] sm:$0xff] %vm3832, %v3829
        %v3835 = vld [vmem:[#allocation2] sm:$0xff]
        %v3836 = vld [vmem:[#allocation2 + $0x28] sm:$0xff]
        %3837 = vst.msk [vmem:[#allocation3] sm:$0xff] %vm3548, %v3835
        %3838 = vst.msk [vmem:[#allocation3 + $0x28] sm:$0xff] %vm3548, %v3836
        %v3839 = vld [vmem:[#allocation2] sm:$0xff]
        %v3840 = vld [vmem:[#allocation2 + $0x28] sm:$0xff]
        %3843 = vrot.lane.b32.xlu0 %v3839, 127
        %v3844 = vpop.permute.xlu0 %3843
        %3845 = vrot.lane.b32.xlu0 %v3840, 127
        %v3846 = vpop.permute.xlu0 %3845
        %3849 = vst.msk [vmem:[#allocation3 + $0x50] sm:$0xff] %vm3548, %v3844
        %3850 = vst.msk [vmem:[#allocation3 + $0x78] sm:$0xff] %vm3548, %v3846
        %v3851 = vld [vmem:[#allocation2] sm:$0xff]
        %v3852 = vld [vmem:[#allocation2 + $0x28] sm:$0xff]
        %3855 = vrot.lane.b32.xlu0 %v3851, 126
        %v3856 = vpop.permute.xlu0 %3855
        %3857 = vrot.lane.b32.xlu0 %v3852, 126
        %v3858 = vpop.permute.xlu0 %3857
        %3861 = vst.msk [vmem:[#allocation3 + $0xa0] sm:$0xff] %vm3548, %v3856
        %3862 = vst.msk [vmem:[#allocation3 + $0xc8] sm:$0xff] %vm3548, %v3858
        %v3863 = vld [vmem:[#allocation2] sm:$0xff]
        %v3864 = vld [vmem:[#allocation2 + $0x28] sm:$0xff]
        %3867 = vrot.lane.b32.xlu0 %v3863, 125
        %v3868 = vpop.permute.xlu0 %3867
        %3869 = vrot.lane.b32.xlu0 %v3864, 125
        %v3870 = vpop.permute.xlu0 %3869
        %3873 = vst.msk [vmem:[#allocation3 + $0xf0] sm:$0xff] %vm3548, %v3868
        %3874 = vst.msk [vmem:[#allocation3 + $0x118] sm:$0xff] %vm3548, %v3870
        %v3875 = vld [vmem:[#allocation2] sm:$0xff]
        %v3876 = vld [vmem:[#allocation2 + $0x28] sm:$0xff]
        %3879 = vrot.lane.b32.xlu0 %v3875, 124
        %v3880 = vpop.permute.xlu0 %3879
        %3881 = vrot.lane.b32.xlu0 %v3876, 124
        %v3882 = vpop.permute.xlu0 %3881
        %3885 = vst.msk [vmem:[#allocation3 + $0x140] sm:$0xff] %vm3548, %v3880
        %3886 = vst.msk [vmem:[#allocation3 + $0x168] sm:$0xff] %vm3548, %v3882
        %v3887 = vld [vmem:[#allocation2] sm:$0xff]
        %v3888 = vld [vmem:[#allocation2 + $0x28] sm:$0xff]
        %3891 = vrot.lane.b32.xlu0 %v3887, 123
        %v3892 = vpop.permute.xlu0 %3891
        %3893 = vrot.lane.b32.xlu0 %v3888, 123
        %v3894 = vpop.permute.xlu0 %3893
        %3897 = vst.msk [vmem:[#allocation3 + $0x190] sm:$0xff] %vm3548, %v3892
        %3898 = vst.msk [vmem:[#allocation3 + $0x1b8] sm:$0xff] %vm3548, %v3894
        %v3899 = vld [vmem:[#allocation2] sm:$0xff]
        %v3900 = vld [vmem:[#allocation2 + $0x28] sm:$0xff]
        %3903 = vrot.lane.b32.xlu0 %v3899, 122
        %v3904 = vpop.permute.xlu0 %3903
        %3905 = vrot.lane.b32.xlu0 %v3900, 122
        %v3906 = vpop.permute.xlu0 %3905
        %3909 = vst.msk [vmem:[#allocation3 + $0x1e0] sm:$0xff] %vm3548, %v3904
        %3910 = vst.msk [vmem:[#allocation3 + $0x208] sm:$0xff] %vm3548, %v3906
        %v3911 = vld [vmem:[#allocation2] sm:$0xff]
        %v3912 = vld [vmem:[#allocation2 + $0x28] sm:$0xff]
        %3915 = vrot.lane.b32.xlu0 %v3911, 121
        %v3916 = vpop.permute.xlu0 %3915
        %3917 = vrot.lane.b32.xlu0 %v3912, 121
        %v3918 = vpop.permute.xlu0 %3917
        %3921 = vst.msk [vmem:[#allocation3 + $0x230] sm:$0xff] %vm3548, %v3916
        %3922 = vst.msk [vmem:[#allocation3 + $0x258] sm:$0xff] %vm3548, %v3918
        %v3923 = vld [vmem:[#allocation2] sm:$0xff]
        %v3924 = vld [vmem:[#allocation2 + $0x28] sm:$0xff]
        %3927 = vrot.lane.b32.xlu0 %v3923, 120
        %v3928 = vpop.permute.xlu0 %3927
        %3929 = vrot.lane.b32.xlu0 %v3924, 120
        %v3930 = vpop.permute.xlu0 %3929
        %3933 = vst.msk [vmem:[#allocation3 + $0x280] sm:$0xff] %vm3548, %v3928
        %3934 = vst.msk [vmem:[#allocation3 + $0x2a8] sm:$0xff] %vm3548, %v3930
        %v3935 = vld [vmem:[%s19] sm:$0xff]
        %v3936 = vld [vmem:[%s19 + $0x8] sm:$0xff]
        %v3937 = vld [vmem:[%s19 + $0x10] sm:$0xff]
        %v3938 = vld [vmem:[%s19 + $0x18] sm:$0xff]
        %v3939 = vld [vmem:[#allocation3] sm:$0xff]
        %v3940 = vld [vmem:[#allocation3 + $0x28] sm:$0xff]
        %v3941 = vld [vmem:[#allocation3 + $0x50] sm:$0xff]
        %v3942 = vld [vmem:[#allocation3 + $0x78] sm:$0xff]
        %v3943 = vld [vmem:[#allocation3 + $0xa0] sm:$0xff]
        %v3944 = vld [vmem:[#allocation3 + $0xc8] sm:$0xff]
        %v3945 = vld [vmem:[#allocation3 + $0xf0] sm:$0xff]
        %v3946 = vld [vmem:[#allocation3 + $0x118] sm:$0xff]
        %v3947 = vld [vmem:[#allocation3 + $0x140] sm:$0xff]
        %v3948 = vld [vmem:[#allocation3 + $0x168] sm:$0xff]
        %v3949 = vld [vmem:[#allocation3 + $0x190] sm:$0xff]
        %v3950 = vld [vmem:[#allocation3 + $0x1b8] sm:$0xff]
        %v3951 = vld [vmem:[#allocation3 + $0x1e0] sm:$0xff]
        %v3952 = vld [vmem:[#allocation3 + $0x208] sm:$0xff]
        %v3953 = vld [vmem:[#allocation3 + $0x230] sm:$0xff]
        %v3954 = vld [vmem:[#allocation3 + $0x258] sm:$0xff]
        %v3955 = vld [vmem:[#allocation3 + $0x280] sm:$0xff]
        %v3956 = vld [vmem:[#allocation3 + $0x2a8] sm:$0xff]
        %vm3957 = vcmask 130048
        %v3959 = vsel %vm3957, %v3936, 0
        %v3962 = vsel %vm3957, %v3938, 0
        %3964 = vmatprep.subr.mxu0 0.0
        %3965 = vmatpush1.msra.mxu0 %v3939
        %3966 = vmatprep.subr.mxu0 0.0
        %3967 = vmatpush1.msra.mxu0 %v3940
        %3968 = vmatprep.subr.mxu0 0.0
        %3969 = vmatpush1.msra.mxu0 %v3941
        %3970 = vmatprep.subr.mxu0 0.0
        %3971 = vmatpush1.msra.mxu0 %v3942
        %3972 = vmatprep.subr.mxu0 0.0
        %3973 = vmatpush1.msra.mxu0 %v3943
        %3974 = vmatprep.subr.mxu0 0.0
        %3975 = vmatpush1.msra.mxu0 %v3944
        %3976 = vmatprep.subr.mxu0 0.0
        %3977 = vmatpush1.msra.mxu0 %v3945
        %3978 = vmatprep.subr.mxu0 0.0
        %3979 = vmatpush1.msra.mxu0 %v3946
        %3980 = vmatprep.subr.mxu0 0.0
        %3981 = vmatpush1.msra.mxu0 %v3947
        %3982 = vmatprep.subr.mxu0 0.0
        %3983 = vmatpush1.msra.mxu0 %v3948
        %3984 = vmatprep.subr.mxu0 0.0
        %3985 = vmatpush1.msra.mxu0 %v3949
        %3986 = vmatprep.subr.mxu0 0.0
        %3987 = vmatpush1.msra.mxu0 %v3950
        %3988 = vmatprep.subr.mxu0 0.0
        %3989 = vmatpush1.msra.mxu0 %v3951
        %3990 = vmatprep.subr.mxu0 0.0
        %3991 = vmatpush1.msra.mxu0 %v3952
        %3992 = vmatprep.subr.mxu0 0.0
        %3993 = vmatpush1.msra.mxu0 %v3953
        %3994 = vmatprep.subr.mxu0 0.0
        %3995 = vmatpush1.msra.mxu0 %v3954
        %3996 = vmatprep.subr.mxu0 0.0
        %3997 = vmatpush1.msra.mxu0 %v3955
        %3998 = vmatprep.subr.mxu0 0.0
        %3999 = vmatpush1.msra.mxu0 %v3956
        %4000 = vmatprep.subr.mxu0 0.0
        %4001 = vmatpush1.msra.mxu0 0.0
        %4002 = vmatprep.subr.mxu0 0.0
        %4003 = vmatpush1.msra.mxu0 0.0
        %4004 = vmatprep.subr.mxu0 0.0
        %4005 = vmatpush1.msra.mxu0 0.0
        %4006 = vmatprep.subr.mxu0 0.0
        %4007 = vmatpush1.msra.mxu0 0.0
        %4008 = vmatprep.subr.mxu0 0.0
        %4009 = vmatpush1.msra.mxu0 0.0
        %4010 = vmatprep.subr.mxu0 0.0
        %4011 = vmatpush1.msra.mxu0 0.0
        %4012 = vmatprep.subr.mxu0 0.0
        %4013 = vmatpush1.msra.mxu0 0.0
        %4014 = vmatprep.subr.mxu0 0.0
        %4015 = vmatpush1.msra.mxu0 0.0
        %4016 = vmatprep.subr.mxu0 0.0
        %4017 = vmatpush1.msra.mxu0 0.0
        %4018 = vmatprep.subr.mxu0 0.0
        %4019 = vmatpush1.msra.mxu0 0.0
        %4020 = vmatprep.subr.mxu0 0.0
        %4021 = vmatpush1.msra.mxu0 0.0
        %4022 = vmatprep.subr.mxu0 0.0
        %4023 = vmatpush1.msra.mxu0 0.0
        %4024 = vmatprep.subr.mxu0 0.0
        %4025 = vmatpush1.msra.mxu0 0.0
        %4026 = vmatprep.subr.mxu0 0.0
        %4027 = vmatpush1.msra.mxu0 0.0
        %4028 = vmatprep.mubr.f32.mxu0 %v3959
        %4029 = vmatmul.mubr.f32.gmra.mrb[0].mxu0 %v3935
        %v4030 = vpop.f32.mrb[0].mxu0
        %v4031 = vadd.f32 0.0, %v4030
        %v4032 = vpop.f32.mrb[0].mxu0
        %4033 = vmatprep.mubr.f32.mxu0 %v3962
        %4034 = vmatmul.mubr.f32.gmra.mrb[0].mxu0 %v3937
        %v4035 = vpop.f32.mrb[0].mxu0
        %v4036 = vadd.f32 0.0, %v4035
        %v4037 = vpop.f32.mrb[0].mxu0
        %4038 = vdwg.mxu0
        %v4039 = vmul.u32 %v2239, 5
        %vm4040 = vcmp.eq.s32.totalorder %v2163, %v4039
        %vm4041 = vcmp.eq.s32.totalorder %v2164, %v4039
        %vm4042 = vcmp.eq.s32.totalorder %v2165, %v4039
        %vm4043 = vcmp.eq.s32.totalorder %v2166, %v4039
        %vm4044 = vcmp.eq.s32.totalorder %v2167, %v4039
        %vm4045 = vcmp.eq.s32.totalorder %v2168, %v4039
        %vm4046 = vcmp.eq.s32.totalorder %v2169, %v4039
        %v4047 = vsel %vm4040, 1, 0
        %v4048 = vsel %vm4041, 1, 0
        %v4049 = vsel %vm4042, 1, 0
        %v4050 = vsel %vm4043, 1, 0
        %v4051 = vsel %vm4044, 1, 0
        %v4052 = vsel %vm4045, 1, 0
        %v4053 = vsel %vm4046, 1, 0
        %v4054 = vcvt.s32.f32 %v4047
        %v4055 = vcvt.s32.f32 %v4048
        %v4056 = vcvt.s32.f32 %v4049
        %v4057 = vcvt.s32.f32 %v4050
        %v4058 = vcvt.s32.f32 %v4051
        %v4059 = vcvt.s32.f32 %v4052
        %v4060 = vcvt.s32.f32 %v4053
        %v4061 = vld [vmem:[%s47] sm:$0xff]
        %v4062 = vld [vmem:[%s47 + $0x8] sm:$0xff]
        %4064 = vset.pattern.permute.xlu0 0
        %4065 = vperm.xlu0 %4064, %v4061
        %v4066 = vpop.permute.xlu0 %4065
        %4069 = vset.pattern.permute.xlu0 0
        %4070 = vperm.xlu0 %4069, %v4062
        %v4071 = vpop.permute.xlu0 %4070
        %v4074 = vsel %vm3548, %v4031, 0
        %v4077 = vsel %vm3548, %v4036, 0
        %vm4079 = vcmask 1041408
        %v4081 = vsel %vm4079, %v4060, 0
        %4083 = vmatprep.subr.mxu0 0.0
        %4084 = vmatpush1.msra.mxu0 %v4054
        %4085 = vmatprep.subr.mxu0 0.0
        %4086 = vmatpush1.msra.mxu0 %v4055
        %4087 = vmatprep.subr.mxu0 0.0
        %4088 = vmatpush1.msra.mxu0 %v4056
        %4089 = vmatprep.subr.mxu0 0.0
        %4090 = vmatpush1.msra.mxu0 %v4057
        %4091 = vmatprep.subr.mxu0 0.0
        %4092 = vmatpush1.msra.mxu0 %v4058
        %4093 = vmatprep.subr.mxu0 0.0
        %4094 = vmatpush1.msra.mxu0 %v4059
        %4095 = vmatprep.subr.mxu0 0.0
        %4096 = vmatpush1.msra.mxu0 %v4081
        %4097 = vmatprep.subr.mxu0 0.0
        %4098 = vmatpush1.msra.mxu0 0.0
        %4099 = vmatprep.subr.mxu0 0.0
        %4100 = vmatpush1.msra.mxu0 0.0
        %4101 = vmatprep.subr.mxu0 0.0
        %4102 = vmatpush1.msra.mxu0 0.0
        %4103 = vmatprep.subr.mxu0 0.0
        %4104 = vmatpush1.msra.mxu0 0.0
        %4105 = vmatprep.subr.mxu0 0.0
        %4106 = vmatpush1.msra.mxu0 0.0
        %4107 = vmatprep.subr.mxu0 0.0
        %4108 = vmatpush1.msra.mxu0 0.0
        %4109 = vmatprep.subr.mxu0 0.0
        %4110 = vmatpush1.msra.mxu0 0.0
        %4111 = vmatprep.subr.mxu0 0.0
        %4112 = vmatpush1.msra.mxu0 0.0
        %4113 = vmatprep.subr.mxu0 0.0
        %4114 = vmatpush1.msra.mxu0 0.0
        %4115 = vmatprep.subr.mxu0 0.0
        %4116 = vmatpush1.msra.mxu0 0.0
        %4117 = vmatprep.subr.mxu0 0.0
        %4118 = vmatpush1.msra.mxu0 0.0
        %4119 = vmatprep.subr.mxu0 0.0
        %4120 = vmatpush1.msra.mxu0 0.0
        %4121 = vmatprep.subr.mxu0 0.0
        %4122 = vmatpush1.msra.mxu0 0.0
        %4123 = vmatprep.subr.mxu0 0.0
        %4124 = vmatpush1.msra.mxu0 0.0
        %4125 = vmatprep.subr.mxu0 0.0
        %4126 = vmatpush1.msra.mxu0 0.0
        %4127 = vmatprep.subr.mxu0 0.0
        %4128 = vmatpush1.msra.mxu0 0.0
        %4129 = vmatprep.subr.mxu0 0.0
        %4130 = vmatpush1.msra.mxu0 0.0
        %4131 = vmatprep.subr.mxu0 0.0
        %4132 = vmatpush1.msra.mxu0 0.0
        %4133 = vmatprep.subr.mxu0 0.0
        %4134 = vmatpush1.msra.mxu0 0.0
        %4135 = vmatprep.subr.mxu0 0.0
        %4136 = vmatpush1.msra.mxu0 0.0
        %4137 = vmatprep.subr.mxu0 0.0
        %4138 = vmatpush1.msra.mxu0 0.0
        %4139 = vmatprep.subr.mxu0 0.0
        %4140 = vmatpush1.msra.mxu0 0.0
        %4141 = vmatprep.subr.mxu0 0.0
        %4142 = vmatpush1.msra.mxu0 0.0
        %4143 = vmatprep.subr.mxu0 0.0
        %4144 = vmatpush1.msra.mxu0 0.0
        %4145 = vmatprep.subr.mxu0 0.0
        %4146 = vmatpush1.msra.mxu0 0.0
        %4147 = vmatprep.mubr.f32.mxu0 0.0
        %4148 = vmatmul.mubr.f32.gmra.mrb[0].mxu0 %v4074
        %v4149 = vpop.f32.mrb[0].mxu0
        %v4150 = vadd.f32 %v4066, %v4149
        %v4151 = vpop.f32.mrb[0].mxu0
        %4152 = vmatprep.mubr.f32.mxu0 0.0
        %4153 = vmatmul.mubr.f32.gmra.mrb[0].mxu0 %v4077
        %v4154 = vpop.f32.mrb[0].mxu0
        %v4155 = vadd.f32 %v4071, %v4154
        %v4156 = vpop.f32.mrb[0].mxu0
        %4157 = vdwg.mxu0
        %4158 = vst.msk [vmem:[#allocation2] sm:$0xff] %vm1074, 0.0
        %4159 = vst.msk [vmem:[#allocation2 + $0x28] sm:$0xff] %vm1074, 0.0
        %vm4160 = vcmask 97368
        %4161 = vst.msk [vmem:[#allocation2] sm:$0xff] %vm4160, 0.0
        %4162 = vst.msk [vmem:[#allocation2 + $0x28] sm:$0xff] %vm4160, 0.0
        %4165 = vrot.lane.b32.xlu0 %v4150, 1
        %v4166 = vpop.permute.xlu0 %4165
        %4167 = vrot.lane.b32.xlu0 %v4155, 1
        %v4168 = vpop.permute.xlu0 %4167
        %vm4171 = vcmask 89096
        %4172 = vst.msk [vmem:[#allocation2] sm:$0xff] %vm4171, %v4166
        %4173 = vst.msk [vmem:[#allocation2 + $0x28] sm:$0xff] %vm4171, %v4168
        %v4174 = vld [vmem:[#allocation2] sm:$0xff]
        %v4175 = vld [vmem:[#allocation2 + $0x28] sm:$0xff]
        %vm4176 = vcmask 80896
        %4177 = vst.msk [vmem:[#allocation3] sm:$0xff] %vm4176, %v4174
        %4178 = vst.msk [vmem:[#allocation3 + $0x28] sm:$0xff] %vm4176, %v4175
        %v4179 = vld [vmem:[#allocation2] sm:$0xff]
        %v4180 = vld [vmem:[#allocation2 + $0x28] sm:$0xff]
        %4183 = vrot.lane.b32.xlu0 %v4179, 127
        %v4184 = vpop.permute.xlu0 %4183
        %4185 = vrot.lane.b32.xlu0 %v4180, 127
        %v4186 = vpop.permute.xlu0 %4185
        %4189 = vst.msk [vmem:[#allocation3 + $0x50] sm:$0xff] %vm4176, %v4184
        %4190 = vst.msk [vmem:[#allocation3 + $0x78] sm:$0xff] %vm4176, %v4186
        %v4191 = vld [vmem:[#allocation2] sm:$0xff]
        %v4192 = vld [vmem:[#allocation2 + $0x28] sm:$0xff]
        %4195 = vrot.lane.b32.xlu0 %v4191, 126
        %v4196 = vpop.permute.xlu0 %4195
        %4197 = vrot.lane.b32.xlu0 %v4192, 126
        %v4198 = vpop.permute.xlu0 %4197
        %4201 = vst.msk [vmem:[#allocation3 + $0xa0] sm:$0xff] %vm4176, %v4196
        %4202 = vst.msk [vmem:[#allocation3 + $0xc8] sm:$0xff] %vm4176, %v4198
        %v4203 = vld [vmem:[%s21] sm:$0xff]
        %v4204 = vld [vmem:[%s21 + $0x8] sm:$0xff]
        %v4205 = vld [vmem:[#allocation3] sm:$0xff]
        %v4206 = vld [vmem:[#allocation3 + $0x28] sm:$0xff]
        %v4207 = vld [vmem:[#allocation3 + $0x50] sm:$0xff]
        %v4208 = vld [vmem:[#allocation3 + $0x78] sm:$0xff]
        %v4209 = vld [vmem:[#allocation3 + $0xa0] sm:$0xff]
        %v4210 = vld [vmem:[#allocation3 + $0xc8] sm:$0xff]
        %v4211 = vld [vmem:[%s49] sm:$0xff]
        %v4212 = vld [vmem:[%s49 + $0x8] sm:$0xff]
        %4214 = vset.pattern.permute.xlu0 0
        %4215 = vperm.xlu0 %4214, %v4211
        %v4216 = vpop.permute.xlu0 %4215
        %4219 = vset.pattern.permute.xlu0 0
        %4220 = vperm.xlu0 %4219, %v4212
        %v4221 = vpop.permute.xlu0 %4220
        %v4224 = vsel %vm3728, %v4203, 0
        %v4227 = vsel %vm3728, %v4204, 0
        %4229 = vmatprep.subr.mxu0 0.0
        %4230 = vmatpush1.msra.mxu0 %v4205
        %4231 = vmatprep.subr.mxu0 0.0
        %4232 = vmatpush1.msra.mxu0 %v4206
        %4233 = vmatprep.subr.mxu0 0.0
        %4234 = vmatpush1.msra.mxu0 %v4207
        %4235 = vmatprep.subr.mxu0 0.0
        %4236 = vmatpush1.msra.mxu0 %v4208
        %4237 = vmatprep.subr.mxu0 0.0
        %4238 = vmatpush1.msra.mxu0 %v4209
        %4239 = vmatprep.subr.mxu0 0.0
        %4240 = vmatpush1.msra.mxu0 %v4210
        %4241 = vmatprep.subr.mxu0 0.0
        %4242 = vmatpush1.msra.mxu0 0.0
        %4243 = vmatprep.subr.mxu0 0.0
        %4244 = vmatpush1.msra.mxu0 0.0
        %4245 = vmatprep.subr.mxu0 0.0
        %4246 = vmatpush1.msra.mxu0 0.0
        %4247 = vmatprep.subr.mxu0 0.0
        %4248 = vmatpush1.msra.mxu0 0.0
        %4249 = vmatprep.subr.mxu0 0.0
        %4250 = vmatpush1.msra.mxu0 0.0
        %4251 = vmatprep.subr.mxu0 0.0
        %4252 = vmatpush1.msra.mxu0 0.0
        %4253 = vmatprep.subr.mxu0 0.0
        %4254 = vmatpush1.msra.mxu0 0.0
        %4255 = vmatprep.subr.mxu0 0.0
        %4256 = vmatpush1.msra.mxu0 0.0
        %4257 = vmatprep.subr.mxu0 0.0
        %4258 = vmatpush1.msra.mxu0 0.0
        %4259 = vmatprep.subr.mxu0 0.0
        %4260 = vmatpush1.msra.mxu0 0.0
        %4261 = vmatprep.subr.mxu0 0.0
        %4262 = vmatpush1.msra.mxu0 0.0
        %4263 = vmatprep.subr.mxu0 0.0
        %4264 = vmatpush1.msra.mxu0 0.0
        %4265 = vmatprep.subr.mxu0 0.0
        %4266 = vmatpush1.msra.mxu0 0.0
        %4267 = vmatprep.subr.mxu0 0.0
        %4268 = vmatpush1.msra.mxu0 0.0
        %4269 = vmatprep.subr.mxu0 0.0
        %4270 = vmatpush1.msra.mxu0 0.0
        %4271 = vmatprep.subr.mxu0 0.0
        %4272 = vmatpush1.msra.mxu0 0.0
        %4273 = vmatprep.subr.mxu0 0.0
        %4274 = vmatpush1.msra.mxu0 0.0
        %4275 = vmatprep.subr.mxu0 0.0
        %4276 = vmatpush1.msra.mxu0 0.0
        %4277 = vmatprep.subr.mxu0 0.0
        %4278 = vmatpush1.msra.mxu0 0.0
        %4279 = vmatprep.subr.mxu0 0.0
        %4280 = vmatpush1.msra.mxu0 0.0
        %4281 = vmatprep.subr.mxu0 0.0
        %4282 = vmatpush1.msra.mxu0 0.0
        %4283 = vmatprep.subr.mxu0 0.0
        %4284 = vmatpush1.msra.mxu0 0.0
        %4285 = vmatprep.subr.mxu0 0.0
        %4286 = vmatpush1.msra.mxu0 0.0
        %4287 = vmatprep.subr.mxu0 0.0
        %4288 = vmatpush1.msra.mxu0 0.0
        %4289 = vmatprep.subr.mxu0 0.0
        %4290 = vmatpush1.msra.mxu0 0.0
        %4291 = vmatprep.subr.mxu0 0.0
        %4292 = vmatpush1.msra.mxu0 0.0
        %4293 = vmatprep.mubr.f32.mxu0 0.0
        %4294 = vmatmul.mubr.f32.gmra.mrb[0].mxu0 %v4224
        %v4295 = vpop.f32.mrb[0].mxu0
        %v4296 = vadd.f32 %v4216, %v4295
        %v4297 = vpop.f32.mrb[0].mxu0
        %4298 = vmatprep.mubr.f32.mxu0 0.0
        %4299 = vmatmul.mubr.f32.gmra.mrb[0].mxu0 %v4227
        %v4300 = vpop.f32.mrb[0].mxu0
        %v4301 = vadd.f32 %v4221, %v4300
        %v4302 = vpop.f32.mrb[0].mxu0
        %4303 = vdwg.mxu0
        %vm4304 = vcmp.ge.f32.partialorder %v4296, 0.0
        %vm4305 = vcmp.ge.f32.partialorder %v4301, 0.0
        %v4306 = vmul.f32 %v4296, 0.1
        %v4307 = vmul.f32 %v4301, 0.1
        %v4308 = vsel %vm4304, %v4296, %v4306
        %v4309 = vsel %vm4305, %v4301, %v4307
        %4310 = vst.msk [vmem:[#allocation2] sm:$0xff] %vm1074, 0.0
        %4311 = vst.msk [vmem:[#allocation2 + $0x28] sm:$0xff] %vm1074, 0.0
        %4312 = vst.msk [vmem:[#allocation2] sm:$0xff] %vm4160, 0.0
        %4313 = vst.msk [vmem:[#allocation2 + $0x28] sm:$0xff] %vm4160, 0.0
        %4316 = vrot.lane.b32.xlu0 %v4308, 1
        %v4317 = vpop.permute.xlu0 %4316
        %4318 = vrot.lane.b32.xlu0 %v4309, 1
        %v4319 = vpop.permute.xlu0 %4318
        %4322 = vst.msk [vmem:[#allocation2] sm:$0xff] %vm4171, %v4317
        %4323 = vst.msk [vmem:[#allocation2 + $0x28] sm:$0xff] %vm4171, %v4319
        %v4324 = vld [vmem:[#allocation2] sm:$0xff]
        %v4325 = vld [vmem:[#allocation2 + $0x28] sm:$0xff]
        %4326 = vst.msk [vmem:[#allocation3] sm:$0xff] %vm4176, %v4324
        %4327 = vst.msk [vmem:[#allocation3 + $0x28] sm:$0xff] %vm4176, %v4325
        %v4328 = vld [vmem:[#allocation2] sm:$0xff]
        %v4329 = vld [vmem:[#allocation2 + $0x28] sm:$0xff]
        %4332 = vrot.lane.b32.xlu0 %v4328, 127
        %v4333 = vpop.permute.xlu0 %4332
        %4334 = vrot.lane.b32.xlu0 %v4329, 127
        %v4335 = vpop.permute.xlu0 %4334
        %4338 = vst.msk [vmem:[#allocation3 + $0x50] sm:$0xff] %vm4176, %v4333
        %4339 = vst.msk [vmem:[#allocation3 + $0x78] sm:$0xff] %vm4176, %v4335
        %v4340 = vld [vmem:[#allocation2] sm:$0xff]
        %v4341 = vld [vmem:[#allocation2 + $0x28] sm:$0xff]
        %4344 = vrot.lane.b32.xlu0 %v4340, 126
        %v4345 = vpop.permute.xlu0 %4344
        %4346 = vrot.lane.b32.xlu0 %v4341, 126
        %v4347 = vpop.permute.xlu0 %4346
        %4350 = vst.msk [vmem:[#allocation3 + $0xa0] sm:$0xff] %vm4176, %v4345
        %4351 = vst.msk [vmem:[#allocation3 + $0xc8] sm:$0xff] %vm4176, %v4347
        %v4352 = vld [vmem:[%s23] sm:$0xff]
        %v4353 = vld [vmem:[%s23 + $0x8] sm:$0xff]
        %v4354 = vld [vmem:[#allocation3] sm:$0xff]
        %v4355 = vld [vmem:[#allocation3 + $0x28] sm:$0xff]
        %v4356 = vld [vmem:[#allocation3 + $0x50] sm:$0xff]
        %v4357 = vld [vmem:[#allocation3 + $0x78] sm:$0xff]
        %v4358 = vld [vmem:[#allocation3 + $0xa0] sm:$0xff]
        %v4359 = vld [vmem:[#allocation3 + $0xc8] sm:$0xff]
        %v4360 = vld [vmem:[%s51] sm:$0xff]
        %v4361 = vld [vmem:[%s51 + $0x8] sm:$0xff]
        %4363 = vset.pattern.permute.xlu0 0
        %4364 = vperm.xlu0 %4363, %v4360
        %v4365 = vpop.permute.xlu0 %4364
        %4368 = vset.pattern.permute.xlu0 0
        %4369 = vperm.xlu0 %4368, %v4361
        %v4370 = vpop.permute.xlu0 %4369
        %v4373 = vsel %vm3728, %v4352, 0
        %v4376 = vsel %vm3728, %v4353, 0
        %4378 = vmatprep.subr.mxu0 0.0
        %4379 = vmatpush1.msra.mxu0 %v4354
        %4380 = vmatprep.subr.mxu0 0.0
        %4381 = vmatpush1.msra.mxu0 %v4355
        %4382 = vmatprep.subr.mxu0 0.0
        %4383 = vmatpush1.msra.mxu0 %v4356
        %4384 = vmatprep.subr.mxu0 0.0
        %4385 = vmatpush1.msra.mxu0 %v4357
        %4386 = vmatprep.subr.mxu0 0.0
        %4387 = vmatpush1.msra.mxu0 %v4358
        %4388 = vmatprep.subr.mxu0 0.0
        %4389 = vmatpush1.msra.mxu0 %v4359
        %4390 = vmatprep.subr.mxu0 0.0
        %4391 = vmatpush1.msra.mxu0 0.0
        %4392 = vmatprep.subr.mxu0 0.0
        %4393 = vmatpush1.msra.mxu0 0.0
        %4394 = vmatprep.subr.mxu0 0.0
        %4395 = vmatpush1.msra.mxu0 0.0
        %4396 = vmatprep.subr.mxu0 0.0
        %4397 = vmatpush1.msra.mxu0 0.0
        %4398 = vmatprep.subr.mxu0 0.0
        %4399 = vmatpush1.msra.mxu0 0.0
        %4400 = vmatprep.subr.mxu0 0.0
        %4401 = vmatpush1.msra.mxu0 0.0
        %4402 = vmatprep.subr.mxu0 0.0
        %4403 = vmatpush1.msra.mxu0 0.0
        %4404 = vmatprep.subr.mxu0 0.0
        %4405 = vmatpush1.msra.mxu0 0.0
        %4406 = vmatprep.subr.mxu0 0.0
        %4407 = vmatpush1.msra.mxu0 0.0
        %4408 = vmatprep.subr.mxu0 0.0
        %4409 = vmatpush1.msra.mxu0 0.0
        %4410 = vmatprep.subr.mxu0 0.0
        %4411 = vmatpush1.msra.mxu0 0.0
        %4412 = vmatprep.subr.mxu0 0.0
        %4413 = vmatpush1.msra.mxu0 0.0
        %4414 = vmatprep.subr.mxu0 0.0
        %4415 = vmatpush1.msra.mxu0 0.0
        %4416 = vmatprep.subr.mxu0 0.0
        %4417 = vmatpush1.msra.mxu0 0.0
        %4418 = vmatprep.subr.mxu0 0.0
        %4419 = vmatpush1.msra.mxu0 0.0
        %4420 = vmatprep.subr.mxu0 0.0
        %4421 = vmatpush1.msra.mxu0 0.0
        %4422 = vmatprep.subr.mxu0 0.0
        %4423 = vmatpush1.msra.mxu0 0.0
        %4424 = vmatprep.subr.mxu0 0.0
        %4425 = vmatpush1.msra.mxu0 0.0
        %4426 = vmatprep.subr.mxu0 0.0
        %4427 = vmatpush1.msra.mxu0 0.0
        %4428 = vmatprep.subr.mxu0 0.0
        %4429 = vmatpush1.msra.mxu0 0.0
        %4430 = vmatprep.subr.mxu0 0.0
        %4431 = vmatpush1.msra.mxu0 0.0
        %4432 = vmatprep.subr.mxu0 0.0
        %4433 = vmatpush1.msra.mxu0 0.0
        %4434 = vmatprep.subr.mxu0 0.0
        %4435 = vmatpush1.msra.mxu0 0.0
        %4436 = vmatprep.subr.mxu0 0.0
        %4437 = vmatpush1.msra.mxu0 0.0
        %4438 = vmatprep.subr.mxu0 0.0
        %4439 = vmatpush1.msra.mxu0 0.0
        %4440 = vmatprep.subr.mxu0 0.0
        %4441 = vmatpush1.msra.mxu0 0.0
        %4442 = vmatprep.mubr.f32.mxu0 0.0
        %4443 = vmatmul.mubr.f32.gmra.mrb[0].mxu0 %v4373
        %v4444 = vpop.f32.mrb[0].mxu0
        %v4445 = vadd.f32 %v4365, %v4444
        %v4446 = vpop.f32.mrb[0].mxu0
        %4447 = vmatprep.mubr.f32.mxu0 0.0
        %4448 = vmatmul.mubr.f32.gmra.mrb[0].mxu0 %v4376
        %v4449 = vpop.f32.mrb[0].mxu0
        %v4450 = vadd.f32 %v4370, %v4449
        %v4451 = vpop.f32.mrb[0].mxu0
        %4452 = vdwg.mxu0
        %4453 = vst.msk [vmem:[%s1064] sm:$0xff] %vm4176, %v4445
        %4454 = vst.msk [vmem:[%s1064 + $0x8] sm:$0xff] %vm4176, %v4450
        %vm4455 = vcmp.ge.f32.partialorder %v4445, 0.0
        %vm4456 = vcmp.ge.f32.partialorder %v4450, 0.0
        %v4457 = vmul.f32 %v4445, 0.1
        %v4458 = vmul.f32 %v4450, 0.1
        %v4459 = vsel %vm4455, %v4445, %v4457
        %v4460 = vsel %vm4456, %v4450, %v4458
        %vm4461 = vcmask 39936
        %4462 = vst.msk [vmem:[#allocation2] sm:$0xff] %vm4461, 0.0
        %4463 = vst.msk [vmem:[#allocation2 + $0x28] sm:$0xff] %vm4461, 0.0
        %vm4464 = vcmask 162936
        %4465 = vst.msk [vmem:[#allocation2] sm:$0xff] %vm4464, 0.0
        %4466 = vst.msk [vmem:[#allocation2 + $0x28] sm:$0xff] %vm4464, 0.0
        %4469 = vrot.lane.b32.xlu0 %v4459, 5
        %v4470 = vpop.permute.xlu0 %4469
        %4471 = vrot.lane.b32.xlu0 %v4460, 5
        %v4472 = vpop.permute.xlu0 %4471
        %vm4475 = vcmask 121896
        %4476 = vst.msk [vmem:[#allocation2] sm:$0xff] %vm4475, %v4470
        %4477 = vst.msk [vmem:[#allocation2 + $0x28] sm:$0xff] %vm4475, %v4472
        %v4478 = vld [vmem:[#allocation2] sm:$0xff]
        %v4479 = vld [vmem:[#allocation2 + $0x28] sm:$0xff]
        %4480 = vst.msk [vmem:[#allocation3] sm:$0xff] %vm4176, %v4478
        %4481 = vst.msk [vmem:[#allocation3 + $0x28] sm:$0xff] %vm4176, %v4479
        %v4482 = vld [vmem:[#allocation2] sm:$0xff]
        %v4483 = vld [vmem:[#allocation2 + $0x28] sm:$0xff]
        %4486 = vrot.lane.b32.xlu0 %v4482, 127
        %v4487 = vpop.permute.xlu0 %4486
        %4488 = vrot.lane.b32.xlu0 %v4483, 127
        %v4489 = vpop.permute.xlu0 %4488
        %4492 = vst.msk [vmem:[#allocation3 + $0x50] sm:$0xff] %vm4176, %v4487
        %4493 = vst.msk [vmem:[#allocation3 + $0x78] sm:$0xff] %vm4176, %v4489
        %v4494 = vld [vmem:[#allocation2] sm:$0xff]
        %v4495 = vld [vmem:[#allocation2 + $0x28] sm:$0xff]
        %4498 = vrot.lane.b32.xlu0 %v4494, 126
        %v4499 = vpop.permute.xlu0 %4498
        %4500 = vrot.lane.b32.xlu0 %v4495, 126
        %v4501 = vpop.permute.xlu0 %4500
        %4504 = vst.msk [vmem:[#allocation3 + $0xa0] sm:$0xff] %vm4176, %v4499
        %4505 = vst.msk [vmem:[#allocation3 + $0xc8] sm:$0xff] %vm4176, %v4501
        %v4506 = vld [vmem:[#allocation2] sm:$0xff]
        %v4507 = vld [vmem:[#allocation2 + $0x28] sm:$0xff]
        %4510 = vrot.lane.b32.xlu0 %v4506, 125
        %v4511 = vpop.permute.xlu0 %4510
        %4512 = vrot.lane.b32.xlu0 %v4507, 125
        %v4513 = vpop.permute.xlu0 %4512
        %4516 = vst.msk [vmem:[#allocation3 + $0xf0] sm:$0xff] %vm4176, %v4511
        %4517 = vst.msk [vmem:[#allocation3 + $0x118] sm:$0xff] %vm4176, %v4513
        %v4518 = vld [vmem:[#allocation2] sm:$0xff]
        %v4519 = vld [vmem:[#allocation2 + $0x28] sm:$0xff]
        %4522 = vrot.lane.b32.xlu0 %v4518, 124
        %v4523 = vpop.permute.xlu0 %4522
        %4524 = vrot.lane.b32.xlu0 %v4519, 124
        %v4525 = vpop.permute.xlu0 %4524
        %4528 = vst.msk [vmem:[#allocation3 + $0x140] sm:$0xff] %vm4176, %v4523
        %4529 = vst.msk [vmem:[#allocation3 + $0x168] sm:$0xff] %vm4176, %v4525
        %v4530 = vld [vmem:[#allocation2] sm:$0xff]
        %v4531 = vld [vmem:[#allocation2 + $0x28] sm:$0xff]
        %4534 = vrot.lane.b32.xlu0 %v4530, 123
        %v4535 = vpop.permute.xlu0 %4534
        %4536 = vrot.lane.b32.xlu0 %v4531, 123
        %v4537 = vpop.permute.xlu0 %4536
        %4540 = vst.msk [vmem:[#allocation3 + $0x190] sm:$0xff] %vm4176, %v4535
        %4541 = vst.msk [vmem:[#allocation3 + $0x1b8] sm:$0xff] %vm4176, %v4537
        %v4542 = vld [vmem:[#allocation2] sm:$0xff]
        %v4543 = vld [vmem:[#allocation2 + $0x28] sm:$0xff]
        %4546 = vrot.lane.b32.xlu0 %v4542, 122
        %v4547 = vpop.permute.xlu0 %4546
        %4548 = vrot.lane.b32.xlu0 %v4543, 122
        %v4549 = vpop.permute.xlu0 %4548
        %4552 = vst.msk [vmem:[#allocation3 + $0x1e0] sm:$0xff] %vm4176, %v4547
        %4553 = vst.msk [vmem:[#allocation3 + $0x208] sm:$0xff] %vm4176, %v4549
        %v4554 = vld [vmem:[#allocation2] sm:$0xff]
        %v4555 = vld [vmem:[#allocation2 + $0x28] sm:$0xff]
        %4558 = vrot.lane.b32.xlu0 %v4554, 121
        %v4559 = vpop.permute.xlu0 %4558
        %4560 = vrot.lane.b32.xlu0 %v4555, 121
        %v4561 = vpop.permute.xlu0 %4560
        %4564 = vst.msk [vmem:[#allocation3 + $0x230] sm:$0xff] %vm4176, %v4559
        %4565 = vst.msk [vmem:[#allocation3 + $0x258] sm:$0xff] %vm4176, %v4561
        %v4566 = vld [vmem:[#allocation2] sm:$0xff]
        %v4567 = vld [vmem:[#allocation2 + $0x28] sm:$0xff]
        %4570 = vrot.lane.b32.xlu0 %v4566, 120
        %v4571 = vpop.permute.xlu0 %4570
        %4572 = vrot.lane.b32.xlu0 %v4567, 120
        %v4573 = vpop.permute.xlu0 %4572
        %4576 = vst.msk [vmem:[#allocation3 + $0x280] sm:$0xff] %vm4176, %v4571
        %4577 = vst.msk [vmem:[#allocation3 + $0x2a8] sm:$0xff] %vm4176, %v4573
        %v4578 = vld [vmem:[#allocation2] sm:$0xff]
        %v4579 = vld [vmem:[#allocation2 + $0x28] sm:$0xff]
        %4582 = vrot.lane.b32.xlu0 %v4578, 119
        %v4583 = vpop.permute.xlu0 %4582
        %4584 = vrot.lane.b32.xlu0 %v4579, 119
        %v4585 = vpop.permute.xlu0 %4584
        %4588 = vst.msk [vmem:[#allocation3 + $0x2d0] sm:$0xff] %vm4176, %v4583
        %4589 = vst.msk [vmem:[#allocation3 + $0x2f8] sm:$0xff] %vm4176, %v4585
        %v4590 = vld [vmem:[#allocation2] sm:$0xff]
        %v4591 = vld [vmem:[#allocation2 + $0x28] sm:$0xff]
        %4594 = vrot.lane.b32.xlu0 %v4590, 118
        %v4595 = vpop.permute.xlu0 %4594
        %4596 = vrot.lane.b32.xlu0 %v4591, 118
        %v4597 = vpop.permute.xlu0 %4596
        %4600 = vst.msk [vmem:[#allocation3 + $0x320] sm:$0xff] %vm4176, %v4595
        %4601 = vst.msk [vmem:[#allocation3 + $0x348] sm:$0xff] %vm4176, %v4597
        %v4602 = vld [vmem:[%s25] sm:$0xff]
        %v4603 = vld [vmem:[%s25 + $0x8] sm:$0xff]
        %v4604 = vld [vmem:[%s25 + $0x10] sm:$0xff]
        %v4605 = vld [vmem:[%s25 + $0x18] sm:$0xff]
        %v4606 = vld [vmem:[#allocation3] sm:$0xff]
        %v4607 = vld [vmem:[#allocation3 + $0x28] sm:$0xff]
        %v4608 = vld [vmem:[#allocation3 + $0x50] sm:$0xff]
        %v4609 = vld [vmem:[#allocation3 + $0x78] sm:$0xff]
        %v4610 = vld [vmem:[#allocation3 + $0xa0] sm:$0xff]
        %v4611 = vld [vmem:[#allocation3 + $0xc8] sm:$0xff]
        %v4612 = vld [vmem:[#allocation3 + $0xf0] sm:$0xff]
        %v4613 = vld [vmem:[#allocation3 + $0x118] sm:$0xff]
        %v4614 = vld [vmem:[#allocation3 + $0x140] sm:$0xff]
        %v4615 = vld [vmem:[#allocation3 + $0x168] sm:$0xff]
        %v4616 = vld [vmem:[#allocation3 + $0x190] sm:$0xff]
        %v4617 = vld [vmem:[#allocation3 + $0x1b8] sm:$0xff]
        %v4618 = vld [vmem:[#allocation3 + $0x1e0] sm:$0xff]
        %v4619 = vld [vmem:[#allocation3 + $0x208] sm:$0xff]
        %v4620 = vld [vmem:[#allocation3 + $0x230] sm:$0xff]
        %v4621 = vld [vmem:[#allocation3 + $0x258] sm:$0xff]
        %v4622 = vld [vmem:[#allocation3 + $0x280] sm:$0xff]
        %v4623 = vld [vmem:[#allocation3 + $0x2a8] sm:$0xff]
        %v4624 = vld [vmem:[#allocation3 + $0x2d0] sm:$0xff]
        %v4625 = vld [vmem:[#allocation3 + $0x2f8] sm:$0xff]
        %v4626 = vld [vmem:[#allocation3 + $0x320] sm:$0xff]
        %v4627 = vld [vmem:[#allocation3 + $0x348] sm:$0xff]
        %v4629 = vsel %vm3728, %v4603, 0
        %v4632 = vsel %vm3728, %v4605, 0
        %4634 = vmatprep.subr.mxu0 0.0
        %4635 = vmatpush1.msra.mxu0 %v4606
        %4636 = vmatprep.subr.mxu0 0.0
        %4637 = vmatpush1.msra.mxu0 %v4607
        %4638 = vmatprep.subr.mxu0 0.0
        %4639 = vmatpush1.msra.mxu0 %v4608
        %4640 = vmatprep.subr.mxu0 0.0
        %4641 = vmatpush1.msra.mxu0 %v4609
        %4642 = vmatprep.subr.mxu0 0.0
        %4643 = vmatpush1.msra.mxu0 %v4610
        %4644 = vmatprep.subr.mxu0 0.0
        %4645 = vmatpush1.msra.mxu0 %v4611
        %4646 = vmatprep.subr.mxu0 0.0
        %4647 = vmatpush1.msra.mxu0 %v4612
        %4648 = vmatprep.subr.mxu0 0.0
        %4649 = vmatpush1.msra.mxu0 %v4613
        %4650 = vmatprep.subr.mxu0 0.0
        %4651 = vmatpush1.msra.mxu0 %v4614
        %4652 = vmatprep.subr.mxu0 0.0
        %4653 = vmatpush1.msra.mxu0 %v4615
        %4654 = vmatprep.subr.mxu0 0.0
        %4655 = vmatpush1.msra.mxu0 %v4616
        %4656 = vmatprep.subr.mxu0 0.0
        %4657 = vmatpush1.msra.mxu0 %v4617
        %4658 = vmatprep.subr.mxu0 0.0
        %4659 = vmatpush1.msra.mxu0 %v4618
        %4660 = vmatprep.subr.mxu0 0.0
        %4661 = vmatpush1.msra.mxu0 %v4619
        %4662 = vmatprep.subr.mxu0 0.0
        %4663 = vmatpush1.msra.mxu0 %v4620
        %4664 = vmatprep.subr.mxu0 0.0
        %4665 = vmatpush1.msra.mxu0 %v4621
        %4666 = vmatprep.subr.mxu0 0.0
        %4667 = vmatpush1.msra.mxu0 %v4622
        %4668 = vmatprep.subr.mxu0 0.0
        %4669 = vmatpush1.msra.mxu0 %v4623
        %4670 = vmatprep.subr.mxu0 0.0
        %4671 = vmatpush1.msra.mxu0 %v4624
        %4672 = vmatprep.subr.mxu0 0.0
        %4673 = vmatpush1.msra.mxu0 %v4625
        %4674 = vmatprep.subr.mxu0 0.0
        %4675 = vmatpush1.msra.mxu0 %v4626
        %4676 = vmatprep.subr.mxu0 0.0
        %4677 = vmatpush1.msra.mxu0 %v4627
        %4678 = vmatprep.subr.mxu0 0.0
        %4679 = vmatpush1.msra.mxu0 0.0
        %4680 = vmatprep.subr.mxu0 0.0
        %4681 = vmatpush1.msra.mxu0 0.0
        %4682 = vmatprep.subr.mxu0 0.0
        %4683 = vmatpush1.msra.mxu0 0.0
        %4684 = vmatprep.subr.mxu0 0.0
        %4685 = vmatpush1.msra.mxu0 0.0
        %4686 = vmatprep.subr.mxu0 0.0
        %4687 = vmatpush1.msra.mxu0 0.0
        %4688 = vmatprep.subr.mxu0 0.0
        %4689 = vmatpush1.msra.mxu0 0.0
        %4690 = vmatprep.subr.mxu0 0.0
        %4691 = vmatpush1.msra.mxu0 0.0
        %4692 = vmatprep.subr.mxu0 0.0
        %4693 = vmatpush1.msra.mxu0 0.0
        %4694 = vmatprep.subr.mxu0 0.0
        %4695 = vmatpush1.msra.mxu0 0.0
        %4696 = vmatprep.subr.mxu0 0.0
        %4697 = vmatpush1.msra.mxu0 0.0
        %4698 = vmatprep.mubr.f32.mxu0 %v4629
        %4699 = vmatmul.mubr.f32.gmra.mrb[0].mxu0 %v4602
        %v4700 = vpop.f32.mrb[0].mxu0
        %v4701 = vadd.f32 0.0, %v4700
        %v4702 = vpop.f32.mrb[0].mxu0
        %4703 = vmatprep.mubr.f32.mxu0 %v4632
        %4704 = vmatmul.mubr.f32.gmra.mrb[0].mxu0 %v4604
        %v4705 = vpop.f32.mrb[0].mxu0
        %v4706 = vadd.f32 0.0, %v4705
        %v4707 = vpop.f32.mrb[0].mxu0
        %4708 = vdwg.mxu0
        %v4709 = vld [vmem:[%s53] sm:$0xff]
        %v4710 = vld [vmem:[%s53 + $0x8] sm:$0xff]
        %4712 = vset.pattern.permute.xlu0 0
        %4713 = vperm.xlu0 %4712, %v4709
        %v4714 = vpop.permute.xlu0 %4713
        %4717 = vset.pattern.permute.xlu0 0
        %4718 = vperm.xlu0 %4717, %v4710
        %v4719 = vpop.permute.xlu0 %4718
        %v4722 = vsel %vm4176, %v4701, 0
        %v4725 = vsel %vm4176, %v4706, 0
        %v4728 = vsel %vm4079, %v4055, 0
        %4730 = vmatprep.subr.mxu0 0.0
        %4731 = vmatpush1.msra.mxu0 %v4054
        %4732 = vmatprep.subr.mxu0 0.0
        %4733 = vmatpush1.msra.mxu0 %v4728
        %4734 = vmatprep.subr.mxu0 0.0
        %4735 = vmatpush1.msra.mxu0 0.0
        %4736 = vmatprep.subr.mxu0 0.0
        %4737 = vmatpush1.msra.mxu0 0.0
        %4738 = vmatprep.subr.mxu0 0.0
        %4739 = vmatpush1.msra.mxu0 0.0
        %4740 = vmatprep.subr.mxu0 0.0
        %4741 = vmatpush1.msra.mxu0 0.0
        %4742 = vmatprep.subr.mxu0 0.0
        %4743 = vmatpush1.msra.mxu0 0.0
        %4744 = vmatprep.subr.mxu0 0.0
        %4745 = vmatpush1.msra.mxu0 0.0
        %4746 = vmatprep.subr.mxu0 0.0
        %4747 = vmatpush1.msra.mxu0 0.0
        %4748 = vmatprep.subr.mxu0 0.0
        %4749 = vmatpush1.msra.mxu0 0.0
        %4750 = vmatprep.subr.mxu0 0.0
        %4751 = vmatpush1.msra.mxu0 0.0
        %4752 = vmatprep.subr.mxu0 0.0
        %4753 = vmatpush1.msra.mxu0 0.0
        %4754 = vmatprep.subr.mxu0 0.0
        %4755 = vmatpush1.msra.mxu0 0.0
        %4756 = vmatprep.subr.mxu0 0.0
        %4757 = vmatpush1.msra.mxu0 0.0
        %4758 = vmatprep.subr.mxu0 0.0
        %4759 = vmatpush1.msra.mxu0 0.0
        %4760 = vmatprep.subr.mxu0 0.0
        %4761 = vmatpush1.msra.mxu0 0.0
        %4762 = vmatprep.subr.mxu0 0.0
        %4763 = vmatpush1.msra.mxu0 0.0
        %4764 = vmatprep.subr.mxu0 0.0
        %4765 = vmatpush1.msra.mxu0 0.0
        %4766 = vmatprep.subr.mxu0 0.0
        %4767 = vmatpush1.msra.mxu0 0.0
        %4768 = vmatprep.subr.mxu0 0.0
        %4769 = vmatpush1.msra.mxu0 0.0
        %4770 = vmatprep.subr.mxu0 0.0
        %4771 = vmatpush1.msra.mxu0 0.0
        %4772 = vmatprep.subr.mxu0 0.0
        %4773 = vmatpush1.msra.mxu0 0.0
        %4774 = vmatprep.subr.mxu0 0.0
        %4775 = vmatpush1.msra.mxu0 0.0
        %4776 = vmatprep.subr.mxu0 0.0
        %4777 = vmatpush1.msra.mxu0 0.0
        %4778 = vmatprep.subr.mxu0 0.0
        %4779 = vmatpush1.msra.mxu0 0.0
        %4780 = vmatprep.subr.mxu0 0.0
        %4781 = vmatpush1.msra.mxu0 0.0
        %4782 = vmatprep.subr.mxu0 0.0
        %4783 = vmatpush1.msra.mxu0 0.0
        %4784 = vmatprep.subr.mxu0 0.0
        %4785 = vmatpush1.msra.mxu0 0.0
        %4786 = vmatprep.subr.mxu0 0.0
        %4787 = vmatpush1.msra.mxu0 0.0
        %4788 = vmatprep.subr.mxu0 0.0
        %4789 = vmatpush1.msra.mxu0 0.0
        %4790 = vmatprep.subr.mxu0 0.0
        %4791 = vmatpush1.msra.mxu0 0.0
        %4792 = vmatprep.subr.mxu0 0.0
        %4793 = vmatpush1.msra.mxu0 0.0
        %4794 = vmatprep.mubr.f32.mxu0 0.0
        %4795 = vmatmul.mubr.f32.gmra.mrb[0].mxu0 %v4722
        %v4796 = vpop.f32.mrb[0].mxu0
        %v4797 = vadd.f32 %v4714, %v4796
        %v4798 = vpop.f32.mrb[0].mxu0
        %4799 = vmatprep.mubr.f32.mxu0 0.0
        %4800 = vmatmul.mubr.f32.gmra.mrb[0].mxu0 %v4725
        %v4801 = vpop.f32.mrb[0].mxu0
        %v4802 = vadd.f32 %v4719, %v4801
        %v4803 = vpop.f32.mrb[0].mxu0
        %4804 = vdwg.mxu0
        %4805 = vst.msk [vmem:[#allocation2] sm:$0xff] %vm1074, 0.0
        %4806 = vst.msk [vmem:[#allocation2 + $0x28] sm:$0xff] %vm1074, 0.0
        %vm4807 = vcmask 31768
        %4808 = vst.msk [vmem:[#allocation2] sm:$0xff] %vm4807, 0.0
        %4809 = vst.msk [vmem:[#allocation2 + $0x28] sm:$0xff] %vm4807, 0.0
        %4812 = vrot.lane.b32.xlu0 %v4797, 1
        %v4813 = vpop.permute.xlu0 %4812
        %4814 = vrot.lane.b32.xlu0 %v4802, 1
        %v4815 = vpop.permute.xlu0 %4814
        %vm4818 = vcmask 23560
        %4819 = vst.msk [vmem:[#allocation2] sm:$0xff] %vm4818, %v4813
        %4820 = vst.msk [vmem:[#allocation2 + $0x28] sm:$0xff] %vm4818, %v4815
        %v4821 = vld [vmem:[#allocation2] sm:$0xff]
        %v4822 = vld [vmem:[#allocation2 + $0x28] sm:$0xff]
        %4823 = vst.msk [vmem:[#allocation3] sm:$0xff] %vm1737, %v4821
        %4824 = vst.msk [vmem:[#allocation3 + $0x28] sm:$0xff] %vm1737, %v4822
        %v4825 = vld [vmem:[#allocation2] sm:$0xff]
        %v4826 = vld [vmem:[#allocation2 + $0x28] sm:$0xff]
        %4829 = vrot.lane.b32.xlu0 %v4825, 127
        %v4830 = vpop.permute.xlu0 %4829
        %4831 = vrot.lane.b32.xlu0 %v4826, 127
        %v4832 = vpop.permute.xlu0 %4831
        %4835 = vst.msk [vmem:[#allocation3 + $0x50] sm:$0xff] %vm1737, %v4830
        %4836 = vst.msk [vmem:[#allocation3 + $0x78] sm:$0xff] %vm1737, %v4832
        %v4837 = vld [vmem:[#allocation2] sm:$0xff]
        %v4838 = vld [vmem:[#allocation2 + $0x28] sm:$0xff]
        %4841 = vrot.lane.b32.xlu0 %v4837, 126
        %v4842 = vpop.permute.xlu0 %4841
        %4843 = vrot.lane.b32.xlu0 %v4838, 126
        %v4844 = vpop.permute.xlu0 %4843
        %4847 = vst.msk [vmem:[#allocation3 + $0xa0] sm:$0xff] %vm1737, %v4842
        %4848 = vst.msk [vmem:[#allocation3 + $0xc8] sm:$0xff] %vm1737, %v4844
        %v4849 = vld [vmem:[%s27] sm:$0xff]
        %v4850 = vld [vmem:[%s27 + $0x8] sm:$0xff]
        %v4851 = vld [vmem:[%s27 + $0x10] sm:$0xff]
        %v4852 = vld [vmem:[%s27 + $0x18] sm:$0xff]
        %v4853 = vld [vmem:[#allocation3] sm:$0xff]
        %v4854 = vld [vmem:[#allocation3 + $0x28] sm:$0xff]
        %v4855 = vld [vmem:[#allocation3 + $0x50] sm:$0xff]
        %v4856 = vld [vmem:[#allocation3 + $0x78] sm:$0xff]
        %v4857 = vld [vmem:[#allocation3 + $0xa0] sm:$0xff]
        %v4858 = vld [vmem:[#allocation3 + $0xc8] sm:$0xff]
        %v4859 = vld [vmem:[%s55] sm:$0xff]
        %v4860 = vld [vmem:[%s55 + $0x8] sm:$0xff]
        %v4861 = vld [vmem:[%s55 + $0x10] sm:$0xff]
        %v4862 = vld [vmem:[%s55 + $0x18] sm:$0xff]
        %4864 = vset.pattern.permute.xlu0 0
        %4865 = vperm.xlu0 %4864, %v4859
        %v4866 = vpop.permute.xlu0 %4865
        %4869 = vset.pattern.permute.xlu0 0
        %4870 = vperm.xlu0 %4869, %v4860
        %v4871 = vpop.permute.xlu0 %4870
        %4874 = vset.pattern.permute.xlu0 0
        %4875 = vperm.xlu0 %4874, %v4861
        %v4876 = vpop.permute.xlu0 %4875
        %4879 = vset.pattern.permute.xlu0 0
        %4880 = vperm.xlu0 %4879, %v4862
        %v4881 = vpop.permute.xlu0 %4880
        %v4884 = vsel %vm3728, %v4849, 0
        %v4887 = vsel %vm3728, %v4850, 0
        %v4890 = vsel %vm3728, %v4851, 0
        %v4893 = vsel %vm3728, %v4852, 0
        %4895 = vmatprep.subr.mxu0 0.0
        %4896 = vmatpush1.msra.mxu0 %v4853
        %4897 = vmatprep.subr.mxu0 0.0
        %4898 = vmatpush1.msra.mxu0 %v4854
        %4899 = vmatprep.subr.mxu0 0.0
        %4900 = vmatpush1.msra.mxu0 %v4855
        %4901 = vmatprep.subr.mxu0 0.0
        %4902 = vmatpush1.msra.mxu0 %v4856
        %4903 = vmatprep.subr.mxu0 0.0
        %4904 = vmatpush1.msra.mxu0 %v4857
        %4905 = vmatprep.subr.mxu0 0.0
        %4906 = vmatpush1.msra.mxu0 %v4858
        %4907 = vmatprep.subr.mxu0 0.0
        %4908 = vmatpush1.msra.mxu0 0.0
        %4909 = vmatprep.subr.mxu0 0.0
        %4910 = vmatpush1.msra.mxu0 0.0
        %4911 = vmatprep.subr.mxu0 0.0
        %4912 = vmatpush1.msra.mxu0 0.0
        %4913 = vmatprep.subr.mxu0 0.0
        %4914 = vmatpush1.msra.mxu0 0.0
        %4915 = vmatprep.subr.mxu0 0.0
        %4916 = vmatpush1.msra.mxu0 0.0
        %4917 = vmatprep.subr.mxu0 0.0
        %4918 = vmatpush1.msra.mxu0 0.0
        %4919 = vmatprep.subr.mxu0 0.0
        %4920 = vmatpush1.msra.mxu0 0.0
        %4921 = vmatprep.subr.mxu0 0.0
        %4922 = vmatpush1.msra.mxu0 0.0
        %4923 = vmatprep.subr.mxu0 0.0
        %4924 = vmatpush1.msra.mxu0 0.0
        %4925 = vmatprep.subr.mxu0 0.0
        %4926 = vmatpush1.msra.mxu0 0.0
        %4927 = vmatprep.subr.mxu0 0.0
        %4928 = vmatpush1.msra.mxu0 0.0
        %4929 = vmatprep.subr.mxu0 0.0
        %4930 = vmatpush1.msra.mxu0 0.0
        %4931 = vmatprep.subr.mxu0 0.0
        %4932 = vmatpush1.msra.mxu0 0.0
        %4933 = vmatprep.subr.mxu0 0.0
        %4934 = vmatpush1.msra.mxu0 0.0
        %4935 = vmatprep.subr.mxu0 0.0
        %4936 = vmatpush1.msra.mxu0 0.0
        %4937 = vmatprep.subr.mxu0 0.0
        %4938 = vmatpush1.msra.mxu0 0.0
        %4939 = vmatprep.subr.mxu0 0.0
        %4940 = vmatpush1.msra.mxu0 0.0
        %4941 = vmatprep.subr.mxu0 0.0
        %4942 = vmatpush1.msra.mxu0 0.0
        %4943 = vmatprep.subr.mxu0 0.0
        %4944 = vmatpush1.msra.mxu0 0.0
        %4945 = vmatprep.subr.mxu0 0.0
        %4946 = vmatpush1.msra.mxu0 0.0
        %4947 = vmatprep.subr.mxu0 0.0
        %4948 = vmatpush1.msra.mxu0 0.0
        %4949 = vmatprep.subr.mxu0 0.0
        %4950 = vmatpush1.msra.mxu0 0.0
        %4951 = vmatprep.subr.mxu0 0.0
        %4952 = vmatpush1.msra.mxu0 0.0
        %4953 = vmatprep.subr.mxu0 0.0
        %4954 = vmatpush1.msra.mxu0 0.0
        %4955 = vmatprep.subr.mxu0 0.0
        %4956 = vmatpush1.msra.mxu0 0.0
        %4957 = vmatprep.subr.mxu0 0.0
        %4958 = vmatpush1.msra.mxu0 0.0
        %4959 = vmatprep.mubr.f32.mxu0 0.0
        %4960 = vmatmul.mubr.f32.gmra.mrb[0].mxu0 %v4884
        %v4961 = vpop.f32.mrb[0].mxu0
        %v4962 = vadd.f32 %v4866, %v4961
        %v4963 = vpop.f32.mrb[0].mxu0
        %4964 = vmatprep.mubr.f32.mxu0 0.0
        %4965 = vmatmul.mubr.f32.gmra.mrb[0].mxu0 %v4887
        %v4966 = vpop.f32.mrb[0].mxu0
        %v4967 = vadd.f32 %v4871, %v4966
        %v4968 = vpop.f32.mrb[0].mxu0
        %4969 = vmatprep.mubr.f32.mxu0 0.0
        %4970 = vmatmul.mubr.f32.gmra.mrb[0].mxu0 %v4890
        %v4971 = vpop.f32.mrb[0].mxu0
        %v4972 = vadd.f32 %v4876, %v4971
        %v4973 = vpop.f32.mrb[0].mxu0
        %4974 = vmatprep.mubr.f32.mxu0 0.0
        %4975 = vmatmul.mubr.f32.gmra.mrb[0].mxu0 %v4893
        %v4976 = vpop.f32.mrb[0].mxu0
        %v4977 = vadd.f32 %v4881, %v4976
        %v4978 = vpop.f32.mrb[0].mxu0
        %4979 = vdwg.mxu0
        %vm4980 = vcmp.ge.f32.partialorder %v4962, 0.0
        %vm4981 = vcmp.ge.f32.partialorder %v4967, 0.0
        %vm4982 = vcmp.ge.f32.partialorder %v4972, 0.0
        %vm4983 = vcmp.ge.f32.partialorder %v4977, 0.0
        %v4984 = vmul.f32 %v4962, 0.1
        %v4985 = vmul.f32 %v4967, 0.1
        %v4986 = vmul.f32 %v4972, 0.1
        %v4987 = vmul.f32 %v4977, 0.1
        %v4988 = vsel %vm4980, %v4962, %v4984
        %v4989 = vsel %vm4981, %v4967, %v4985
        %v4990 = vsel %vm4982, %v4972, %v4986
        %v4991 = vsel %vm4983, %v4977, %v4987
        %4992 = vst.msk [vmem:[#allocation2] sm:$0xff] %vm1074, 0.0
        %4993 = vst.msk [vmem:[#allocation2 + $0x28] sm:$0xff] %vm1074, 0.0
        %4994 = vst.msk [vmem:[#allocation2 + $0x50] sm:$0xff] %vm1074, 0.0
        %4995 = vst.msk [vmem:[#allocation2 + $0x78] sm:$0xff] %vm1074, 0.0
        %4996 = vst.msk [vmem:[#allocation2] sm:$0xff] %vm4807, 0.0
        %4997 = vst.msk [vmem:[#allocation2 + $0x28] sm:$0xff] %vm4807, 0.0
        %4998 = vst.msk [vmem:[#allocation2 + $0x50] sm:$0xff] %vm4807, 0.0
        %4999 = vst.msk [vmem:[#allocation2 + $0x78] sm:$0xff] %vm4807, 0.0
        %5004 = vrot.lane.b32.xlu0 %v4988, 1
        %v5005 = vpop.permute.xlu0 %5004
        %5006 = vrot.lane.b32.xlu0 %v4989, 1
        %v5007 = vpop.permute.xlu0 %5006
        %5008 = vrot.lane.b32.xlu0 %v4990, 1
        %v5009 = vpop.permute.xlu0 %5008
        %5010 = vrot.lane.b32.xlu0 %v4991, 1
        %v5011 = vpop.permute.xlu0 %5010
        %5016 = vst.msk [vmem:[#allocation2] sm:$0xff] %vm4818, %v5005
        %5017 = vst.msk [vmem:[#allocation2 + $0x28] sm:$0xff] %vm4818, %v5007
        %5018 = vst.msk [vmem:[#allocation2 + $0x50] sm:$0xff] %vm4818, %v5009
        %5019 = vst.msk [vmem:[#allocation2 + $0x78] sm:$0xff] %vm4818, %v5011
        %v5020 = vld [vmem:[#allocation2] sm:$0xff]
        %v5021 = vld [vmem:[#allocation2 + $0x28] sm:$0xff]
        %v5022 = vld [vmem:[#allocation2 + $0x50] sm:$0xff]
        %v5023 = vld [vmem:[#allocation2 + $0x78] sm:$0xff]
        %5024 = vst.msk [vmem:[#allocation3] sm:$0xff] %vm1737, %v5020
        %5025 = vst.msk [vmem:[#allocation3 + $0x28] sm:$0xff] %vm1737, %v5021
        %5026 = vst.msk [vmem:[#allocation3 + $0x50] sm:$0xff] %vm1737, %v5022
        %5027 = vst.msk [vmem:[#allocation3 + $0x78] sm:$0xff] %vm1737, %v5023
        %v5028 = vld [vmem:[#allocation2] sm:$0xff]
        %v5029 = vld [vmem:[#allocation2 + $0x28] sm:$0xff]
        %v5030 = vld [vmem:[#allocation2 + $0x50] sm:$0xff]
        %v5031 = vld [vmem:[#allocation2 + $0x78] sm:$0xff]
        %5036 = vrot.lane.b32.xlu0 %v5028, 127
        %v5037 = vpop.permute.xlu0 %5036
        %5038 = vrot.lane.b32.xlu0 %v5029, 127
        %v5039 = vpop.permute.xlu0 %5038
        %5040 = vrot.lane.b32.xlu0 %v5030, 127
        %v5041 = vpop.permute.xlu0 %5040
        %5042 = vrot.lane.b32.xlu0 %v5031, 127
        %v5043 = vpop.permute.xlu0 %5042
        %5048 = vst.msk [vmem:[#allocation3 + $0xa0] sm:$0xff] %vm1737, %v5037
        %5049 = vst.msk [vmem:[#allocation3 + $0xc8] sm:$0xff] %vm1737, %v5039
        %5050 = vst.msk [vmem:[#allocation3 + $0xf0] sm:$0xff] %vm1737, %v5041
        %5051 = vst.msk [vmem:[#allocation3 + $0x118] sm:$0xff] %vm1737, %v5043
        %v5052 = vld [vmem:[#allocation2] sm:$0xff]
        %v5053 = vld [vmem:[#allocation2 + $0x28] sm:$0xff]
        %v5054 = vld [vmem:[#allocation2 + $0x50] sm:$0xff]
        %v5055 = vld [vmem:[#allocation2 + $0x78] sm:$0xff]
        %5060 = vrot.lane.b32.xlu0 %v5052, 126
        %v5061 = vpop.permute.xlu0 %5060
        %5062 = vrot.lane.b32.xlu0 %v5053, 126
        %v5063 = vpop.permute.xlu0 %5062
        %5064 = vrot.lane.b32.xlu0 %v5054, 126
        %v5065 = vpop.permute.xlu0 %5064
        %5066 = vrot.lane.b32.xlu0 %v5055, 126
        %v5067 = vpop.permute.xlu0 %5066
        %5072 = vst.msk [vmem:[#allocation3 + $0x140] sm:$0xff] %vm1737, %v5061
        %5073 = vst.msk [vmem:[#allocation3 + $0x168] sm:$0xff] %vm1737, %v5063
        %5074 = vst.msk [vmem:[#allocation3 + $0x190] sm:$0xff] %vm1737, %v5065
        %5075 = vst.msk [vmem:[#allocation3 + $0x1b8] sm:$0xff] %vm1737, %v5067
        %v5076 = vld [vmem:[%s29] sm:$0xff]
        %v5077 = vld [vmem:[%s29 + $0x8] sm:$0xff]
        %v5078 = vld [vmem:[%s29 + $0x10] sm:$0xff]
        %v5079 = vld [vmem:[%s29 + $0x18] sm:$0xff]
        %v5080 = vld [vmem:[#allocation3] sm:$0xff]
        %v5081 = vld [vmem:[#allocation3 + $0x28] sm:$0xff]
        %v5082 = vld [vmem:[#allocation3 + $0x50] sm:$0xff]
        %v5083 = vld [vmem:[#allocation3 + $0x78] sm:$0xff]
        %v5084 = vld [vmem:[#allocation3 + $0xa0] sm:$0xff]
        %v5085 = vld [vmem:[#allocation3 + $0xc8] sm:$0xff]
        %v5086 = vld [vmem:[#allocation3 + $0xf0] sm:$0xff]
        %v5087 = vld [vmem:[#allocation3 + $0x118] sm:$0xff]
        %v5088 = vld [vmem:[#allocation3 + $0x140] sm:$0xff]
        %v5089 = vld [vmem:[#allocation3 + $0x168] sm:$0xff]
        %v5090 = vld [vmem:[#allocation3 + $0x190] sm:$0xff]
        %v5091 = vld [vmem:[#allocation3 + $0x1b8] sm:$0xff]
        %v5092 = vld [vmem:[%s57] sm:$0xff]
        %v5093 = vld [vmem:[%s57 + $0x8] sm:$0xff]
        %v5094 = vld [vmem:[%s57 + $0x10] sm:$0xff]
        %v5095 = vld [vmem:[%s57 + $0x18] sm:$0xff]
        %5097 = vset.pattern.permute.xlu0 0
        %5098 = vperm.xlu0 %5097, %v5092
        %v5099 = vpop.permute.xlu0 %5098
        %5102 = vset.pattern.permute.xlu0 0
        %5103 = vperm.xlu0 %5102, %v5093
        %v5104 = vpop.permute.xlu0 %5103
        %5107 = vset.pattern.permute.xlu0 0
        %5108 = vperm.xlu0 %5107, %v5094
        %v5109 = vpop.permute.xlu0 %5108
        %5112 = vset.pattern.permute.xlu0 0
        %5113 = vperm.xlu0 %5112, %v5095
        %v5114 = vpop.permute.xlu0 %5113
        %vm5116 = vcmask 785408
        %v5118 = vsel %vm5116, %v5076, 0
        %v5121 = vsel %vm5116, %v5077, 0
        %v5124 = vsel %vm5116, %v5078, 0
        %v5127 = vsel %vm5116, %v5079, 0
        %5129 = vmatprep.subr.mxu0 0.0
        %5130 = vmatpush1.msra.mxu0 %v5080
        %5131 = vmatprep.subr.mxu0 0.0
        %5132 = vmatpush1.msra.mxu0 %v5081
        %5133 = vmatprep.subr.mxu0 0.0
        %5134 = vmatpush1.msra.mxu0 %v5082
        %5135 = vmatprep.subr.mxu0 0.0
        %5136 = vmatpush1.msra.mxu0 %v5083
        %5137 = vmatprep.subr.mxu0 0.0
        %5138 = vmatpush1.msra.mxu0 %v5084
        %5139 = vmatprep.subr.mxu0 0.0
        %5140 = vmatpush1.msra.mxu0 %v5085
        %5141 = vmatprep.subr.mxu0 0.0
        %5142 = vmatpush1.msra.mxu0 %v5086
        %5143 = vmatprep.subr.mxu0 0.0
        %5144 = vmatpush1.msra.mxu0 %v5087
        %5145 = vmatprep.subr.mxu0 0.0
        %5146 = vmatpush1.msra.mxu0 %v5088
        %5147 = vmatprep.subr.mxu0 0.0
        %5148 = vmatpush1.msra.mxu0 %v5089
        %5149 = vmatprep.subr.mxu0 0.0
        %5150 = vmatpush1.msra.mxu0 %v5090
        %5151 = vmatprep.subr.mxu0 0.0
        %5152 = vmatpush1.msra.mxu0 %v5091
        %5153 = vmatprep.subr.mxu0 0.0
        %5154 = vmatpush1.msra.mxu0 0.0
        %5155 = vmatprep.subr.mxu0 0.0
        %5156 = vmatpush1.msra.mxu0 0.0
        %5157 = vmatprep.subr.mxu0 0.0
        %5158 = vmatpush1.msra.mxu0 0.0
        %5159 = vmatprep.subr.mxu0 0.0
        %5160 = vmatpush1.msra.mxu0 0.0
        %5161 = vmatprep.subr.mxu0 0.0
        %5162 = vmatpush1.msra.mxu0 0.0
        %5163 = vmatprep.subr.mxu0 0.0
        %5164 = vmatpush1.msra.mxu0 0.0
        %5165 = vmatprep.subr.mxu0 0.0
        %5166 = vmatpush1.msra.mxu0 0.0
        %5167 = vmatprep.subr.mxu0 0.0
        %5168 = vmatpush1.msra.mxu0 0.0
        %5169 = vmatprep.subr.mxu0 0.0
        %5170 = vmatpush1.msra.mxu0 0.0
        %5171 = vmatprep.subr.mxu0 0.0
        %5172 = vmatpush1.msra.mxu0 0.0
        %5173 = vmatprep.subr.mxu0 0.0
        %5174 = vmatpush1.msra.mxu0 0.0
        %5175 = vmatprep.subr.mxu0 0.0
        %5176 = vmatpush1.msra.mxu0 0.0
        %5177 = vmatprep.subr.mxu0 0.0
        %5178 = vmatpush1.msra.mxu0 0.0
        %5179 = vmatprep.subr.mxu0 0.0
        %5180 = vmatpush1.msra.mxu0 0.0
        %5181 = vmatprep.subr.mxu0 0.0
        %5182 = vmatpush1.msra.mxu0 0.0
        %5183 = vmatprep.subr.mxu0 0.0
        %5184 = vmatpush1.msra.mxu0 0.0
        %5185 = vmatprep.subr.mxu0 0.0
        %5186 = vmatpush1.msra.mxu0 0.0
        %5187 = vmatprep.subr.mxu0 0.0
        %5188 = vmatpush1.msra.mxu0 0.0
        %5189 = vmatprep.subr.mxu0 0.0
        %5190 = vmatpush1.msra.mxu0 0.0
        %5191 = vmatprep.subr.mxu0 0.0
        %5192 = vmatpush1.msra.mxu0 0.0
        %5193 = vmatprep.mubr.f32.mxu0 0.0
        %5194 = vmatmul.mubr.f32.gmra.mrb[0].mxu0 %v5118
        %v5195 = vpop.f32.mrb[0].mxu0
        %v5196 = vadd.f32 %v5099, %v5195
        %v5197 = vpop.f32.mrb[0].mxu0
        %5198 = vmatprep.mubr.f32.mxu0 0.0
        %5199 = vmatmul.mubr.f32.gmra.mrb[0].mxu0 %v5121
        %v5200 = vpop.f32.mrb[0].mxu0
        %v5201 = vadd.f32 %v5104, %v5200
        %v5202 = vpop.f32.mrb[0].mxu0
        %5203 = vmatprep.mubr.f32.mxu0 0.0
        %5204 = vmatmul.mubr.f32.gmra.mrb[0].mxu0 %v5124
        %v5205 = vpop.f32.mrb[0].mxu0
        %v5206 = vadd.f32 %v5109, %v5205
        %v5207 = vpop.f32.mrb[0].mxu0
        %5208 = vmatprep.mubr.f32.mxu0 0.0
        %5209 = vmatmul.mubr.f32.gmra.mrb[0].mxu0 %v5127
        %v5210 = vpop.f32.mrb[0].mxu0
        %v5211 = vadd.f32 %v5114, %v5210
        %v5212 = vpop.f32.mrb[0].mxu0
        %5213 = vdwg.mxu0
        %5214 = vst.msk [vmem:[%s1059] sm:$0xff] %vm1737, %v5196
        %5215 = vst.msk [vmem:[%s1059 + $0x8] sm:$0xff] %vm1737, %v5201
        %5216 = vst.msk [vmem:[%s1059 + $0x10] sm:$0xff] %vm1737, %v5206
        %5217 = vst.msk [vmem:[%s1059 + $0x18] sm:$0xff] %vm1737, %v5211
        %p5218 = scmp.lt.s32.totalorder %s86, 1
        %s5219 = scalar_select %p5218, %s86, 1
        %s5220 = smul.addr %s5219, 4
        %s5221 = smul.addr %s5220, 8
        %s5222 = scalar_lea.vmem %s59, %s5221
        %p5223 = scmp.lt.s32.totalorder %s86, 1
        %s5224 = scalar_select %p5223, %s86, 1
        %s5225 = smul.addr %s5224, 2
        %s5226 = smul.addr %s5225, 8
        %s5227 = scalar_lea.vmem %s61, %s5226
        %s5228 = sand.u32 %s760, 1
        %s5229 = scalar_lea.sflag [#allocation6], %s5228
        %s5230 = sand.u32 %s760, 1
        %s5231 = smul.addr %s5230, 16
        %s5232 = scalar_lea.vmem [#allocation7], %s5231
        %s5233 = sand.u32 %s86, 1
        %s5234 = scalar_lea.sflag [#allocation9], %s5233
        %s5235 = sand.u32 %s786, 1
        %s5236 = smul.addr %s5235, 16
        %s5237 = scalar_lea.vmem [#allocation8], %s5236
        %s5238 = sand.u32 %s86, 1
        %s5239 = scalar_lea.sflag [#allocation9], %s5238
        %s5240 = sand.u32 %s812, 1
        %s5241 = smul.addr %s5240, 40
        %s5242 = scalar_lea.vmem [#allocation10], %s5241
        // Predicated region
        $region141: #{tpu_custom_call.1} parent=135 // pred_check
          %p5243 = pneg %p718
        $region142: #{tpu_custom_call.1} parent=135 // pred_check_branch
          %5245 = sbr.rel (%p5243) target = $region144
        $region143: #{tpu_custom_call.1} parent=135 // pred_region
          _
        $region144: #{tpu_custom_call.1} parent=135 // pred_fallthru
          _
        // Predicated region
        $region145: #{tpu_custom_call.1} parent=135 // pred_check
          %p5246 = pneg %p744
        $region146: #{tpu_custom_call.1} parent=135 // pred_check_branch
          %5248 = sbr.rel (%p5246) target = $region148
        $region147: #{tpu_custom_call.1} parent=135 // pred_region
          _
        $region148: #{tpu_custom_call.1} parent=135 // pred_fallthru
          _
        // Predicated region
        $region149: #{tpu_custom_call.1} parent=135 // pred_check
          %p5249 = pneg %p770
        $region150: #{tpu_custom_call.1} parent=135 // pred_check_branch
          %5251 = sbr.rel (%p5249) target = $region152
        $region151: #{tpu_custom_call.1} parent=135 // pred_region
          %s5253 = ssub.s32 256, 256
          %5254 = vsyncadd %s5229, %s5253
          %s5255 = smul.addr %s86, 2
          %s5256 = smul.addr %s5255, 128
          %s5257 = scalar_lea.hbm %s63, %s5256
          %s5258 = sshll.u32 %s5232, 4
          %s5259 = int_to_ptr.vmem [resolvable:$true] %s5258
          %5264 = dma.vmem_to_hbm [thread:$0]  %s5259, 256, %s5257, %s5229, 128, 128, 8
        $region152: #{tpu_custom_call.1} parent=135 // pred_fallthru
          _
        // Predicated region
        $region153: #{tpu_custom_call.1} parent=135 // pred_check
          %p5265 = pneg %p796
        $region154: #{tpu_custom_call.1} parent=135 // pred_check_branch
          %5267 = sbr.rel (%p5265) target = $region156
        $region155: #{tpu_custom_call.1} parent=135 // pred_region
          %s5269 = ssub.s32 256, 256
          %5270 = vsyncadd %s5234, %s5269
          %s5271 = smul.addr %s86, 2
          %s5272 = smul.addr %s5271, 128
          %s5273 = scalar_lea.hbm %s65, %s5272
          %s5275 = sshll.u32 %s5237, 4
          %s5276 = int_to_ptr.vmem [resolvable:$true] %s5275
          %5278 = dma.vmem_to_hbm [thread:$0]  %s5276, 256, %s5273, %s5234
        $region156: #{tpu_custom_call.1} parent=135 // pred_fallthru
          _
        // Predicated region
        $region157: #{tpu_custom_call.1} parent=135 // pred_check
          %p5279 = pneg %p822
        $region158: #{tpu_custom_call.1} parent=135 // pred_check_branch
          %5281 = sbr.rel (%p5279) target = $region160
        $region159: #{tpu_custom_call.1} parent=135 // pred_region
          %s5283 = ssub.s32 640, 640
          %5284 = vsyncadd %s5239, %s5283
          %s5285 = smul.addr %s86, 5
          %s5286 = smul.addr %s5285, 128
          %s5287 = scalar_lea.hbm %s67, %s5286
          %s5289 = sshll.u32 %s5242, 4
          %s5290 = int_to_ptr.vmem [resolvable:$true] %s5289
          %5292 = dma.vmem_to_hbm [thread:$0]  %s5290, 640, %s5287, %s5239
        $region160: #{tpu_custom_call.1} parent=135 // pred_fallthru
          _
      $region136: #{tpu_custom_call.1} parent=5 // pred_fallthru
        _
      %p5293 = scmp.le.s32.totalorder 2, %s81
      // Predicated region
      $region161: #{tpu_custom_call.1} parent=5 // pred_check
        %p5294 = pneg %p5293
      $region162: #{tpu_custom_call.1} parent=5 // pred_check_branch
        %5296 = sbr.rel (%p5294) target = $region164
      $region163: #{tpu_custom_call.1} parent=5 // pred_region
        %s5297 = ssub.s32 %s81, 2
        // Predicated region
        $region165: #{tpu_custom_call.1} parent=163 // pred_check
          %p5298 = pneg %p724
        $region166: #{tpu_custom_call.1} parent=163 // pred_check_branch
          %5300 = sbr.rel (%p5298) target = $region168
        $region167: #{tpu_custom_call.1} parent=163 // pred_region
          %p5301 = scmp.lt.s32.totalorder %s87, 1
          %s5302 = scalar_select %p5301, %s87, 1
          %s5303 = smul.addr %s5302, 4
          %s5304 = smul.addr %s5303, 8
          %s5305 = scalar_lea.vmem %s59, %s5304
        $region168: #{tpu_custom_call.1} parent=163 // pred_fallthru
          _
        // Predicated region
        $region169: #{tpu_custom_call.1} parent=163 // pred_check
          %p5306 = pneg %p750
        $region170: #{tpu_custom_call.1} parent=163 // pred_check_branch
          %5308 = sbr.rel (%p5306) target = $region172
        $region171: #{tpu_custom_call.1} parent=163 // pred_region
          %p5309 = scmp.lt.s32.totalorder %s87, 1
          %s5310 = scalar_select %p5309, %s87, 1
          %s5311 = smul.addr %s5310, 2
          %s5312 = smul.addr %s5311, 8
          %s5313 = scalar_lea.vmem %s61, %s5312
        $region172: #{tpu_custom_call.1} parent=163 // pred_fallthru
          _
        // Predicated region
        $region173: #{tpu_custom_call.1} parent=163 // pred_check
          %p5314 = pneg %p776
        $region174: #{tpu_custom_call.1} parent=163 // pred_check_branch
          %5316 = sbr.rel (%p5314) target = $region176
        $region175: #{tpu_custom_call.1} parent=163 // pred_region
          %s5317 = sand.u32 %s761, 1
          %s5318 = scalar_lea.sflag [#allocation6], %s5317
          %s5319 = sand.u32 %s761, 1
          %s5320 = smul.addr %s5319, 16
          %s5321 = scalar_lea.vmem [#allocation7], %s5320
          %5322 = dma.done %s5318, 256
        $region176: #{tpu_custom_call.1} parent=163 // pred_fallthru
          _
        // Predicated region
        $region177: #{tpu_custom_call.1} parent=163 // pred_check
          %p5323 = pneg %p802
        $region178: #{tpu_custom_call.1} parent=163 // pred_check_branch
          %5325 = sbr.rel (%p5323) target = $region180
        $region179: #{tpu_custom_call.1} parent=163 // pred_region
          %s5326 = sand.u32 %s87, 1
          %s5327 = scalar_lea.sflag [#allocation9], %s5326
          %s5328 = sand.u32 %s787, 1
          %s5329 = smul.addr %s5328, 16
          %s5330 = scalar_lea.vmem [#allocation8], %s5329
          %5331 = dma.done %s5327, 256
        $region180: #{tpu_custom_call.1} parent=163 // pred_fallthru
          _
        // Predicated region
        $region181: #{tpu_custom_call.1} parent=163 // pred_check
          %p5332 = pneg %p828
        $region182: #{tpu_custom_call.1} parent=163 // pred_check_branch
          %5334 = sbr.rel (%p5332) target = $region184
        $region183: #{tpu_custom_call.1} parent=163 // pred_region
          %s5335 = sand.u32 %s87, 1
          %s5336 = scalar_lea.sflag [#allocation9], %s5335
          %s5337 = sand.u32 %s813, 1
          %s5338 = smul.addr %s5337, 40
          %s5339 = scalar_lea.vmem [#allocation10], %s5338
          %5340 = dma.done %s5336, 640
        $region184: #{tpu_custom_call.1} parent=163 // pred_fallthru
          _
      $region164: #{tpu_custom_call.1} parent=5 // pred_fallthru
        _
    $region6: #{tpu_custom_call.1} parent=1 // loop_footer
      %s85 = sadd.s32 1, %s81
    $region7: #{tpu_custom_call.1} parent=1 // loop_footer_branch
      %80 = sbr.rel target = $region3
    $region8: #{tpu_custom_call.1} parent=1 // loop_exit
      _
    %5341 = vsyncpa [#allocation5], 1
    %s5342 = scalar_lea.sflag [#allocation5], 1
    %5343 = vsyncpa %s5342, 1
    %5344 = vsyncpa [#allocation6], 1
    %s5345 = scalar_lea.sflag [#allocation6], 1
    %5346 = vsyncpa %s5345, 1
    %5347 = vsyncpa [#allocation9], 1
    %s5348 = scalar_lea.sflag [#allocation9], 1
    %5349 = vsyncpa %s5348, 1

</llo_original>
